<compile_context>
chip_gen: v5e
topology: v5e:2x2
jax: 0.10.0
libtpu: 0.0.40
codegen_flags: <defaults>
</compile_context>

<pallas_src>
import math
import functools

import jax
import jax.numpy as jnp
from jax.experimental import pallas as pl
from jax.experimental.pallas import tpu as pltpu


# ----------------------------------------------------------------------------
# small helpers
# ----------------------------------------------------------------------------

def _cparams(n_grid_axes=1):
    # row/batch grid axes are embarrassingly parallel -> let megacore split them;
    # explicit (conservative) VMEM budget so the same tiles fit v5e/v6e/v7x.
    return pltpu.CompilerParams(
        dimension_semantics=("parallel",) * n_grid_axes,
        vmem_limit_bytes=32 * 1024 * 1024,
    )


def _row_tile(n, target=256):
    """Largest row tile <= target that divides n (full array if it already fits)."""
    if n <= target:
        return n
    for t in (256, 128, 64, 32, 16, 8):
        if t <= target and n % t == 0:
            return t
    return n


def _layernorm(x, g, b, eps):
    mu = jnp.mean(x, axis=-1, keepdims=True)
    xc = x - mu
    var = jnp.mean(xc * xc, axis=-1, keepdims=True)
    return xc * jax.lax.rsqrt(var + eps) * g + b


# ----------------------------------------------------------------------------
# Pallas kernels
# ----------------------------------------------------------------------------

def _ln_kernel(x_ref, g_ref, b_ref, o_ref, *, eps):
    o_ref[...] = _layernorm(x_ref[...], g_ref[...], b_ref[...], eps)


def pallas_layer_norm(x, ln, *, eps):
    shape = x.shape
    D = shape[-1]
    x2 = x.reshape(-1, D).astype(jnp.float32)
    N = x2.shape[0]
    TM = _row_tile(N)
    out = pl.pallas_call(
        functools.partial(_ln_kernel, eps=eps),
        grid=(N // TM,),
        in_specs=[
            pl.BlockSpec((TM, D), lambda i: (i, 0)),
            pl.BlockSpec((1, D), lambda i: (0, 0)),
            pl.BlockSpec((1, D), lambda i: (0, 0)),
        ],
        out_specs=pl.BlockSpec((TM, D), lambda i: (i, 0)),
        out_shape=jax.ShapeDtypeStruct((N, D), jnp.float32),
        compiler_params=_cparams(1),
    )(x2, ln["g"], ln["b"])
    return out.reshape(shape)


def _ln_qkv_kernel(x_ref, pos_ref, g_ref, b_ref, wqk_ref, bqk_ref, wv_ref, bv_ref,
                   qk_ref, v_ref, *, eps):
    # fused pre-LayerNorm + packed [Q|K] projection (pos added, q-scale folded into Wq) + V proj.
    x = x_ref[...]
    ln = _layernorm(x, g_ref[...], b_ref[...], eps)
    lnp = (ln + pos_ref[...]).astype(jnp.bfloat16)
    qk = jnp.dot(lnp, wqk_ref[...], preferred_element_type=jnp.float32) + bqk_ref[...]
    v = jnp.dot(ln.astype(jnp.bfloat16), wv_ref[...],
                preferred_element_type=jnp.float32) + bv_ref[...]
    qk_ref[...] = qk.astype(qk_ref.dtype)
    v_ref[...] = v.astype(v_ref.dtype)


def pallas_ln_qkv(x2, pos2, ln, mha, *, eps=1e-5):
    N, D = x2.shape
    TM = _row_tile(N)
    return pl.pallas_call(
        functools.partial(_ln_qkv_kernel, eps=eps),
        grid=(N // TM,),
        in_specs=[
            pl.BlockSpec((TM, D), lambda i: (i, 0)),        # x
            pl.BlockSpec((TM, D), lambda i: (i, 0)),        # pos
            pl.BlockSpec((1, D), lambda i: (0, 0)),         # gamma
            pl.BlockSpec((1, D), lambda i: (0, 0)),         # beta
            pl.BlockSpec((D, 2 * D), lambda i: (0, 0)),     # Wqk (bf16, q pre-scaled)
            pl.BlockSpec((1, 2 * D), lambda i: (0, 0)),     # bqk
            pl.BlockSpec((D, D), lambda i: (0, 0)),         # Wv (bf16)
            pl.BlockSpec((1, D), lambda i: (0, 0)),         # bv
        ],
        out_specs=(
            pl.BlockSpec((TM, 2 * D), lambda i: (i, 0)),
            pl.BlockSpec((TM, D), lambda i: (i, 0)),
        ),
        out_shape=(
            jax.ShapeDtypeStruct((N, 2 * D), jnp.bfloat16),
            jax.ShapeDtypeStruct((N, D), jnp.bfloat16),
        ),
        compiler_params=_cparams(1),
    )(x2, pos2, ln["g"], ln["b"], mha["wqk"], mha["bqk"], mha["wv"], mha["bv"])


def _ln_q_kernel(x_ref, pos_ref, g_ref, b_ref, wq_ref, bq_ref, q_ref, *, eps):
    x = x_ref[...]
    ln = _layernorm(x, g_ref[...], b_ref[...], eps)
    lnp = (ln + pos_ref[...]).astype(jnp.bfloat16)
    q = jnp.dot(lnp, wq_ref[...], preferred_element_type=jnp.float32) + bq_ref[...]
    q_ref[...] = q.astype(q_ref.dtype)


def pallas_ln_q(x2, pos2, ln, mha, *, eps=1e-5):
    N, D = x2.shape
    TM = _row_tile(N)
    return pl.pallas_call(
        functools.partial(_ln_q_kernel, eps=eps),
        grid=(N // TM,),
        in_specs=[
            pl.BlockSpec((TM, D), lambda i: (i, 0)),
            pl.BlockSpec((TM, D), lambda i: (i, 0)),
            pl.BlockSpec((1, D), lambda i: (0, 0)),
            pl.BlockSpec((1, D), lambda i: (0, 0)),
            pl.BlockSpec((D, D), lambda i: (0, 0)),
            pl.BlockSpec((1, D), lambda i: (0, 0)),
        ],
        out_specs=pl.BlockSpec((TM, D), lambda i: (i, 0)),
        out_shape=jax.ShapeDtypeStruct((N, D), jnp.bfloat16),
        compiler_params=_cparams(1),
    )(x2, pos2, ln["g"], ln["b"], mha["wq"], mha["bq"])


def _kv_kernel(m_ref, pos_ref, wk_ref, bk_ref, wv_ref, bv_ref, k_ref, v_ref):
    m = m_ref[...]
    mp = (m + pos_ref[...]).astype(jnp.bfloat16)
    k = jnp.dot(mp, wk_ref[...], preferred_element_type=jnp.float32) + bk_ref[...]
    v = jnp.dot(m.astype(jnp.bfloat16), wv_ref[...],
                preferred_element_type=jnp.float32) + bv_ref[...]
    k_ref[...] = k.astype(k_ref.dtype)
    v_ref[...] = v.astype(v_ref.dtype)


def pallas_kv(mem2, pos2, mha):
    N, D = mem2.shape
    TM = _row_tile(N)
    return pl.pallas_call(
        _kv_kernel,
        grid=(N // TM,),
        in_specs=[
            pl.BlockSpec((TM, D), lambda i: (i, 0)),
            pl.BlockSpec((TM, D), lambda i: (i, 0)),
            pl.BlockSpec((D, D), lambda i: (0, 0)),
            pl.BlockSpec((1, D), lambda i: (0, 0)),
            pl.BlockSpec((D, D), lambda i: (0, 0)),
            pl.BlockSpec((1, D), lambda i: (0, 0)),
        ],
        out_specs=(
            pl.BlockSpec((TM, D), lambda i: (i, 0)),
            pl.BlockSpec((TM, D), lambda i: (i, 0)),
        ),
        out_shape=(
            jax.ShapeDtypeStruct((N, D), jnp.bfloat16),
            jax.ShapeDtypeStruct((N, D), jnp.bfloat16),
        ),
        compiler_params=_cparams(1),
    )(mem2, pos2, mha["wk"], mha["bk"], mha["wv"], mha["bv"])


def _attention_body(get_q, get_k, get_v, kpm_row, res, wo_ref, bo, o_ref, *, nhead, causal):
    # one batch element, all heads; fused output projection + residual add.
    Lq = res.shape[0]
    Lk = kpm_row.shape[-1]
    if causal:
        row = jax.lax.broadcasted_iota(jnp.int32, (Lq, Lk), 0)
        col = jax.lax.broadcasted_iota(jnp.int32, (Lq, Lk), 1)
        keep = col <= row
    acc = None
    for h in range(nhead):
        qh = get_q(h)                         # (Lq, Dh) bf16 (q already scaled)
        kh = get_k(h)                         # (Lk, Dh) bf16
        vh = get_v(h)                         # (Lk, Dh) bf16
        s = jax.lax.dot_general(qh, kh, (((1,), (1,)), ((), ())),
                                preferred_element_type=jnp.float32)
        s = s + kpm_row                       # additive key-padding bias (0 / -1e9)
        if causal:
            s = jnp.where(keep, s, jnp.float32(-1e9))
        m = jnp.max(s, axis=-1, keepdims=True)
        p = jnp.exp(s - m)
        denom = jnp.sum(p, axis=-1, keepdims=True)
        attn = (p * pl.reciprocal(denom, approx=True)).astype(vh.dtype)
        oh = jnp.dot(attn, vh, preferred_element_type=jnp.float32)          # (Lq, Dh)
        part = jnp.dot(oh.astype(wo_ref.dtype), wo_ref[h],
                       preferred_element_type=jnp.float32)                   # (Lq, D)
        acc = part if acc is None else acc + part
    o_ref[0] = res + acc + bo


def _self_attn_kernel(qk_ref, v_ref, kpm_ref, res_ref, wo_ref, bo_ref, o_ref,
                      *, nhead, causal):
    D = v_ref.shape[-1]
    dh = D // nhead
    _attention_body(
        lambda h: qk_ref[0, :, h * dh:(h + 1) * dh],
        lambda h: qk_ref[0, :, D + h * dh:D + (h + 1) * dh],
        lambda h: v_ref[0, :, h * dh:(h + 1) * dh],
        kpm_ref[0], res_ref[0], wo_ref, bo_ref[...], o_ref,
        nhead=nhead, causal=causal)


def _cross_attn_kernel(q_ref, k_ref, v_ref, kpm_ref, res_ref, wo_ref, bo_ref, o_ref,
                       *, nhead):
    D = q_ref.shape[-1]
    dh = D // nhead
    _attention_body(
        lambda h: q_ref[0, :, h * dh:(h + 1) * dh],
        lambda h: k_ref[0, :, h * dh:(h + 1) * dh],
        lambda h: v_ref[0, :, h * dh:(h + 1) * dh],
        kpm_ref[0], res_ref[0], wo_ref, bo_ref[...], o_ref,
        nhead=nhead, causal=False)


def pallas_self_attention(qk, v, kpm, res, wo, bo, *, nhead, causal):
    B, Lq, D = res.shape
    Lk = v.shape[1]
    dh = D // nhead
    return pl.pallas_call(
        functools.partial(_self_attn_kernel, nhead=nhead, causal=causal),
        grid=(B,),
        in_specs=[
            pl.BlockSpec((1, Lq, 2 * D), lambda b: (b, 0, 0)),   # packed [q|k]
            pl.BlockSpec((1, Lk, D), lambda b: (b, 0, 0)),       # v
            pl.BlockSpec((1, 1, Lk), lambda b: (b, 0, 0)),       # key-padding bias
            pl.BlockSpec((1, Lq, D), lambda b: (b, 0, 0)),       # residual
            pl.BlockSpec((nhead, dh, D), lambda b: (0, 0, 0)),   # Wo split per head row-block
            pl.BlockSpec((1, D), lambda b: (0, 0)),              # bo
        ],
        out_specs=pl.BlockSpec((1, Lq, D), lambda b: (b, 0, 0)),
        out_shape=jax.ShapeDtypeStruct((B, Lq, D), jnp.float32),
        compiler_params=_cparams(1),
    )(qk, v, kpm, res, wo, bo)


def pallas_cross_attention(q, k, v, kpm, res, wo, bo, *, nhead):
    B, Lq, D = res.shape
    Lk = k.shape[1]
    dh = D // nhead
    return pl.pallas_call(
        functools.partial(_cross_attn_kernel, nhead=nhead),
        grid=(B,),
        in_specs=[
            pl.BlockSpec((1, Lq, D), lambda b: (b, 0, 0)),
            pl.BlockSpec((1, Lk, D), lambda b: (b, 0, 0)),
            pl.BlockSpec((1, Lk, D), lambda b: (b, 0, 0)),
            pl.BlockSpec((1, 1, Lk), lambda b: (b, 0, 0)),
            pl.BlockSpec((1, Lq, D), lambda b: (b, 0, 0)),
            pl.BlockSpec((nhead, dh, D), lambda b: (0, 0, 0)),
            pl.BlockSpec((1, D), lambda b: (0, 0)),
        ],
        out_specs=pl.BlockSpec((1, Lq, D), lambda b: (b, 0, 0)),
        out_shape=jax.ShapeDtypeStruct((B, Lq, D), jnp.float32),
        compiler_params=_cparams(1),
    )(q, k, v, kpm, res, wo, bo)


def _ln_ffn_kernel(x_ref, g_ref, b_ref, w1_ref, b1_ref, w2_ref, b2_ref, o_ref, *, eps):
    # fused pre-LayerNorm + linear1 + relu + linear2 + residual add.
    x = x_ref[...]
    ln = _layernorm(x, g_ref[...], b_ref[...], eps)
    h = jnp.dot(ln.astype(jnp.bfloat16), w1_ref[...],
                preferred_element_type=jnp.float32) + b1_ref[...]
    h = jnp.maximum(h, 0.0)
    y = jnp.dot(h.astype(jnp.bfloat16), w2_ref[...],
                preferred_element_type=jnp.float32) + b2_ref[...]
    o_ref[...] = x + y


def pallas_ln_ffn(x, ln, w1, b1, w2, b2, *, eps):
    B, L, D = x.shape
    F = w1.shape[1]
    x2 = x.reshape(B * L, D)
    N = x2.shape[0]
    TM = _row_tile(N)
    out = pl.pallas_call(
        functools.partial(_ln_ffn_kernel, eps=eps),
        grid=(N // TM,),
        in_specs=[
            pl.BlockSpec((TM, D), lambda i: (i, 0)),
            pl.BlockSpec((1, D), lambda i: (0, 0)),
            pl.BlockSpec((1, D), lambda i: (0, 0)),
            pl.BlockSpec((D, F), lambda i: (0, 0)),
            pl.BlockSpec((1, F), lambda i: (0, 0)),
            pl.BlockSpec((F, D), lambda i: (0, 0)),
            pl.BlockSpec((1, D), lambda i: (0, 0)),
        ],
        out_specs=pl.BlockSpec((TM, D), lambda i: (i, 0)),
        out_shape=jax.ShapeDtypeStruct((N, D), jnp.float32),
        compiler_params=_cparams(1),
    )(x2, ln["g"], ln["b"], w1, b1, w2, b2)
    return out.reshape(B, L, D)


# ----------------------------------------------------------------------------
# model glue (plain JAX reshapes only; all math in the Pallas kernels)
# ----------------------------------------------------------------------------

def self_attention_block(mha, ln, x_bld, pos_bld, kpm, *, nhead, causal):
    B, L, D = x_bld.shape
    qk, v = pallas_ln_qkv(x_bld.reshape(B * L, D), pos_bld.reshape(B * L, D), ln, mha)
    return pallas_self_attention(qk.reshape(B, L, 2 * D), v.reshape(B, L, D),
                                 kpm, x_bld, mha["wo"], mha["bo"],
                                 nhead=nhead, causal=causal)


def cross_attention_block(mha, ln, tgt_bld, mem_bld, pos_bld, qpos_bld, kpm, *, nhead):
    B, Lt, D = tgt_bld.shape
    Lm = mem_bld.shape[1]
    q = pallas_ln_q(tgt_bld.reshape(B * Lt, D), qpos_bld.reshape(B * Lt, D), ln, mha)
    k, v = pallas_kv(mem_bld.reshape(B * Lm, D), pos_bld.reshape(B * Lm, D), mha)
    return pallas_cross_attention(q.reshape(B, Lt, D), k.reshape(B, Lm, D),
                                  v.reshape(B, Lm, D), kpm, tgt_bld,
                                  mha["wo"], mha["bo"], nhead=nhead)


def encoder_layer(p, src, pos, kpm, *, nhead):
    src = self_attention_block(p["sa"], p["ln1"], src, pos, kpm, nhead=nhead, causal=False)
    src = pallas_ln_ffn(src, p["ln2"], p["w1"], p["b1"], p["w2"], p["b2"], eps=1e-5)
    return src


def decoder_layer(p, tgt, memory, pos, query_pos, tgt_kpm, mem_kpm, *, nhead):
    tgt = self_attention_block(p["sa"], p["ln1"], tgt, query_pos, tgt_kpm,
                               nhead=nhead, causal=True)
    tgt = cross_attention_block(p["ca"], p["ln2"], tgt, memory, pos, query_pos,
                                mem_kpm, nhead=nhead)
    tgt = pallas_ln_ffn(tgt, p["ln3"], p["w1"], p["b1"], p["w2"], p["b2"], eps=1e-5)
    return tgt


def decoder_embeddings(emb, tokens, *, layer_norm_eps=1e-12):
    # TODO(synk): embedding gather has no clean dense-Pallas equivalent; done with jnp.take (XLA).
    B, L = tokens.shape
    we = jnp.take(emb["word"], tokens, axis=0)            # (B, L, D)
    pe = emb["pos"][None, :L, :]
    x = (we + pe).astype(jnp.float32)
    return pallas_layer_norm(x, emb["ln"], eps=layer_norm_eps)   # dropout -> identity (eval)


def transformer_forward(params, src, mask, pos_embed, tgt, tgt_pad_mask, *, nhead):
    bs, c, h, w = src.shape
    hw = h * w
    # (B, C, H, W) -> (B, HW, C)
    src_bld = src.reshape(bs, c, hw).transpose(0, 2, 1).astype(jnp.float32)
    pos_bld = pos_embed.reshape(bs, c, hw).transpose(0, 2, 1).astype(jnp.float32)
    mem_kpm = jnp.where(mask.reshape(bs, 1, hw), jnp.float32(-1e9), jnp.float32(0.0))

    # decoder embeddings: (B, Lt, D)
    tgt_bld = decoder_embeddings(params["emb"], tgt)
    Lt = tgt_bld.shape[1]
    query_pos = jnp.broadcast_to(params["emb"]["pos"][None, :, :], (bs, Lt, c))
    tgt_kpm = jnp.where(tgt_pad_mask.reshape(bs, 1, Lt), jnp.float32(-1e9), jnp.float32(0.0))

    # encoder (normalize_before=True -> pre-norm layers + final norm)
    memory = src_bld
    for lp in params["enc"]["layers"]:
        memory = encoder_layer(lp, memory, pos_bld, mem_kpm, nhead=nhead)
    memory = pallas_layer_norm(memory, params["enc"]["norm"], eps=1e-5)

    # decoder (causal mask generated inside the attention kernel)
    out = tgt_bld
    for lp in params["dec"]["layers"]:
        out = decoder_layer(lp, out, memory, pos_bld, query_pos, tgt_kpm, mem_kpm, nhead=nhead)
    out = pallas_layer_norm(out, params["dec"]["norm"], eps=1e-5)
    return out.transpose(1, 0, 2)      # (Lt, B, D), return_intermediate_dec=False


# ----------------------------------------------------------------------------
# deterministic parameter init (weights pre-transposed / packed / bf16)
# ----------------------------------------------------------------------------

def _xavier(key, shape):
    fan_out, fan_in = shape[0], shape[1]          # PyTorch (out, in) convention
    limit = math.sqrt(6.0 / (fan_in + fan_out))
    return jax.random.uniform(key, shape, jnp.float32, -limit, limit)


def _init_ln(d):
    return {"g": jnp.ones((1, d), jnp.float32), "b": jnp.zeros((1, d), jnp.float32)}


def _init_mha(key, d, nhead, *, packed_qk):
    k_in, k_out = jax.random.split(key)
    w_in = _xavier(k_in, (3 * d, d))              # torch in_proj_weight (3D, D)
    wq_t = jnp.transpose(w_in[:d])                # (Din, Dout)
    wk_t = jnp.transpose(w_in[d:2 * d])
    wv_t = jnp.transpose(w_in[2 * d:])
    dh = d // nhead
    scale = 1.0 / math.sqrt(dh)
    wo_t = jnp.transpose(_xavier(k_out, (d, d)))
    p = {
        "wv": wv_t.astype(jnp.bfloat16),
        "bv": jnp.zeros((1, d), jnp.float32),
        "wo": wo_t.reshape(nhead, dh, d).astype(jnp.bfloat16),  # per-head input-row blocks
        "bo": jnp.zeros((1, d), jnp.float32),
    }
    if packed_qk:
        p["wqk"] = jnp.concatenate([wq_t * scale, wk_t], axis=1).astype(jnp.bfloat16)
        p["bqk"] = jnp.zeros((1, 2 * d), jnp.float32)
    else:
        p["wq"] = (wq_t * scale).astype(jnp.bfloat16)
        p["bq"] = jnp.zeros((1, d), jnp.float32)
        p["wk"] = wk_t.astype(jnp.bfloat16)
        p["bk"] = jnp.zeros((1, d), jnp.float32)
    return p


def _init_enc_layer(key, d, ff, nhead):
    k = jax.random.split(key, 3)
    return {
        "sa": _init_mha(k[0], d, nhead, packed_qk=True),
        "w1": jnp.transpose(_xavier(k[1], (ff, d))).astype(jnp.bfloat16),
        "b1": jnp.zeros((1, ff), jnp.float32),
        "w2": jnp.transpose(_xavier(k[2], (d, ff))).astype(jnp.bfloat16),
        "b2": jnp.zeros((1, d), jnp.float32),
        "ln1": _init_ln(d), "ln2": _init_ln(d),
    }


def _init_dec_layer(key, d, ff, nhead):
    k = jax.random.split(key, 4)
    return {
        "sa": _init_mha(k[0], d, nhead, packed_qk=True),
        "ca": _init_mha(k[1], d, nhead, packed_qk=False),
        "w1": jnp.transpose(_xavier(k[2], (ff, d))).astype(jnp.bfloat16),
        "b1": jnp.zeros((1, ff), jnp.float32),
        "w2": jnp.transpose(_xavier(k[3], (d, ff))).astype(jnp.bfloat16),
        "b2": jnp.zeros((1, d), jnp.float32),
        "ln1": _init_ln(d), "ln2": _init_ln(d), "ln3": _init_ln(d),
    }


def init_params(key, *, d_model, nhead, dim_ff, n_enc, n_dec, vocab, max_pos):
    keys = jax.random.split(key, n_enc + n_dec + 1)
    enc = {"layers": [_init_enc_layer(keys[i], d_model, dim_ff, nhead) for i in range(n_enc)],
           "norm": _init_ln(d_model)}
    dec = {"layers": [_init_dec_layer(keys[n_enc + i], d_model, dim_ff, nhead) for i in range(n_dec)],
           "norm": _init_ln(d_model)}
    ek = jax.random.split(keys[-1], 2)
    emb = {"word": _xavier(ek[0], (vocab, d_model)),
           "pos": _xavier(ek[1], (max_pos, d_model)),
           "ln": _init_ln(d_model)}
    return {"enc": enc, "dec": dec, "emb": emb}


# ----------------------------------------------------------------------------
# main
# ----------------------------------------------------------------------------

if __name__ == "__main__":
    # Small, module-consistent shapes.
    bs, d_model, h, w = 2, 32, 4, 4
    nhead, dim_ff = 4, 64
    n_enc, n_dec = 2, 2
    vocab, max_pos = 50, 8          # target sequence length == max_position_embeddings

    root = jax.random.PRNGKey(0)
    kp, k1, k2, k3 = jax.random.split(root, 4)

    params = init_params(kp, d_model=d_model, nhead=nhead, dim_ff=dim_ff,
                         n_enc=n_enc, n_dec=n_dec, vocab=vocab, max_pos=max_pos)

    src = jax.random.normal(k1, (bs, d_model, h, w), jnp.float32)        # NCHW features
    mask = jnp.zeros((bs, h, w), dtype=bool)                             # key padding mask (no pads)
    pos_embed = jax.random.normal(k2, (bs, d_model, h, w), jnp.float32)  # positional encodings
    tgt = jax.random.randint(k3, (bs, max_pos), 0, vocab, jnp.int32)     # target token ids
    tgt_kpm = jnp.zeros((bs, max_pos), dtype=bool)                       # tgt key padding mask

    # TODO(synk): dropout layers are stochastic; implemented as identity (eval mode).
    fwd = jax.jit(functools.partial(transformer_forward, nhead=nhead))
    hs = jax.block_until_ready(fwd(params, src, mask, pos_embed, tgt, tgt_kpm))
    assert hs.shape == (max_pos, bs, d_model)
    assert bool(jnp.all(jnp.isfinite(hs)))
    print("KERNEL_OK")
</pallas_src>

<mosaic_0001>
module attributes {stable_mosaic.version = 11 : i64} {
  func.func @_ln_kernel(%arg0: i32, %arg1: memref<16x32xf32, #tpu.memory_space<vmem>>, %arg2: memref<1x32xf32, #tpu.memory_space<vmem>>, %arg3: memref<1x32xf32, #tpu.memory_space<vmem>>, %arg4: memref<16x32xf32, #tpu.memory_space<vmem>>) attributes {dimension_semantics = [#tpu.dimension_semantics<parallel>], iteration_bounds = array<i64: 1>, scalar_prefetch = 0 : i64, scratch_operands = 0 : i64, tpu.core_type = #tpu.core_type<tc>, window_params = [{transform_indices = @transform_0, window_bounds = array<i64: 16, 32>}, {pipeline_mode = #tpu.pipeline_mode<synchronous>, transform_indices = @transform_1, window_bounds = array<i64: 1, 32>}, {pipeline_mode = #tpu.pipeline_mode<synchronous>, transform_indices = @transform_2, window_bounds = array<i64: 1, 32>}, {transform_indices = @transform_3, window_bounds = array<i64: 16, 32>}]} {
    %c0 = arith.constant 0 : index
    %c0_0 = arith.constant 0 : index
    %0 = vector.load %arg1[%c0, %c0_0] : memref<16x32xf32, #tpu.memory_space<vmem>>, vector<16x32xf32>
    %c0_1 = arith.constant 0 : index
    %c0_2 = arith.constant 0 : index
    %1 = vector.load %arg2[%c0_1, %c0_2] : memref<1x32xf32, #tpu.memory_space<vmem>>, vector<1x32xf32>
    %c0_3 = arith.constant 0 : index
    %c0_4 = arith.constant 0 : index
    %2 = vector.load %arg3[%c0_3, %c0_4] : memref<1x32xf32, #tpu.memory_space<vmem>>, vector<1x32xf32>
    %cst = arith.constant dense<0.000000e+00> : vector<16xf32>
    %3 = vector.multi_reduction <add>, %0, %cst [1] : vector<16x32xf32> to vector<16xf32>
    %4 = vector.shape_cast %3 : vector<16xf32> to vector<16x1xf32>
    %cst_5 = arith.constant 3.200000e+01 : f32
    %5 = vector.broadcast %cst_5 : f32 to vector<16x1xf32>
    %6 = arith.divf %4, %5 : vector<16x1xf32>
    %7 = vector.broadcast %6 : vector<16x1xf32> to vector<16x32xf32>
    %8 = arith.subf %0, %7 : vector<16x32xf32>
    %9 = arith.mulf %8, %8 : vector<16x32xf32>
    %cst_6 = arith.constant dense<0.000000e+00> : vector<16xf32>
    %10 = vector.multi_reduction <add>, %9, %cst_6 [1] : vector<16x32xf32> to vector<16xf32>
    %11 = vector.shape_cast %10 : vector<16xf32> to vector<16x1xf32>
    %cst_7 = arith.constant 3.200000e+01 : f32
    %12 = vector.broadcast %cst_7 : f32 to vector<16x1xf32>
    %13 = arith.divf %11, %12 : vector<16x1xf32>
    %cst_8 = arith.constant 9.99999996E-13 : f32
    %14 = vector.broadcast %cst_8 : f32 to vector<16x1xf32>
    %15 = arith.addf %13, %14 : vector<16x1xf32>
    %16 = math.rsqrt %15 : vector<16x1xf32>
    %17 = vector.broadcast %16 : vector<16x1xf32> to vector<16x32xf32>
    %18 = arith.mulf %8, %17 : vector<16x32xf32>
    %19 = vector.broadcast %1 : vector<1x32xf32> to vector<16x32xf32>
    %20 = arith.mulf %18, %19 : vector<16x32xf32>
    %21 = vector.broadcast %2 : vector<1x32xf32> to vector<16x32xf32>
    %22 = arith.addf %20, %21 : vector<16x32xf32>
    %c0_9 = arith.constant 0 : index
    %c0_10 = arith.constant 0 : index
    %23 = vector.load %arg4[%c0_9, %c0_10] : memref<16x32xf32, #tpu.memory_space<vmem>>, vector<16x32xf32>
    tpu.vector_store %arg4[%c0_9, %c0_10], %22 {strides = array<i32>} : memref<16x32xf32, #tpu.memory_space<vmem>>, vector<16x32xf32>,
    return
  }
  func.func @transform_0(%arg0: i32) -> (i32, i32) {
    %c0_i32 = arith.constant 0 : i32
    %c0_i32_0 = arith.constant 0 : i32
    return %arg0, %c0_i32 : i32, i32
  }
  func.func @transform_1(%arg0: i32) -> (i32, i32) {
    %c0_i32 = arith.constant 0 : i32
    %c0_i32_0 = arith.constant 0 : i32
    %c0_i32_1 = arith.constant 0 : i32
    return %c0_i32, %c0_i32_0 : i32, i32
  }
  func.func @transform_2(%arg0: i32) -> (i32, i32) {
    %c0_i32 = arith.constant 0 : i32
    %c0_i32_0 = arith.constant 0 : i32
    %c0_i32_1 = arith.constant 0 : i32
    return %c0_i32, %c0_i32_0 : i32, i32
  }
  func.func @transform_3(%arg0: i32) -> (i32, i32) {
    %c0_i32 = arith.constant 0 : i32
    %c0_i32_0 = arith.constant 0 : i32
    return %arg0, %c0_i32 : i32, i32
  }
}

module attributes {stable_mosaic.version = 11 : i64} {
  func.func @_ln_qkv_kernel(%arg0: i32, %arg1: memref<16x32xf32, #tpu.memory_space<vmem>>, %arg2: memref<16x32xf32, #tpu.memory_space<vmem>>, %arg3: memref<1x32xf32, #tpu.memory_space<vmem>>, %arg4: memref<1x32xf32, #tpu.memory_space<vmem>>, %arg5: memref<32x64xbf16, #tpu.memory_space<vmem>>, %arg6: memref<1x64xf32, #tpu.memory_space<vmem>>, %arg7: memref<32x32xbf16, #tpu.memory_space<vmem>>, %arg8: memref<1x32xf32, #tpu.memory_space<vmem>>, %arg9: memref<16x64xbf16, #tpu.memory_space<vmem>>, %arg10: memref<16x32xbf16, #tpu.memory_space<vmem>>) attributes {dimension_semantics = [#tpu.dimension_semantics<parallel>], iteration_bounds = array<i64: 1>, scalar_prefetch = 0 : i64, scratch_operands = 0 : i64, tpu.core_type = #tpu.core_type<tc>, window_params = [{transform_indices = @transform_0, window_bounds = array<i64: 16, 32>}, {transform_indices = @transform_1, window_bounds = array<i64: 16, 32>}, {pipeline_mode = #tpu.pipeline_mode<synchronous>, transform_indices = @transform_2, window_bounds = array<i64: 1, 32>}, {pipeline_mode = #tpu.pipeline_mode<synchronous>, transform_indices = @transform_3, window_bounds = array<i64: 1, 32>}, {pipeline_mode = #tpu.pipeline_mode<synchronous>, transform_indices = @transform_4, window_bounds = array<i64: 32, 64>}, {pipeline_mode = #tpu.pipeline_mode<synchronous>, transform_indices = @transform_5, window_bounds = array<i64: 1, 64>}, {pipeline_mode = #tpu.pipeline_mode<synchronous>, transform_indices = @transform_6, window_bounds = array<i64: 32, 32>}, {pipeline_mode = #tpu.pipeline_mode<synchronous>, transform_indices = @transform_7, window_bounds = array<i64: 1, 32>}, {transform_indices = @transform_8, window_bounds = array<i64: 16, 64>}, {transform_indices = @transform_9, window_bounds = array<i64: 16, 32>}]} {
    %c0 = arith.constant 0 : index
    %c0_0 = arith.constant 0 : index
    %0 = vector.load %arg1[%c0, %c0_0] : memref<16x32xf32, #tpu.memory_space<vmem>>, vector<16x32xf32>
    %c0_1 = arith.constant 0 : index
    %c0_2 = arith.constant 0 : index
    %1 = vector.load %arg3[%c0_1, %c0_2] : memref<1x32xf32, #tpu.memory_space<vmem>>, vector<1x32xf32>
    %c0_3 = arith.constant 0 : index
    %c0_4 = arith.constant 0 : index
    %2 = vector.load %arg4[%c0_3, %c0_4] : memref<1x32xf32, #tpu.memory_space<vmem>>, vector<1x32xf32>
    %cst = arith.constant dense<0.000000e+00> : vector<16xf32>
    %3 = vector.multi_reduction <add>, %0, %cst [1] : vector<16x32xf32> to vector<16xf32>
    %4 = vector.shape_cast %3 : vector<16xf32> to vector<16x1xf32>
    %cst_5 = arith.constant 3.200000e+01 : f32
    %5 = vector.broadcast %cst_5 : f32 to vector<16x1xf32>
    %6 = arith.divf %4, %5 : vector<16x1xf32>
    %7 = vector.broadcast %6 : vector<16x1xf32> to vector<16x32xf32>
    %8 = arith.subf %0, %7 : vector<16x32xf32>
    %9 = arith.mulf %8, %8 : vector<16x32xf32>
    %cst_6 = arith.constant dense<0.000000e+00> : vector<16xf32>
    %10 = vector.multi_reduction <add>, %9, %cst_6 [1] : vector<16x32xf32> to vector<16xf32>
    %11 = vector.shape_cast %10 : vector<16xf32> to vector<16x1xf32>
    %cst_7 = arith.constant 3.200000e+01 : f32
    %12 = vector.broadcast %cst_7 : f32 to vector<16x1xf32>
    %13 = arith.divf %11, %12 : vector<16x1xf32>
    %cst_8 = arith.constant 9.99999974E-6 : f32
    %14 = vector.broadcast %cst_8 : f32 to vector<16x1xf32>
    %15 = arith.addf %13, %14 : vector<16x1xf32>
    %16 = math.rsqrt %15 : vector<16x1xf32>
    %17 = vector.broadcast %16 : vector<16x1xf32> to vector<16x32xf32>
    %18 = arith.mulf %8, %17 : vector<16x32xf32>
    %19 = vector.broadcast %1 : vector<1x32xf32> to vector<16x32xf32>
    %20 = arith.mulf %18, %19 : vector<16x32xf32>
    %21 = vector.broadcast %2 : vector<1x32xf32> to vector<16x32xf32>
    %22 = arith.addf %20, %21 : vector<16x32xf32>
    %c0_9 = arith.constant 0 : index
    %c0_10 = arith.constant 0 : index
    %23 = vector.load %arg2[%c0_9, %c0_10] : memref<16x32xf32, #tpu.memory_space<vmem>>, vector<16x32xf32>
    %24 = arith.addf %22, %23 : vector<16x32xf32>
    %25 = arith.truncf %24 : vector<16x32xf32> to vector<16x32xbf16>
    %c0_11 = arith.constant 0 : index
    %c0_12 = arith.constant 0 : index
    %26 = vector.load %arg5[%c0_11, %c0_12] : memref<32x64xbf16, #tpu.memory_space<vmem>>, vector<32x64xbf16>
    %cst_13 = arith.constant dense<0.000000e+00> : vector<16x64xf32>
    %27 = tpu.matmul %25, %26, %cst_13 {dimension_numbers = #tpu.dot_dimension_numbers<[1], [0], [0], [1], [0, 0, 1, 1], [], []>} : vector<16x32xbf16>, vector<32x64xbf16>, vector<16x64xf32> -> vector<16x64xf32>
    %c0_14 = arith.constant 0 : index
    %c0_15 = arith.constant 0 : index
    %28 = vector.load %arg6[%c0_14, %c0_15] : memref<1x64xf32, #tpu.memory_space<vmem>>, vector<1x64xf32>
    %29 = vector.broadcast %28 : vector<1x64xf32> to vector<16x64xf32>
    %30 = arith.addf %27, %29 : vector<16x64xf32>
    %31 = arith.truncf %22 : vector<16x32xf32> to vector<16x32xbf16>
    %c0_16 = arith.constant 0 : index
    %c0_17 = arith.constant 0 : index
    %32 = vector.load %arg7[%c0_16, %c0_17] : memref<32x32xbf16, #tpu.memory_space<vmem>>, vector<32x32xbf16>
    %cst_18 = arith.constant dense<0.000000e+00> : vector<16x32xf32>
    %33 = tpu.matmul %31, %32, %cst_18 {dimension_numbers = #tpu.dot_dimension_numbers<[1], [0], [0], [1], [0, 0, 1, 1], [], []>} : vector<16x32xbf16>, vector<32x32xbf16>, vector<16x32xf32> -> vector<16x32xf32>
    %c0_19 = arith.constant 0 : index
    %c0_20 = arith.constant 0 : index
    %34 = vector.load %arg8[%c0_19, %c0_20] : memref<1x32xf32, #tpu.memory_space<vmem>>, vector<1x32xf32>
    %35 = vector.broadcast %34 : vector<1x32xf32> to vector<16x32xf32>
    %36 = arith.addf %33, %35 : vector<16x32xf32>
    %37 = arith.truncf %30 : vector<16x64xf32> to vector<16x64xbf16>
    %c0_21 = arith.constant 0 : index
    %c0_22 = arith.constant 0 : index
    %38 = vector.load %arg9[%c0_21, %c0_22] : memref<16x64xbf16, #tpu.memory_space<vmem>>, vector<16x64xbf16>
    tpu.vector_store %arg9[%c0_21, %c0_22], %37 {strides = array<i32>} : memref<16x64xbf16, #tpu.memory_space<vmem>>, vector<16x64xbf16>,
    %39 = arith.truncf %36 : vector<16x32xf32> to vector<16x32xbf16>
    %c0_23 = arith.constant 0 : index
    %c0_24 = arith.constant 0 : index
    %40 = vector.load %arg10[%c0_23, %c0_24] : memref<16x32xbf16, #tpu.memory_space<vmem>>, vector<16x32xbf16>
    tpu.vector_store %arg10[%c0_23, %c0_24], %39 {strides = array<i32>} : memref<16x32xbf16, #tpu.memory_space<vmem>>, vector<16x32xbf16>,
    return
  }
  func.func @transform_0(%arg0: i32) -> (i32, i32) {
    %c0_i32 = arith.constant 0 : i32
    %c0_i32_0 = arith.constant 0 : i32
    return %arg0, %c0_i32 : i32, i32
  }
  func.func @transform_1(%arg0: i32) -> (i32, i32) {
    %c0_i32 = arith.constant 0 : i32
    %c0_i32_0 = arith.constant 0 : i32
    return %arg0, %c0_i32 : i32, i32
  }
  func.func @transform_2(%arg0: i32) -> (i32, i32) {
    %c0_i32 = arith.constant 0 : i32
    %c0_i32_0 = arith.constant 0 : i32
    %c0_i32_1 = arith.constant 0 : i32
    return %c0_i32, %c0_i32_0 : i32, i32
  }
  func.func @transform_3(%arg0: i32) -> (i32, i32) {
    %c0_i32 = arith.constant 0 : i32
    %c0_i32_0 = arith.constant 0 : i32
    %c0_i32_1 = arith.constant 0 : i32
    return %c0_i32, %c0_i32_0 : i32, i32
  }
  func.func @transform_4(%arg0: i32) -> (i32, i32) {
    %c0_i32 = arith.constant 0 : i32
    %c0_i32_0 = arith.constant 0 : i32
    %c0_i32_1 = arith.constant 0 : i32
    return %c0_i32, %c0_i32_0 : i32, i32
  }
  func.func @transform_5(%arg0: i32) -> (i32, i32) {
    %c0_i32 = arith.constant 0 : i32
    %c0_i32_0 = arith.constant 0 : i32
    %c0_i32_1 = arith.constant 0 : i32
    return %c0_i32, %c0_i32_0 : i32, i32
  }
  func.func @transform_6(%arg0: i32) -> (i32, i32) {
    %c0_i32 = arith.constant 0 : i32
    %c0_i32_0 = arith.constant 0 : i32
    %c0_i32_1 = arith.constant 0 : i32
    return %c0_i32, %c0_i32_0 : i32, i32
  }
  func.func @transform_7(%arg0: i32) -> (i32, i32) {
    %c0_i32 = arith.constant 0 : i32
    %c0_i32_0 = arith.constant 0 : i32
    %c0_i32_1 = arith.constant 0 : i32
    return %c0_i32, %c0_i32_0 : i32, i32
  }
  func.func @transform_8(%arg0: i32) -> (i32, i32) {
    %c0_i32 = arith.constant 0 : i32
    %c0_i32_0 = arith.constant 0 : i32
    return %arg0, %c0_i32 : i32, i32
  }
  func.func @transform_9(%arg0: i32) -> (i32, i32) {
    %c0_i32 = arith.constant 0 : i32
    %c0_i32_0 = arith.constant 0 : i32
    return %arg0, %c0_i32 : i32, i32
  }
}

module attributes {stable_mosaic.version = 11 : i64} {
  func.func @_ln_q_kernel(%arg0: i32, %arg1: memref<16x32xf32, #tpu.memory_space<vmem>>, %arg2: memref<16x32xf32, #tpu.memory_space<vmem>>, %arg3: memref<1x32xf32, #tpu.memory_space<vmem>>, %arg4: memref<1x32xf32, #tpu.memory_space<vmem>>, %arg5: memref<32x32xbf16, #tpu.memory_space<vmem>>, %arg6: memref<1x32xf32, #tpu.memory_space<vmem>>, %arg7: memref<16x32xbf16, #tpu.memory_space<vmem>>) attributes {dimension_semantics = [#tpu.dimension_semantics<parallel>], iteration_bounds = array<i64: 1>, scalar_prefetch = 0 : i64, scratch_operands = 0 : i64, tpu.core_type = #tpu.core_type<tc>, window_params = [{transform_indices = @transform_0, window_bounds = array<i64: 16, 32>}, {transform_indices = @transform_1, window_bounds = array<i64: 16, 32>}, {pipeline_mode = #tpu.pipeline_mode<synchronous>, transform_indices = @transform_2, window_bounds = array<i64: 1, 32>}, {pipeline_mode = #tpu.pipeline_mode<synchronous>, transform_indices = @transform_3, window_bounds = array<i64: 1, 32>}, {pipeline_mode = #tpu.pipeline_mode<synchronous>, transform_indices = @transform_4, window_bounds = array<i64: 32, 32>}, {pipeline_mode = #tpu.pipeline_mode<synchronous>, transform_indices = @transform_5, window_bounds = array<i64: 1, 32>}, {transform_indices = @transform_6, window_bounds = array<i64: 16, 32>}]} {
    %c0 = arith.constant 0 : index
    %c0_0 = arith.constant 0 : index
    %0 = vector.load %arg1[%c0, %c0_0] : memref<16x32xf32, #tpu.memory_space<vmem>>, vector<16x32xf32>
    %c0_1 = arith.constant 0 : index
    %c0_2 = arith.constant 0 : index
    %1 = vector.load %arg3[%c0_1, %c0_2] : memref<1x32xf32, #tpu.memory_space<vmem>>, vector<1x32xf32>
    %c0_3 = arith.constant 0 : index
    %c0_4 = arith.constant 0 : index
    %2 = vector.load %arg4[%c0_3, %c0_4] : memref<1x32xf32, #tpu.memory_space<vmem>>, vector<1x32xf32>
    %cst = arith.constant dense<0.000000e+00> : vector<16xf32>
    %3 = vector.multi_reduction <add>, %0, %cst [1] : vector<16x32xf32> to vector<16xf32>
    %4 = vector.shape_cast %3 : vector<16xf32> to vector<16x1xf32>
    %cst_5 = arith.constant 3.200000e+01 : f32
    %5 = vector.broadcast %cst_5 : f32 to vector<16x1xf32>
    %6 = arith.divf %4, %5 : vector<16x1xf32>
    %7 = vector.broadcast %6 : vector<16x1xf32> to vector<16x32xf32>
    %8 = arith.subf %0, %7 : vector<16x32xf32>
    %9 = arith.mulf %8, %8 : vector<16x32xf32>
    %cst_6 = arith.constant dense<0.000000e+00> : vector<16xf32>
    %10 = vector.multi_reduction <add>, %9, %cst_6 [1] : vector<16x32xf32> to vector<16xf32>
    %11 = vector.shape_cast %10 : vector<16xf32> to vector<16x1xf32>
    %cst_7 = arith.constant 3.200000e+01 : f32
    %12 = vector.broadcast %cst_7 : f32 to vector<16x1xf32>
    %13 = arith.divf %11, %12 : vector<16x1xf32>
    %cst_8 = arith.constant 9.99999974E-6 : f32
    %14 = vector.broadcast %cst_8 : f32 to vector<16x1xf32>
    %15 = arith.addf %13, %14 : vector<16x1xf32>
    %16 = math.rsqrt %15 : vector<16x1xf32>
    %17 = vector.broadcast %16 : vector<16x1xf32> to vector<16x32xf32>
    %18 = arith.mulf %8, %17 : vector<16x32xf32>
    %19 = vector.broadcast %1 : vector<1x32xf32> to vector<16x32xf32>
    %20 = arith.mulf %18, %19 : vector<16x32xf32>
    %21 = vector.broadcast %2 : vector<1x32xf32> to vector<16x32xf32>
    %22 = arith.addf %20, %21 : vector<16x32xf32>
    %c0_9 = arith.constant 0 : index
    %c0_10 = arith.constant 0 : index
    %23 = vector.load %arg2[%c0_9, %c0_10] : memref<16x32xf32, #tpu.memory_space<vmem>>, vector<16x32xf32>
    %24 = arith.addf %22, %23 : vector<16x32xf32>
    %25 = arith.truncf %24 : vector<16x32xf32> to vector<16x32xbf16>
    %c0_11 = arith.constant 0 : index
    %c0_12 = arith.constant 0 : index
    %26 = vector.load %arg5[%c0_11, %c0_12] : memref<32x32xbf16, #tpu.memory_space<vmem>>, vector<32x32xbf16>
    %cst_13 = arith.constant dense<0.000000e+00> : vector<16x32xf32>
    %27 = tpu.matmul %25, %26, %cst_13 {dimension_numbers = #tpu.dot_dimension_numbers<[1], [0], [0], [1], [0, 0, 1, 1], [], []>} : vector<16x32xbf16>, vector<32x32xbf16>, vector<16x32xf32> -> vector<16x32xf32>
    %c0_14 = arith.constant 0 : index
    %c0_15 = arith.constant 0 : index
    %28 = vector.load %arg6[%c0_14, %c0_15] : memref<1x32xf32, #tpu.memory_space<vmem>>, vector<1x32xf32>
    %29 = vector.broadcast %28 : vector<1x32xf32> to vector<16x32xf32>
    %30 = arith.addf %27, %29 : vector<16x32xf32>
    %31 = arith.truncf %30 : vector<16x32xf32> to vector<16x32xbf16>
    %c0_16 = arith.constant 0 : index
    %c0_17 = arith.constant 0 : index
    %32 = vector.load %arg7[%c0_16, %c0_17] : memref<16x32xbf16, #tpu.memory_space<vmem>>, vector<16x32xbf16>
    tpu.vector_store %arg7[%c0_16, %c0_17], %31 {strides = array<i32>} : memref<16x32xbf16, #tpu.memory_space<vmem>>, vector<16x32xbf16>,
    return
  }
  func.func @transform_0(%arg0: i32) -> (i32, i32) {
    %c0_i32 = arith.constant 0 : i32
    %c0_i32_0 = arith.constant 0 : i32
    return %arg0, %c0_i32 : i32, i32
  }
  func.func @transform_1(%arg0: i32) -> (i32, i32) {
    %c0_i32 = arith.constant 0 : i32
    %c0_i32_0 = arith.constant 0 : i32
    return %arg0, %c0_i32 : i32, i32
  }
  func.func @transform_2(%arg0: i32) -> (i32, i32) {
    %c0_i32 = arith.constant 0 : i32
    %c0_i32_0 = arith.constant 0 : i32
    %c0_i32_1 = arith.constant 0 : i32
    return %c0_i32, %c0_i32_0 : i32, i32
  }
  func.func @transform_3(%arg0: i32) -> (i32, i32) {
    %c0_i32 = arith.constant 0 : i32
    %c0_i32_0 = arith.constant 0 : i32
    %c0_i32_1 = arith.constant 0 : i32
    return %c0_i32, %c0_i32_0 : i32, i32
  }
  func.func @transform_4(%arg0: i32) -> (i32, i32) {
    %c0_i32 = arith.constant 0 : i32
    %c0_i32_0 = arith.constant 0 : i32
    %c0_i32_1 = arith.constant 0 : i32
    return %c0_i32, %c0_i32_0 : i32, i32
  }
  func.func @transform_5(%arg0: i32) -> (i32, i32) {
    %c0_i32 = arith.constant 0 : i32
    %c0_i32_0 = arith.constant 0 : i32
    %c0_i32_1 = arith.constant 0 : i32
    return %c0_i32, %c0_i32_0 : i32, i32
  }
  func.func @transform_6(%arg0: i32) -> (i32, i32) {
    %c0_i32 = arith.constant 0 : i32
    %c0_i32_0 = arith.constant 0 : i32
    return %arg0, %c0_i32 : i32, i32
  }
}

module attributes {stable_mosaic.version = 11 : i64} {
  func.func @_self_attn_kernel(%arg0: i32, %arg1: memref<1x8x64xbf16, #tpu.memory_space<vmem>>, %arg2: memref<1x8x32xbf16, #tpu.memory_space<vmem>>, %arg3: memref<1x1x8xf32, #tpu.memory_space<vmem>>, %arg4: memref<1x8x32xf32, #tpu.memory_space<vmem>>, %arg5: memref<4x8x32xbf16, #tpu.memory_space<vmem>>, %arg6: memref<1x32xf32, #tpu.memory_space<vmem>>, %arg7: memref<1x8x32xf32, #tpu.memory_space<vmem>>) attributes {dimension_semantics = [#tpu.dimension_semantics<parallel>], iteration_bounds = array<i64: 2>, scalar_prefetch = 0 : i64, scratch_operands = 0 : i64, tpu.core_type = #tpu.core_type<tc>, window_params = [{transform_indices = @transform_0, window_bounds = array<i64: 1, 8, 64>}, {transform_indices = @transform_1, window_bounds = array<i64: 1, 8, 32>}, {transform_indices = @transform_2, window_bounds = array<i64: 1, 1, 8>}, {transform_indices = @transform_3, window_bounds = array<i64: 1, 8, 32>}, {pipeline_mode = #tpu.pipeline_mode<synchronous>, transform_indices = @transform_4, window_bounds = array<i64: 4, 8, 32>}, {pipeline_mode = #tpu.pipeline_mode<synchronous>, transform_indices = @transform_5, window_bounds = array<i64: 1, 32>}, {transform_indices = @transform_6, window_bounds = array<i64: 1, 8, 32>}]} {
    %c0 = arith.constant 0 : index
    %c0_0 = arith.constant 0 : index
    %c0_1 = arith.constant 0 : index
    %0 = vector.load %arg3[%c0, %c0_0, %c0_1] : memref<1x1x8xf32, #tpu.memory_space<vmem>>, vector<1x1x8xf32>
    %1 = vector.shape_cast %0 : vector<1x1x8xf32> to vector<1x8xf32>
    %c0_2 = arith.constant 0 : index
    %c0_3 = arith.constant 0 : index
    %c0_4 = arith.constant 0 : index
    %2 = vector.load %arg4[%c0_2, %c0_3, %c0_4] : memref<1x8x32xf32, #tpu.memory_space<vmem>>, vector<1x8x32xf32>
    %3 = vector.shape_cast %2 : vector<1x8x32xf32> to vector<8x32xf32>
    %c0_5 = arith.constant 0 : index
    %c0_6 = arith.constant 0 : index
    %4 = vector.load %arg6[%c0_5, %c0_6] : memref<1x32xf32, #tpu.memory_space<vmem>>, vector<1x32xf32>
    %5 = tpu.iota {dimensions = array<i32: 0>} : vector<8x8xi32>
    %6 = tpu.iota {dimensions = array<i32: 1>} : vector<8x8xi32>
    %7 = arith.cmpi sle, %6, %5 : vector<8x8xi32>
    %c0_7 = arith.constant 0 : index
    %c0_8 = arith.constant 0 : index
    %c0_9 = arith.constant 0 : index
    %8 = vector.load %arg1[%c0_7, %c0_8, %c0_9] : memref<1x8x64xbf16, #tpu.memory_space<vmem>>, vector<1x8x8xbf16>
    %9 = vector.shape_cast %8 : vector<1x8x8xbf16> to vector<8x8xbf16>
    %c0_10 = arith.constant 0 : index
    %c0_11 = arith.constant 0 : index
    %c32 = arith.constant 32 : index
    %10 = vector.load %arg1[%c0_10, %c0_11, %c32] : memref<1x8x64xbf16, #tpu.memory_space<vmem>>, vector<1x8x8xbf16>
    %11 = vector.shape_cast %10 : vector<1x8x8xbf16> to vector<8x8xbf16>
    %c0_12 = arith.constant 0 : index
    %c0_13 = arith.constant 0 : index
    %c0_14 = arith.constant 0 : index
    %12 = vector.load %arg2[%c0_12, %c0_13, %c0_14] : memref<1x8x32xbf16, #tpu.memory_space<vmem>>, vector<1x8x8xbf16>
    %13 = vector.shape_cast %12 : vector<1x8x8xbf16> to vector<8x8xbf16>
    %cst = arith.constant dense<0.000000e+00> : vector<8x8xf32>
    %14 = tpu.matmul %9, %11, %cst {dimension_numbers = #tpu.dot_dimension_numbers<[1], [1], [0], [0], [0, 0, 1, 0], [], []>} : vector<8x8xbf16>, vector<8x8xbf16>, vector<8x8xf32> -> vector<8x8xf32>
    %15 = vector.broadcast %1 : vector<1x8xf32> to vector<8x8xf32>
    %16 = arith.addf %14, %15 : vector<8x8xf32>
    %cst_15 = arith.constant -1.000000e+09 : f32
    %17 = vector.broadcast %cst_15 : f32 to vector<8x8xf32>
    %18 = arith.select %7, %16, %17 : vector<8x8xi1>, vector<8x8xf32>
    %cst_16 = arith.constant dense<0xFF800000> : vector<8xf32>
    %19 = vector.multi_reduction <maximumf>, %18, %cst_16 [1] : vector<8x8xf32> to vector<8xf32>
    %20 = vector.shape_cast %19 : vector<8xf32> to vector<8x1xf32>
    %21 = vector.broadcast %20 : vector<8x1xf32> to vector<8x8xf32>
    %22 = arith.subf %18, %21 : vector<8x8xf32>
    %23 = math.exp %22 : vector<8x8xf32>
    %cst_17 = arith.constant dense<0.000000e+00> : vector<8xf32>
    %24 = vector.multi_reduction <add>, %23, %cst_17 [1] : vector<8x8xf32> to vector<8xf32>
    %25 = vector.shape_cast %24 : vector<8xf32> to vector<8x1xf32>
    %26 = tpu.reciprocal %25 {approx = true} : vector<8x1xf32> -> vector<8x1xf32>
    %27 = vector.broadcast %26 : vector<8x1xf32> to vector<8x8xf32>
    %28 = arith.mulf %23, %27 : vector<8x8xf32>
    %29 = arith.truncf %28 : vector<8x8xf32> to vector<8x8xbf16>
    %cst_18 = arith.constant dense<0.000000e+00> : vector<8x8xf32>
    %30 = tpu.matmul %29, %13, %cst_18 {dimension_numbers = #tpu.dot_dimension_numbers<[1], [0], [0], [1], [0, 0, 1, 1], [], []>} : vector<8x8xbf16>, vector<8x8xbf16>, vector<8x8xf32> -> vector<8x8xf32>
    %31 = arith.truncf %30 : vector<8x8xf32> to vector<8x8xbf16>
    %c0_19 = arith.constant 0 : index
    %c0_20 = arith.constant 0 : index
    %c0_21 = arith.constant 0 : index
    %32 = vector.load %arg5[%c0_19, %c0_20, %c0_21] : memref<4x8x32xbf16, #tpu.memory_space<vmem>>, vector<1x8x32xbf16>
    %33 = vector.shape_cast %32 : vector<1x8x32xbf16> to vector<8x32xbf16>
    %cst_22 = arith.constant dense<0.000000e+00> : vector<8x32xf32>
    %34 = tpu.matmul %31, %33, %cst_22 {dimension_numbers = #tpu.dot_dimension_numbers<[1], [0], [0], [1], [0, 0, 1, 1], [], []>} : vector<8x8xbf16>, vector<8x32xbf16>, vector<8x32xf32> -> vector<8x32xf32>
    %c0_23 = arith.constant 0 : index
    %c0_24 = arith.constant 0 : index
    %c8 = arith.constant 8 : index
    %35 = vector.load %arg1[%c0_23, %c0_24, %c8] : memref<1x8x64xbf16, #tpu.memory_space<vmem>>, vector<1x8x8xbf16>
    %36 = vector.shape_cast %35 : vector<1x8x8xbf16> to vector<8x8xbf16>
    %c0_25 = arith.constant 0 : index
    %c0_26 = arith.constant 0 : index
    %c40 = arith.constant 40 : index
    %37 = vector.load %arg1[%c0_25, %c0_26, %c40] : memref<1x8x64xbf16, #tpu.memory_space<vmem>>, vector<1x8x8xbf16>
    %38 = vector.shape_cast %37 : vector<1x8x8xbf16> to vector<8x8xbf16>
    %c0_27 = arith.constant 0 : index
    %c0_28 = arith.constant 0 : index
    %c8_29 = arith.constant 8 : index
    %39 = vector.load %arg2[%c0_27, %c0_28, %c8_29] : memref<1x8x32xbf16, #tpu.memory_space<vmem>>, vector<1x8x8xbf16>
    %40 = vector.shape_cast %39 : vector<1x8x8xbf16> to vector<8x8xbf16>
    %cst_30 = arith.constant dense<0.000000e+00> : vector<8x8xf32>
    %41 = tpu.matmul %36, %38, %cst_30 {dimension_numbers = #tpu.dot_dimension_numbers<[1], [1], [0], [0], [0, 0, 1, 0], [], []>} : vector<8x8xbf16>, vector<8x8xbf16>, vector<8x8xf32> -> vector<8x8xf32>
    %42 = vector.broadcast %1 : vector<1x8xf32> to vector<8x8xf32>
    %43 = arith.addf %41, %42 : vector<8x8xf32>
    %cst_31 = arith.constant -1.000000e+09 : f32
    %44 = vector.broadcast %cst_31 : f32 to vector<8x8xf32>
    %45 = arith.select %7, %43, %44 : vector<8x8xi1>, vector<8x8xf32>
    %cst_32 = arith.constant dense<0xFF800000> : vector<8xf32>
    %46 = vector.multi_reduction <maximumf>, %45, %cst_32 [1] : vector<8x8xf32> to vector<8xf32>
    %47 = vector.shape_cast %46 : vector<8xf32> to vector<8x1xf32>
    %48 = vector.broadcast %47 : vector<8x1xf32> to vector<8x8xf32>
    %49 = arith.subf %45, %48 : vector<8x8xf32>
    %50 = math.exp %49 : vector<8x8xf32>
    %cst_33 = arith.constant dense<0.000000e+00> : vector<8xf32>
    %51 = vector.multi_reduction <add>, %50, %cst_33 [1] : vector<8x8xf32> to vector<8xf32>
    %52 = vector.shape_cast %51 : vector<8xf32> to vector<8x1xf32>
    %53 = tpu.reciprocal %52 {approx = true} : vector<8x1xf32> -> vector<8x1xf32>
    %54 = vector.broadcast %53 : vector<8x1xf32> to vector<8x8xf32>
    %55 = arith.mulf %50, %54 : vector<8x8xf32>
    %56 = arith.truncf %55 : vector<8x8xf32> to vector<8x8xbf16>
    %cst_34 = arith.constant dense<0.000000e+00> : vector<8x8xf32>
    %57 = tpu.matmul %56, %40, %cst_34 {dimension_numbers = #tpu.dot_dimension_numbers<[1], [0], [0], [1], [0, 0, 1, 1], [], []>} : vector<8x8xbf16>, vector<8x8xbf16>, vector<8x8xf32> -> vector<8x8xf32>
    %58 = arith.truncf %57 : vector<8x8xf32> to vector<8x8xbf16>
    %c1 = arith.constant 1 : index
    %c0_35 = arith.constant 0 : index
    %c0_36 = arith.constant 0 : index
    %59 = vector.load %arg5[%c1, %c0_35, %c0_36] : memref<4x8x32xbf16, #tpu.memory_space<vmem>>, vector<1x8x32xbf16>
    %60 = vector.shape_cast %59 : vector<1x8x32xbf16> to vector<8x32xbf16>
    %cst_37 = arith.constant dense<0.000000e+00> : vector<8x32xf32>
    %61 = tpu.matmul %58, %60, %cst_37 {dimension_numbers = #tpu.dot_dimension_numbers<[1], [0], [0], [1], [0, 0, 1, 1], [], []>} : vector<8x8xbf16>, vector<8x32xbf16>, vector<8x32xf32> -> vector<8x32xf32>
    %62 = arith.addf %34, %61 : vector<8x32xf32>
    %c0_38 = arith.constant 0 : index
    %c0_39 = arith.constant 0 : index
    %c16 = arith.constant 16 : index
    %63 = vector.load %arg1[%c0_38, %c0_39, %c16] : memref<1x8x64xbf16, #tpu.memory_space<vmem>>, vector<1x8x8xbf16>
    %64 = vector.shape_cast %63 : vector<1x8x8xbf16> to vector<8x8xbf16>
    %c0_40 = arith.constant 0 : index
    %c0_41 = arith.constant 0 : index
    %c48 = arith.constant 48 : index
    %65 = vector.load %arg1[%c0_40, %c0_41, %c48] : memref<1x8x64xbf16, #tpu.memory_space<vmem>>, vector<1x8x8xbf16>
    %66 = vector.shape_cast %65 : vector<1x8x8xbf16> to vector<8x8xbf16>
    %c0_42 = arith.constant 0 : index
    %c0_43 = arith.constant 0 : index
    %c16_44 = arith.constant 16 : index
    %67 = vector.load %arg2[%c0_42, %c0_43, %c16_44] : memref<1x8x32xbf16, #tpu.memory_space<vmem>>, vector<1x8x8xbf16>
    %68 = vector.shape_cast %67 : vector<1x8x8xbf16> to vector<8x8xbf16>
    %cst_45 = arith.constant dense<0.000000e+00> : vector<8x8xf32>
    %69 = tpu.matmul %64, %66, %cst_45 {dimension_numbers = #tpu.dot_dimension_numbers<[1], [1], [0], [0], [0, 0, 1, 0], [], []>} : vector<8x8xbf16>, vector<8x8xbf16>, vector<8x8xf32> -> vector<8x8xf32>
    %70 = vector.broadcast %1 : vector<1x8xf32> to vector<8x8xf32>
    %71 = arith.addf %69, %70 : vector<8x8xf32>
    %cst_46 = arith.constant -1.000000e+09 : f32
    %72 = vector.broadcast %cst_46 : f32 to vector<8x8xf32>
    %73 = arith.select %7, %71, %72 : vector<8x8xi1>, vector<8x8xf32>
    %cst_47 = arith.constant dense<0xFF800000> : vector<8xf32>
    %74 = vector.multi_reduction <maximumf>, %73, %cst_47 [1] : vector<8x8xf32> to vector<8xf32>
    %75 = vector.shape_cast %74 : vector<8xf32> to vector<8x1xf32>
    %76 = vector.broadcast %75 : vector<8x1xf32> to vector<8x8xf32>
    %77 = arith.subf %73, %76 : vector<8x8xf32>
    %78 = math.exp %77 : vector<8x8xf32>
    %cst_48 = arith.constant dense<0.000000e+00> : vector<8xf32>
    %79 = vector.multi_reduction <add>, %78, %cst_48 [1] : vector<8x8xf32> to vector<8xf32>
    %80 = vector.shape_cast %79 : vector<8xf32> to vector<8x1xf32>
    %81 = tpu.reciprocal %80 {approx = true} : vector<8x1xf32> -> vector<8x1xf32>
    %82 = vector.broadcast %81 : vector<8x1xf32> to vector<8x8xf32>
    %83 = arith.mulf %78, %82 : vector<8x8xf32>
    %84 = arith.truncf %83 : vector<8x8xf32> to vector<8x8xbf16>
    %cst_49 = arith.constant dense<0.000000e+00> : vector<8x8xf32>
    %85 = tpu.matmul %84, %68, %cst_49 {dimension_numbers = #tpu.dot_dimension_numbers<[1], [0], [0], [1], [0, 0, 1, 1], [], []>} : vector<8x8xbf16>, vector<8x8xbf16>, vector<8x8xf32> -> vector<8x8xf32>
    %86 = arith.truncf %85 : vector<8x8xf32> to vector<8x8xbf16>
    %c2 = arith.constant 2 : index
    %c0_50 = arith.constant 0 : index
    %c0_51 = arith.constant 0 : index
    %87 = vector.load %arg5[%c2, %c0_50, %c0_51] : memref<4x8x32xbf16, #tpu.memory_space<vmem>>, vector<1x8x32xbf16>
    %88 = vector.shape_cast %87 : vector<1x8x32xbf16> to vector<8x32xbf16>
    %cst_52 = arith.constant dense<0.000000e+00> : vector<8x32xf32>
    %89 = tpu.matmul %86, %88, %cst_52 {dimension_numbers = #tpu.dot_dimension_numbers<[1], [0], [0], [1], [0, 0, 1, 1], [], []>} : vector<8x8xbf16>, vector<8x32xbf16>, vector<8x32xf32> -> vector<8x32xf32>
    %90 = arith.addf %62, %89 : vector<8x32xf32>
    %c0_53 = arith.constant 0 : index
    %c0_54 = arith.constant 0 : index
    %c24 = arith.constant 24 : index
    %91 = vector.load %arg1[%c0_53, %c0_54, %c24] : memref<1x8x64xbf16, #tpu.memory_space<vmem>>, vector<1x8x8xbf16>
    %92 = vector.shape_cast %91 : vector<1x8x8xbf16> to vector<8x8xbf16>
    %c0_55 = arith.constant 0 : index
    %c0_56 = arith.constant 0 : index
    %c56 = arith.constant 56 : index
    %93 = vector.load %arg1[%c0_55, %c0_56, %c56] : memref<1x8x64xbf16, #tpu.memory_space<vmem>>, vector<1x8x8xbf16>
    %94 = vector.shape_cast %93 : vector<1x8x8xbf16> to vector<8x8xbf16>
    %c0_57 = arith.constant 0 : index
    %c0_58 = arith.constant 0 : index
    %c24_59 = arith.constant 24 : index
    %95 = vector.load %arg2[%c0_57, %c0_58, %c24_59] : memref<1x8x32xbf16, #tpu.memory_space<vmem>>, vector<1x8x8xbf16>
    %96 = vector.shape_cast %95 : vector<1x8x8xbf16> to vector<8x8xbf16>
    %cst_60 = arith.constant dense<0.000000e+00> : vector<8x8xf32>
    %97 = tpu.matmul %92, %94, %cst_60 {dimension_numbers = #tpu.dot_dimension_numbers<[1], [1], [0], [0], [0, 0, 1, 0], [], []>} : vector<8x8xbf16>, vector<8x8xbf16>, vector<8x8xf32> -> vector<8x8xf32>
    %98 = vector.broadcast %1 : vector<1x8xf32> to vector<8x8xf32>
    %99 = arith.addf %97, %98 : vector<8x8xf32>
    %cst_61 = arith.constant -1.000000e+09 : f32
    %100 = vector.broadcast %cst_61 : f32 to vector<8x8xf32>
    %101 = arith.select %7, %99, %100 : vector<8x8xi1>, vector<8x8xf32>
    %cst_62 = arith.constant dense<0xFF800000> : vector<8xf32>
    %102 = vector.multi_reduction <maximumf>, %101, %cst_62 [1] : vector<8x8xf32> to vector<8xf32>
    %103 = vector.shape_cast %102 : vector<8xf32> to vector<8x1xf32>
    %104 = vector.broadcast %103 : vector<8x1xf32> to vector<8x8xf32>
    %105 = arith.subf %101, %104 : vector<8x8xf32>
    %106 = math.exp %105 : vector<8x8xf32>
    %cst_63 = arith.constant dense<0.000000e+00> : vector<8xf32>
    %107 = vector.multi_reduction <add>, %106, %cst_63 [1] : vector<8x8xf32> to vector<8xf32>
    %108 = vector.shape_cast %107 : vector<8xf32> to vector<8x1xf32>
    %109 = tpu.reciprocal %108 {approx = true} : vector<8x1xf32> -> vector<8x1xf32>
    %110 = vector.broadcast %109 : vector<8x1xf32> to vector<8x8xf32>
    %111 = arith.mulf %106, %110 : vector<8x8xf32>
    %112 = arith.truncf %111 : vector<8x8xf32> to vector<8x8xbf16>
    %cst_64 = arith.constant dense<0.000000e+00> : vector<8x8xf32>
    %113 = tpu.matmul %112, %96, %cst_64 {dimension_numbers = #tpu.dot_dimension_numbers<[1], [0], [0], [1], [0, 0, 1, 1], [], []>} : vector<8x8xbf16>, vector<8x8xbf16>, vector<8x8xf32> -> vector<8x8xf32>
    %114 = arith.truncf %113 : vector<8x8xf32> to vector<8x8xbf16>
    %c3 = arith.constant 3 : index
    %c0_65 = arith.constant 0 : index
    %c0_66 = arith.constant 0 : index
    %115 = vector.load %arg5[%c3, %c0_65, %c0_66] : memref<4x8x32xbf16, #tpu.memory_space<vmem>>, vector<1x8x32xbf16>
    %116 = vector.shape_cast %115 : vector<1x8x32xbf16> to vector<8x32xbf16>
    %cst_67 = arith.constant dense<0.000000e+00> : vector<8x32xf32>
    %117 = tpu.matmul %114, %116, %cst_67 {dimension_numbers = #tpu.dot_dimension_numbers<[1], [0], [0], [1], [0, 0, 1, 1], [], []>} : vector<8x8xbf16>, vector<8x32xbf16>, vector<8x32xf32> -> vector<8x32xf32>
    %118 = arith.addf %90, %117 : vector<8x32xf32>
    %119 = arith.addf %3, %118 : vector<8x32xf32>
    %120 = vector.broadcast %4 : vector<1x32xf32> to vector<8x32xf32>
    %121 = arith.addf %119, %120 : vector<8x32xf32>
    %c0_68 = arith.constant 0 : index
    %c0_69 = arith.constant 0 : index
    %c0_70 = arith.constant 0 : index
    %122 = vector.load %arg7[%c0_68, %c0_69, %c0_70] : memref<1x8x32xf32, #tpu.memory_space<vmem>>, vector<1x8x32xf32>
    %123 = vector.shape_cast %122 : vector<1x8x32xf32> to vector<8x32xf32>
    %124 = vector.shape_cast %121 : vector<8x32xf32> to vector<1x8x32xf32>
    tpu.vector_store %arg7[%c0_68, %c0_69, %c0_70], %124 {strides = array<i32>} : memref<1x8x32xf32, #tpu.memory_space<vmem>>, vector<1x8x32xf32>,
    return
  }
  func.func @transform_0(%arg0: i32) -> (i32, i32, i32) {
    %c0_i32 = arith.constant 0 : i32
    %c0_i32_0 = arith.constant 0 : i32
    %c0_i32_1 = arith.constant 0 : i32
    return %arg0, %c0_i32, %c0_i32_0 : i32, i32, i32
  }
  func.func @transform_1(%arg0: i32) -> (i32, i32, i32) {
    %c0_i32 = arith.constant 0 : i32
    %c0_i32_0 = arith.constant 0 : i32
    %c0_i32_1 = arith.constant 0 : i32
    return %arg0, %c0_i32, %c0_i32_0 : i32, i32, i32
  }
  func.func @transform_2(%arg0: i32) -> (i32, i32, i32) {
    %c0_i32 = arith.constant 0 : i32
    %c0_i32_0 = arith.constant 0 : i32
    %c0_i32_1 = arith.constant 0 : i32
    return %arg0, %c0_i32, %c0_i32_0 : i32, i32, i32
  }
  func.func @transform_3(%arg0: i32) -> (i32, i32, i32) {
    %c0_i32 = arith.constant 0 : i32
    %c0_i32_0 = arith.constant 0 : i32
    %c0_i32_1 = arith.constant 0 : i32
    return %arg0, %c0_i32, %c0_i32_0 : i32, i32, i32
  }
  func.func @transform_4(%arg0: i32) -> (i32, i32, i32) {
    %c0_i32 = arith.constant 0 : i32
    %c0_i32_0 = arith.constant 0 : i32
    %c0_i32_1 = arith.constant 0 : i32
    %c0_i32_2 = arith.constant 0 : i32
    return %c0_i32, %c0_i32_0, %c0_i32_1 : i32, i32, i32
  }
  func.func @transform_5(%arg0: i32) -> (i32, i32) {
    %c0_i32 = arith.constant 0 : i32
    %c0_i32_0 = arith.constant 0 : i32
    %c0_i32_1 = arith.constant 0 : i32
    return %c0_i32, %c0_i32_0 : i32, i32
  }
  func.func @transform_6(%arg0: i32) -> (i32, i32, i32) {
    %c0_i32 = arith.constant 0 : i32
    %c0_i32_0 = arith.constant 0 : i32
    %c0_i32_1 = arith.constant 0 : i32
    return %arg0, %c0_i32, %c0_i32_0 : i32, i32, i32
  }
}

module attributes {stable_mosaic.version = 11 : i64} {
  func.func @_ln_qkv_kernel(%arg0: i32, %arg1: memref<32x32xf32, #tpu.memory_space<vmem>>, %arg2: memref<32x32xf32, #tpu.memory_space<vmem>>, %arg3: memref<1x32xf32, #tpu.memory_space<vmem>>, %arg4: memref<1x32xf32, #tpu.memory_space<vmem>>, %arg5: memref<32x64xbf16, #tpu.memory_space<vmem>>, %arg6: memref<1x64xf32, #tpu.memory_space<vmem>>, %arg7: memref<32x32xbf16, #tpu.memory_space<vmem>>, %arg8: memref<1x32xf32, #tpu.memory_space<vmem>>, %arg9: memref<32x64xbf16, #tpu.memory_space<vmem>>, %arg10: memref<32x32xbf16, #tpu.memory_space<vmem>>) attributes {dimension_semantics = [#tpu.dimension_semantics<parallel>], iteration_bounds = array<i64: 1>, scalar_prefetch = 0 : i64, scratch_operands = 0 : i64, tpu.core_type = #tpu.core_type<tc>, window_params = [{transform_indices = @transform_0, window_bounds = array<i64: 32, 32>}, {transform_indices = @transform_1, window_bounds = array<i64: 32, 32>}, {pipeline_mode = #tpu.pipeline_mode<synchronous>, transform_indices = @transform_2, window_bounds = array<i64: 1, 32>}, {pipeline_mode = #tpu.pipeline_mode<synchronous>, transform_indices = @transform_3, window_bounds = array<i64: 1, 32>}, {pipeline_mode = #tpu.pipeline_mode<synchronous>, transform_indices = @transform_4, window_bounds = array<i64: 32, 64>}, {pipeline_mode = #tpu.pipeline_mode<synchronous>, transform_indices = @transform_5, window_bounds = array<i64: 1, 64>}, {pipeline_mode = #tpu.pipeline_mode<synchronous>, transform_indices = @transform_6, window_bounds = array<i64: 32, 32>}, {pipeline_mode = #tpu.pipeline_mode<synchronous>, transform_indices = @transform_7, window_bounds = array<i64: 1, 32>}, {transform_indices = @transform_8, window_bounds = array<i64: 32, 64>}, {transform_indices = @transform_9, window_bounds = array<i64: 32, 32>}]} {
    %c0 = arith.constant 0 : index
    %c0_0 = arith.constant 0 : index
    %0 = vector.load %arg1[%c0, %c0_0] : memref<32x32xf32, #tpu.memory_space<vmem>>, vector<32x32xf32>
    %c0_1 = arith.constant 0 : index
    %c0_2 = arith.constant 0 : index
    %1 = vector.load %arg3[%c0_1, %c0_2] : memref<1x32xf32, #tpu.memory_space<vmem>>, vector<1x32xf32>
    %c0_3 = arith.constant 0 : index
    %c0_4 = arith.constant 0 : index
    %2 = vector.load %arg4[%c0_3, %c0_4] : memref<1x32xf32, #tpu.memory_space<vmem>>, vector<1x32xf32>
    %cst = arith.constant dense<0.000000e+00> : vector<32xf32>
    %3 = vector.multi_reduction <add>, %0, %cst [1] : vector<32x32xf32> to vector<32xf32>
    %4 = vector.shape_cast %3 : vector<32xf32> to vector<32x1xf32>
    %cst_5 = arith.constant 3.200000e+01 : f32
    %5 = vector.broadcast %cst_5 : f32 to vector<32x1xf32>
    %6 = arith.divf %4, %5 : vector<32x1xf32>
    %7 = vector.broadcast %6 : vector<32x1xf32> to vector<32x32xf32>
    %8 = arith.subf %0, %7 : vector<32x32xf32>
    %9 = arith.mulf %8, %8 : vector<32x32xf32>
    %cst_6 = arith.constant dense<0.000000e+00> : vector<32xf32>
    %10 = vector.multi_reduction <add>, %9, %cst_6 [1] : vector<32x32xf32> to vector<32xf32>
    %11 = vector.shape_cast %10 : vector<32xf32> to vector<32x1xf32>
    %cst_7 = arith.constant 3.200000e+01 : f32
    %12 = vector.broadcast %cst_7 : f32 to vector<32x1xf32>
    %13 = arith.divf %11, %12 : vector<32x1xf32>
    %cst_8 = arith.constant 9.99999974E-6 : f32
    %14 = vector.broadcast %cst_8 : f32 to vector<32x1xf32>
    %15 = arith.addf %13, %14 : vector<32x1xf32>
    %16 = math.rsqrt %15 : vector<32x1xf32>
    %17 = vector.broadcast %16 : vector<32x1xf32> to vector<32x32xf32>
    %18 = arith.mulf %8, %17 : vector<32x32xf32>
    %19 = vector.broadcast %1 : vector<1x32xf32> to vector<32x32xf32>
    %20 = arith.mulf %18, %19 : vector<32x32xf32>
    %21 = vector.broadcast %2 : vector<1x32xf32> to vector<32x32xf32>
    %22 = arith.addf %20, %21 : vector<32x32xf32>
    %c0_9 = arith.constant 0 : index
    %c0_10 = arith.constant 0 : index
    %23 = vector.load %arg2[%c0_9, %c0_10] : memref<32x32xf32, #tpu.memory_space<vmem>>, vector<32x32xf32>
    %24 = arith.addf %22, %23 : vector<32x32xf32>
    %25 = arith.truncf %24 : vector<32x32xf32> to vector<32x32xbf16>
    %c0_11 = arith.constant 0 : index
    %c0_12 = arith.constant 0 : index
    %26 = vector.load %arg5[%c0_11, %c0_12] : memref<32x64xbf16, #tpu.memory_space<vmem>>, vector<32x64xbf16>
    %cst_13 = arith.constant dense<0.000000e+00> : vector<32x64xf32>
    %27 = tpu.matmul %25, %26, %cst_13 {dimension_numbers = #tpu.dot_dimension_numbers<[1], [0], [0], [1], [0, 0, 1, 1], [], []>} : vector<32x32xbf16>, vector<32x64xbf16>, vector<32x64xf32> -> vector<32x64xf32>
    %c0_14 = arith.constant 0 : index
    %c0_15 = arith.constant 0 : index
    %28 = vector.load %arg6[%c0_14, %c0_15] : memref<1x64xf32, #tpu.memory_space<vmem>>, vector<1x64xf32>
    %29 = vector.broadcast %28 : vector<1x64xf32> to vector<32x64xf32>
    %30 = arith.addf %27, %29 : vector<32x64xf32>
    %31 = arith.truncf %22 : vector<32x32xf32> to vector<32x32xbf16>
    %c0_16 = arith.constant 0 : index
    %c0_17 = arith.constant 0 : index
    %32 = vector.load %arg7[%c0_16, %c0_17] : memref<32x32xbf16, #tpu.memory_space<vmem>>, vector<32x32xbf16>
    %cst_18 = arith.constant dense<0.000000e+00> : vector<32x32xf32>
    %33 = tpu.matmul %31, %32, %cst_18 {dimension_numbers = #tpu.dot_dimension_numbers<[1], [0], [0], [1], [0, 0, 1, 1], [], []>} : vector<32x32xbf16>, vector<32x32xbf16>, vector<32x32xf32> -> vector<32x32xf32>
    %c0_19 = arith.constant 0 : index
    %c0_20 = arith.constant 0 : index
    %34 = vector.load %arg8[%c0_19, %c0_20] : memref<1x32xf32, #tpu.memory_space<vmem>>, vector<1x32xf32>
    %35 = vector.broadcast %34 : vector<1x32xf32> to vector<32x32xf32>
    %36 = arith.addf %33, %35 : vector<32x32xf32>
    %37 = arith.truncf %30 : vector<32x64xf32> to vector<32x64xbf16>
    %c0_21 = arith.constant 0 : index
    %c0_22 = arith.constant 0 : index
    %38 = vector.load %arg9[%c0_21, %c0_22] : memref<32x64xbf16, #tpu.memory_space<vmem>>, vector<32x64xbf16>
    tpu.vector_store %arg9[%c0_21, %c0_22], %37 {strides = array<i32>} : memref<32x64xbf16, #tpu.memory_space<vmem>>, vector<32x64xbf16>,
    %39 = arith.truncf %36 : vector<32x32xf32> to vector<32x32xbf16>
    %c0_23 = arith.constant 0 : index
    %c0_24 = arith.constant 0 : index
    %40 = vector.load %arg10[%c0_23, %c0_24] : memref<32x32xbf16, #tpu.memory_space<vmem>>, vector<32x32xbf16>
    tpu.vector_store %arg10[%c0_23, %c0_24], %39 {strides = array<i32>} : memref<32x32xbf16, #tpu.memory_space<vmem>>, vector<32x32xbf16>,
    return
  }
  func.func @transform_0(%arg0: i32) -> (i32, i32) {
    %c0_i32 = arith.constant 0 : i32
    %c0_i32_0 = arith.constant 0 : i32
    return %arg0, %c0_i32 : i32, i32
  }
  func.func @transform_1(%arg0: i32) -> (i32, i32) {
    %c0_i32 = arith.constant 0 : i32
    %c0_i32_0 = arith.constant 0 : i32
    return %arg0, %c0_i32 : i32, i32
  }
  func.func @transform_2(%arg0: i32) -> (i32, i32) {
    %c0_i32 = arith.constant 0 : i32
    %c0_i32_0 = arith.constant 0 : i32
    %c0_i32_1 = arith.constant 0 : i32
    return %c0_i32, %c0_i32_0 : i32, i32
  }
  func.func @transform_3(%arg0: i32) -> (i32, i32) {
    %c0_i32 = arith.constant 0 : i32
    %c0_i32_0 = arith.constant 0 : i32
    %c0_i32_1 = arith.constant 0 : i32
    return %c0_i32, %c0_i32_0 : i32, i32
  }
  func.func @transform_4(%arg0: i32) -> (i32, i32) {
    %c0_i32 = arith.constant 0 : i32
    %c0_i32_0 = arith.constant 0 : i32
    %c0_i32_1 = arith.constant 0 : i32
    return %c0_i32, %c0_i32_0 : i32, i32
  }
  func.func @transform_5(%arg0: i32) -> (i32, i32) {
    %c0_i32 = arith.constant 0 : i32
    %c0_i32_0 = arith.constant 0 : i32
    %c0_i32_1 = arith.constant 0 : i32
    return %c0_i32, %c0_i32_0 : i32, i32
  }
  func.func @transform_6(%arg0: i32) -> (i32, i32) {
    %c0_i32 = arith.constant 0 : i32
    %c0_i32_0 = arith.constant 0 : i32
    %c0_i32_1 = arith.constant 0 : i32
    return %c0_i32, %c0_i32_0 : i32, i32
  }
  func.func @transform_7(%arg0: i32) -> (i32, i32) {
    %c0_i32 = arith.constant 0 : i32
    %c0_i32_0 = arith.constant 0 : i32
    %c0_i32_1 = arith.constant 0 : i32
    return %c0_i32, %c0_i32_0 : i32, i32
  }
  func.func @transform_8(%arg0: i32) -> (i32, i32) {
    %c0_i32 = arith.constant 0 : i32
    %c0_i32_0 = arith.constant 0 : i32
    return %arg0, %c0_i32 : i32, i32
  }
  func.func @transform_9(%arg0: i32) -> (i32, i32) {
    %c0_i32 = arith.constant 0 : i32
    %c0_i32_0 = arith.constant 0 : i32
    return %arg0, %c0_i32 : i32, i32
  }
}

module attributes {stable_mosaic.version = 11 : i64} {
  func.func @_ln_ffn_kernel(%arg0: i32, %arg1: memref<32x32xf32, #tpu.memory_space<vmem>>, %arg2: memref<1x32xf32, #tpu.memory_space<vmem>>, %arg3: memref<1x32xf32, #tpu.memory_space<vmem>>, %arg4: memref<32x64xbf16, #tpu.memory_space<vmem>>, %arg5: memref<1x64xf32, #tpu.memory_space<vmem>>, %arg6: memref<64x32xbf16, #tpu.memory_space<vmem>>, %arg7: memref<1x32xf32, #tpu.memory_space<vmem>>, %arg8: memref<32x32xf32, #tpu.memory_space<vmem>>) attributes {dimension_semantics = [#tpu.dimension_semantics<parallel>], iteration_bounds = array<i64: 1>, scalar_prefetch = 0 : i64, scratch_operands = 0 : i64, tpu.core_type = #tpu.core_type<tc>, window_params = [{transform_indices = @transform_0, window_bounds = array<i64: 32, 32>}, {pipeline_mode = #tpu.pipeline_mode<synchronous>, transform_indices = @transform_1, window_bounds = array<i64: 1, 32>}, {pipeline_mode = #tpu.pipeline_mode<synchronous>, transform_indices = @transform_2, window_bounds = array<i64: 1, 32>}, {pipeline_mode = #tpu.pipeline_mode<synchronous>, transform_indices = @transform_3, window_bounds = array<i64: 32, 64>}, {pipeline_mode = #tpu.pipeline_mode<synchronous>, transform_indices = @transform_4, window_bounds = array<i64: 1, 64>}, {pipeline_mode = #tpu.pipeline_mode<synchronous>, transform_indices = @transform_5, window_bounds = array<i64: 64, 32>}, {pipeline_mode = #tpu.pipeline_mode<synchronous>, transform_indices = @transform_6, window_bounds = array<i64: 1, 32>}, {transform_indices = @transform_7, window_bounds = array<i64: 32, 32>}]} {
    %c0 = arith.constant 0 : index
    %c0_0 = arith.constant 0 : index
    %0 = vector.load %arg1[%c0, %c0_0] : memref<32x32xf32, #tpu.memory_space<vmem>>, vector<32x32xf32>
    %c0_1 = arith.constant 0 : index
    %c0_2 = arith.constant 0 : index
    %1 = vector.load %arg2[%c0_1, %c0_2] : memref<1x32xf32, #tpu.memory_space<vmem>>, vector<1x32xf32>
    %c0_3 = arith.constant 0 : index
    %c0_4 = arith.constant 0 : index
    %2 = vector.load %arg3[%c0_3, %c0_4] : memref<1x32xf32, #tpu.memory_space<vmem>>, vector<1x32xf32>
    %cst = arith.constant dense<0.000000e+00> : vector<32xf32>
    %3 = vector.multi_reduction <add>, %0, %cst [1] : vector<32x32xf32> to vector<32xf32>
    %4 = vector.shape_cast %3 : vector<32xf32> to vector<32x1xf32>
    %cst_5 = arith.constant 3.200000e+01 : f32
    %5 = vector.broadcast %cst_5 : f32 to vector<32x1xf32>
    %6 = arith.divf %4, %5 : vector<32x1xf32>
    %7 = vector.broadcast %6 : vector<32x1xf32> to vector<32x32xf32>
    %8 = arith.subf %0, %7 : vector<32x32xf32>
    %9 = arith.mulf %8, %8 : vector<32x32xf32>
    %cst_6 = arith.constant dense<0.000000e+00> : vector<32xf32>
    %10 = vector.multi_reduction <add>, %9, %cst_6 [1] : vector<32x32xf32> to vector<32xf32>
    %11 = vector.shape_cast %10 : vector<32xf32> to vector<32x1xf32>
    %cst_7 = arith.constant 3.200000e+01 : f32
    %12 = vector.broadcast %cst_7 : f32 to vector<32x1xf32>
    %13 = arith.divf %11, %12 : vector<32x1xf32>
    %cst_8 = arith.constant 9.99999974E-6 : f32
    %14 = vector.broadcast %cst_8 : f32 to vector<32x1xf32>
    %15 = arith.addf %13, %14 : vector<32x1xf32>
    %16 = math.rsqrt %15 : vector<32x1xf32>
    %17 = vector.broadcast %16 : vector<32x1xf32> to vector<32x32xf32>
    %18 = arith.mulf %8, %17 : vector<32x32xf32>
    %19 = vector.broadcast %1 : vector<1x32xf32> to vector<32x32xf32>
    %20 = arith.mulf %18, %19 : vector<32x32xf32>
    %21 = vector.broadcast %2 : vector<1x32xf32> to vector<32x32xf32>
    %22 = arith.addf %20, %21 : vector<32x32xf32>
    %23 = arith.truncf %22 : vector<32x32xf32> to vector<32x32xbf16>
    %c0_9 = arith.constant 0 : index
    %c0_10 = arith.constant 0 : index
    %24 = vector.load %arg4[%c0_9, %c0_10] : memref<32x64xbf16, #tpu.memory_space<vmem>>, vector<32x64xbf16>
    %cst_11 = arith.constant dense<0.000000e+00> : vector<32x64xf32>
    %25 = tpu.matmul %23, %24, %cst_11 {dimension_numbers = #tpu.dot_dimension_numbers<[1], [0], [0], [1], [0, 0, 1, 1], [], []>} : vector<32x32xbf16>, vector<32x64xbf16>, vector<32x64xf32> -> vector<32x64xf32>
    %c0_12 = arith.constant 0 : index
    %c0_13 = arith.constant 0 : index
    %26 = vector.load %arg5[%c0_12, %c0_13] : memref<1x64xf32, #tpu.memory_space<vmem>>, vector<1x64xf32>
    %27 = vector.broadcast %26 : vector<1x64xf32> to vector<32x64xf32>
    %28 = arith.addf %25, %27 : vector<32x64xf32>
    %cst_14 = arith.constant 0.000000e+00 : f32
    %29 = vector.broadcast %cst_14 : f32 to vector<32x64xf32>
    %30 = arith.maximumf %28, %29 : vector<32x64xf32>
    %31 = arith.truncf %30 : vector<32x64xf32> to vector<32x64xbf16>
    %c0_15 = arith.constant 0 : index
    %c0_16 = arith.constant 0 : index
    %32 = vector.load %arg6[%c0_15, %c0_16] : memref<64x32xbf16, #tpu.memory_space<vmem>>, vector<64x32xbf16>
    %cst_17 = arith.constant dense<0.000000e+00> : vector<32x32xf32>
    %33 = tpu.matmul %31, %32, %cst_17 {dimension_numbers = #tpu.dot_dimension_numbers<[1], [0], [0], [1], [0, 0, 1, 1], [], []>} : vector<32x64xbf16>, vector<64x32xbf16>, vector<32x32xf32> -> vector<32x32xf32>
    %c0_18 = arith.constant 0 : index
    %c0_19 = arith.constant 0 : index
    %34 = vector.load %arg7[%c0_18, %c0_19] : memref<1x32xf32, #tpu.memory_space<vmem>>, vector<1x32xf32>
    %35 = vector.broadcast %34 : vector<1x32xf32> to vector<32x32xf32>
    %36 = arith.addf %33, %35 : vector<32x32xf32>
    %37 = arith.addf %0, %36 : vector<32x32xf32>
    %c0_20 = arith.constant 0 : index
    %c0_21 = arith.constant 0 : index
    %38 = vector.load %arg8[%c0_20, %c0_21] : memref<32x32xf32, #tpu.memory_space<vmem>>, vector<32x32xf32>
    tpu.vector_store %arg8[%c0_20, %c0_21], %37 {strides = array<i32>} : memref<32x32xf32, #tpu.memory_space<vmem>>, vector<32x32xf32>,
    return
  }
  func.func @transform_0(%arg0: i32) -> (i32, i32) {
    %c0_i32 = arith.constant 0 : i32
    %c0_i32_0 = arith.constant 0 : i32
    return %arg0, %c0_i32 : i32, i32
  }
  func.func @transform_1(%arg0: i32) -> (i32, i32) {
    %c0_i32 = arith.constant 0 : i32
    %c0_i32_0 = arith.constant 0 : i32
    %c0_i32_1 = arith.constant 0 : i32
    return %c0_i32, %c0_i32_0 : i32, i32
  }
  func.func @transform_2(%arg0: i32) -> (i32, i32) {
    %c0_i32 = arith.constant 0 : i32
    %c0_i32_0 = arith.constant 0 : i32
    %c0_i32_1 = arith.constant 0 : i32
    return %c0_i32, %c0_i32_0 : i32, i32
  }
  func.func @transform_3(%arg0: i32) -> (i32, i32) {
    %c0_i32 = arith.constant 0 : i32
    %c0_i32_0 = arith.constant 0 : i32
    %c0_i32_1 = arith.constant 0 : i32
    return %c0_i32, %c0_i32_0 : i32, i32
  }
  func.func @transform_4(%arg0: i32) -> (i32, i32) {
    %c0_i32 = arith.constant 0 : i32
    %c0_i32_0 = arith.constant 0 : i32
    %c0_i32_1 = arith.constant 0 : i32
    return %c0_i32, %c0_i32_0 : i32, i32
  }
  func.func @transform_5(%arg0: i32) -> (i32, i32) {
    %c0_i32 = arith.constant 0 : i32
    %c0_i32_0 = arith.constant 0 : i32
    %c0_i32_1 = arith.constant 0 : i32
    return %c0_i32, %c0_i32_0 : i32, i32
  }
  func.func @transform_6(%arg0: i32) -> (i32, i32) {
    %c0_i32 = arith.constant 0 : i32
    %c0_i32_0 = arith.constant 0 : i32
    %c0_i32_1 = arith.constant 0 : i32
    return %c0_i32, %c0_i32_0 : i32, i32
  }
  func.func @transform_7(%arg0: i32) -> (i32, i32) {
    %c0_i32 = arith.constant 0 : i32
    %c0_i32_0 = arith.constant 0 : i32
    return %arg0, %c0_i32 : i32, i32
  }
}

module attributes {stable_mosaic.version = 11 : i64} {
  func.func @_self_attn_kernel(%arg0: i32, %arg1: memref<1x16x64xbf16, #tpu.memory_space<vmem>>, %arg2: memref<1x16x32xbf16, #tpu.memory_space<vmem>>, %arg3: memref<1x1x16xf32, #tpu.memory_space<vmem>>, %arg4: memref<1x16x32xf32, #tpu.memory_space<vmem>>, %arg5: memref<4x8x32xbf16, #tpu.memory_space<vmem>>, %arg6: memref<1x32xf32, #tpu.memory_space<vmem>>, %arg7: memref<1x16x32xf32, #tpu.memory_space<vmem>>) attributes {dimension_semantics = [#tpu.dimension_semantics<parallel>], iteration_bounds = array<i64: 2>, scalar_prefetch = 0 : i64, scratch_operands = 0 : i64, tpu.core_type = #tpu.core_type<tc>, window_params = [{transform_indices = @transform_0, window_bounds = array<i64: 1, 16, 64>}, {transform_indices = @transform_1, window_bounds = array<i64: 1, 16, 32>}, {transform_indices = @transform_2, window_bounds = array<i64: 1, 1, 16>}, {transform_indices = @transform_3, window_bounds = array<i64: 1, 16, 32>}, {pipeline_mode = #tpu.pipeline_mode<synchronous>, transform_indices = @transform_4, window_bounds = array<i64: 4, 8, 32>}, {pipeline_mode = #tpu.pipeline_mode<synchronous>, transform_indices = @transform_5, window_bounds = array<i64: 1, 32>}, {transform_indices = @transform_6, window_bounds = array<i64: 1, 16, 32>}]} {
    %c0 = arith.constant 0 : index
    %c0_0 = arith.constant 0 : index
    %c0_1 = arith.constant 0 : index
    %0 = vector.load %arg3[%c0, %c0_0, %c0_1] : memref<1x1x16xf32, #tpu.memory_space<vmem>>, vector<1x1x16xf32>
    %1 = vector.shape_cast %0 : vector<1x1x16xf32> to vector<1x16xf32>
    %c0_2 = arith.constant 0 : index
    %c0_3 = arith.constant 0 : index
    %c0_4 = arith.constant 0 : index
    %2 = vector.load %arg4[%c0_2, %c0_3, %c0_4] : memref<1x16x32xf32, #tpu.memory_space<vmem>>, vector<1x16x32xf32>
    %3 = vector.shape_cast %2 : vector<1x16x32xf32> to vector<16x32xf32>
    %c0_5 = arith.constant 0 : index
    %c0_6 = arith.constant 0 : index
    %4 = vector.load %arg6[%c0_5, %c0_6] : memref<1x32xf32, #tpu.memory_space<vmem>>, vector<1x32xf32>
    %c0_7 = arith.constant 0 : index
    %c0_8 = arith.constant 0 : index
    %c0_9 = arith.constant 0 : index
    %5 = vector.load %arg1[%c0_7, %c0_8, %c0_9] : memref<1x16x64xbf16, #tpu.memory_space<vmem>>, vector<1x16x8xbf16>
    %6 = vector.shape_cast %5 : vector<1x16x8xbf16> to vector<16x8xbf16>
    %c0_10 = arith.constant 0 : index
    %c0_11 = arith.constant 0 : index
    %c32 = arith.constant 32 : index
    %7 = vector.load %arg1[%c0_10, %c0_11, %c32] : memref<1x16x64xbf16, #tpu.memory_space<vmem>>, vector<1x16x8xbf16>
    %8 = vector.shape_cast %7 : vector<1x16x8xbf16> to vector<16x8xbf16>
    %c0_12 = arith.constant 0 : index
    %c0_13 = arith.constant 0 : index
    %c0_14 = arith.constant 0 : index
    %9 = vector.load %arg2[%c0_12, %c0_13, %c0_14] : memref<1x16x32xbf16, #tpu.memory_space<vmem>>, vector<1x16x8xbf16>
    %10 = vector.shape_cast %9 : vector<1x16x8xbf16> to vector<16x8xbf16>
    %cst = arith.constant dense<0.000000e+00> : vector<16x16xf32>
    %11 = tpu.matmul %6, %8, %cst {dimension_numbers = #tpu.dot_dimension_numbers<[1], [1], [0], [0], [0, 0, 1, 0], [], []>} : vector<16x8xbf16>, vector<16x8xbf16>, vector<16x16xf32> -> vector<16x16xf32>
    %12 = vector.broadcast %1 : vector<1x16xf32> to vector<16x16xf32>
    %13 = arith.addf %11, %12 : vector<16x16xf32>
    %cst_15 = arith.constant dense<0xFF800000> : vector<16xf32>
    %14 = vector.multi_reduction <maximumf>, %13, %cst_15 [1] : vector<16x16xf32> to vector<16xf32>
    %15 = vector.shape_cast %14 : vector<16xf32> to vector<16x1xf32>
    %16 = vector.broadcast %15 : vector<16x1xf32> to vector<16x16xf32>
    %17 = arith.subf %13, %16 : vector<16x16xf32>
    %18 = math.exp %17 : vector<16x16xf32>
    %cst_16 = arith.constant dense<0.000000e+00> : vector<16xf32>
    %19 = vector.multi_reduction <add>, %18, %cst_16 [1] : vector<16x16xf32> to vector<16xf32>
    %20 = vector.shape_cast %19 : vector<16xf32> to vector<16x1xf32>
    %21 = tpu.reciprocal %20 {approx = true} : vector<16x1xf32> -> vector<16x1xf32>
    %22 = vector.broadcast %21 : vector<16x1xf32> to vector<16x16xf32>
    %23 = arith.mulf %18, %22 : vector<16x16xf32>
    %24 = arith.truncf %23 : vector<16x16xf32> to vector<16x16xbf16>
    %cst_17 = arith.constant dense<0.000000e+00> : vector<16x8xf32>
    %25 = tpu.matmul %24, %10, %cst_17 {dimension_numbers = #tpu.dot_dimension_numbers<[1], [0], [0], [1], [0, 0, 1, 1], [], []>} : vector<16x16xbf16>, vector<16x8xbf16>, vector<16x8xf32> -> vector<16x8xf32>
    %26 = arith.truncf %25 : vector<16x8xf32> to vector<16x8xbf16>
    %c0_18 = arith.constant 0 : index
    %c0_19 = arith.constant 0 : index
    %c0_20 = arith.constant 0 : index
    %27 = vector.load %arg5[%c0_18, %c0_19, %c0_20] : memref<4x8x32xbf16, #tpu.memory_space<vmem>>, vector<1x8x32xbf16>
    %28 = vector.shape_cast %27 : vector<1x8x32xbf16> to vector<8x32xbf16>
    %cst_21 = arith.constant dense<0.000000e+00> : vector<16x32xf32>
    %29 = tpu.matmul %26, %28, %cst_21 {dimension_numbers = #tpu.dot_dimension_numbers<[1], [0], [0], [1], [0, 0, 1, 1], [], []>} : vector<16x8xbf16>, vector<8x32xbf16>, vector<16x32xf32> -> vector<16x32xf32>
    %c0_22 = arith.constant 0 : index
    %c0_23 = arith.constant 0 : index
    %c8 = arith.constant 8 : index
    %30 = vector.load %arg1[%c0_22, %c0_23, %c8] : memref<1x16x64xbf16, #tpu.memory_space<vmem>>, vector<1x16x8xbf16>
    %31 = vector.shape_cast %30 : vector<1x16x8xbf16> to vector<16x8xbf16>
    %c0_24 = arith.constant 0 : index
    %c0_25 = arith.constant 0 : index
    %c40 = arith.constant 40 : index
    %32 = vector.load %arg1[%c0_24, %c0_25, %c40] : memref<1x16x64xbf16, #tpu.memory_space<vmem>>, vector<1x16x8xbf16>
    %33 = vector.shape_cast %32 : vector<1x16x8xbf16> to vector<16x8xbf16>
    %c0_26 = arith.constant 0 : index
    %c0_27 = arith.constant 0 : index
    %c8_28 = arith.constant 8 : index
    %34 = vector.load %arg2[%c0_26, %c0_27, %c8_28] : memref<1x16x32xbf16, #tpu.memory_space<vmem>>, vector<1x16x8xbf16>
    %35 = vector.shape_cast %34 : vector<1x16x8xbf16> to vector<16x8xbf16>
    %cst_29 = arith.constant dense<0.000000e+00> : vector<16x16xf32>
    %36 = tpu.matmul %31, %33, %cst_29 {dimension_numbers = #tpu.dot_dimension_numbers<[1], [1], [0], [0], [0, 0, 1, 0], [], []>} : vector<16x8xbf16>, vector<16x8xbf16>, vector<16x16xf32> -> vector<16x16xf32>
    %37 = vector.broadcast %1 : vector<1x16xf32> to vector<16x16xf32>
    %38 = arith.addf %36, %37 : vector<16x16xf32>
    %cst_30 = arith.constant dense<0xFF800000> : vector<16xf32>
    %39 = vector.multi_reduction <maximumf>, %38, %cst_30 [1] : vector<16x16xf32> to vector<16xf32>
    %40 = vector.shape_cast %39 : vector<16xf32> to vector<16x1xf32>
    %41 = vector.broadcast %40 : vector<16x1xf32> to vector<16x16xf32>
    %42 = arith.subf %38, %41 : vector<16x16xf32>
    %43 = math.exp %42 : vector<16x16xf32>
    %cst_31 = arith.constant dense<0.000000e+00> : vector<16xf32>
    %44 = vector.multi_reduction <add>, %43, %cst_31 [1] : vector<16x16xf32> to vector<16xf32>
    %45 = vector.shape_cast %44 : vector<16xf32> to vector<16x1xf32>
    %46 = tpu.reciprocal %45 {approx = true} : vector<16x1xf32> -> vector<16x1xf32>
    %47 = vector.broadcast %46 : vector<16x1xf32> to vector<16x16xf32>
    %48 = arith.mulf %43, %47 : vector<16x16xf32>
    %49 = arith.truncf %48 : vector<16x16xf32> to vector<16x16xbf16>
    %cst_32 = arith.constant dense<0.000000e+00> : vector<16x8xf32>
    %50 = tpu.matmul %49, %35, %cst_32 {dimension_numbers = #tpu.dot_dimension_numbers<[1], [0], [0], [1], [0, 0, 1, 1], [], []>} : vector<16x16xbf16>, vector<16x8xbf16>, vector<16x8xf32> -> vector<16x8xf32>
    %51 = arith.truncf %50 : vector<16x8xf32> to vector<16x8xbf16>
    %c1 = arith.constant 1 : index
    %c0_33 = arith.constant 0 : index
    %c0_34 = arith.constant 0 : index
    %52 = vector.load %arg5[%c1, %c0_33, %c0_34] : memref<4x8x32xbf16, #tpu.memory_space<vmem>>, vector<1x8x32xbf16>
    %53 = vector.shape_cast %52 : vector<1x8x32xbf16> to vector<8x32xbf16>
    %cst_35 = arith.constant dense<0.000000e+00> : vector<16x32xf32>
    %54 = tpu.matmul %51, %53, %cst_35 {dimension_numbers = #tpu.dot_dimension_numbers<[1], [0], [0], [1], [0, 0, 1, 1], [], []>} : vector<16x8xbf16>, vector<8x32xbf16>, vector<16x32xf32> -> vector<16x32xf32>
    %55 = arith.addf %29, %54 : vector<16x32xf32>
    %c0_36 = arith.constant 0 : index
    %c0_37 = arith.constant 0 : index
    %c16 = arith.constant 16 : index
    %56 = vector.load %arg1[%c0_36, %c0_37, %c16] : memref<1x16x64xbf16, #tpu.memory_space<vmem>>, vector<1x16x8xbf16>
    %57 = vector.shape_cast %56 : vector<1x16x8xbf16> to vector<16x8xbf16>
    %c0_38 = arith.constant 0 : index
    %c0_39 = arith.constant 0 : index
    %c48 = arith.constant 48 : index
    %58 = vector.load %arg1[%c0_38, %c0_39, %c48] : memref<1x16x64xbf16, #tpu.memory_space<vmem>>, vector<1x16x8xbf16>
    %59 = vector.shape_cast %58 : vector<1x16x8xbf16> to vector<16x8xbf16>
    %c0_40 = arith.constant 0 : index
    %c0_41 = arith.constant 0 : index
    %c16_42 = arith.constant 16 : index
    %60 = vector.load %arg2[%c0_40, %c0_41, %c16_42] : memref<1x16x32xbf16, #tpu.memory_space<vmem>>, vector<1x16x8xbf16>
    %61 = vector.shape_cast %60 : vector<1x16x8xbf16> to vector<16x8xbf16>
    %cst_43 = arith.constant dense<0.000000e+00> : vector<16x16xf32>
    %62 = tpu.matmul %57, %59, %cst_43 {dimension_numbers = #tpu.dot_dimension_numbers<[1], [1], [0], [0], [0, 0, 1, 0], [], []>} : vector<16x8xbf16>, vector<16x8xbf16>, vector<16x16xf32> -> vector<16x16xf32>
    %63 = vector.broadcast %1 : vector<1x16xf32> to vector<16x16xf32>
    %64 = arith.addf %62, %63 : vector<16x16xf32>
    %cst_44 = arith.constant dense<0xFF800000> : vector<16xf32>
    %65 = vector.multi_reduction <maximumf>, %64, %cst_44 [1] : vector<16x16xf32> to vector<16xf32>
    %66 = vector.shape_cast %65 : vector<16xf32> to vector<16x1xf32>
    %67 = vector.broadcast %66 : vector<16x1xf32> to vector<16x16xf32>
    %68 = arith.subf %64, %67 : vector<16x16xf32>
    %69 = math.exp %68 : vector<16x16xf32>
    %cst_45 = arith.constant dense<0.000000e+00> : vector<16xf32>
    %70 = vector.multi_reduction <add>, %69, %cst_45 [1] : vector<16x16xf32> to vector<16xf32>
    %71 = vector.shape_cast %70 : vector<16xf32> to vector<16x1xf32>
    %72 = tpu.reciprocal %71 {approx = true} : vector<16x1xf32> -> vector<16x1xf32>
    %73 = vector.broadcast %72 : vector<16x1xf32> to vector<16x16xf32>
    %74 = arith.mulf %69, %73 : vector<16x16xf32>
    %75 = arith.truncf %74 : vector<16x16xf32> to vector<16x16xbf16>
    %cst_46 = arith.constant dense<0.000000e+00> : vector<16x8xf32>
    %76 = tpu.matmul %75, %61, %cst_46 {dimension_numbers = #tpu.dot_dimension_numbers<[1], [0], [0], [1], [0, 0, 1, 1], [], []>} : vector<16x16xbf16>, vector<16x8xbf16>, vector<16x8xf32> -> vector<16x8xf32>
    %77 = arith.truncf %76 : vector<16x8xf32> to vector<16x8xbf16>
    %c2 = arith.constant 2 : index
    %c0_47 = arith.constant 0 : index
    %c0_48 = arith.constant 0 : index
    %78 = vector.load %arg5[%c2, %c0_47, %c0_48] : memref<4x8x32xbf16, #tpu.memory_space<vmem>>, vector<1x8x32xbf16>
    %79 = vector.shape_cast %78 : vector<1x8x32xbf16> to vector<8x32xbf16>
    %cst_49 = arith.constant dense<0.000000e+00> : vector<16x32xf32>
    %80 = tpu.matmul %77, %79, %cst_49 {dimension_numbers = #tpu.dot_dimension_numbers<[1], [0], [0], [1], [0, 0, 1, 1], [], []>} : vector<16x8xbf16>, vector<8x32xbf16>, vector<16x32xf32> -> vector<16x32xf32>
    %81 = arith.addf %55, %80 : vector<16x32xf32>
    %c0_50 = arith.constant 0 : index
    %c0_51 = arith.constant 0 : index
    %c24 = arith.constant 24 : index
    %82 = vector.load %arg1[%c0_50, %c0_51, %c24] : memref<1x16x64xbf16, #tpu.memory_space<vmem>>, vector<1x16x8xbf16>
    %83 = vector.shape_cast %82 : vector<1x16x8xbf16> to vector<16x8xbf16>
    %c0_52 = arith.constant 0 : index
    %c0_53 = arith.constant 0 : index
    %c56 = arith.constant 56 : index
    %84 = vector.load %arg1[%c0_52, %c0_53, %c56] : memref<1x16x64xbf16, #tpu.memory_space<vmem>>, vector<1x16x8xbf16>
    %85 = vector.shape_cast %84 : vector<1x16x8xbf16> to vector<16x8xbf16>
    %c0_54 = arith.constant 0 : index
    %c0_55 = arith.constant 0 : index
    %c24_56 = arith.constant 24 : index
    %86 = vector.load %arg2[%c0_54, %c0_55, %c24_56] : memref<1x16x32xbf16, #tpu.memory_space<vmem>>, vector<1x16x8xbf16>
    %87 = vector.shape_cast %86 : vector<1x16x8xbf16> to vector<16x8xbf16>
    %cst_57 = arith.constant dense<0.000000e+00> : vector<16x16xf32>
    %88 = tpu.matmul %83, %85, %cst_57 {dimension_numbers = #tpu.dot_dimension_numbers<[1], [1], [0], [0], [0, 0, 1, 0], [], []>} : vector<16x8xbf16>, vector<16x8xbf16>, vector<16x16xf32> -> vector<16x16xf32>
    %89 = vector.broadcast %1 : vector<1x16xf32> to vector<16x16xf32>
    %90 = arith.addf %88, %89 : vector<16x16xf32>
    %cst_58 = arith.constant dense<0xFF800000> : vector<16xf32>
    %91 = vector.multi_reduction <maximumf>, %90, %cst_58 [1] : vector<16x16xf32> to vector<16xf32>
    %92 = vector.shape_cast %91 : vector<16xf32> to vector<16x1xf32>
    %93 = vector.broadcast %92 : vector<16x1xf32> to vector<16x16xf32>
    %94 = arith.subf %90, %93 : vector<16x16xf32>
    %95 = math.exp %94 : vector<16x16xf32>
    %cst_59 = arith.constant dense<0.000000e+00> : vector<16xf32>
    %96 = vector.multi_reduction <add>, %95, %cst_59 [1] : vector<16x16xf32> to vector<16xf32>
    %97 = vector.shape_cast %96 : vector<16xf32> to vector<16x1xf32>
    %98 = tpu.reciprocal %97 {approx = true} : vector<16x1xf32> -> vector<16x1xf32>
    %99 = vector.broadcast %98 : vector<16x1xf32> to vector<16x16xf32>
    %100 = arith.mulf %95, %99 : vector<16x16xf32>
    %101 = arith.truncf %100 : vector<16x16xf32> to vector<16x16xbf16>
    %cst_60 = arith.constant dense<0.000000e+00> : vector<16x8xf32>
    %102 = tpu.matmul %101, %87, %cst_60 {dimension_numbers = #tpu.dot_dimension_numbers<[1], [0], [0], [1], [0, 0, 1, 1], [], []>} : vector<16x16xbf16>, vector<16x8xbf16>, vector<16x8xf32> -> vector<16x8xf32>
    %103 = arith.truncf %102 : vector<16x8xf32> to vector<16x8xbf16>
    %c3 = arith.constant 3 : index
    %c0_61 = arith.constant 0 : index
    %c0_62 = arith.constant 0 : index
    %104 = vector.load %arg5[%c3, %c0_61, %c0_62] : memref<4x8x32xbf16, #tpu.memory_space<vmem>>, vector<1x8x32xbf16>
    %105 = vector.shape_cast %104 : vector<1x8x32xbf16> to vector<8x32xbf16>
    %cst_63 = arith.constant dense<0.000000e+00> : vector<16x32xf32>
    %106 = tpu.matmul %103, %105, %cst_63 {dimension_numbers = #tpu.dot_dimension_numbers<[1], [0], [0], [1], [0, 0, 1, 1], [], []>} : vector<16x8xbf16>, vector<8x32xbf16>, vector<16x32xf32> -> vector<16x32xf32>
    %107 = arith.addf %81, %106 : vector<16x32xf32>
    %108 = arith.addf %3, %107 : vector<16x32xf32>
    %109 = vector.broadcast %4 : vector<1x32xf32> to vector<16x32xf32>
    %110 = arith.addf %108, %109 : vector<16x32xf32>
    %c0_64 = arith.constant 0 : index
    %c0_65 = arith.constant 0 : index
    %c0_66 = arith.constant 0 : index
    %111 = vector.load %arg7[%c0_64, %c0_65, %c0_66] : memref<1x16x32xf32, #tpu.memory_space<vmem>>, vector<1x16x32xf32>
    %112 = vector.shape_cast %111 : vector<1x16x32xf32> to vector<16x32xf32>
    %113 = vector.shape_cast %110 : vector<16x32xf32> to vector<1x16x32xf32>
    tpu.vector_store %arg7[%c0_64, %c0_65, %c0_66], %113 {strides = array<i32>} : memref<1x16x32xf32, #tpu.memory_space<vmem>>, vector<1x16x32xf32>,
    return
  }
  func.func @transform_0(%arg0: i32) -> (i32, i32, i32) {
    %c0_i32 = arith.constant 0 : i32
    %c0_i32_0 = arith.constant 0 : i32
    %c0_i32_1 = arith.constant 0 : i32
    return %arg0, %c0_i32, %c0_i32_0 : i32, i32, i32
  }
  func.func @transform_1(%arg0: i32) -> (i32, i32, i32) {
    %c0_i32 = arith.constant 0 : i32
    %c0_i32_0 = arith.constant 0 : i32
    %c0_i32_1 = arith.constant 0 : i32
    return %arg0, %c0_i32, %c0_i32_0 : i32, i32, i32
  }
  func.func @transform_2(%arg0: i32) -> (i32, i32, i32) {
    %c0_i32 = arith.constant 0 : i32
    %c0_i32_0 = arith.constant 0 : i32
    %c0_i32_1 = arith.constant 0 : i32
    return %arg0, %c0_i32, %c0_i32_0 : i32, i32, i32
  }
  func.func @transform_3(%arg0: i32) -> (i32, i32, i32) {
    %c0_i32 = arith.constant 0 : i32
    %c0_i32_0 = arith.constant 0 : i32
    %c0_i32_1 = arith.constant 0 : i32
    return %arg0, %c0_i32, %c0_i32_0 : i32, i32, i32
  }
  func.func @transform_4(%arg0: i32) -> (i32, i32, i32) {
    %c0_i32 = arith.constant 0 : i32
    %c0_i32_0 = arith.constant 0 : i32
    %c0_i32_1 = arith.constant 0 : i32
    %c0_i32_2 = arith.constant 0 : i32
    return %c0_i32, %c0_i32_0, %c0_i32_1 : i32, i32, i32
  }
  func.func @transform_5(%arg0: i32) -> (i32, i32) {
    %c0_i32 = arith.constant 0 : i32
    %c0_i32_0 = arith.constant 0 : i32
    %c0_i32_1 = arith.constant 0 : i32
    return %c0_i32, %c0_i32_0 : i32, i32
  }
  func.func @transform_6(%arg0: i32) -> (i32, i32, i32) {
    %c0_i32 = arith.constant 0 : i32
    %c0_i32_0 = arith.constant 0 : i32
    %c0_i32_1 = arith.constant 0 : i32
    return %arg0, %c0_i32, %c0_i32_0 : i32, i32, i32
  }
}

module attributes {stable_mosaic.version = 11 : i64} {
  func.func @_ln_qkv_kernel(%arg0: i32, %arg1: memref<32x32xf32, #tpu.memory_space<vmem>>, %arg2: memref<32x32xf32, #tpu.memory_space<vmem>>, %arg3: memref<1x32xf32, #tpu.memory_space<vmem>>, %arg4: memref<1x32xf32, #tpu.memory_space<vmem>>, %arg5: memref<32x64xbf16, #tpu.memory_space<vmem>>, %arg6: memref<1x64xf32, #tpu.memory_space<vmem>>, %arg7: memref<32x32xbf16, #tpu.memory_space<vmem>>, %arg8: memref<1x32xf32, #tpu.memory_space<vmem>>, %arg9: memref<32x64xbf16, #tpu.memory_space<vmem>>, %arg10: memref<32x32xbf16, #tpu.memory_space<vmem>>) attributes {dimension_semantics = [#tpu.dimension_semantics<parallel>], iteration_bounds = array<i64: 1>, scalar_prefetch = 0 : i64, scratch_operands = 0 : i64, tpu.core_type = #tpu.core_type<tc>, window_params = [{transform_indices = @transform_0, window_bounds = array<i64: 32, 32>}, {transform_indices = @transform_1, window_bounds = array<i64: 32, 32>}, {pipeline_mode = #tpu.pipeline_mode<synchronous>, transform_indices = @transform_2, window_bounds = array<i64: 1, 32>}, {pipeline_mode = #tpu.pipeline_mode<synchronous>, transform_indices = @transform_3, window_bounds = array<i64: 1, 32>}, {pipeline_mode = #tpu.pipeline_mode<synchronous>, transform_indices = @transform_4, window_bounds = array<i64: 32, 64>}, {pipeline_mode = #tpu.pipeline_mode<synchronous>, transform_indices = @transform_5, window_bounds = array<i64: 1, 64>}, {pipeline_mode = #tpu.pipeline_mode<synchronous>, transform_indices = @transform_6, window_bounds = array<i64: 32, 32>}, {pipeline_mode = #tpu.pipeline_mode<synchronous>, transform_indices = @transform_7, window_bounds = array<i64: 1, 32>}, {transform_indices = @transform_8, window_bounds = array<i64: 32, 64>}, {transform_indices = @transform_9, window_bounds = array<i64: 32, 32>}]} {
    %c0 = arith.constant 0 : index
    %c0_0 = arith.constant 0 : index
    %0 = vector.load %arg1[%c0, %c0_0] : memref<32x32xf32, #tpu.memory_space<vmem>>, vector<32x32xf32>
    %c0_1 = arith.constant 0 : index
    %c0_2 = arith.constant 0 : index
    %1 = vector.load %arg3[%c0_1, %c0_2] : memref<1x32xf32, #tpu.memory_space<vmem>>, vector<1x32xf32>
    %c0_3 = arith.constant 0 : index
    %c0_4 = arith.constant 0 : index
    %2 = vector.load %arg4[%c0_3, %c0_4] : memref<1x32xf32, #tpu.memory_space<vmem>>, vector<1x32xf32>
    %cst = arith.constant dense<0.000000e+00> : vector<32xf32>
    %3 = vector.multi_reduction <add>, %0, %cst [1] : vector<32x32xf32> to vector<32xf32>
    %4 = vector.shape_cast %3 : vector<32xf32> to vector<32x1xf32>
    %cst_5 = arith.constant 3.200000e+01 : f32
    %5 = vector.broadcast %cst_5 : f32 to vector<32x1xf32>
    %6 = arith.divf %4, %5 : vector<32x1xf32>
    %7 = vector.broadcast %6 : vector<32x1xf32> to vector<32x32xf32>
    %8 = arith.subf %0, %7 : vector<32x32xf32>
    %9 = arith.mulf %8, %8 : vector<32x32xf32>
    %cst_6 = arith.constant dense<0.000000e+00> : vector<32xf32>
    %10 = vector.multi_reduction <add>, %9, %cst_6 [1] : vector<32x32xf32> to vector<32xf32>
    %11 = vector.shape_cast %10 : vector<32xf32> to vector<32x1xf32>
    %cst_7 = arith.constant 3.200000e+01 : f32
    %12 = vector.broadcast %cst_7 : f32 to vector<32x1xf32>
    %13 = arith.divf %11, %12 : vector<32x1xf32>
    %cst_8 = arith.constant 9.99999974E-6 : f32
    %14 = vector.broadcast %cst_8 : f32 to vector<32x1xf32>
    %15 = arith.addf %13, %14 : vector<32x1xf32>
    %16 = math.rsqrt %15 : vector<32x1xf32>
    %17 = vector.broadcast %16 : vector<32x1xf32> to vector<32x32xf32>
    %18 = arith.mulf %8, %17 : vector<32x32xf32>
    %19 = vector.broadcast %1 : vector<1x32xf32> to vector<32x32xf32>
    %20 = arith.mulf %18, %19 : vector<32x32xf32>
    %21 = vector.broadcast %2 : vector<1x32xf32> to vector<32x32xf32>
    %22 = arith.addf %20, %21 : vector<32x32xf32>
    %c0_9 = arith.constant 0 : index
    %c0_10 = arith.constant 0 : index
    %23 = vector.load %arg2[%c0_9, %c0_10] : memref<32x32xf32, #tpu.memory_space<vmem>>, vector<32x32xf32>
    %24 = arith.addf %22, %23 : vector<32x32xf32>
    %25 = arith.truncf %24 : vector<32x32xf32> to vector<32x32xbf16>
    %c0_11 = arith.constant 0 : index
    %c0_12 = arith.constant 0 : index
    %26 = vector.load %arg5[%c0_11, %c0_12] : memref<32x64xbf16, #tpu.memory_space<vmem>>, vector<32x64xbf16>
    %cst_13 = arith.constant dense<0.000000e+00> : vector<32x64xf32>
    %27 = tpu.matmul %25, %26, %cst_13 {dimension_numbers = #tpu.dot_dimension_numbers<[1], [0], [0], [1], [0, 0, 1, 1], [], []>} : vector<32x32xbf16>, vector<32x64xbf16>, vector<32x64xf32> -> vector<32x64xf32>
    %c0_14 = arith.constant 0 : index
    %c0_15 = arith.constant 0 : index
    %28 = vector.load %arg6[%c0_14, %c0_15] : memref<1x64xf32, #tpu.memory_space<vmem>>, vector<1x64xf32>
    %29 = vector.broadcast %28 : vector<1x64xf32> to vector<32x64xf32>
    %30 = arith.addf %27, %29 : vector<32x64xf32>
    %31 = arith.truncf %22 : vector<32x32xf32> to vector<32x32xbf16>
    %c0_16 = arith.constant 0 : index
    %c0_17 = arith.constant 0 : index
    %32 = vector.load %arg7[%c0_16, %c0_17] : memref<32x32xbf16, #tpu.memory_space<vmem>>, vector<32x32xbf16>
    %cst_18 = arith.constant dense<0.000000e+00> : vector<32x32xf32>
    %33 = tpu.matmul %31, %32, %cst_18 {dimension_numbers = #tpu.dot_dimension_numbers<[1], [0], [0], [1], [0, 0, 1, 1], [], []>} : vector<32x32xbf16>, vector<32x32xbf16>, vector<32x32xf32> -> vector<32x32xf32>
    %c0_19 = arith.constant 0 : index
    %c0_20 = arith.constant 0 : index
    %34 = vector.load %arg8[%c0_19, %c0_20] : memref<1x32xf32, #tpu.memory_space<vmem>>, vector<1x32xf32>
    %35 = vector.broadcast %34 : vector<1x32xf32> to vector<32x32xf32>
    %36 = arith.addf %33, %35 : vector<32x32xf32>
    %37 = arith.truncf %30 : vector<32x64xf32> to vector<32x64xbf16>
    %c0_21 = arith.constant 0 : index
    %c0_22 = arith.constant 0 : index
    %38 = vector.load %arg9[%c0_21, %c0_22] : memref<32x64xbf16, #tpu.memory_space<vmem>>, vector<32x64xbf16>
    tpu.vector_store %arg9[%c0_21, %c0_22], %37 {strides = array<i32>} : memref<32x64xbf16, #tpu.memory_space<vmem>>, vector<32x64xbf16>,
    %39 = arith.truncf %36 : vector<32x32xf32> to vector<32x32xbf16>
    %c0_23 = arith.constant 0 : index
    %c0_24 = arith.constant 0 : index
    %40 = vector.load %arg10[%c0_23, %c0_24] : memref<32x32xbf16, #tpu.memory_space<vmem>>, vector<32x32xbf16>
    tpu.vector_store %arg10[%c0_23, %c0_24], %39 {strides = array<i32>} : memref<32x32xbf16, #tpu.memory_space<vmem>>, vector<32x32xbf16>,
    return
  }
  func.func @transform_0(%arg0: i32) -> (i32, i32) {
    %c0_i32 = arith.constant 0 : i32
    %c0_i32_0 = arith.constant 0 : i32
    return %arg0, %c0_i32 : i32, i32
  }
  func.func @transform_1(%arg0: i32) -> (i32, i32) {
    %c0_i32 = arith.constant 0 : i32
    %c0_i32_0 = arith.constant 0 : i32
    return %arg0, %c0_i32 : i32, i32
  }
  func.func @transform_2(%arg0: i32) -> (i32, i32) {
    %c0_i32 = arith.constant 0 : i32
    %c0_i32_0 = arith.constant 0 : i32
    %c0_i32_1 = arith.constant 0 : i32
    return %c0_i32, %c0_i32_0 : i32, i32
  }
  func.func @transform_3(%arg0: i32) -> (i32, i32) {
    %c0_i32 = arith.constant 0 : i32
    %c0_i32_0 = arith.constant 0 : i32
    %c0_i32_1 = arith.constant 0 : i32
    return %c0_i32, %c0_i32_0 : i32, i32
  }
  func.func @transform_4(%arg0: i32) -> (i32, i32) {
    %c0_i32 = arith.constant 0 : i32
    %c0_i32_0 = arith.constant 0 : i32
    %c0_i32_1 = arith.constant 0 : i32
    return %c0_i32, %c0_i32_0 : i32, i32
  }
  func.func @transform_5(%arg0: i32) -> (i32, i32) {
    %c0_i32 = arith.constant 0 : i32
    %c0_i32_0 = arith.constant 0 : i32
    %c0_i32_1 = arith.constant 0 : i32
    return %c0_i32, %c0_i32_0 : i32, i32
  }
  func.func @transform_6(%arg0: i32) -> (i32, i32) {
    %c0_i32 = arith.constant 0 : i32
    %c0_i32_0 = arith.constant 0 : i32
    %c0_i32_1 = arith.constant 0 : i32
    return %c0_i32, %c0_i32_0 : i32, i32
  }
  func.func @transform_7(%arg0: i32) -> (i32, i32) {
    %c0_i32 = arith.constant 0 : i32
    %c0_i32_0 = arith.constant 0 : i32
    %c0_i32_1 = arith.constant 0 : i32
    return %c0_i32, %c0_i32_0 : i32, i32
  }
  func.func @transform_8(%arg0: i32) -> (i32, i32) {
    %c0_i32 = arith.constant 0 : i32
    %c0_i32_0 = arith.constant 0 : i32
    return %arg0, %c0_i32 : i32, i32
  }
  func.func @transform_9(%arg0: i32) -> (i32, i32) {
    %c0_i32 = arith.constant 0 : i32
    %c0_i32_0 = arith.constant 0 : i32
    return %arg0, %c0_i32 : i32, i32
  }
}

module attributes {stable_mosaic.version = 11 : i64} {
  func.func @_ln_ffn_kernel(%arg0: i32, %arg1: memref<32x32xf32, #tpu.memory_space<vmem>>, %arg2: memref<1x32xf32, #tpu.memory_space<vmem>>, %arg3: memref<1x32xf32, #tpu.memory_space<vmem>>, %arg4: memref<32x64xbf16, #tpu.memory_space<vmem>>, %arg5: memref<1x64xf32, #tpu.memory_space<vmem>>, %arg6: memref<64x32xbf16, #tpu.memory_space<vmem>>, %arg7: memref<1x32xf32, #tpu.memory_space<vmem>>, %arg8: memref<32x32xf32, #tpu.memory_space<vmem>>) attributes {dimension_semantics = [#tpu.dimension_semantics<parallel>], iteration_bounds = array<i64: 1>, scalar_prefetch = 0 : i64, scratch_operands = 0 : i64, tpu.core_type = #tpu.core_type<tc>, window_params = [{transform_indices = @transform_0, window_bounds = array<i64: 32, 32>}, {pipeline_mode = #tpu.pipeline_mode<synchronous>, transform_indices = @transform_1, window_bounds = array<i64: 1, 32>}, {pipeline_mode = #tpu.pipeline_mode<synchronous>, transform_indices = @transform_2, window_bounds = array<i64: 1, 32>}, {pipeline_mode = #tpu.pipeline_mode<synchronous>, transform_indices = @transform_3, window_bounds = array<i64: 32, 64>}, {pipeline_mode = #tpu.pipeline_mode<synchronous>, transform_indices = @transform_4, window_bounds = array<i64: 1, 64>}, {pipeline_mode = #tpu.pipeline_mode<synchronous>, transform_indices = @transform_5, window_bounds = array<i64: 64, 32>}, {pipeline_mode = #tpu.pipeline_mode<synchronous>, transform_indices = @transform_6, window_bounds = array<i64: 1, 32>}, {transform_indices = @transform_7, window_bounds = array<i64: 32, 32>}]} {
    %c0 = arith.constant 0 : index
    %c0_0 = arith.constant 0 : index
    %0 = vector.load %arg1[%c0, %c0_0] : memref<32x32xf32, #tpu.memory_space<vmem>>, vector<32x32xf32>
    %c0_1 = arith.constant 0 : index
    %c0_2 = arith.constant 0 : index
    %1 = vector.load %arg2[%c0_1, %c0_2] : memref<1x32xf32, #tpu.memory_space<vmem>>, vector<1x32xf32>
    %c0_3 = arith.constant 0 : index
    %c0_4 = arith.constant 0 : index
    %2 = vector.load %arg3[%c0_3, %c0_4] : memref<1x32xf32, #tpu.memory_space<vmem>>, vector<1x32xf32>
    %cst = arith.constant dense<0.000000e+00> : vector<32xf32>
    %3 = vector.multi_reduction <add>, %0, %cst [1] : vector<32x32xf32> to vector<32xf32>
    %4 = vector.shape_cast %3 : vector<32xf32> to vector<32x1xf32>
    %cst_5 = arith.constant 3.200000e+01 : f32
    %5 = vector.broadcast %cst_5 : f32 to vector<32x1xf32>
    %6 = arith.divf %4, %5 : vector<32x1xf32>
    %7 = vector.broadcast %6 : vector<32x1xf32> to vector<32x32xf32>
    %8 = arith.subf %0, %7 : vector<32x32xf32>
    %9 = arith.mulf %8, %8 : vector<32x32xf32>
    %cst_6 = arith.constant dense<0.000000e+00> : vector<32xf32>
    %10 = vector.multi_reduction <add>, %9, %cst_6 [1] : vector<32x32xf32> to vector<32xf32>
    %11 = vector.shape_cast %10 : vector<32xf32> to vector<32x1xf32>
    %cst_7 = arith.constant 3.200000e+01 : f32
    %12 = vector.broadcast %cst_7 : f32 to vector<32x1xf32>
    %13 = arith.divf %11, %12 : vector<32x1xf32>
    %cst_8 = arith.constant 9.99999974E-6 : f32
    %14 = vector.broadcast %cst_8 : f32 to vector<32x1xf32>
    %15 = arith.addf %13, %14 : vector<32x1xf32>
    %16 = math.rsqrt %15 : vector<32x1xf32>
    %17 = vector.broadcast %16 : vector<32x1xf32> to vector<32x32xf32>
    %18 = arith.mulf %8, %17 : vector<32x32xf32>
    %19 = vector.broadcast %1 : vector<1x32xf32> to vector<32x32xf32>
    %20 = arith.mulf %18, %19 : vector<32x32xf32>
    %21 = vector.broadcast %2 : vector<1x32xf32> to vector<32x32xf32>
    %22 = arith.addf %20, %21 : vector<32x32xf32>
    %23 = arith.truncf %22 : vector<32x32xf32> to vector<32x32xbf16>
    %c0_9 = arith.constant 0 : index
    %c0_10 = arith.constant 0 : index
    %24 = vector.load %arg4[%c0_9, %c0_10] : memref<32x64xbf16, #tpu.memory_space<vmem>>, vector<32x64xbf16>
    %cst_11 = arith.constant dense<0.000000e+00> : vector<32x64xf32>
    %25 = tpu.matmul %23, %24, %cst_11 {dimension_numbers = #tpu.dot_dimension_numbers<[1], [0], [0], [1], [0, 0, 1, 1], [], []>} : vector<32x32xbf16>, vector<32x64xbf16>, vector<32x64xf32> -> vector<32x64xf32>
    %c0_12 = arith.constant 0 : index
    %c0_13 = arith.constant 0 : index
    %26 = vector.load %arg5[%c0_12, %c0_13] : memref<1x64xf32, #tpu.memory_space<vmem>>, vector<1x64xf32>
    %27 = vector.broadcast %26 : vector<1x64xf32> to vector<32x64xf32>
    %28 = arith.addf %25, %27 : vector<32x64xf32>
    %cst_14 = arith.constant 0.000000e+00 : f32
    %29 = vector.broadcast %cst_14 : f32 to vector<32x64xf32>
    %30 = arith.maximumf %28, %29 : vector<32x64xf32>
    %31 = arith.truncf %30 : vector<32x64xf32> to vector<32x64xbf16>
    %c0_15 = arith.constant 0 : index
    %c0_16 = arith.constant 0 : index
    %32 = vector.load %arg6[%c0_15, %c0_16] : memref<64x32xbf16, #tpu.memory_space<vmem>>, vector<64x32xbf16>
    %cst_17 = arith.constant dense<0.000000e+00> : vector<32x32xf32>
    %33 = tpu.matmul %31, %32, %cst_17 {dimension_numbers = #tpu.dot_dimension_numbers<[1], [0], [0], [1], [0, 0, 1, 1], [], []>} : vector<32x64xbf16>, vector<64x32xbf16>, vector<32x32xf32> -> vector<32x32xf32>
    %c0_18 = arith.constant 0 : index
    %c0_19 = arith.constant 0 : index
    %34 = vector.load %arg7[%c0_18, %c0_19] : memref<1x32xf32, #tpu.memory_space<vmem>>, vector<1x32xf32>
    %35 = vector.broadcast %34 : vector<1x32xf32> to vector<32x32xf32>
    %36 = arith.addf %33, %35 : vector<32x32xf32>
    %37 = arith.addf %0, %36 : vector<32x32xf32>
    %c0_20 = arith.constant 0 : index
    %c0_21 = arith.constant 0 : index
    %38 = vector.load %arg8[%c0_20, %c0_21] : memref<32x32xf32, #tpu.memory_space<vmem>>, vector<32x32xf32>
    tpu.vector_store %arg8[%c0_20, %c0_21], %37 {strides = array<i32>} : memref<32x32xf32, #tpu.memory_space<vmem>>, vector<32x32xf32>,
    return
  }
  func.func @transform_0(%arg0: i32) -> (i32, i32) {
    %c0_i32 = arith.constant 0 : i32
    %c0_i32_0 = arith.constant 0 : i32
    return %arg0, %c0_i32 : i32, i32
  }
  func.func @transform_1(%arg0: i32) -> (i32, i32) {
    %c0_i32 = arith.constant 0 : i32
    %c0_i32_0 = arith.constant 0 : i32
    %c0_i32_1 = arith.constant 0 : i32
    return %c0_i32, %c0_i32_0 : i32, i32
  }
  func.func @transform_2(%arg0: i32) -> (i32, i32) {
    %c0_i32 = arith.constant 0 : i32
    %c0_i32_0 = arith.constant 0 : i32
    %c0_i32_1 = arith.constant 0 : i32
    return %c0_i32, %c0_i32_0 : i32, i32
  }
  func.func @transform_3(%arg0: i32) -> (i32, i32) {
    %c0_i32 = arith.constant 0 : i32
    %c0_i32_0 = arith.constant 0 : i32
    %c0_i32_1 = arith.constant 0 : i32
    return %c0_i32, %c0_i32_0 : i32, i32
  }
  func.func @transform_4(%arg0: i32) -> (i32, i32) {
    %c0_i32 = arith.constant 0 : i32
    %c0_i32_0 = arith.constant 0 : i32
    %c0_i32_1 = arith.constant 0 : i32
    return %c0_i32, %c0_i32_0 : i32, i32
  }
  func.func @transform_5(%arg0: i32) -> (i32, i32) {
    %c0_i32 = arith.constant 0 : i32
    %c0_i32_0 = arith.constant 0 : i32
    %c0_i32_1 = arith.constant 0 : i32
    return %c0_i32, %c0_i32_0 : i32, i32
  }
  func.func @transform_6(%arg0: i32) -> (i32, i32) {
    %c0_i32 = arith.constant 0 : i32
    %c0_i32_0 = arith.constant 0 : i32
    %c0_i32_1 = arith.constant 0 : i32
    return %c0_i32, %c0_i32_0 : i32, i32
  }
  func.func @transform_7(%arg0: i32) -> (i32, i32) {
    %c0_i32 = arith.constant 0 : i32
    %c0_i32_0 = arith.constant 0 : i32
    return %arg0, %c0_i32 : i32, i32
  }
}

module attributes {stable_mosaic.version = 11 : i64} {
  func.func @_ln_kernel(%arg0: i32, %arg1: memref<32x32xf32, #tpu.memory_space<vmem>>, %arg2: memref<1x32xf32, #tpu.memory_space<vmem>>, %arg3: memref<1x32xf32, #tpu.memory_space<vmem>>, %arg4: memref<32x32xf32, #tpu.memory_space<vmem>>) attributes {dimension_semantics = [#tpu.dimension_semantics<parallel>], iteration_bounds = array<i64: 1>, scalar_prefetch = 0 : i64, scratch_operands = 0 : i64, tpu.core_type = #tpu.core_type<tc>, window_params = [{transform_indices = @transform_0, window_bounds = array<i64: 32, 32>}, {pipeline_mode = #tpu.pipeline_mode<synchronous>, transform_indices = @transform_1, window_bounds = array<i64: 1, 32>}, {pipeline_mode = #tpu.pipeline_mode<synchronous>, transform_indices = @transform_2, window_bounds = array<i64: 1, 32>}, {transform_indices = @transform_3, window_bounds = array<i64: 32, 32>}]} {
    %c0 = arith.constant 0 : index
    %c0_0 = arith.constant 0 : index
    %0 = vector.load %arg1[%c0, %c0_0] : memref<32x32xf32, #tpu.memory_space<vmem>>, vector<32x32xf32>
    %c0_1 = arith.constant 0 : index
    %c0_2 = arith.constant 0 : index
    %1 = vector.load %arg2[%c0_1, %c0_2] : memref<1x32xf32, #tpu.memory_space<vmem>>, vector<1x32xf32>
    %c0_3 = arith.constant 0 : index
    %c0_4 = arith.constant 0 : index
    %2 = vector.load %arg3[%c0_3, %c0_4] : memref<1x32xf32, #tpu.memory_space<vmem>>, vector<1x32xf32>
    %cst = arith.constant dense<0.000000e+00> : vector<32xf32>
    %3 = vector.multi_reduction <add>, %0, %cst [1] : vector<32x32xf32> to vector<32xf32>
    %4 = vector.shape_cast %3 : vector<32xf32> to vector<32x1xf32>
    %cst_5 = arith.constant 3.200000e+01 : f32
    %5 = vector.broadcast %cst_5 : f32 to vector<32x1xf32>
    %6 = arith.divf %4, %5 : vector<32x1xf32>
    %7 = vector.broadcast %6 : vector<32x1xf32> to vector<32x32xf32>
    %8 = arith.subf %0, %7 : vector<32x32xf32>
    %9 = arith.mulf %8, %8 : vector<32x32xf32>
    %cst_6 = arith.constant dense<0.000000e+00> : vector<32xf32>
    %10 = vector.multi_reduction <add>, %9, %cst_6 [1] : vector<32x32xf32> to vector<32xf32>
    %11 = vector.shape_cast %10 : vector<32xf32> to vector<32x1xf32>
    %cst_7 = arith.constant 3.200000e+01 : f32
    %12 = vector.broadcast %cst_7 : f32 to vector<32x1xf32>
    %13 = arith.divf %11, %12 : vector<32x1xf32>
    %cst_8 = arith.constant 9.99999974E-6 : f32
    %14 = vector.broadcast %cst_8 : f32 to vector<32x1xf32>
    %15 = arith.addf %13, %14 : vector<32x1xf32>
    %16 = math.rsqrt %15 : vector<32x1xf32>
    %17 = vector.broadcast %16 : vector<32x1xf32> to vector<32x32xf32>
    %18 = arith.mulf %8, %17 : vector<32x32xf32>
    %19 = vector.broadcast %1 : vector<1x32xf32> to vector<32x32xf32>
    %20 = arith.mulf %18, %19 : vector<32x32xf32>
    %21 = vector.broadcast %2 : vector<1x32xf32> to vector<32x32xf32>
    %22 = arith.addf %20, %21 : vector<32x32xf32>
    %c0_9 = arith.constant 0 : index
    %c0_10 = arith.constant 0 : index
    %23 = vector.load %arg4[%c0_9, %c0_10] : memref<32x32xf32, #tpu.memory_space<vmem>>, vector<32x32xf32>
    tpu.vector_store %arg4[%c0_9, %c0_10], %22 {strides = array<i32>} : memref<32x32xf32, #tpu.memory_space<vmem>>, vector<32x32xf32>,
    return
  }
  func.func @transform_0(%arg0: i32) -> (i32, i32) {
    %c0_i32 = arith.constant 0 : i32
    %c0_i32_0 = arith.constant 0 : i32
    return %arg0, %c0_i32 : i32, i32
  }
  func.func @transform_1(%arg0: i32) -> (i32, i32) {
    %c0_i32 = arith.constant 0 : i32
    %c0_i32_0 = arith.constant 0 : i32
    %c0_i32_1 = arith.constant 0 : i32
    return %c0_i32, %c0_i32_0 : i32, i32
  }
  func.func @transform_2(%arg0: i32) -> (i32, i32) {
    %c0_i32 = arith.constant 0 : i32
    %c0_i32_0 = arith.constant 0 : i32
    %c0_i32_1 = arith.constant 0 : i32
    return %c0_i32, %c0_i32_0 : i32, i32
  }
  func.func @transform_3(%arg0: i32) -> (i32, i32) {
    %c0_i32 = arith.constant 0 : i32
    %c0_i32_0 = arith.constant 0 : i32
    return %arg0, %c0_i32 : i32, i32
  }
}

module attributes {stable_mosaic.version = 11 : i64} {
  func.func @_kv_kernel(%arg0: i32, %arg1: memref<32x32xf32, #tpu.memory_space<vmem>>, %arg2: memref<32x32xf32, #tpu.memory_space<vmem>>, %arg3: memref<32x32xbf16, #tpu.memory_space<vmem>>, %arg4: memref<1x32xf32, #tpu.memory_space<vmem>>, %arg5: memref<32x32xbf16, #tpu.memory_space<vmem>>, %arg6: memref<1x32xf32, #tpu.memory_space<vmem>>, %arg7: memref<32x32xbf16, #tpu.memory_space<vmem>>, %arg8: memref<32x32xbf16, #tpu.memory_space<vmem>>) attributes {dimension_semantics = [#tpu.dimension_semantics<parallel>], iteration_bounds = array<i64: 1>, scalar_prefetch = 0 : i64, scratch_operands = 0 : i64, tpu.core_type = #tpu.core_type<tc>, window_params = [{transform_indices = @transform_0, window_bounds = array<i64: 32, 32>}, {transform_indices = @transform_1, window_bounds = array<i64: 32, 32>}, {pipeline_mode = #tpu.pipeline_mode<synchronous>, transform_indices = @transform_2, window_bounds = array<i64: 32, 32>}, {pipeline_mode = #tpu.pipeline_mode<synchronous>, transform_indices = @transform_3, window_bounds = array<i64: 1, 32>}, {pipeline_mode = #tpu.pipeline_mode<synchronous>, transform_indices = @transform_4, window_bounds = array<i64: 32, 32>}, {pipeline_mode = #tpu.pipeline_mode<synchronous>, transform_indices = @transform_5, window_bounds = array<i64: 1, 32>}, {transform_indices = @transform_6, window_bounds = array<i64: 32, 32>}, {transform_indices = @transform_7, window_bounds = array<i64: 32, 32>}]} {
    %c0 = arith.constant 0 : index
    %c0_0 = arith.constant 0 : index
    %0 = vector.load %arg1[%c0, %c0_0] : memref<32x32xf32, #tpu.memory_space<vmem>>, vector<32x32xf32>
    %c0_1 = arith.constant 0 : index
    %c0_2 = arith.constant 0 : index
    %1 = vector.load %arg2[%c0_1, %c0_2] : memref<32x32xf32, #tpu.memory_space<vmem>>, vector<32x32xf32>
    %2 = arith.addf %0, %1 : vector<32x32xf32>
    %3 = arith.truncf %2 : vector<32x32xf32> to vector<32x32xbf16>
    %c0_3 = arith.constant 0 : index
    %c0_4 = arith.constant 0 : index
    %4 = vector.load %arg3[%c0_3, %c0_4] : memref<32x32xbf16, #tpu.memory_space<vmem>>, vector<32x32xbf16>
    %cst = arith.constant dense<0.000000e+00> : vector<32x32xf32>
    %5 = tpu.matmul %3, %4, %cst {dimension_numbers = #tpu.dot_dimension_numbers<[1], [0], [0], [1], [0, 0, 1, 1], [], []>} : vector<32x32xbf16>, vector<32x32xbf16>, vector<32x32xf32> -> vector<32x32xf32>
    %c0_5 = arith.constant 0 : index
    %c0_6 = arith.constant 0 : index
    %6 = vector.load %arg4[%c0_5, %c0_6] : memref<1x32xf32, #tpu.memory_space<vmem>>, vector<1x32xf32>
    %7 = vector.broadcast %6 : vector<1x32xf32> to vector<32x32xf32>
    %8 = arith.addf %5, %7 : vector<32x32xf32>
    %9 = arith.truncf %0 : vector<32x32xf32> to vector<32x32xbf16>
    %c0_7 = arith.constant 0 : index
    %c0_8 = arith.constant 0 : index
    %10 = vector.load %arg5[%c0_7, %c0_8] : memref<32x32xbf16, #tpu.memory_space<vmem>>, vector<32x32xbf16>
    %cst_9 = arith.constant dense<0.000000e+00> : vector<32x32xf32>
    %11 = tpu.matmul %9, %10, %cst_9 {dimension_numbers = #tpu.dot_dimension_numbers<[1], [0], [0], [1], [0, 0, 1, 1], [], []>} : vector<32x32xbf16>, vector<32x32xbf16>, vector<32x32xf32> -> vector<32x32xf32>
    %c0_10 = arith.constant 0 : index
    %c0_11 = arith.constant 0 : index
    %12 = vector.load %arg6[%c0_10, %c0_11] : memref<1x32xf32, #tpu.memory_space<vmem>>, vector<1x32xf32>
    %13 = vector.broadcast %12 : vector<1x32xf32> to vector<32x32xf32>
    %14 = arith.addf %11, %13 : vector<32x32xf32>
    %15 = arith.truncf %8 : vector<32x32xf32> to vector<32x32xbf16>
    %c0_12 = arith.constant 0 : index
    %c0_13 = arith.constant 0 : index
    %16 = vector.load %arg7[%c0_12, %c0_13] : memref<32x32xbf16, #tpu.memory_space<vmem>>, vector<32x32xbf16>
    tpu.vector_store %arg7[%c0_12, %c0_13], %15 {strides = array<i32>} : memref<32x32xbf16, #tpu.memory_space<vmem>>, vector<32x32xbf16>,
    %17 = arith.truncf %14 : vector<32x32xf32> to vector<32x32xbf16>
    %c0_14 = arith.constant 0 : index
    %c0_15 = arith.constant 0 : index
    %18 = vector.load %arg8[%c0_14, %c0_15] : memref<32x32xbf16, #tpu.memory_space<vmem>>, vector<32x32xbf16>
    tpu.vector_store %arg8[%c0_14, %c0_15], %17 {strides = array<i32>} : memref<32x32xbf16, #tpu.memory_space<vmem>>, vector<32x32xbf16>,
    return
  }
  func.func @transform_0(%arg0: i32) -> (i32, i32) {
    %c0_i32 = arith.constant 0 : i32
    %c0_i32_0 = arith.constant 0 : i32
    return %arg0, %c0_i32 : i32, i32
  }
  func.func @transform_1(%arg0: i32) -> (i32, i32) {
    %c0_i32 = arith.constant 0 : i32
    %c0_i32_0 = arith.constant 0 : i32
    return %arg0, %c0_i32 : i32, i32
  }
  func.func @transform_2(%arg0: i32) -> (i32, i32) {
    %c0_i32 = arith.constant 0 : i32
    %c0_i32_0 = arith.constant 0 : i32
    %c0_i32_1 = arith.constant 0 : i32
    return %c0_i32, %c0_i32_0 : i32, i32
  }
  func.func @transform_3(%arg0: i32) -> (i32, i32) {
    %c0_i32 = arith.constant 0 : i32
    %c0_i32_0 = arith.constant 0 : i32
    %c0_i32_1 = arith.constant 0 : i32
    return %c0_i32, %c0_i32_0 : i32, i32
  }
  func.func @transform_4(%arg0: i32) -> (i32, i32) {
    %c0_i32 = arith.constant 0 : i32
    %c0_i32_0 = arith.constant 0 : i32
    %c0_i32_1 = arith.constant 0 : i32
    return %c0_i32, %c0_i32_0 : i32, i32
  }
  func.func @transform_5(%arg0: i32) -> (i32, i32) {
    %c0_i32 = arith.constant 0 : i32
    %c0_i32_0 = arith.constant 0 : i32
    %c0_i32_1 = arith.constant 0 : i32
    return %c0_i32, %c0_i32_0 : i32, i32
  }
  func.func @transform_6(%arg0: i32) -> (i32, i32) {
    %c0_i32 = arith.constant 0 : i32
    %c0_i32_0 = arith.constant 0 : i32
    return %arg0, %c0_i32 : i32, i32
  }
  func.func @transform_7(%arg0: i32) -> (i32, i32) {
    %c0_i32 = arith.constant 0 : i32
    %c0_i32_0 = arith.constant 0 : i32
    return %arg0, %c0_i32 : i32, i32
  }
}

module attributes {stable_mosaic.version = 11 : i64} {
  func.func @_cross_attn_kernel(%arg0: i32, %arg1: memref<1x8x32xbf16, #tpu.memory_space<vmem>>, %arg2: memref<1x16x32xbf16, #tpu.memory_space<vmem>>, %arg3: memref<1x16x32xbf16, #tpu.memory_space<vmem>>, %arg4: memref<1x1x16xf32, #tpu.memory_space<vmem>>, %arg5: memref<1x8x32xf32, #tpu.memory_space<vmem>>, %arg6: memref<4x8x32xbf16, #tpu.memory_space<vmem>>, %arg7: memref<1x32xf32, #tpu.memory_space<vmem>>, %arg8: memref<1x8x32xf32, #tpu.memory_space<vmem>>) attributes {dimension_semantics = [#tpu.dimension_semantics<parallel>], iteration_bounds = array<i64: 2>, scalar_prefetch = 0 : i64, scratch_operands = 0 : i64, tpu.core_type = #tpu.core_type<tc>, window_params = [{transform_indices = @transform_0, window_bounds = array<i64: 1, 8, 32>}, {transform_indices = @transform_1, window_bounds = array<i64: 1, 16, 32>}, {transform_indices = @transform_2, window_bounds = array<i64: 1, 16, 32>}, {transform_indices = @transform_3, window_bounds = array<i64: 1, 1, 16>}, {transform_indices = @transform_4, window_bounds = array<i64: 1, 8, 32>}, {pipeline_mode = #tpu.pipeline_mode<synchronous>, transform_indices = @transform_5, window_bounds = array<i64: 4, 8, 32>}, {pipeline_mode = #tpu.pipeline_mode<synchronous>, transform_indices = @transform_6, window_bounds = array<i64: 1, 32>}, {transform_indices = @transform_7, window_bounds = array<i64: 1, 8, 32>}]} {
    %c0 = arith.constant 0 : index
    %c0_0 = arith.constant 0 : index
    %c0_1 = arith.constant 0 : index
    %0 = vector.load %arg4[%c0, %c0_0, %c0_1] : memref<1x1x16xf32, #tpu.memory_space<vmem>>, vector<1x1x16xf32>
    %1 = vector.shape_cast %0 : vector<1x1x16xf32> to vector<1x16xf32>
    %c0_2 = arith.constant 0 : index
    %c0_3 = arith.constant 0 : index
    %c0_4 = arith.constant 0 : index
    %2 = vector.load %arg5[%c0_2, %c0_3, %c0_4] : memref<1x8x32xf32, #tpu.memory_space<vmem>>, vector<1x8x32xf32>
    %3 = vector.shape_cast %2 : vector<1x8x32xf32> to vector<8x32xf32>
    %c0_5 = arith.constant 0 : index
    %c0_6 = arith.constant 0 : index
    %4 = vector.load %arg7[%c0_5, %c0_6] : memref<1x32xf32, #tpu.memory_space<vmem>>, vector<1x32xf32>
    %c0_7 = arith.constant 0 : index
    %c0_8 = arith.constant 0 : index
    %c0_9 = arith.constant 0 : index
    %5 = vector.load %arg1[%c0_7, %c0_8, %c0_9] : memref<1x8x32xbf16, #tpu.memory_space<vmem>>, vector<1x8x8xbf16>
    %6 = vector.shape_cast %5 : vector<1x8x8xbf16> to vector<8x8xbf16>
    %c0_10 = arith.constant 0 : index
    %c0_11 = arith.constant 0 : index
    %c0_12 = arith.constant 0 : index
    %7 = vector.load %arg2[%c0_10, %c0_11, %c0_12] : memref<1x16x32xbf16, #tpu.memory_space<vmem>>, vector<1x16x8xbf16>
    %8 = vector.shape_cast %7 : vector<1x16x8xbf16> to vector<16x8xbf16>
    %c0_13 = arith.constant 0 : index
    %c0_14 = arith.constant 0 : index
    %c0_15 = arith.constant 0 : index
    %9 = vector.load %arg3[%c0_13, %c0_14, %c0_15] : memref<1x16x32xbf16, #tpu.memory_space<vmem>>, vector<1x16x8xbf16>
    %10 = vector.shape_cast %9 : vector<1x16x8xbf16> to vector<16x8xbf16>
    %cst = arith.constant dense<0.000000e+00> : vector<8x16xf32>
    %11 = tpu.matmul %6, %8, %cst {dimension_numbers = #tpu.dot_dimension_numbers<[1], [1], [0], [0], [0, 0, 1, 0], [], []>} : vector<8x8xbf16>, vector<16x8xbf16>, vector<8x16xf32> -> vector<8x16xf32>
    %12 = vector.broadcast %1 : vector<1x16xf32> to vector<8x16xf32>
    %13 = arith.addf %11, %12 : vector<8x16xf32>
    %cst_16 = arith.constant dense<0xFF800000> : vector<8xf32>
    %14 = vector.multi_reduction <maximumf>, %13, %cst_16 [1] : vector<8x16xf32> to vector<8xf32>
    %15 = vector.shape_cast %14 : vector<8xf32> to vector<8x1xf32>
    %16 = vector.broadcast %15 : vector<8x1xf32> to vector<8x16xf32>
    %17 = arith.subf %13, %16 : vector<8x16xf32>
    %18 = math.exp %17 : vector<8x16xf32>
    %cst_17 = arith.constant dense<0.000000e+00> : vector<8xf32>
    %19 = vector.multi_reduction <add>, %18, %cst_17 [1] : vector<8x16xf32> to vector<8xf32>
    %20 = vector.shape_cast %19 : vector<8xf32> to vector<8x1xf32>
    %21 = tpu.reciprocal %20 {approx = true} : vector<8x1xf32> -> vector<8x1xf32>
    %22 = vector.broadcast %21 : vector<8x1xf32> to vector<8x16xf32>
    %23 = arith.mulf %18, %22 : vector<8x16xf32>
    %24 = arith.truncf %23 : vector<8x16xf32> to vector<8x16xbf16>
    %cst_18 = arith.constant dense<0.000000e+00> : vector<8x8xf32>
    %25 = tpu.matmul %24, %10, %cst_18 {dimension_numbers = #tpu.dot_dimension_numbers<[1], [0], [0], [1], [0, 0, 1, 1], [], []>} : vector<8x16xbf16>, vector<16x8xbf16>, vector<8x8xf32> -> vector<8x8xf32>
    %26 = arith.truncf %25 : vector<8x8xf32> to vector<8x8xbf16>
    %c0_19 = arith.constant 0 : index
    %c0_20 = arith.constant 0 : index
    %c0_21 = arith.constant 0 : index
    %27 = vector.load %arg6[%c0_19, %c0_20, %c0_21] : memref<4x8x32xbf16, #tpu.memory_space<vmem>>, vector<1x8x32xbf16>
    %28 = vector.shape_cast %27 : vector<1x8x32xbf16> to vector<8x32xbf16>
    %cst_22 = arith.constant dense<0.000000e+00> : vector<8x32xf32>
    %29 = tpu.matmul %26, %28, %cst_22 {dimension_numbers = #tpu.dot_dimension_numbers<[1], [0], [0], [1], [0, 0, 1, 1], [], []>} : vector<8x8xbf16>, vector<8x32xbf16>, vector<8x32xf32> -> vector<8x32xf32>
    %c0_23 = arith.constant 0 : index
    %c0_24 = arith.constant 0 : index
    %c8 = arith.constant 8 : index
    %30 = vector.load %arg1[%c0_23, %c0_24, %c8] : memref<1x8x32xbf16, #tpu.memory_space<vmem>>, vector<1x8x8xbf16>
    %31 = vector.shape_cast %30 : vector<1x8x8xbf16> to vector<8x8xbf16>
    %c0_25 = arith.constant 0 : index
    %c0_26 = arith.constant 0 : index
    %c8_27 = arith.constant 8 : index
    %32 = vector.load %arg2[%c0_25, %c0_26, %c8_27] : memref<1x16x32xbf16, #tpu.memory_space<vmem>>, vector<1x16x8xbf16>
    %33 = vector.shape_cast %32 : vector<1x16x8xbf16> to vector<16x8xbf16>
    %c0_28 = arith.constant 0 : index
    %c0_29 = arith.constant 0 : index
    %c8_30 = arith.constant 8 : index
    %34 = vector.load %arg3[%c0_28, %c0_29, %c8_30] : memref<1x16x32xbf16, #tpu.memory_space<vmem>>, vector<1x16x8xbf16>
    %35 = vector.shape_cast %34 : vector<1x16x8xbf16> to vector<16x8xbf16>
    %cst_31 = arith.constant dense<0.000000e+00> : vector<8x16xf32>
    %36 = tpu.matmul %31, %33, %cst_31 {dimension_numbers = #tpu.dot_dimension_numbers<[1], [1], [0], [0], [0, 0, 1, 0], [], []>} : vector<8x8xbf16>, vector<16x8xbf16>, vector<8x16xf32> -> vector<8x16xf32>
    %37 = vector.broadcast %1 : vector<1x16xf32> to vector<8x16xf32>
    %38 = arith.addf %36, %37 : vector<8x16xf32>
    %cst_32 = arith.constant dense<0xFF800000> : vector<8xf32>
    %39 = vector.multi_reduction <maximumf>, %38, %cst_32 [1] : vector<8x16xf32> to vector<8xf32>
    %40 = vector.shape_cast %39 : vector<8xf32> to vector<8x1xf32>
    %41 = vector.broadcast %40 : vector<8x1xf32> to vector<8x16xf32>
    %42 = arith.subf %38, %41 : vector<8x16xf32>
    %43 = math.exp %42 : vector<8x16xf32>
    %cst_33 = arith.constant dense<0.000000e+00> : vector<8xf32>
    %44 = vector.multi_reduction <add>, %43, %cst_33 [1] : vector<8x16xf32> to vector<8xf32>
    %45 = vector.shape_cast %44 : vector<8xf32> to vector<8x1xf32>
    %46 = tpu.reciprocal %45 {approx = true} : vector<8x1xf32> -> vector<8x1xf32>
    %47 = vector.broadcast %46 : vector<8x1xf32> to vector<8x16xf32>
    %48 = arith.mulf %43, %47 : vector<8x16xf32>
    %49 = arith.truncf %48 : vector<8x16xf32> to vector<8x16xbf16>
    %cst_34 = arith.constant dense<0.000000e+00> : vector<8x8xf32>
    %50 = tpu.matmul %49, %35, %cst_34 {dimension_numbers = #tpu.dot_dimension_numbers<[1], [0], [0], [1], [0, 0, 1, 1], [], []>} : vector<8x16xbf16>, vector<16x8xbf16>, vector<8x8xf32> -> vector<8x8xf32>
    %51 = arith.truncf %50 : vector<8x8xf32> to vector<8x8xbf16>
    %c1 = arith.constant 1 : index
    %c0_35 = arith.constant 0 : index
    %c0_36 = arith.constant 0 : index
    %52 = vector.load %arg6[%c1, %c0_35, %c0_36] : memref<4x8x32xbf16, #tpu.memory_space<vmem>>, vector<1x8x32xbf16>
    %53 = vector.shape_cast %52 : vector<1x8x32xbf16> to vector<8x32xbf16>
    %cst_37 = arith.constant dense<0.000000e+00> : vector<8x32xf32>
    %54 = tpu.matmul %51, %53, %cst_37 {dimension_numbers = #tpu.dot_dimension_numbers<[1], [0], [0], [1], [0, 0, 1, 1], [], []>} : vector<8x8xbf16>, vector<8x32xbf16>, vector<8x32xf32> -> vector<8x32xf32>
    %55 = arith.addf %29, %54 : vector<8x32xf32>
    %c0_38 = arith.constant 0 : index
    %c0_39 = arith.constant 0 : index
    %c16 = arith.constant 16 : index
    %56 = vector.load %arg1[%c0_38, %c0_39, %c16] : memref<1x8x32xbf16, #tpu.memory_space<vmem>>, vector<1x8x8xbf16>
    %57 = vector.shape_cast %56 : vector<1x8x8xbf16> to vector<8x8xbf16>
    %c0_40 = arith.constant 0 : index
    %c0_41 = arith.constant 0 : index
    %c16_42 = arith.constant 16 : index
    %58 = vector.load %arg2[%c0_40, %c0_41, %c16_42] : memref<1x16x32xbf16, #tpu.memory_space<vmem>>, vector<1x16x8xbf16>
    %59 = vector.shape_cast %58 : vector<1x16x8xbf16> to vector<16x8xbf16>
    %c0_43 = arith.constant 0 : index
    %c0_44 = arith.constant 0 : index
    %c16_45 = arith.constant 16 : index
    %60 = vector.load %arg3[%c0_43, %c0_44, %c16_45] : memref<1x16x32xbf16, #tpu.memory_space<vmem>>, vector<1x16x8xbf16>
    %61 = vector.shape_cast %60 : vector<1x16x8xbf16> to vector<16x8xbf16>
    %cst_46 = arith.constant dense<0.000000e+00> : vector<8x16xf32>
    %62 = tpu.matmul %57, %59, %cst_46 {dimension_numbers = #tpu.dot_dimension_numbers<[1], [1], [0], [0], [0, 0, 1, 0], [], []>} : vector<8x8xbf16>, vector<16x8xbf16>, vector<8x16xf32> -> vector<8x16xf32>
    %63 = vector.broadcast %1 : vector<1x16xf32> to vector<8x16xf32>
    %64 = arith.addf %62, %63 : vector<8x16xf32>
    %cst_47 = arith.constant dense<0xFF800000> : vector<8xf32>
    %65 = vector.multi_reduction <maximumf>, %64, %cst_47 [1] : vector<8x16xf32> to vector<8xf32>
    %66 = vector.shape_cast %65 : vector<8xf32> to vector<8x1xf32>
    %67 = vector.broadcast %66 : vector<8x1xf32> to vector<8x16xf32>
    %68 = arith.subf %64, %67 : vector<8x16xf32>
    %69 = math.exp %68 : vector<8x16xf32>
    %cst_48 = arith.constant dense<0.000000e+00> : vector<8xf32>
    %70 = vector.multi_reduction <add>, %69, %cst_48 [1] : vector<8x16xf32> to vector<8xf32>
    %71 = vector.shape_cast %70 : vector<8xf32> to vector<8x1xf32>
    %72 = tpu.reciprocal %71 {approx = true} : vector<8x1xf32> -> vector<8x1xf32>
    %73 = vector.broadcast %72 : vector<8x1xf32> to vector<8x16xf32>
    %74 = arith.mulf %69, %73 : vector<8x16xf32>
    %75 = arith.truncf %74 : vector<8x16xf32> to vector<8x16xbf16>
    %cst_49 = arith.constant dense<0.000000e+00> : vector<8x8xf32>
    %76 = tpu.matmul %75, %61, %cst_49 {dimension_numbers = #tpu.dot_dimension_numbers<[1], [0], [0], [1], [0, 0, 1, 1], [], []>} : vector<8x16xbf16>, vector<16x8xbf16>, vector<8x8xf32> -> vector<8x8xf32>
    %77 = arith.truncf %76 : vector<8x8xf32> to vector<8x8xbf16>
    %c2 = arith.constant 2 : index
    %c0_50 = arith.constant 0 : index
    %c0_51 = arith.constant 0 : index
    %78 = vector.load %arg6[%c2, %c0_50, %c0_51] : memref<4x8x32xbf16, #tpu.memory_space<vmem>>, vector<1x8x32xbf16>
    %79 = vector.shape_cast %78 : vector<1x8x32xbf16> to vector<8x32xbf16>
    %cst_52 = arith.constant dense<0.000000e+00> : vector<8x32xf32>
    %80 = tpu.matmul %77, %79, %cst_52 {dimension_numbers = #tpu.dot_dimension_numbers<[1], [0], [0], [1], [0, 0, 1, 1], [], []>} : vector<8x8xbf16>, vector<8x32xbf16>, vector<8x32xf32> -> vector<8x32xf32>
    %81 = arith.addf %55, %80 : vector<8x32xf32>
    %c0_53 = arith.constant 0 : index
    %c0_54 = arith.constant 0 : index
    %c24 = arith.constant 24 : index
    %82 = vector.load %arg1[%c0_53, %c0_54, %c24] : memref<1x8x32xbf16, #tpu.memory_space<vmem>>, vector<1x8x8xbf16>
    %83 = vector.shape_cast %82 : vector<1x8x8xbf16> to vector<8x8xbf16>
    %c0_55 = arith.constant 0 : index
    %c0_56 = arith.constant 0 : index
    %c24_57 = arith.constant 24 : index
    %84 = vector.load %arg2[%c0_55, %c0_56, %c24_57] : memref<1x16x32xbf16, #tpu.memory_space<vmem>>, vector<1x16x8xbf16>
    %85 = vector.shape_cast %84 : vector<1x16x8xbf16> to vector<16x8xbf16>
    %c0_58 = arith.constant 0 : index
    %c0_59 = arith.constant 0 : index
    %c24_60 = arith.constant 24 : index
    %86 = vector.load %arg3[%c0_58, %c0_59, %c24_60] : memref<1x16x32xbf16, #tpu.memory_space<vmem>>, vector<1x16x8xbf16>
    %87 = vector.shape_cast %86 : vector<1x16x8xbf16> to vector<16x8xbf16>
    %cst_61 = arith.constant dense<0.000000e+00> : vector<8x16xf32>
    %88 = tpu.matmul %83, %85, %cst_61 {dimension_numbers = #tpu.dot_dimension_numbers<[1], [1], [0], [0], [0, 0, 1, 0], [], []>} : vector<8x8xbf16>, vector<16x8xbf16>, vector<8x16xf32> -> vector<8x16xf32>
    %89 = vector.broadcast %1 : vector<1x16xf32> to vector<8x16xf32>
    %90 = arith.addf %88, %89 : vector<8x16xf32>
    %cst_62 = arith.constant dense<0xFF800000> : vector<8xf32>
    %91 = vector.multi_reduction <maximumf>, %90, %cst_62 [1] : vector<8x16xf32> to vector<8xf32>
    %92 = vector.shape_cast %91 : vector<8xf32> to vector<8x1xf32>
    %93 = vector.broadcast %92 : vector<8x1xf32> to vector<8x16xf32>
    %94 = arith.subf %90, %93 : vector<8x16xf32>
    %95 = math.exp %94 : vector<8x16xf32>
    %cst_63 = arith.constant dense<0.000000e+00> : vector<8xf32>
    %96 = vector.multi_reduction <add>, %95, %cst_63 [1] : vector<8x16xf32> to vector<8xf32>
    %97 = vector.shape_cast %96 : vector<8xf32> to vector<8x1xf32>
    %98 = tpu.reciprocal %97 {approx = true} : vector<8x1xf32> -> vector<8x1xf32>
    %99 = vector.broadcast %98 : vector<8x1xf32> to vector<8x16xf32>
    %100 = arith.mulf %95, %99 : vector<8x16xf32>
    %101 = arith.truncf %100 : vector<8x16xf32> to vector<8x16xbf16>
    %cst_64 = arith.constant dense<0.000000e+00> : vector<8x8xf32>
    %102 = tpu.matmul %101, %87, %cst_64 {dimension_numbers = #tpu.dot_dimension_numbers<[1], [0], [0], [1], [0, 0, 1, 1], [], []>} : vector<8x16xbf16>, vector<16x8xbf16>, vector<8x8xf32> -> vector<8x8xf32>
    %103 = arith.truncf %102 : vector<8x8xf32> to vector<8x8xbf16>
    %c3 = arith.constant 3 : index
    %c0_65 = arith.constant 0 : index
    %c0_66 = arith.constant 0 : index
    %104 = vector.load %arg6[%c3, %c0_65, %c0_66] : memref<4x8x32xbf16, #tpu.memory_space<vmem>>, vector<1x8x32xbf16>
    %105 = vector.shape_cast %104 : vector<1x8x32xbf16> to vector<8x32xbf16>
    %cst_67 = arith.constant dense<0.000000e+00> : vector<8x32xf32>
    %106 = tpu.matmul %103, %105, %cst_67 {dimension_numbers = #tpu.dot_dimension_numbers<[1], [0], [0], [1], [0, 0, 1, 1], [], []>} : vector<8x8xbf16>, vector<8x32xbf16>, vector<8x32xf32> -> vector<8x32xf32>
    %107 = arith.addf %81, %106 : vector<8x32xf32>
    %108 = arith.addf %3, %107 : vector<8x32xf32>
    %109 = vector.broadcast %4 : vector<1x32xf32> to vector<8x32xf32>
    %110 = arith.addf %108, %109 : vector<8x32xf32>
    %c0_68 = arith.constant 0 : index
    %c0_69 = arith.constant 0 : index
    %c0_70 = arith.constant 0 : index
    %111 = vector.load %arg8[%c0_68, %c0_69, %c0_70] : memref<1x8x32xf32, #tpu.memory_space<vmem>>, vector<1x8x32xf32>
    %112 = vector.shape_cast %111 : vector<1x8x32xf32> to vector<8x32xf32>
    %113 = vector.shape_cast %110 : vector<8x32xf32> to vector<1x8x32xf32>
    tpu.vector_store %arg8[%c0_68, %c0_69, %c0_70], %113 {strides = array<i32>} : memref<1x8x32xf32, #tpu.memory_space<vmem>>, vector<1x8x32xf32>,
    return
  }
  func.func @transform_0(%arg0: i32) -> (i32, i32, i32) {
    %c0_i32 = arith.constant 0 : i32
    %c0_i32_0 = arith.constant 0 : i32
    %c0_i32_1 = arith.constant 0 : i32
    return %arg0, %c0_i32, %c0_i32_0 : i32, i32, i32
  }
  func.func @transform_1(%arg0: i32) -> (i32, i32, i32) {
    %c0_i32 = arith.constant 0 : i32
    %c0_i32_0 = arith.constant 0 : i32
    %c0_i32_1 = arith.constant 0 : i32
    return %arg0, %c0_i32, %c0_i32_0 : i32, i32, i32
  }
  func.func @transform_2(%arg0: i32) -> (i32, i32, i32) {
    %c0_i32 = arith.constant 0 : i32
    %c0_i32_0 = arith.constant 0 : i32
    %c0_i32_1 = arith.constant 0 : i32
    return %arg0, %c0_i32, %c0_i32_0 : i32, i32, i32
  }
  func.func @transform_3(%arg0: i32) -> (i32, i32, i32) {
    %c0_i32 = arith.constant 0 : i32
    %c0_i32_0 = arith.constant 0 : i32
    %c0_i32_1 = arith.constant 0 : i32
    return %arg0, %c0_i32, %c0_i32_0 : i32, i32, i32
  }
  func.func @transform_4(%arg0: i32) -> (i32, i32, i32) {
    %c0_i32 = arith.constant 0 : i32
    %c0_i32_0 = arith.constant 0 : i32
    %c0_i32_1 = arith.constant 0 : i32
    return %arg0, %c0_i32, %c0_i32_0 : i32, i32, i32
  }
  func.func @transform_5(%arg0: i32) -> (i32, i32, i32) {
    %c0_i32 = arith.constant 0 : i32
    %c0_i32_0 = arith.constant 0 : i32
    %c0_i32_1 = arith.constant 0 : i32
    %c0_i32_2 = arith.constant 0 : i32
    return %c0_i32, %c0_i32_0, %c0_i32_1 : i32, i32, i32
  }
  func.func @transform_6(%arg0: i32) -> (i32, i32) {
    %c0_i32 = arith.constant 0 : i32
    %c0_i32_0 = arith.constant 0 : i32
    %c0_i32_1 = arith.constant 0 : i32
    return %c0_i32, %c0_i32_0 : i32, i32
  }
  func.func @transform_7(%arg0: i32) -> (i32, i32, i32) {
    %c0_i32 = arith.constant 0 : i32
    %c0_i32_0 = arith.constant 0 : i32
    %c0_i32_1 = arith.constant 0 : i32
    return %arg0, %c0_i32, %c0_i32_0 : i32, i32, i32
  }
}

module attributes {stable_mosaic.version = 11 : i64} {
  func.func @_ln_ffn_kernel(%arg0: i32, %arg1: memref<16x32xf32, #tpu.memory_space<vmem>>, %arg2: memref<1x32xf32, #tpu.memory_space<vmem>>, %arg3: memref<1x32xf32, #tpu.memory_space<vmem>>, %arg4: memref<32x64xbf16, #tpu.memory_space<vmem>>, %arg5: memref<1x64xf32, #tpu.memory_space<vmem>>, %arg6: memref<64x32xbf16, #tpu.memory_space<vmem>>, %arg7: memref<1x32xf32, #tpu.memory_space<vmem>>, %arg8: memref<16x32xf32, #tpu.memory_space<vmem>>) attributes {dimension_semantics = [#tpu.dimension_semantics<parallel>], iteration_bounds = array<i64: 1>, scalar_prefetch = 0 : i64, scratch_operands = 0 : i64, tpu.core_type = #tpu.core_type<tc>, window_params = [{transform_indices = @transform_0, window_bounds = array<i64: 16, 32>}, {pipeline_mode = #tpu.pipeline_mode<synchronous>, transform_indices = @transform_1, window_bounds = array<i64: 1, 32>}, {pipeline_mode = #tpu.pipeline_mode<synchronous>, transform_indices = @transform_2, window_bounds = array<i64: 1, 32>}, {pipeline_mode = #tpu.pipeline_mode<synchronous>, transform_indices = @transform_3, window_bounds = array<i64: 32, 64>}, {pipeline_mode = #tpu.pipeline_mode<synchronous>, transform_indices = @transform_4, window_bounds = array<i64: 1, 64>}, {pipeline_mode = #tpu.pipeline_mode<synchronous>, transform_indices = @transform_5, window_bounds = array<i64: 64, 32>}, {pipeline_mode = #tpu.pipeline_mode<synchronous>, transform_indices = @transform_6, window_bounds = array<i64: 1, 32>}, {transform_indices = @transform_7, window_bounds = array<i64: 16, 32>}]} {
    %c0 = arith.constant 0 : index
    %c0_0 = arith.constant 0 : index
    %0 = vector.load %arg1[%c0, %c0_0] : memref<16x32xf32, #tpu.memory_space<vmem>>, vector<16x32xf32>
    %c0_1 = arith.constant 0 : index
    %c0_2 = arith.constant 0 : index
    %1 = vector.load %arg2[%c0_1, %c0_2] : memref<1x32xf32, #tpu.memory_space<vmem>>, vector<1x32xf32>
    %c0_3 = arith.constant 0 : index
    %c0_4 = arith.constant 0 : index
    %2 = vector.load %arg3[%c0_3, %c0_4] : memref<1x32xf32, #tpu.memory_space<vmem>>, vector<1x32xf32>
    %cst = arith.constant dense<0.000000e+00> : vector<16xf32>
    %3 = vector.multi_reduction <add>, %0, %cst [1] : vector<16x32xf32> to vector<16xf32>
    %4 = vector.shape_cast %3 : vector<16xf32> to vector<16x1xf32>
    %cst_5 = arith.constant 3.200000e+01 : f32
    %5 = vector.broadcast %cst_5 : f32 to vector<16x1xf32>
    %6 = arith.divf %4, %5 : vector<16x1xf32>
    %7 = vector.broadcast %6 : vector<16x1xf32> to vector<16x32xf32>
    %8 = arith.subf %0, %7 : vector<16x32xf32>
    %9 = arith.mulf %8, %8 : vector<16x32xf32>
    %cst_6 = arith.constant dense<0.000000e+00> : vector<16xf32>
    %10 = vector.multi_reduction <add>, %9, %cst_6 [1] : vector<16x32xf32> to vector<16xf32>
    %11 = vector.shape_cast %10 : vector<16xf32> to vector<16x1xf32>
    %cst_7 = arith.constant 3.200000e+01 : f32
    %12 = vector.broadcast %cst_7 : f32 to vector<16x1xf32>
    %13 = arith.divf %11, %12 : vector<16x1xf32>
    %cst_8 = arith.constant 9.99999974E-6 : f32
    %14 = vector.broadcast %cst_8 : f32 to vector<16x1xf32>
    %15 = arith.addf %13, %14 : vector<16x1xf32>
    %16 = math.rsqrt %15 : vector<16x1xf32>
    %17 = vector.broadcast %16 : vector<16x1xf32> to vector<16x32xf32>
    %18 = arith.mulf %8, %17 : vector<16x32xf32>
    %19 = vector.broadcast %1 : vector<1x32xf32> to vector<16x32xf32>
    %20 = arith.mulf %18, %19 : vector<16x32xf32>
    %21 = vector.broadcast %2 : vector<1x32xf32> to vector<16x32xf32>
    %22 = arith.addf %20, %21 : vector<16x32xf32>
    %23 = arith.truncf %22 : vector<16x32xf32> to vector<16x32xbf16>
    %c0_9 = arith.constant 0 : index
    %c0_10 = arith.constant 0 : index
    %24 = vector.load %arg4[%c0_9, %c0_10] : memref<32x64xbf16, #tpu.memory_space<vmem>>, vector<32x64xbf16>
    %cst_11 = arith.constant dense<0.000000e+00> : vector<16x64xf32>
    %25 = tpu.matmul %23, %24, %cst_11 {dimension_numbers = #tpu.dot_dimension_numbers<[1], [0], [0], [1], [0, 0, 1, 1], [], []>} : vector<16x32xbf16>, vector<32x64xbf16>, vector<16x64xf32> -> vector<16x64xf32>
    %c0_12 = arith.constant 0 : index
    %c0_13 = arith.constant 0 : index
    %26 = vector.load %arg5[%c0_12, %c0_13] : memref<1x64xf32, #tpu.memory_space<vmem>>, vector<1x64xf32>
    %27 = vector.broadcast %26 : vector<1x64xf32> to vector<16x64xf32>
    %28 = arith.addf %25, %27 : vector<16x64xf32>
    %cst_14 = arith.constant 0.000000e+00 : f32
    %29 = vector.broadcast %cst_14 : f32 to vector<16x64xf32>
    %30 = arith.maximumf %28, %29 : vector<16x64xf32>
    %31 = arith.truncf %30 : vector<16x64xf32> to vector<16x64xbf16>
    %c0_15 = arith.constant 0 : index
    %c0_16 = arith.constant 0 : index
    %32 = vector.load %arg6[%c0_15, %c0_16] : memref<64x32xbf16, #tpu.memory_space<vmem>>, vector<64x32xbf16>
    %cst_17 = arith.constant dense<0.000000e+00> : vector<16x32xf32>
    %33 = tpu.matmul %31, %32, %cst_17 {dimension_numbers = #tpu.dot_dimension_numbers<[1], [0], [0], [1], [0, 0, 1, 1], [], []>} : vector<16x64xbf16>, vector<64x32xbf16>, vector<16x32xf32> -> vector<16x32xf32>
    %c0_18 = arith.constant 0 : index
    %c0_19 = arith.constant 0 : index
    %34 = vector.load %arg7[%c0_18, %c0_19] : memref<1x32xf32, #tpu.memory_space<vmem>>, vector<1x32xf32>
    %35 = vector.broadcast %34 : vector<1x32xf32> to vector<16x32xf32>
    %36 = arith.addf %33, %35 : vector<16x32xf32>
    %37 = arith.addf %0, %36 : vector<16x32xf32>
    %c0_20 = arith.constant 0 : index
    %c0_21 = arith.constant 0 : index
    %38 = vector.load %arg8[%c0_20, %c0_21] : memref<16x32xf32, #tpu.memory_space<vmem>>, vector<16x32xf32>
    tpu.vector_store %arg8[%c0_20, %c0_21], %37 {strides = array<i32>} : memref<16x32xf32, #tpu.memory_space<vmem>>, vector<16x32xf32>,
    return
  }
  func.func @transform_0(%arg0: i32) -> (i32, i32) {
    %c0_i32 = arith.constant 0 : i32
    %c0_i32_0 = arith.constant 0 : i32
    return %arg0, %c0_i32 : i32, i32
  }
  func.func @transform_1(%arg0: i32) -> (i32, i32) {
    %c0_i32 = arith.constant 0 : i32
    %c0_i32_0 = arith.constant 0 : i32
    %c0_i32_1 = arith.constant 0 : i32
    return %c0_i32, %c0_i32_0 : i32, i32
  }
  func.func @transform_2(%arg0: i32) -> (i32, i32) {
    %c0_i32 = arith.constant 0 : i32
    %c0_i32_0 = arith.constant 0 : i32
    %c0_i32_1 = arith.constant 0 : i32
    return %c0_i32, %c0_i32_0 : i32, i32
  }
  func.func @transform_3(%arg0: i32) -> (i32, i32) {
    %c0_i32 = arith.constant 0 : i32
    %c0_i32_0 = arith.constant 0 : i32
    %c0_i32_1 = arith.constant 0 : i32
    return %c0_i32, %c0_i32_0 : i32, i32
  }
  func.func @transform_4(%arg0: i32) -> (i32, i32) {
    %c0_i32 = arith.constant 0 : i32
    %c0_i32_0 = arith.constant 0 : i32
    %c0_i32_1 = arith.constant 0 : i32
    return %c0_i32, %c0_i32_0 : i32, i32
  }
  func.func @transform_5(%arg0: i32) -> (i32, i32) {
    %c0_i32 = arith.constant 0 : i32
    %c0_i32_0 = arith.constant 0 : i32
    %c0_i32_1 = arith.constant 0 : i32
    return %c0_i32, %c0_i32_0 : i32, i32
  }
  func.func @transform_6(%arg0: i32) -> (i32, i32) {
    %c0_i32 = arith.constant 0 : i32
    %c0_i32_0 = arith.constant 0 : i32
    %c0_i32_1 = arith.constant 0 : i32
    return %c0_i32, %c0_i32_0 : i32, i32
  }
  func.func @transform_7(%arg0: i32) -> (i32, i32) {
    %c0_i32 = arith.constant 0 : i32
    %c0_i32_0 = arith.constant 0 : i32
    return %arg0, %c0_i32 : i32, i32
  }
}

module attributes {stable_mosaic.version = 11 : i64} {
  func.func @_ln_qkv_kernel(%arg0: i32, %arg1: memref<16x32xf32, #tpu.memory_space<vmem>>, %arg2: memref<16x32xf32, #tpu.memory_space<vmem>>, %arg3: memref<1x32xf32, #tpu.memory_space<vmem>>, %arg4: memref<1x32xf32, #tpu.memory_space<vmem>>, %arg5: memref<32x64xbf16, #tpu.memory_space<vmem>>, %arg6: memref<1x64xf32, #tpu.memory_space<vmem>>, %arg7: memref<32x32xbf16, #tpu.memory_space<vmem>>, %arg8: memref<1x32xf32, #tpu.memory_space<vmem>>, %arg9: memref<16x64xbf16, #tpu.memory_space<vmem>>, %arg10: memref<16x32xbf16, #tpu.memory_space<vmem>>) attributes {dimension_semantics = [#tpu.dimension_semantics<parallel>], iteration_bounds = array<i64: 1>, scalar_prefetch = 0 : i64, scratch_operands = 0 : i64, tpu.core_type = #tpu.core_type<tc>, window_params = [{transform_indices = @transform_0, window_bounds = array<i64: 16, 32>}, {transform_indices = @transform_1, window_bounds = array<i64: 16, 32>}, {pipeline_mode = #tpu.pipeline_mode<synchronous>, transform_indices = @transform_2, window_bounds = array<i64: 1, 32>}, {pipeline_mode = #tpu.pipeline_mode<synchronous>, transform_indices = @transform_3, window_bounds = array<i64: 1, 32>}, {pipeline_mode = #tpu.pipeline_mode<synchronous>, transform_indices = @transform_4, window_bounds = array<i64: 32, 64>}, {pipeline_mode = #tpu.pipeline_mode<synchronous>, transform_indices = @transform_5, window_bounds = array<i64: 1, 64>}, {pipeline_mode = #tpu.pipeline_mode<synchronous>, transform_indices = @transform_6, window_bounds = array<i64: 32, 32>}, {pipeline_mode = #tpu.pipeline_mode<synchronous>, transform_indices = @transform_7, window_bounds = array<i64: 1, 32>}, {transform_indices = @transform_8, window_bounds = array<i64: 16, 64>}, {transform_indices = @transform_9, window_bounds = array<i64: 16, 32>}]} {
    %c0 = arith.constant 0 : index
    %c0_0 = arith.constant 0 : index
    %0 = vector.load %arg1[%c0, %c0_0] : memref<16x32xf32, #tpu.memory_space<vmem>>, vector<16x32xf32>
    %c0_1 = arith.constant 0 : index
    %c0_2 = arith.constant 0 : index
    %1 = vector.load %arg3[%c0_1, %c0_2] : memref<1x32xf32, #tpu.memory_space<vmem>>, vector<1x32xf32>
    %c0_3 = arith.constant 0 : index
    %c0_4 = arith.constant 0 : index
    %2 = vector.load %arg4[%c0_3, %c0_4] : memref<1x32xf32, #tpu.memory_space<vmem>>, vector<1x32xf32>
    %cst = arith.constant dense<0.000000e+00> : vector<16xf32>
    %3 = vector.multi_reduction <add>, %0, %cst [1] : vector<16x32xf32> to vector<16xf32>
    %4 = vector.shape_cast %3 : vector<16xf32> to vector<16x1xf32>
    %cst_5 = arith.constant 3.200000e+01 : f32
    %5 = vector.broadcast %cst_5 : f32 to vector<16x1xf32>
    %6 = arith.divf %4, %5 : vector<16x1xf32>
    %7 = vector.broadcast %6 : vector<16x1xf32> to vector<16x32xf32>
    %8 = arith.subf %0, %7 : vector<16x32xf32>
    %9 = arith.mulf %8, %8 : vector<16x32xf32>
    %cst_6 = arith.constant dense<0.000000e+00> : vector<16xf32>
    %10 = vector.multi_reduction <add>, %9, %cst_6 [1] : vector<16x32xf32> to vector<16xf32>
    %11 = vector.shape_cast %10 : vector<16xf32> to vector<16x1xf32>
    %cst_7 = arith.constant 3.200000e+01 : f32
    %12 = vector.broadcast %cst_7 : f32 to vector<16x1xf32>
    %13 = arith.divf %11, %12 : vector<16x1xf32>
    %cst_8 = arith.constant 9.99999974E-6 : f32
    %14 = vector.broadcast %cst_8 : f32 to vector<16x1xf32>
    %15 = arith.addf %13, %14 : vector<16x1xf32>
    %16 = math.rsqrt %15 : vector<16x1xf32>
    %17 = vector.broadcast %16 : vector<16x1xf32> to vector<16x32xf32>
    %18 = arith.mulf %8, %17 : vector<16x32xf32>
    %19 = vector.broadcast %1 : vector<1x32xf32> to vector<16x32xf32>
    %20 = arith.mulf %18, %19 : vector<16x32xf32>
    %21 = vector.broadcast %2 : vector<1x32xf32> to vector<16x32xf32>
    %22 = arith.addf %20, %21 : vector<16x32xf32>
    %c0_9 = arith.constant 0 : index
    %c0_10 = arith.constant 0 : index
    %23 = vector.load %arg2[%c0_9, %c0_10] : memref<16x32xf32, #tpu.memory_space<vmem>>, vector<16x32xf32>
    %24 = arith.addf %22, %23 : vector<16x32xf32>
    %25 = arith.truncf %24 : vector<16x32xf32> to vector<16x32xbf16>
    %c0_11 = arith.constant 0 : index
    %c0_12 = arith.constant 0 : index
    %26 = vector.load %arg5[%c0_11, %c0_12] : memref<32x64xbf16, #tpu.memory_space<vmem>>, vector<32x64xbf16>
    %cst_13 = arith.constant dense<0.000000e+00> : vector<16x64xf32>
    %27 = tpu.matmul %25, %26, %cst_13 {dimension_numbers = #tpu.dot_dimension_numbers<[1], [0], [0], [1], [0, 0, 1, 1], [], []>} : vector<16x32xbf16>, vector<32x64xbf16>, vector<16x64xf32> -> vector<16x64xf32>
    %c0_14 = arith.constant 0 : index
    %c0_15 = arith.constant 0 : index
    %28 = vector.load %arg6[%c0_14, %c0_15] : memref<1x64xf32, #tpu.memory_space<vmem>>, vector<1x64xf32>
    %29 = vector.broadcast %28 : vector<1x64xf32> to vector<16x64xf32>
    %30 = arith.addf %27, %29 : vector<16x64xf32>
    %31 = arith.truncf %22 : vector<16x32xf32> to vector<16x32xbf16>
    %c0_16 = arith.constant 0 : index
    %c0_17 = arith.constant 0 : index
    %32 = vector.load %arg7[%c0_16, %c0_17] : memref<32x32xbf16, #tpu.memory_space<vmem>>, vector<32x32xbf16>
    %cst_18 = arith.constant dense<0.000000e+00> : vector<16x32xf32>
    %33 = tpu.matmul %31, %32, %cst_18 {dimension_numbers = #tpu.dot_dimension_numbers<[1], [0], [0], [1], [0, 0, 1, 1], [], []>} : vector<16x32xbf16>, vector<32x32xbf16>, vector<16x32xf32> -> vector<16x32xf32>
    %c0_19 = arith.constant 0 : index
    %c0_20 = arith.constant 0 : index
    %34 = vector.load %arg8[%c0_19, %c0_20] : memref<1x32xf32, #tpu.memory_space<vmem>>, vector<1x32xf32>
    %35 = vector.broadcast %34 : vector<1x32xf32> to vector<16x32xf32>
    %36 = arith.addf %33, %35 : vector<16x32xf32>
    %37 = arith.truncf %30 : vector<16x64xf32> to vector<16x64xbf16>
    %c0_21 = arith.constant 0 : index
    %c0_22 = arith.constant 0 : index
    %38 = vector.load %arg9[%c0_21, %c0_22] : memref<16x64xbf16, #tpu.memory_space<vmem>>, vector<16x64xbf16>
    tpu.vector_store %arg9[%c0_21, %c0_22], %37 {strides = array<i32>} : memref<16x64xbf16, #tpu.memory_space<vmem>>, vector<16x64xbf16>,
    %39 = arith.truncf %36 : vector<16x32xf32> to vector<16x32xbf16>
    %c0_23 = arith.constant 0 : index
    %c0_24 = arith.constant 0 : index
    %40 = vector.load %arg10[%c0_23, %c0_24] : memref<16x32xbf16, #tpu.memory_space<vmem>>, vector<16x32xbf16>
    tpu.vector_store %arg10[%c0_23, %c0_24], %39 {strides = array<i32>} : memref<16x32xbf16, #tpu.memory_space<vmem>>, vector<16x32xbf16>,
    return
  }
  func.func @transform_0(%arg0: i32) -> (i32, i32) {
    %c0_i32 = arith.constant 0 : i32
    %c0_i32_0 = arith.constant 0 : i32
    return %arg0, %c0_i32 : i32, i32
  }
  func.func @transform_1(%arg0: i32) -> (i32, i32) {
    %c0_i32 = arith.constant 0 : i32
    %c0_i32_0 = arith.constant 0 : i32
    return %arg0, %c0_i32 : i32, i32
  }
  func.func @transform_2(%arg0: i32) -> (i32, i32) {
    %c0_i32 = arith.constant 0 : i32
    %c0_i32_0 = arith.constant 0 : i32
    %c0_i32_1 = arith.constant 0 : i32
    return %c0_i32, %c0_i32_0 : i32, i32
  }
  func.func @transform_3(%arg0: i32) -> (i32, i32) {
    %c0_i32 = arith.constant 0 : i32
    %c0_i32_0 = arith.constant 0 : i32
    %c0_i32_1 = arith.constant 0 : i32
    return %c0_i32, %c0_i32_0 : i32, i32
  }
  func.func @transform_4(%arg0: i32) -> (i32, i32) {
    %c0_i32 = arith.constant 0 : i32
    %c0_i32_0 = arith.constant 0 : i32
    %c0_i32_1 = arith.constant 0 : i32
    return %c0_i32, %c0_i32_0 : i32, i32
  }
  func.func @transform_5(%arg0: i32) -> (i32, i32) {
    %c0_i32 = arith.constant 0 : i32
    %c0_i32_0 = arith.constant 0 : i32
    %c0_i32_1 = arith.constant 0 : i32
    return %c0_i32, %c0_i32_0 : i32, i32
  }
  func.func @transform_6(%arg0: i32) -> (i32, i32) {
    %c0_i32 = arith.constant 0 : i32
    %c0_i32_0 = arith.constant 0 : i32
    %c0_i32_1 = arith.constant 0 : i32
    return %c0_i32, %c0_i32_0 : i32, i32
  }
  func.func @transform_7(%arg0: i32) -> (i32, i32) {
    %c0_i32 = arith.constant 0 : i32
    %c0_i32_0 = arith.constant 0 : i32
    %c0_i32_1 = arith.constant 0 : i32
    return %c0_i32, %c0_i32_0 : i32, i32
  }
  func.func @transform_8(%arg0: i32) -> (i32, i32) {
    %c0_i32 = arith.constant 0 : i32
    %c0_i32_0 = arith.constant 0 : i32
    return %arg0, %c0_i32 : i32, i32
  }
  func.func @transform_9(%arg0: i32) -> (i32, i32) {
    %c0_i32 = arith.constant 0 : i32
    %c0_i32_0 = arith.constant 0 : i32
    return %arg0, %c0_i32 : i32, i32
  }
}

module attributes {stable_mosaic.version = 11 : i64} {
  func.func @_ln_q_kernel(%arg0: i32, %arg1: memref<16x32xf32, #tpu.memory_space<vmem>>, %arg2: memref<16x32xf32, #tpu.memory_space<vmem>>, %arg3: memref<1x32xf32, #tpu.memory_space<vmem>>, %arg4: memref<1x32xf32, #tpu.memory_space<vmem>>, %arg5: memref<32x32xbf16, #tpu.memory_space<vmem>>, %arg6: memref<1x32xf32, #tpu.memory_space<vmem>>, %arg7: memref<16x32xbf16, #tpu.memory_space<vmem>>) attributes {dimension_semantics = [#tpu.dimension_semantics<parallel>], iteration_bounds = array<i64: 1>, scalar_prefetch = 0 : i64, scratch_operands = 0 : i64, tpu.core_type = #tpu.core_type<tc>, window_params = [{transform_indices = @transform_0, window_bounds = array<i64: 16, 32>}, {transform_indices = @transform_1, window_bounds = array<i64: 16, 32>}, {pipeline_mode = #tpu.pipeline_mode<synchronous>, transform_indices = @transform_2, window_bounds = array<i64: 1, 32>}, {pipeline_mode = #tpu.pipeline_mode<synchronous>, transform_indices = @transform_3, window_bounds = array<i64: 1, 32>}, {pipeline_mode = #tpu.pipeline_mode<synchronous>, transform_indices = @transform_4, window_bounds = array<i64: 32, 32>}, {pipeline_mode = #tpu.pipeline_mode<synchronous>, transform_indices = @transform_5, window_bounds = array<i64: 1, 32>}, {transform_indices = @transform_6, window_bounds = array<i64: 16, 32>}]} {
    %c0 = arith.constant 0 : index
    %c0_0 = arith.constant 0 : index
    %0 = vector.load %arg1[%c0, %c0_0] : memref<16x32xf32, #tpu.memory_space<vmem>>, vector<16x32xf32>
    %c0_1 = arith.constant 0 : index
    %c0_2 = arith.constant 0 : index
    %1 = vector.load %arg3[%c0_1, %c0_2] : memref<1x32xf32, #tpu.memory_space<vmem>>, vector<1x32xf32>
    %c0_3 = arith.constant 0 : index
    %c0_4 = arith.constant 0 : index
    %2 = vector.load %arg4[%c0_3, %c0_4] : memref<1x32xf32, #tpu.memory_space<vmem>>, vector<1x32xf32>
    %cst = arith.constant dense<0.000000e+00> : vector<16xf32>
    %3 = vector.multi_reduction <add>, %0, %cst [1] : vector<16x32xf32> to vector<16xf32>
    %4 = vector.shape_cast %3 : vector<16xf32> to vector<16x1xf32>
    %cst_5 = arith.constant 3.200000e+01 : f32
    %5 = vector.broadcast %cst_5 : f32 to vector<16x1xf32>
    %6 = arith.divf %4, %5 : vector<16x1xf32>
    %7 = vector.broadcast %6 : vector<16x1xf32> to vector<16x32xf32>
    %8 = arith.subf %0, %7 : vector<16x32xf32>
    %9 = arith.mulf %8, %8 : vector<16x32xf32>
    %cst_6 = arith.constant dense<0.000000e+00> : vector<16xf32>
    %10 = vector.multi_reduction <add>, %9, %cst_6 [1] : vector<16x32xf32> to vector<16xf32>
    %11 = vector.shape_cast %10 : vector<16xf32> to vector<16x1xf32>
    %cst_7 = arith.constant 3.200000e+01 : f32
    %12 = vector.broadcast %cst_7 : f32 to vector<16x1xf32>
    %13 = arith.divf %11, %12 : vector<16x1xf32>
    %cst_8 = arith.constant 9.99999974E-6 : f32
    %14 = vector.broadcast %cst_8 : f32 to vector<16x1xf32>
    %15 = arith.addf %13, %14 : vector<16x1xf32>
    %16 = math.rsqrt %15 : vector<16x1xf32>
    %17 = vector.broadcast %16 : vector<16x1xf32> to vector<16x32xf32>
    %18 = arith.mulf %8, %17 : vector<16x32xf32>
    %19 = vector.broadcast %1 : vector<1x32xf32> to vector<16x32xf32>
    %20 = arith.mulf %18, %19 : vector<16x32xf32>
    %21 = vector.broadcast %2 : vector<1x32xf32> to vector<16x32xf32>
    %22 = arith.addf %20, %21 : vector<16x32xf32>
    %c0_9 = arith.constant 0 : index
    %c0_10 = arith.constant 0 : index
    %23 = vector.load %arg2[%c0_9, %c0_10] : memref<16x32xf32, #tpu.memory_space<vmem>>, vector<16x32xf32>
    %24 = arith.addf %22, %23 : vector<16x32xf32>
    %25 = arith.truncf %24 : vector<16x32xf32> to vector<16x32xbf16>
    %c0_11 = arith.constant 0 : index
    %c0_12 = arith.constant 0 : index
    %26 = vector.load %arg5[%c0_11, %c0_12] : memref<32x32xbf16, #tpu.memory_space<vmem>>, vector<32x32xbf16>
    %cst_13 = arith.constant dense<0.000000e+00> : vector<16x32xf32>
    %27 = tpu.matmul %25, %26, %cst_13 {dimension_numbers = #tpu.dot_dimension_numbers<[1], [0], [0], [1], [0, 0, 1, 1], [], []>} : vector<16x32xbf16>, vector<32x32xbf16>, vector<16x32xf32> -> vector<16x32xf32>
    %c0_14 = arith.constant 0 : index
    %c0_15 = arith.constant 0 : index
    %28 = vector.load %arg6[%c0_14, %c0_15] : memref<1x32xf32, #tpu.memory_space<vmem>>, vector<1x32xf32>
    %29 = vector.broadcast %28 : vector<1x32xf32> to vector<16x32xf32>
    %30 = arith.addf %27, %29 : vector<16x32xf32>
    %31 = arith.truncf %30 : vector<16x32xf32> to vector<16x32xbf16>
    %c0_16 = arith.constant 0 : index
    %c0_17 = arith.constant 0 : index
    %32 = vector.load %arg7[%c0_16, %c0_17] : memref<16x32xbf16, #tpu.memory_space<vmem>>, vector<16x32xbf16>
    tpu.vector_store %arg7[%c0_16, %c0_17], %31 {strides = array<i32>} : memref<16x32xbf16, #tpu.memory_space<vmem>>, vector<16x32xbf16>,
    return
  }
  func.func @transform_0(%arg0: i32) -> (i32, i32) {
    %c0_i32 = arith.constant 0 : i32
    %c0_i32_0 = arith.constant 0 : i32
    return %arg0, %c0_i32 : i32, i32
  }
  func.func @transform_1(%arg0: i32) -> (i32, i32) {
    %c0_i32 = arith.constant 0 : i32
    %c0_i32_0 = arith.constant 0 : i32
    return %arg0, %c0_i32 : i32, i32
  }
  func.func @transform_2(%arg0: i32) -> (i32, i32) {
    %c0_i32 = arith.constant 0 : i32
    %c0_i32_0 = arith.constant 0 : i32
    %c0_i32_1 = arith.constant 0 : i32
    return %c0_i32, %c0_i32_0 : i32, i32
  }
  func.func @transform_3(%arg0: i32) -> (i32, i32) {
    %c0_i32 = arith.constant 0 : i32
    %c0_i32_0 = arith.constant 0 : i32
    %c0_i32_1 = arith.constant 0 : i32
    return %c0_i32, %c0_i32_0 : i32, i32
  }
  func.func @transform_4(%arg0: i32) -> (i32, i32) {
    %c0_i32 = arith.constant 0 : i32
    %c0_i32_0 = arith.constant 0 : i32
    %c0_i32_1 = arith.constant 0 : i32
    return %c0_i32, %c0_i32_0 : i32, i32
  }
  func.func @transform_5(%arg0: i32) -> (i32, i32) {
    %c0_i32 = arith.constant 0 : i32
    %c0_i32_0 = arith.constant 0 : i32
    %c0_i32_1 = arith.constant 0 : i32
    return %c0_i32, %c0_i32_0 : i32, i32
  }
  func.func @transform_6(%arg0: i32) -> (i32, i32) {
    %c0_i32 = arith.constant 0 : i32
    %c0_i32_0 = arith.constant 0 : i32
    return %arg0, %c0_i32 : i32, i32
  }
}

module attributes {stable_mosaic.version = 11 : i64} {
  func.func @_kv_kernel(%arg0: i32, %arg1: memref<32x32xf32, #tpu.memory_space<vmem>>, %arg2: memref<32x32xf32, #tpu.memory_space<vmem>>, %arg3: memref<32x32xbf16, #tpu.memory_space<vmem>>, %arg4: memref<1x32xf32, #tpu.memory_space<vmem>>, %arg5: memref<32x32xbf16, #tpu.memory_space<vmem>>, %arg6: memref<1x32xf32, #tpu.memory_space<vmem>>, %arg7: memref<32x32xbf16, #tpu.memory_space<vmem>>, %arg8: memref<32x32xbf16, #tpu.memory_space<vmem>>) attributes {dimension_semantics = [#tpu.dimension_semantics<parallel>], iteration_bounds = array<i64: 1>, scalar_prefetch = 0 : i64, scratch_operands = 0 : i64, tpu.core_type = #tpu.core_type<tc>, window_params = [{transform_indices = @transform_0, window_bounds = array<i64: 32, 32>}, {transform_indices = @transform_1, window_bounds = array<i64: 32, 32>}, {pipeline_mode = #tpu.pipeline_mode<synchronous>, transform_indices = @transform_2, window_bounds = array<i64: 32, 32>}, {pipeline_mode = #tpu.pipeline_mode<synchronous>, transform_indices = @transform_3, window_bounds = array<i64: 1, 32>}, {pipeline_mode = #tpu.pipeline_mode<synchronous>, transform_indices = @transform_4, window_bounds = array<i64: 32, 32>}, {pipeline_mode = #tpu.pipeline_mode<synchronous>, transform_indices = @transform_5, window_bounds = array<i64: 1, 32>}, {transform_indices = @transform_6, window_bounds = array<i64: 32, 32>}, {transform_indices = @transform_7, window_bounds = array<i64: 32, 32>}]} {
    %c0 = arith.constant 0 : index
    %c0_0 = arith.constant 0 : index
    %0 = vector.load %arg1[%c0, %c0_0] : memref<32x32xf32, #tpu.memory_space<vmem>>, vector<32x32xf32>
    %c0_1 = arith.constant 0 : index
    %c0_2 = arith.constant 0 : index
    %1 = vector.load %arg2[%c0_1, %c0_2] : memref<32x32xf32, #tpu.memory_space<vmem>>, vector<32x32xf32>
    %2 = arith.addf %0, %1 : vector<32x32xf32>
    %3 = arith.truncf %2 : vector<32x32xf32> to vector<32x32xbf16>
    %c0_3 = arith.constant 0 : index
    %c0_4 = arith.constant 0 : index
    %4 = vector.load %arg3[%c0_3, %c0_4] : memref<32x32xbf16, #tpu.memory_space<vmem>>, vector<32x32xbf16>
    %cst = arith.constant dense<0.000000e+00> : vector<32x32xf32>
    %5 = tpu.matmul %3, %4, %cst {dimension_numbers = #tpu.dot_dimension_numbers<[1], [0], [0], [1], [0, 0, 1, 1], [], []>} : vector<32x32xbf16>, vector<32x32xbf16>, vector<32x32xf32> -> vector<32x32xf32>
    %c0_5 = arith.constant 0 : index
    %c0_6 = arith.constant 0 : index
    %6 = vector.load %arg4[%c0_5, %c0_6] : memref<1x32xf32, #tpu.memory_space<vmem>>, vector<1x32xf32>
    %7 = vector.broadcast %6 : vector<1x32xf32> to vector<32x32xf32>
    %8 = arith.addf %5, %7 : vector<32x32xf32>
    %9 = arith.truncf %0 : vector<32x32xf32> to vector<32x32xbf16>
    %c0_7 = arith.constant 0 : index
    %c0_8 = arith.constant 0 : index
    %10 = vector.load %arg5[%c0_7, %c0_8] : memref<32x32xbf16, #tpu.memory_space<vmem>>, vector<32x32xbf16>
    %cst_9 = arith.constant dense<0.000000e+00> : vector<32x32xf32>
    %11 = tpu.matmul %9, %10, %cst_9 {dimension_numbers = #tpu.dot_dimension_numbers<[1], [0], [0], [1], [0, 0, 1, 1], [], []>} : vector<32x32xbf16>, vector<32x32xbf16>, vector<32x32xf32> -> vector<32x32xf32>
    %c0_10 = arith.constant 0 : index
    %c0_11 = arith.constant 0 : index
    %12 = vector.load %arg6[%c0_10, %c0_11] : memref<1x32xf32, #tpu.memory_space<vmem>>, vector<1x32xf32>
    %13 = vector.broadcast %12 : vector<1x32xf32> to vector<32x32xf32>
    %14 = arith.addf %11, %13 : vector<32x32xf32>
    %15 = arith.truncf %8 : vector<32x32xf32> to vector<32x32xbf16>
    %c0_12 = arith.constant 0 : index
    %c0_13 = arith.constant 0 : index
    %16 = vector.load %arg7[%c0_12, %c0_13] : memref<32x32xbf16, #tpu.memory_space<vmem>>, vector<32x32xbf16>
    tpu.vector_store %arg7[%c0_12, %c0_13], %15 {strides = array<i32>} : memref<32x32xbf16, #tpu.memory_space<vmem>>, vector<32x32xbf16>,
    %17 = arith.truncf %14 : vector<32x32xf32> to vector<32x32xbf16>
    %c0_14 = arith.constant 0 : index
    %c0_15 = arith.constant 0 : index
    %18 = vector.load %arg8[%c0_14, %c0_15] : memref<32x32xbf16, #tpu.memory_space<vmem>>, vector<32x32xbf16>
    tpu.vector_store %arg8[%c0_14, %c0_15], %17 {strides = array<i32>} : memref<32x32xbf16, #tpu.memory_space<vmem>>, vector<32x32xbf16>,
    return
  }
  func.func @transform_0(%arg0: i32) -> (i32, i32) {
    %c0_i32 = arith.constant 0 : i32
    %c0_i32_0 = arith.constant 0 : i32
    return %arg0, %c0_i32 : i32, i32
  }
  func.func @transform_1(%arg0: i32) -> (i32, i32) {
    %c0_i32 = arith.constant 0 : i32
    %c0_i32_0 = arith.constant 0 : i32
    return %arg0, %c0_i32 : i32, i32
  }
  func.func @transform_2(%arg0: i32) -> (i32, i32) {
    %c0_i32 = arith.constant 0 : i32
    %c0_i32_0 = arith.constant 0 : i32
    %c0_i32_1 = arith.constant 0 : i32
    return %c0_i32, %c0_i32_0 : i32, i32
  }
  func.func @transform_3(%arg0: i32) -> (i32, i32) {
    %c0_i32 = arith.constant 0 : i32
    %c0_i32_0 = arith.constant 0 : i32
    %c0_i32_1 = arith.constant 0 : i32
    return %c0_i32, %c0_i32_0 : i32, i32
  }
  func.func @transform_4(%arg0: i32) -> (i32, i32) {
    %c0_i32 = arith.constant 0 : i32
    %c0_i32_0 = arith.constant 0 : i32
    %c0_i32_1 = arith.constant 0 : i32
    return %c0_i32, %c0_i32_0 : i32, i32
  }
  func.func @transform_5(%arg0: i32) -> (i32, i32) {
    %c0_i32 = arith.constant 0 : i32
    %c0_i32_0 = arith.constant 0 : i32
    %c0_i32_1 = arith.constant 0 : i32
    return %c0_i32, %c0_i32_0 : i32, i32
  }
  func.func @transform_6(%arg0: i32) -> (i32, i32) {
    %c0_i32 = arith.constant 0 : i32
    %c0_i32_0 = arith.constant 0 : i32
    return %arg0, %c0_i32 : i32, i32
  }
  func.func @transform_7(%arg0: i32) -> (i32, i32) {
    %c0_i32 = arith.constant 0 : i32
    %c0_i32_0 = arith.constant 0 : i32
    return %arg0, %c0_i32 : i32, i32
  }
}

module attributes {stable_mosaic.version = 11 : i64} {
  func.func @_cross_attn_kernel(%arg0: i32, %arg1: memref<1x8x32xbf16, #tpu.memory_space<vmem>>, %arg2: memref<1x16x32xbf16, #tpu.memory_space<vmem>>, %arg3: memref<1x16x32xbf16, #tpu.memory_space<vmem>>, %arg4: memref<1x1x16xf32, #tpu.memory_space<vmem>>, %arg5: memref<1x8x32xf32, #tpu.memory_space<vmem>>, %arg6: memref<4x8x32xbf16, #tpu.memory_space<vmem>>, %arg7: memref<1x32xf32, #tpu.memory_space<vmem>>, %arg8: memref<1x8x32xf32, #tpu.memory_space<vmem>>) attributes {dimension_semantics = [#tpu.dimension_semantics<parallel>], iteration_bounds = array<i64: 2>, scalar_prefetch = 0 : i64, scratch_operands = 0 : i64, tpu.core_type = #tpu.core_type<tc>, window_params = [{transform_indices = @transform_0, window_bounds = array<i64: 1, 8, 32>}, {transform_indices = @transform_1, window_bounds = array<i64: 1, 16, 32>}, {transform_indices = @transform_2, window_bounds = array<i64: 1, 16, 32>}, {transform_indices = @transform_3, window_bounds = array<i64: 1, 1, 16>}, {transform_indices = @transform_4, window_bounds = array<i64: 1, 8, 32>}, {pipeline_mode = #tpu.pipeline_mode<synchronous>, transform_indices = @transform_5, window_bounds = array<i64: 4, 8, 32>}, {pipeline_mode = #tpu.pipeline_mode<synchronous>, transform_indices = @transform_6, window_bounds = array<i64: 1, 32>}, {transform_indices = @transform_7, window_bounds = array<i64: 1, 8, 32>}]} {
    %c0 = arith.constant 0 : index
    %c0_0 = arith.constant 0 : index
    %c0_1 = arith.constant 0 : index
    %0 = vector.load %arg4[%c0, %c0_0, %c0_1] : memref<1x1x16xf32, #tpu.memory_space<vmem>>, vector<1x1x16xf32>
    %1 = vector.shape_cast %0 : vector<1x1x16xf32> to vector<1x16xf32>
    %c0_2 = arith.constant 0 : index
    %c0_3 = arith.constant 0 : index
    %c0_4 = arith.constant 0 : index
    %2 = vector.load %arg5[%c0_2, %c0_3, %c0_4] : memref<1x8x32xf32, #tpu.memory_space<vmem>>, vector<1x8x32xf32>
    %3 = vector.shape_cast %2 : vector<1x8x32xf32> to vector<8x32xf32>
    %c0_5 = arith.constant 0 : index
    %c0_6 = arith.constant 0 : index
    %4 = vector.load %arg7[%c0_5, %c0_6] : memref<1x32xf32, #tpu.memory_space<vmem>>, vector<1x32xf32>
    %c0_7 = arith.constant 0 : index
    %c0_8 = arith.constant 0 : index
    %c0_9 = arith.constant 0 : index
    %5 = vector.load %arg1[%c0_7, %c0_8, %c0_9] : memref<1x8x32xbf16, #tpu.memory_space<vmem>>, vector<1x8x8xbf16>
    %6 = vector.shape_cast %5 : vector<1x8x8xbf16> to vector<8x8xbf16>
    %c0_10 = arith.constant 0 : index
    %c0_11 = arith.constant 0 : index
    %c0_12 = arith.constant 0 : index
    %7 = vector.load %arg2[%c0_10, %c0_11, %c0_12] : memref<1x16x32xbf16, #tpu.memory_space<vmem>>, vector<1x16x8xbf16>
    %8 = vector.shape_cast %7 : vector<1x16x8xbf16> to vector<16x8xbf16>
    %c0_13 = arith.constant 0 : index
    %c0_14 = arith.constant 0 : index
    %c0_15 = arith.constant 0 : index
    %9 = vector.load %arg3[%c0_13, %c0_14, %c0_15] : memref<1x16x32xbf16, #tpu.memory_space<vmem>>, vector<1x16x8xbf16>
    %10 = vector.shape_cast %9 : vector<1x16x8xbf16> to vector<16x8xbf16>
    %cst = arith.constant dense<0.000000e+00> : vector<8x16xf32>
    %11 = tpu.matmul %6, %8, %cst {dimension_numbers = #tpu.dot_dimension_numbers<[1], [1], [0], [0], [0, 0, 1, 0], [], []>} : vector<8x8xbf16>, vector<16x8xbf16>, vector<8x16xf32> -> vector<8x16xf32>
    %12 = vector.broadcast %1 : vector<1x16xf32> to vector<8x16xf32>
    %13 = arith.addf %11, %12 : vector<8x16xf32>
    %cst_16 = arith.constant dense<0xFF800000> : vector<8xf32>
    %14 = vector.multi_reduction <maximumf>, %13, %cst_16 [1] : vector<8x16xf32> to vector<8xf32>
    %15 = vector.shape_cast %14 : vector<8xf32> to vector<8x1xf32>
    %16 = vector.broadcast %15 : vector<8x1xf32> to vector<8x16xf32>
    %17 = arith.subf %13, %16 : vector<8x16xf32>
    %18 = math.exp %17 : vector<8x16xf32>
    %cst_17 = arith.constant dense<0.000000e+00> : vector<8xf32>
    %19 = vector.multi_reduction <add>, %18, %cst_17 [1] : vector<8x16xf32> to vector<8xf32>
    %20 = vector.shape_cast %19 : vector<8xf32> to vector<8x1xf32>
    %21 = tpu.reciprocal %20 {approx = true} : vector<8x1xf32> -> vector<8x1xf32>
    %22 = vector.broadcast %21 : vector<8x1xf32> to vector<8x16xf32>
    %23 = arith.mulf %18, %22 : vector<8x16xf32>
    %24 = arith.truncf %23 : vector<8x16xf32> to vector<8x16xbf16>
    %cst_18 = arith.constant dense<0.000000e+00> : vector<8x8xf32>
    %25 = tpu.matmul %24, %10, %cst_18 {dimension_numbers = #tpu.dot_dimension_numbers<[1], [0], [0], [1], [0, 0, 1, 1], [], []>} : vector<8x16xbf16>, vector<16x8xbf16>, vector<8x8xf32> -> vector<8x8xf32>
    %26 = arith.truncf %25 : vector<8x8xf32> to vector<8x8xbf16>
    %c0_19 = arith.constant 0 : index
    %c0_20 = arith.constant 0 : index
    %c0_21 = arith.constant 0 : index
    %27 = vector.load %arg6[%c0_19, %c0_20, %c0_21] : memref<4x8x32xbf16, #tpu.memory_space<vmem>>, vector<1x8x32xbf16>
    %28 = vector.shape_cast %27 : vector<1x8x32xbf16> to vector<8x32xbf16>
    %cst_22 = arith.constant dense<0.000000e+00> : vector<8x32xf32>
    %29 = tpu.matmul %26, %28, %cst_22 {dimension_numbers = #tpu.dot_dimension_numbers<[1], [0], [0], [1], [0, 0, 1, 1], [], []>} : vector<8x8xbf16>, vector<8x32xbf16>, vector<8x32xf32> -> vector<8x32xf32>
    %c0_23 = arith.constant 0 : index
    %c0_24 = arith.constant 0 : index
    %c8 = arith.constant 8 : index
    %30 = vector.load %arg1[%c0_23, %c0_24, %c8] : memref<1x8x32xbf16, #tpu.memory_space<vmem>>, vector<1x8x8xbf16>
    %31 = vector.shape_cast %30 : vector<1x8x8xbf16> to vector<8x8xbf16>
    %c0_25 = arith.constant 0 : index
    %c0_26 = arith.constant 0 : index
    %c8_27 = arith.constant 8 : index
    %32 = vector.load %arg2[%c0_25, %c0_26, %c8_27] : memref<1x16x32xbf16, #tpu.memory_space<vmem>>, vector<1x16x8xbf16>
    %33 = vector.shape_cast %32 : vector<1x16x8xbf16> to vector<16x8xbf16>
    %c0_28 = arith.constant 0 : index
    %c0_29 = arith.constant 0 : index
    %c8_30 = arith.constant 8 : index
    %34 = vector.load %arg3[%c0_28, %c0_29, %c8_30] : memref<1x16x32xbf16, #tpu.memory_space<vmem>>, vector<1x16x8xbf16>
    %35 = vector.shape_cast %34 : vector<1x16x8xbf16> to vector<16x8xbf16>
    %cst_31 = arith.constant dense<0.000000e+00> : vector<8x16xf32>
    %36 = tpu.matmul %31, %33, %cst_31 {dimension_numbers = #tpu.dot_dimension_numbers<[1], [1], [0], [0], [0, 0, 1, 0], [], []>} : vector<8x8xbf16>, vector<16x8xbf16>, vector<8x16xf32> -> vector<8x16xf32>
    %37 = vector.broadcast %1 : vector<1x16xf32> to vector<8x16xf32>
    %38 = arith.addf %36, %37 : vector<8x16xf32>
    %cst_32 = arith.constant dense<0xFF800000> : vector<8xf32>
    %39 = vector.multi_reduction <maximumf>, %38, %cst_32 [1] : vector<8x16xf32> to vector<8xf32>
    %40 = vector.shape_cast %39 : vector<8xf32> to vector<8x1xf32>
    %41 = vector.broadcast %40 : vector<8x1xf32> to vector<8x16xf32>
    %42 = arith.subf %38, %41 : vector<8x16xf32>
    %43 = math.exp %42 : vector<8x16xf32>
    %cst_33 = arith.constant dense<0.000000e+00> : vector<8xf32>
    %44 = vector.multi_reduction <add>, %43, %cst_33 [1] : vector<8x16xf32> to vector<8xf32>
    %45 = vector.shape_cast %44 : vector<8xf32> to vector<8x1xf32>
    %46 = tpu.reciprocal %45 {approx = true} : vector<8x1xf32> -> vector<8x1xf32>
    %47 = vector.broadcast %46 : vector<8x1xf32> to vector<8x16xf32>
    %48 = arith.mulf %43, %47 : vector<8x16xf32>
    %49 = arith.truncf %48 : vector<8x16xf32> to vector<8x16xbf16>
    %cst_34 = arith.constant dense<0.000000e+00> : vector<8x8xf32>
    %50 = tpu.matmul %49, %35, %cst_34 {dimension_numbers = #tpu.dot_dimension_numbers<[1], [0], [0], [1], [0, 0, 1, 1], [], []>} : vector<8x16xbf16>, vector<16x8xbf16>, vector<8x8xf32> -> vector<8x8xf32>
    %51 = arith.truncf %50 : vector<8x8xf32> to vector<8x8xbf16>
    %c1 = arith.constant 1 : index
    %c0_35 = arith.constant 0 : index
    %c0_36 = arith.constant 0 : index
    %52 = vector.load %arg6[%c1, %c0_35, %c0_36] : memref<4x8x32xbf16, #tpu.memory_space<vmem>>, vector<1x8x32xbf16>
    %53 = vector.shape_cast %52 : vector<1x8x32xbf16> to vector<8x32xbf16>
    %cst_37 = arith.constant dense<0.000000e+00> : vector<8x32xf32>
    %54 = tpu.matmul %51, %53, %cst_37 {dimension_numbers = #tpu.dot_dimension_numbers<[1], [0], [0], [1], [0, 0, 1, 1], [], []>} : vector<8x8xbf16>, vector<8x32xbf16>, vector<8x32xf32> -> vector<8x32xf32>
    %55 = arith.addf %29, %54 : vector<8x32xf32>
    %c0_38 = arith.constant 0 : index
    %c0_39 = arith.constant 0 : index
    %c16 = arith.constant 16 : index
    %56 = vector.load %arg1[%c0_38, %c0_39, %c16] : memref<1x8x32xbf16, #tpu.memory_space<vmem>>, vector<1x8x8xbf16>
    %57 = vector.shape_cast %56 : vector<1x8x8xbf16> to vector<8x8xbf16>
    %c0_40 = arith.constant 0 : index
    %c0_41 = arith.constant 0 : index
    %c16_42 = arith.constant 16 : index
    %58 = vector.load %arg2[%c0_40, %c0_41, %c16_42] : memref<1x16x32xbf16, #tpu.memory_space<vmem>>, vector<1x16x8xbf16>
    %59 = vector.shape_cast %58 : vector<1x16x8xbf16> to vector<16x8xbf16>
    %c0_43 = arith.constant 0 : index
    %c0_44 = arith.constant 0 : index
    %c16_45 = arith.constant 16 : index
    %60 = vector.load %arg3[%c0_43, %c0_44, %c16_45] : memref<1x16x32xbf16, #tpu.memory_space<vmem>>, vector<1x16x8xbf16>
    %61 = vector.shape_cast %60 : vector<1x16x8xbf16> to vector<16x8xbf16>
    %cst_46 = arith.constant dense<0.000000e+00> : vector<8x16xf32>
    %62 = tpu.matmul %57, %59, %cst_46 {dimension_numbers = #tpu.dot_dimension_numbers<[1], [1], [0], [0], [0, 0, 1, 0], [], []>} : vector<8x8xbf16>, vector<16x8xbf16>, vector<8x16xf32> -> vector<8x16xf32>
    %63 = vector.broadcast %1 : vector<1x16xf32> to vector<8x16xf32>
    %64 = arith.addf %62, %63 : vector<8x16xf32>
    %cst_47 = arith.constant dense<0xFF800000> : vector<8xf32>
    %65 = vector.multi_reduction <maximumf>, %64, %cst_47 [1] : vector<8x16xf32> to vector<8xf32>
    %66 = vector.shape_cast %65 : vector<8xf32> to vector<8x1xf32>
    %67 = vector.broadcast %66 : vector<8x1xf32> to vector<8x16xf32>
    %68 = arith.subf %64, %67 : vector<8x16xf32>
    %69 = math.exp %68 : vector<8x16xf32>
    %cst_48 = arith.constant dense<0.000000e+00> : vector<8xf32>
    %70 = vector.multi_reduction <add>, %69, %cst_48 [1] : vector<8x16xf32> to vector<8xf32>
    %71 = vector.shape_cast %70 : vector<8xf32> to vector<8x1xf32>
    %72 = tpu.reciprocal %71 {approx = true} : vector<8x1xf32> -> vector<8x1xf32>
    %73 = vector.broadcast %72 : vector<8x1xf32> to vector<8x16xf32>
    %74 = arith.mulf %69, %73 : vector<8x16xf32>
    %75 = arith.truncf %74 : vector<8x16xf32> to vector<8x16xbf16>
    %cst_49 = arith.constant dense<0.000000e+00> : vector<8x8xf32>
    %76 = tpu.matmul %75, %61, %cst_49 {dimension_numbers = #tpu.dot_dimension_numbers<[1], [0], [0], [1], [0, 0, 1, 1], [], []>} : vector<8x16xbf16>, vector<16x8xbf16>, vector<8x8xf32> -> vector<8x8xf32>
    %77 = arith.truncf %76 : vector<8x8xf32> to vector<8x8xbf16>
    %c2 = arith.constant 2 : index
    %c0_50 = arith.constant 0 : index
    %c0_51 = arith.constant 0 : index
    %78 = vector.load %arg6[%c2, %c0_50, %c0_51] : memref<4x8x32xbf16, #tpu.memory_space<vmem>>, vector<1x8x32xbf16>
    %79 = vector.shape_cast %78 : vector<1x8x32xbf16> to vector<8x32xbf16>
    %cst_52 = arith.constant dense<0.000000e+00> : vector<8x32xf32>
    %80 = tpu.matmul %77, %79, %cst_52 {dimension_numbers = #tpu.dot_dimension_numbers<[1], [0], [0], [1], [0, 0, 1, 1], [], []>} : vector<8x8xbf16>, vector<8x32xbf16>, vector<8x32xf32> -> vector<8x32xf32>
    %81 = arith.addf %55, %80 : vector<8x32xf32>
    %c0_53 = arith.constant 0 : index
    %c0_54 = arith.constant 0 : index
    %c24 = arith.constant 24 : index
    %82 = vector.load %arg1[%c0_53, %c0_54, %c24] : memref<1x8x32xbf16, #tpu.memory_space<vmem>>, vector<1x8x8xbf16>
    %83 = vector.shape_cast %82 : vector<1x8x8xbf16> to vector<8x8xbf16>
    %c0_55 = arith.constant 0 : index
    %c0_56 = arith.constant 0 : index
    %c24_57 = arith.constant 24 : index
    %84 = vector.load %arg2[%c0_55, %c0_56, %c24_57] : memref<1x16x32xbf16, #tpu.memory_space<vmem>>, vector<1x16x8xbf16>
    %85 = vector.shape_cast %84 : vector<1x16x8xbf16> to vector<16x8xbf16>
    %c0_58 = arith.constant 0 : index
    %c0_59 = arith.constant 0 : index
    %c24_60 = arith.constant 24 : index
    %86 = vector.load %arg3[%c0_58, %c0_59, %c24_60] : memref<1x16x32xbf16, #tpu.memory_space<vmem>>, vector<1x16x8xbf16>
    %87 = vector.shape_cast %86 : vector<1x16x8xbf16> to vector<16x8xbf16>
    %cst_61 = arith.constant dense<0.000000e+00> : vector<8x16xf32>
    %88 = tpu.matmul %83, %85, %cst_61 {dimension_numbers = #tpu.dot_dimension_numbers<[1], [1], [0], [0], [0, 0, 1, 0], [], []>} : vector<8x8xbf16>, vector<16x8xbf16>, vector<8x16xf32> -> vector<8x16xf32>
    %89 = vector.broadcast %1 : vector<1x16xf32> to vector<8x16xf32>
    %90 = arith.addf %88, %89 : vector<8x16xf32>
    %cst_62 = arith.constant dense<0xFF800000> : vector<8xf32>
    %91 = vector.multi_reduction <maximumf>, %90, %cst_62 [1] : vector<8x16xf32> to vector<8xf32>
    %92 = vector.shape_cast %91 : vector<8xf32> to vector<8x1xf32>
    %93 = vector.broadcast %92 : vector<8x1xf32> to vector<8x16xf32>
    %94 = arith.subf %90, %93 : vector<8x16xf32>
    %95 = math.exp %94 : vector<8x16xf32>
    %cst_63 = arith.constant dense<0.000000e+00> : vector<8xf32>
    %96 = vector.multi_reduction <add>, %95, %cst_63 [1] : vector<8x16xf32> to vector<8xf32>
    %97 = vector.shape_cast %96 : vector<8xf32> to vector<8x1xf32>
    %98 = tpu.reciprocal %97 {approx = true} : vector<8x1xf32> -> vector<8x1xf32>
    %99 = vector.broadcast %98 : vector<8x1xf32> to vector<8x16xf32>
    %100 = arith.mulf %95, %99 : vector<8x16xf32>
    %101 = arith.truncf %100 : vector<8x16xf32> to vector<8x16xbf16>
    %cst_64 = arith.constant dense<0.000000e+00> : vector<8x8xf32>
    %102 = tpu.matmul %101, %87, %cst_64 {dimension_numbers = #tpu.dot_dimension_numbers<[1], [0], [0], [1], [0, 0, 1, 1], [], []>} : vector<8x16xbf16>, vector<16x8xbf16>, vector<8x8xf32> -> vector<8x8xf32>
    %103 = arith.truncf %102 : vector<8x8xf32> to vector<8x8xbf16>
    %c3 = arith.constant 3 : index
    %c0_65 = arith.constant 0 : index
    %c0_66 = arith.constant 0 : index
    %104 = vector.load %arg6[%c3, %c0_65, %c0_66] : memref<4x8x32xbf16, #tpu.memory_space<vmem>>, vector<1x8x32xbf16>
    %105 = vector.shape_cast %104 : vector<1x8x32xbf16> to vector<8x32xbf16>
    %cst_67 = arith.constant dense<0.000000e+00> : vector<8x32xf32>
    %106 = tpu.matmul %103, %105, %cst_67 {dimension_numbers = #tpu.dot_dimension_numbers<[1], [0], [0], [1], [0, 0, 1, 1], [], []>} : vector<8x8xbf16>, vector<8x32xbf16>, vector<8x32xf32> -> vector<8x32xf32>
    %107 = arith.addf %81, %106 : vector<8x32xf32>
    %108 = arith.addf %3, %107 : vector<8x32xf32>
    %109 = vector.broadcast %4 : vector<1x32xf32> to vector<8x32xf32>
    %110 = arith.addf %108, %109 : vector<8x32xf32>
    %c0_68 = arith.constant 0 : index
    %c0_69 = arith.constant 0 : index
    %c0_70 = arith.constant 0 : index
    %111 = vector.load %arg8[%c0_68, %c0_69, %c0_70] : memref<1x8x32xf32, #tpu.memory_space<vmem>>, vector<1x8x32xf32>
    %112 = vector.shape_cast %111 : vector<1x8x32xf32> to vector<8x32xf32>
    %113 = vector.shape_cast %110 : vector<8x32xf32> to vector<1x8x32xf32>
    tpu.vector_store %arg8[%c0_68, %c0_69, %c0_70], %113 {strides = array<i32>} : memref<1x8x32xf32, #tpu.memory_space<vmem>>, vector<1x8x32xf32>,
    return
  }
  func.func @transform_0(%arg0: i32) -> (i32, i32, i32) {
    %c0_i32 = arith.constant 0 : i32
    %c0_i32_0 = arith.constant 0 : i32
    %c0_i32_1 = arith.constant 0 : i32
    return %arg0, %c0_i32, %c0_i32_0 : i32, i32, i32
  }
  func.func @transform_1(%arg0: i32) -> (i32, i32, i32) {
    %c0_i32 = arith.constant 0 : i32
    %c0_i32_0 = arith.constant 0 : i32
    %c0_i32_1 = arith.constant 0 : i32
    return %arg0, %c0_i32, %c0_i32_0 : i32, i32, i32
  }
  func.func @transform_2(%arg0: i32) -> (i32, i32, i32) {
    %c0_i32 = arith.constant 0 : i32
    %c0_i32_0 = arith.constant 0 : i32
    %c0_i32_1 = arith.constant 0 : i32
    return %arg0, %c0_i32, %c0_i32_0 : i32, i32, i32
  }
  func.func @transform_3(%arg0: i32) -> (i32, i32, i32) {
    %c0_i32 = arith.constant 0 : i32
    %c0_i32_0 = arith.constant 0 : i32
    %c0_i32_1 = arith.constant 0 : i32
    return %arg0, %c0_i32, %c0_i32_0 : i32, i32, i32
  }
  func.func @transform_4(%arg0: i32) -> (i32, i32, i32) {
    %c0_i32 = arith.constant 0 : i32
    %c0_i32_0 = arith.constant 0 : i32
    %c0_i32_1 = arith.constant 0 : i32
    return %arg0, %c0_i32, %c0_i32_0 : i32, i32, i32
  }
  func.func @transform_5(%arg0: i32) -> (i32, i32, i32) {
    %c0_i32 = arith.constant 0 : i32
    %c0_i32_0 = arith.constant 0 : i32
    %c0_i32_1 = arith.constant 0 : i32
    %c0_i32_2 = arith.constant 0 : i32
    return %c0_i32, %c0_i32_0, %c0_i32_1 : i32, i32, i32
  }
  func.func @transform_6(%arg0: i32) -> (i32, i32) {
    %c0_i32 = arith.constant 0 : i32
    %c0_i32_0 = arith.constant 0 : i32
    %c0_i32_1 = arith.constant 0 : i32
    return %c0_i32, %c0_i32_0 : i32, i32
  }
  func.func @transform_7(%arg0: i32) -> (i32, i32, i32) {
    %c0_i32 = arith.constant 0 : i32
    %c0_i32_0 = arith.constant 0 : i32
    %c0_i32_1 = arith.constant 0 : i32
    return %arg0, %c0_i32, %c0_i32_0 : i32, i32, i32
  }
}

module attributes {stable_mosaic.version = 11 : i64} {
  func.func @_ln_kernel(%arg0: i32, %arg1: memref<16x32xf32, #tpu.memory_space<vmem>>, %arg2: memref<1x32xf32, #tpu.memory_space<vmem>>, %arg3: memref<1x32xf32, #tpu.memory_space<vmem>>, %arg4: memref<16x32xf32, #tpu.memory_space<vmem>>) attributes {dimension_semantics = [#tpu.dimension_semantics<parallel>], iteration_bounds = array<i64: 1>, scalar_prefetch = 0 : i64, scratch_operands = 0 : i64, tpu.core_type = #tpu.core_type<tc>, window_params = [{transform_indices = @transform_0, window_bounds = array<i64: 16, 32>}, {pipeline_mode = #tpu.pipeline_mode<synchronous>, transform_indices = @transform_1, window_bounds = array<i64: 1, 32>}, {pipeline_mode = #tpu.pipeline_mode<synchronous>, transform_indices = @transform_2, window_bounds = array<i64: 1, 32>}, {transform_indices = @transform_3, window_bounds = array<i64: 16, 32>}]} {
    %c0 = arith.constant 0 : index
    %c0_0 = arith.constant 0 : index
    %0 = vector.load %arg1[%c0, %c0_0] : memref<16x32xf32, #tpu.memory_space<vmem>>, vector<16x32xf32>
    %c0_1 = arith.constant 0 : index
    %c0_2 = arith.constant 0 : index
    %1 = vector.load %arg2[%c0_1, %c0_2] : memref<1x32xf32, #tpu.memory_space<vmem>>, vector<1x32xf32>
    %c0_3 = arith.constant 0 : index
    %c0_4 = arith.constant 0 : index
    %2 = vector.load %arg3[%c0_3, %c0_4] : memref<1x32xf32, #tpu.memory_space<vmem>>, vector<1x32xf32>
    %cst = arith.constant dense<0.000000e+00> : vector<16xf32>
    %3 = vector.multi_reduction <add>, %0, %cst [1] : vector<16x32xf32> to vector<16xf32>
    %4 = vector.shape_cast %3 : vector<16xf32> to vector<16x1xf32>
    %cst_5 = arith.constant 3.200000e+01 : f32
    %5 = vector.broadcast %cst_5 : f32 to vector<16x1xf32>
    %6 = arith.divf %4, %5 : vector<16x1xf32>
    %7 = vector.broadcast %6 : vector<16x1xf32> to vector<16x32xf32>
    %8 = arith.subf %0, %7 : vector<16x32xf32>
    %9 = arith.mulf %8, %8 : vector<16x32xf32>
    %cst_6 = arith.constant dense<0.000000e+00> : vector<16xf32>
    %10 = vector.multi_reduction <add>, %9, %cst_6 [1] : vector<16x32xf32> to vector<16xf32>
    %11 = vector.shape_cast %10 : vector<16xf32> to vector<16x1xf32>
    %cst_7 = arith.constant 3.200000e+01 : f32
    %12 = vector.broadcast %cst_7 : f32 to vector<16x1xf32>
    %13 = arith.divf %11, %12 : vector<16x1xf32>
    %cst_8 = arith.constant 9.99999974E-6 : f32
    %14 = vector.broadcast %cst_8 : f32 to vector<16x1xf32>
    %15 = arith.addf %13, %14 : vector<16x1xf32>
    %16 = math.rsqrt %15 : vector<16x1xf32>
    %17 = vector.broadcast %16 : vector<16x1xf32> to vector<16x32xf32>
    %18 = arith.mulf %8, %17 : vector<16x32xf32>
    %19 = vector.broadcast %1 : vector<1x32xf32> to vector<16x32xf32>
    %20 = arith.mulf %18, %19 : vector<16x32xf32>
    %21 = vector.broadcast %2 : vector<1x32xf32> to vector<16x32xf32>
    %22 = arith.addf %20, %21 : vector<16x32xf32>
    %c0_9 = arith.constant 0 : index
    %c0_10 = arith.constant 0 : index
    %23 = vector.load %arg4[%c0_9, %c0_10] : memref<16x32xf32, #tpu.memory_space<vmem>>, vector<16x32xf32>
    tpu.vector_store %arg4[%c0_9, %c0_10], %22 {strides = array<i32>} : memref<16x32xf32, #tpu.memory_space<vmem>>, vector<16x32xf32>,
    return
  }
  func.func @transform_0(%arg0: i32) -> (i32, i32) {
    %c0_i32 = arith.constant 0 : i32
    %c0_i32_0 = arith.constant 0 : i32
    return %arg0, %c0_i32 : i32, i32
  }
  func.func @transform_1(%arg0: i32) -> (i32, i32) {
    %c0_i32 = arith.constant 0 : i32
    %c0_i32_0 = arith.constant 0 : i32
    %c0_i32_1 = arith.constant 0 : i32
    return %c0_i32, %c0_i32_0 : i32, i32
  }
  func.func @transform_2(%arg0: i32) -> (i32, i32) {
    %c0_i32 = arith.constant 0 : i32
    %c0_i32_0 = arith.constant 0 : i32
    %c0_i32_1 = arith.constant 0 : i32
    return %c0_i32, %c0_i32_0 : i32, i32
  }
  func.func @transform_3(%arg0: i32) -> (i32, i32) {
    %c0_i32 = arith.constant 0 : i32
    %c0_i32_0 = arith.constant 0 : i32
    return %arg0, %c0_i32 : i32, i32
  }
}

module attributes {stable_mosaic.version = 11 : i64} {
  func.func @_ln_ffn_kernel(%arg0: i32, %arg1: memref<16x32xf32, #tpu.memory_space<vmem>>, %arg2: memref<1x32xf32, #tpu.memory_space<vmem>>, %arg3: memref<1x32xf32, #tpu.memory_space<vmem>>, %arg4: memref<32x64xbf16, #tpu.memory_space<vmem>>, %arg5: memref<1x64xf32, #tpu.memory_space<vmem>>, %arg6: memref<64x32xbf16, #tpu.memory_space<vmem>>, %arg7: memref<1x32xf32, #tpu.memory_space<vmem>>, %arg8: memref<16x32xf32, #tpu.memory_space<vmem>>) attributes {dimension_semantics = [#tpu.dimension_semantics<parallel>], iteration_bounds = array<i64: 1>, scalar_prefetch = 0 : i64, scratch_operands = 0 : i64, tpu.core_type = #tpu.core_type<tc>, window_params = [{transform_indices = @transform_0, window_bounds = array<i64: 16, 32>}, {pipeline_mode = #tpu.pipeline_mode<synchronous>, transform_indices = @transform_1, window_bounds = array<i64: 1, 32>}, {pipeline_mode = #tpu.pipeline_mode<synchronous>, transform_indices = @transform_2, window_bounds = array<i64: 1, 32>}, {pipeline_mode = #tpu.pipeline_mode<synchronous>, transform_indices = @transform_3, window_bounds = array<i64: 32, 64>}, {pipeline_mode = #tpu.pipeline_mode<synchronous>, transform_indices = @transform_4, window_bounds = array<i64: 1, 64>}, {pipeline_mode = #tpu.pipeline_mode<synchronous>, transform_indices = @transform_5, window_bounds = array<i64: 64, 32>}, {pipeline_mode = #tpu.pipeline_mode<synchronous>, transform_indices = @transform_6, window_bounds = array<i64: 1, 32>}, {transform_indices = @transform_7, window_bounds = array<i64: 16, 32>}]} {
    %c0 = arith.constant 0 : index
    %c0_0 = arith.constant 0 : index
    %0 = vector.load %arg1[%c0, %c0_0] : memref<16x32xf32, #tpu.memory_space<vmem>>, vector<16x32xf32>
    %c0_1 = arith.constant 0 : index
    %c0_2 = arith.constant 0 : index
    %1 = vector.load %arg2[%c0_1, %c0_2] : memref<1x32xf32, #tpu.memory_space<vmem>>, vector<1x32xf32>
    %c0_3 = arith.constant 0 : index
    %c0_4 = arith.constant 0 : index
    %2 = vector.load %arg3[%c0_3, %c0_4] : memref<1x32xf32, #tpu.memory_space<vmem>>, vector<1x32xf32>
    %cst = arith.constant dense<0.000000e+00> : vector<16xf32>
    %3 = vector.multi_reduction <add>, %0, %cst [1] : vector<16x32xf32> to vector<16xf32>
    %4 = vector.shape_cast %3 : vector<16xf32> to vector<16x1xf32>
    %cst_5 = arith.constant 3.200000e+01 : f32
    %5 = vector.broadcast %cst_5 : f32 to vector<16x1xf32>
    %6 = arith.divf %4, %5 : vector<16x1xf32>
    %7 = vector.broadcast %6 : vector<16x1xf32> to vector<16x32xf32>
    %8 = arith.subf %0, %7 : vector<16x32xf32>
    %9 = arith.mulf %8, %8 : vector<16x32xf32>
    %cst_6 = arith.constant dense<0.000000e+00> : vector<16xf32>
    %10 = vector.multi_reduction <add>, %9, %cst_6 [1] : vector<16x32xf32> to vector<16xf32>
    %11 = vector.shape_cast %10 : vector<16xf32> to vector<16x1xf32>
    %cst_7 = arith.constant 3.200000e+01 : f32
    %12 = vector.broadcast %cst_7 : f32 to vector<16x1xf32>
    %13 = arith.divf %11, %12 : vector<16x1xf32>
    %cst_8 = arith.constant 9.99999974E-6 : f32
    %14 = vector.broadcast %cst_8 : f32 to vector<16x1xf32>
    %15 = arith.addf %13, %14 : vector<16x1xf32>
    %16 = math.rsqrt %15 : vector<16x1xf32>
    %17 = vector.broadcast %16 : vector<16x1xf32> to vector<16x32xf32>
    %18 = arith.mulf %8, %17 : vector<16x32xf32>
    %19 = vector.broadcast %1 : vector<1x32xf32> to vector<16x32xf32>
    %20 = arith.mulf %18, %19 : vector<16x32xf32>
    %21 = vector.broadcast %2 : vector<1x32xf32> to vector<16x32xf32>
    %22 = arith.addf %20, %21 : vector<16x32xf32>
    %23 = arith.truncf %22 : vector<16x32xf32> to vector<16x32xbf16>
    %c0_9 = arith.constant 0 : index
    %c0_10 = arith.constant 0 : index
    %24 = vector.load %arg4[%c0_9, %c0_10] : memref<32x64xbf16, #tpu.memory_space<vmem>>, vector<32x64xbf16>
    %cst_11 = arith.constant dense<0.000000e+00> : vector<16x64xf32>
    %25 = tpu.matmul %23, %24, %cst_11 {dimension_numbers = #tpu.dot_dimension_numbers<[1], [0], [0], [1], [0, 0, 1, 1], [], []>} : vector<16x32xbf16>, vector<32x64xbf16>, vector<16x64xf32> -> vector<16x64xf32>
    %c0_12 = arith.constant 0 : index
    %c0_13 = arith.constant 0 : index
    %26 = vector.load %arg5[%c0_12, %c0_13] : memref<1x64xf32, #tpu.memory_space<vmem>>, vector<1x64xf32>
    %27 = vector.broadcast %26 : vector<1x64xf32> to vector<16x64xf32>
    %28 = arith.addf %25, %27 : vector<16x64xf32>
    %cst_14 = arith.constant 0.000000e+00 : f32
    %29 = vector.broadcast %cst_14 : f32 to vector<16x64xf32>
    %30 = arith.maximumf %28, %29 : vector<16x64xf32>
    %31 = arith.truncf %30 : vector<16x64xf32> to vector<16x64xbf16>
    %c0_15 = arith.constant 0 : index
    %c0_16 = arith.constant 0 : index
    %32 = vector.load %arg6[%c0_15, %c0_16] : memref<64x32xbf16, #tpu.memory_space<vmem>>, vector<64x32xbf16>
    %cst_17 = arith.constant dense<0.000000e+00> : vector<16x32xf32>
    %33 = tpu.matmul %31, %32, %cst_17 {dimension_numbers = #tpu.dot_dimension_numbers<[1], [0], [0], [1], [0, 0, 1, 1], [], []>} : vector<16x64xbf16>, vector<64x32xbf16>, vector<16x32xf32> -> vector<16x32xf32>
    %c0_18 = arith.constant 0 : index
    %c0_19 = arith.constant 0 : index
    %34 = vector.load %arg7[%c0_18, %c0_19] : memref<1x32xf32, #tpu.memory_space<vmem>>, vector<1x32xf32>
    %35 = vector.broadcast %34 : vector<1x32xf32> to vector<16x32xf32>
    %36 = arith.addf %33, %35 : vector<16x32xf32>
    %37 = arith.addf %0, %36 : vector<16x32xf32>
    %c0_20 = arith.constant 0 : index
    %c0_21 = arith.constant 0 : index
    %38 = vector.load %arg8[%c0_20, %c0_21] : memref<16x32xf32, #tpu.memory_space<vmem>>, vector<16x32xf32>
    tpu.vector_store %arg8[%c0_20, %c0_21], %37 {strides = array<i32>} : memref<16x32xf32, #tpu.memory_space<vmem>>, vector<16x32xf32>,
    return
  }
  func.func @transform_0(%arg0: i32) -> (i32, i32) {
    %c0_i32 = arith.constant 0 : i32
    %c0_i32_0 = arith.constant 0 : i32
    return %arg0, %c0_i32 : i32, i32
  }
  func.func @transform_1(%arg0: i32) -> (i32, i32) {
    %c0_i32 = arith.constant 0 : i32
    %c0_i32_0 = arith.constant 0 : i32
    %c0_i32_1 = arith.constant 0 : i32
    return %c0_i32, %c0_i32_0 : i32, i32
  }
  func.func @transform_2(%arg0: i32) -> (i32, i32) {
    %c0_i32 = arith.constant 0 : i32
    %c0_i32_0 = arith.constant 0 : i32
    %c0_i32_1 = arith.constant 0 : i32
    return %c0_i32, %c0_i32_0 : i32, i32
  }
  func.func @transform_3(%arg0: i32) -> (i32, i32) {
    %c0_i32 = arith.constant 0 : i32
    %c0_i32_0 = arith.constant 0 : i32
    %c0_i32_1 = arith.constant 0 : i32
    return %c0_i32, %c0_i32_0 : i32, i32
  }
  func.func @transform_4(%arg0: i32) -> (i32, i32) {
    %c0_i32 = arith.constant 0 : i32
    %c0_i32_0 = arith.constant 0 : i32
    %c0_i32_1 = arith.constant 0 : i32
    return %c0_i32, %c0_i32_0 : i32, i32
  }
  func.func @transform_5(%arg0: i32) -> (i32, i32) {
    %c0_i32 = arith.constant 0 : i32
    %c0_i32_0 = arith.constant 0 : i32
    %c0_i32_1 = arith.constant 0 : i32
    return %c0_i32, %c0_i32_0 : i32, i32
  }
  func.func @transform_6(%arg0: i32) -> (i32, i32) {
    %c0_i32 = arith.constant 0 : i32
    %c0_i32_0 = arith.constant 0 : i32
    %c0_i32_1 = arith.constant 0 : i32
    return %c0_i32, %c0_i32_0 : i32, i32
  }
  func.func @transform_7(%arg0: i32) -> (i32, i32) {
    %c0_i32 = arith.constant 0 : i32
    %c0_i32_0 = arith.constant 0 : i32
    return %arg0, %c0_i32 : i32, i32
  }
}

</mosaic_0001>

<llo_original>
// kernel: transformer_forward.31
$region0: #{transformer_forward.31}
  #allocation0 [shape = 'u32[]', space=smem, size = 0x4, offset = 0x4, fixed_abs, tag = 'smem constant byte address 0x4 - core index']
  #allocation1 [shape = 'u32[72,128]{1,0:T(1,128)}', space=vmem, size = 0x9000, scoped, tag = 'internal scratch']
  %s0 = inlined_call_operand.vmem [shape: f32[16,32], index: 0, kind: input, shape index: {}]
  %s1 = inlined_call_operand.vmem [shape: f32[16,32], index: 1, kind: input, shape index: {}]
  %s2 = inlined_call_operand.vmem [shape: f32[1,32], index: 2, kind: input, shape index: {}]
  %s3 = inlined_call_operand.vmem [shape: f32[1,32], index: 3, kind: input, shape index: {}]
  %s4 = inlined_call_operand.vmem [shape: bf16[32,32], index: 4, kind: input, shape index: {}]
  %s5 = inlined_call_operand.vmem [shape: f32[1,32], index: 5, kind: input, shape index: {}]
  %s6 = inlined_call_operand.vmem [shape: bf16[16,32], index: 6, kind: output, shape index: {}]
  %s7 = sld [smem:[#allocation0]]
  $region34: #{transformer_forward.31} parent=0
    _
  %s9 = ssub.s32 1, %s7
  %s10 = scalar_select 0, %s9, %s7
  // Predicated region
  $region2: #{transformer_forward.31} parent=0 // pred_check
    _
  $region3: #{transformer_forward.31} parent=0 // pred_check_branch
    %12 = sbr.rel (0) target = $region5
  $region4: #{transformer_forward.31} parent=0 // pred_region
    _
  $region5: #{transformer_forward.31} parent=0 // pred_fallthru
    _
  // Predicated region
  $region6: #{transformer_forward.31} parent=0 // pred_check
    _
  $region7: #{transformer_forward.31} parent=0 // pred_check_branch
    %14 = sbr.rel (0) target = $region9
  $region8: #{transformer_forward.31} parent=0 // pred_region
    _
  $region9: #{transformer_forward.31} parent=0 // pred_fallthru
    _
  // Predicated region
  $region10: #{transformer_forward.31} parent=0 // pred_check
    _
  $region11: #{transformer_forward.31} parent=0 // pred_check_branch
    %16 = sbr.rel (0) target = $region13
  $region12: #{transformer_forward.31} parent=0 // pred_region
    _
  $region13: #{transformer_forward.31} parent=0 // pred_fallthru
    _
  // Predicated region
  $region14: #{transformer_forward.31} parent=0 // pred_check
    _
  $region15: #{transformer_forward.31} parent=0 // pred_check_branch
    %18 = sbr.rel (0) target = $region17
  $region16: #{transformer_forward.31} parent=0 // pred_region
    _
  $region17: #{transformer_forward.31} parent=0 // pred_fallthru
    _
  // Predicated region
  $region18: #{transformer_forward.31} parent=0 // pred_check
    _
  $region19: #{transformer_forward.31} parent=0 // pred_check_branch
    %20 = sbr.rel (0) target = $region21
  $region20: #{transformer_forward.31} parent=0 // pred_region
    _
  $region21: #{transformer_forward.31} parent=0 // pred_fallthru
    _
  // Predicated region
  $region22: #{transformer_forward.31} parent=0 // pred_check
    _
  $region23: #{transformer_forward.31} parent=0 // pred_check_branch
    %22 = sbr.rel (0) target = $region25
  $region24: #{transformer_forward.31} parent=0 // pred_region
    _
  $region25: #{transformer_forward.31} parent=0 // pred_fallthru
    _
  %v24 = vld [vmem:[%s0] sm:$0xff]
  %v25 = vld [vmem:[%s0 + $0x8] sm:$0xff]
  %v26 = vld [vmem:[%s2] sm:$0x1]
  %v27 = vld [vmem:[%s3] sm:$0x1]
  %vm28 = vcmask 261120
  %v29 = vsel %vm28, %v24, 0.0
  %30 = vadd.xlane.f32.xlu0 %v29
  %v31 = vpop.xlane.xlu0 %30
  %v32 = vsel %vm28, %v25, 0.0
  %33 = vadd.xlane.f32.xlu0 %v32
  %v34 = vpop.xlane.xlu0 %33
  %v35 = vrcp.pop 32.0
  %v36 = vmul.f32 32.0, %v35
  %v37 = vsub.f32 1.0, %v36
  %v38 = vmul.f32 %v35, %v37
  %v39 = vadd.f32 %v35, %v38
  %vm40 = vweird.f32 %v35
  %v41 = vsel %vm40, %v35, %v39
  %v42 = vmul.f32 %v31, %v41
  %v43 = vmul.f32 %v34, %v41
  %v44 = vsub.f32 %v24, %v42
  %v45 = vsub.f32 %v25, %v43
  %v46 = vmul.f32 %v44, %v44
  %v47 = vmul.f32 %v45, %v45
  %v48 = vsel %vm28, %v46, 0.0
  %49 = vadd.xlane.f32.xlu0 %v48
  %v50 = vpop.xlane.xlu0 %49
  %v51 = vsel %vm28, %v47, 0.0
  %52 = vadd.xlane.f32.xlu0 %v51
  %v53 = vpop.xlane.xlu0 %52
  %v54 = vmul.f32 %v50, %v41
  %v55 = vmul.f32 %v53, %v41
  %v56 = vadd.f32 %v54, 1e-05
  %v57 = vadd.f32 %v55, 1e-05
  %v58 = vrsqrt.pop %v56
  %v59 = vmul.f32 %v58, %v56
  %v60 = vmul.f32 %v59, %v58
  %v61 = vmul.f32 0.5, %v60
  %v62 = vsub.f32 1.5, %v61
  %v63 = vmul.f32 %v58, %v62
  %vm64 = vweird.f32 %v56
  %vm65 = vweird.f32 %v58
  %vm66 = vmor %vm64, %vm65
  %v67 = vsel %vm66, %v58, %v63
  %v68 = vrsqrt.pop %v57
  %v69 = vmul.f32 %v68, %v57
  %v70 = vmul.f32 %v69, %v68
  %v71 = vmul.f32 0.5, %v70
  %v72 = vsub.f32 1.5, %v71
  %v73 = vmul.f32 %v68, %v72
  %vm74 = vweird.f32 %v57
  %vm75 = vweird.f32 %v68
  %vm76 = vmor %vm74, %vm75
  %v77 = vsel %vm76, %v68, %v73
  %v78 = vmul.f32 %v44, %v67
  %v79 = vmul.f32 %v45, %v77
  %v81 = vperm.slane %v26, 0
  %v83 = vmul.f32 %v78, %v81
  %v84 = vmul.f32 %v79, %v81
  %v86 = vperm.slane %v27, 0
  %v88 = vadd.f32 %v83, %v86
  %v89 = vadd.f32 %v84, %v86
  %v90 = vld [vmem:[%s1] sm:$0xff]
  %v91 = vld [vmem:[%s1 + $0x8] sm:$0xff]
  %v92 = vadd.f32 %v88, %v90
  %v93 = vadd.f32 %v89, %v91
  %v94 = vpack.c.bf16 %v93, %v92
  %v95 = vld [vmem:[%s4] sm:$0xf]
  %v96 = vld [vmem:[%s4 + $0x4] sm:$0xf]
  %v97 = vld [vmem:[%s4 + $0x8] sm:$0xf]
  %v98 = vld [vmem:[%s4 + $0xc] sm:$0xf]
  %v99 = vld [vmem:[%s5] sm:$0x1]
  %v101 = vperm.slane %v99, 0
  %v107 = vunpack.c.l.b16 %v95
  %v108 = vunpack.c.l.b16 %v96
  %v109 = vunpack.c.l.b16 %v97
  %v110 = vunpack.c.l.b16 %v98
  %v111 = vpack.c.b16 %v108, %v107
  %v112 = vpack.c.b16 %v110, %v109
  %v116 = vsel %vm28, %v94, 0
  %118 = vmatpush.bf16.msra.mxu0 0
  %119 = vmatpush.bf16.msra.mxu0 0
  %120 = vmatpush.bf16.msra.mxu0 0
  %121 = vmatpush.bf16.msra.mxu0 0
  %122 = vmatpush.bf16.msra.mxu0 0
  %123 = vmatpush.bf16.msra.mxu0 0
  %124 = vmatpush.bf16.msra.mxu0 %v112
  %125 = vmatpush.bf16.msra.mxu0 %v111
  %126 = vmatmul.bf16.gmra.mxu0 %v116
  %v127 = vpop.f32.mrf.mxu0
  %v128 = vadd.f32 %v101, %v127
  %v129 = vpop.f32.mrf.mxu0
  %v130 = vadd.f32 %v101, %v129
  %131 = vdwg.mxu0
  %v132 = vpack.c.bf16 %v128, %v128
  %v133 = vpack.c.bf16 %v130, %v130
  %vm134 = vcmask 257024
  %135 = vst.msk [vmem:[%s6] sm:$0xf] %vm134, %v132
  %136 = vst.msk [vmem:[%s6 + $0x4] sm:$0xf] %vm134, %v133
  // Predicated region
  $region26: #{transformer_forward.31} parent=0 // pred_check
    _
  $region27: #{transformer_forward.31} parent=0 // pred_check_branch
    %138 = sbr.rel (0) target = $region29
  $region28: #{transformer_forward.31} parent=0 // pred_region
    _
  $region29: #{transformer_forward.31} parent=0 // pred_fallthru
    _
  // Predicated region
  $region30: #{transformer_forward.31} parent=0 // pred_check
    _
  $region31: #{transformer_forward.31} parent=0 // pred_check_branch
    %140 = sbr.rel (0) target = $region33
  $region32: #{transformer_forward.31} parent=0 // pred_region
    _
  $region33: #{transformer_forward.31} parent=0 // pred_fallthru
    _

// kernel: transformer_forward.21
$region0: #{transformer_forward.21}
  #allocation0 [shape = 'u32[]', space=smem, size = 0x4, offset = 0x4, fixed_abs, tag = 'smem constant byte address 0x4 - core index']
  #allocation1 [shape = 'u32[72,128]{1,0:T(1,128)}', space=vmem, size = 0x9000, scoped, tag = 'internal scratch']
  %s0 = inlined_call_operand.vmem [shape: f32[16,32], index: 0, kind: input, shape index: {}]
  %s1 = inlined_call_operand.vmem [shape: f32[1,32], index: 1, kind: input, shape index: {}]
  %s2 = inlined_call_operand.vmem [shape: f32[1,32], index: 2, kind: input, shape index: {}]
  %s3 = inlined_call_operand.vmem [shape: f32[16,32], index: 3, kind: output, shape index: {}]
  %s4 = sld [smem:[#allocation0]]
  $region22: #{transformer_forward.21} parent=0
    _
  %s6 = ssub.s32 1, %s4
  %s7 = scalar_select 0, %s6, %s4
  // Predicated region
  $region2: #{transformer_forward.21} parent=0 // pred_check
    _
  $region3: #{transformer_forward.21} parent=0 // pred_check_branch
    %9 = sbr.rel (0) target = $region5
  $region4: #{transformer_forward.21} parent=0 // pred_region
    _
  $region5: #{transformer_forward.21} parent=0 // pred_fallthru
    _
  // Predicated region
  $region6: #{transformer_forward.21} parent=0 // pred_check
    _
  $region7: #{transformer_forward.21} parent=0 // pred_check_branch
    %11 = sbr.rel (0) target = $region9
  $region8: #{transformer_forward.21} parent=0 // pred_region
    _
  $region9: #{transformer_forward.21} parent=0 // pred_fallthru
    _
  // Predicated region
  $region10: #{transformer_forward.21} parent=0 // pred_check
    _
  $region11: #{transformer_forward.21} parent=0 // pred_check_branch
    %13 = sbr.rel (0) target = $region13
  $region12: #{transformer_forward.21} parent=0 // pred_region
    _
  $region13: #{transformer_forward.21} parent=0 // pred_fallthru
    _
  %v14 = vld [vmem:[%s0] sm:$0xff]
  %v15 = vld [vmem:[%s0 + $0x8] sm:$0xff]
  %v16 = vld [vmem:[%s1] sm:$0x1]
  %v17 = vld [vmem:[%s2] sm:$0x1]
  %vm18 = vcmask 261120
  %v19 = vsel %vm18, %v14, 0.0
  %20 = vadd.xlane.f32.xlu0 %v19
  %v21 = vpop.xlane.xlu0 %20
  %v22 = vsel %vm18, %v15, 0.0
  %23 = vadd.xlane.f32.xlu0 %v22
  %v24 = vpop.xlane.xlu0 %23
  %v25 = vrcp.pop 32.0
  %v26 = vmul.f32 32.0, %v25
  %v27 = vsub.f32 1.0, %v26
  %v28 = vmul.f32 %v25, %v27
  %v29 = vadd.f32 %v25, %v28
  %vm30 = vweird.f32 %v25
  %v31 = vsel %vm30, %v25, %v29
  %v32 = vmul.f32 %v21, %v31
  %v33 = vmul.f32 %v24, %v31
  %v34 = vsub.f32 %v14, %v32
  %v35 = vsub.f32 %v15, %v33
  %v36 = vmul.f32 %v34, %v34
  %v37 = vmul.f32 %v35, %v35
  %v38 = vsel %vm18, %v36, 0.0
  %39 = vadd.xlane.f32.xlu0 %v38
  %v40 = vpop.xlane.xlu0 %39
  %v41 = vsel %vm18, %v37, 0.0
  %42 = vadd.xlane.f32.xlu0 %v41
  %v43 = vpop.xlane.xlu0 %42
  %v44 = vmul.f32 %v40, %v31
  %v45 = vmul.f32 %v43, %v31
  %v46 = vadd.f32 %v44, 1e-12
  %v47 = vadd.f32 %v45, 1e-12
  %v48 = vrsqrt.pop %v46
  %v49 = vmul.f32 %v48, %v46
  %v50 = vmul.f32 %v49, %v48
  %v51 = vmul.f32 0.5, %v50
  %v52 = vsub.f32 1.5, %v51
  %v53 = vmul.f32 %v48, %v52
  %vm54 = vweird.f32 %v46
  %vm55 = vweird.f32 %v48
  %vm56 = vmor %vm54, %vm55
  %v57 = vsel %vm56, %v48, %v53
  %v58 = vrsqrt.pop %v47
  %v59 = vmul.f32 %v58, %v47
  %v60 = vmul.f32 %v59, %v58
  %v61 = vmul.f32 0.5, %v60
  %v62 = vsub.f32 1.5, %v61
  %v63 = vmul.f32 %v58, %v62
  %vm64 = vweird.f32 %v47
  %vm65 = vweird.f32 %v58
  %vm66 = vmor %vm64, %vm65
  %v67 = vsel %vm66, %v58, %v63
  %v68 = vmul.f32 %v34, %v57
  %v69 = vmul.f32 %v35, %v67
  %v71 = vperm.slane %v16, 0
  %v73 = vmul.f32 %v68, %v71
  %v74 = vmul.f32 %v69, %v71
  %v76 = vperm.slane %v17, 0
  %v78 = vadd.f32 %v73, %v76
  %v79 = vadd.f32 %v74, %v76
  %80 = vst.msk [vmem:[%s3] sm:$0xff] %vm18, %v78
  %81 = vst.msk [vmem:[%s3 + $0x8] sm:$0xff] %vm18, %v79
  // Predicated region
  $region14: #{transformer_forward.21} parent=0 // pred_check
    _
  $region15: #{transformer_forward.21} parent=0 // pred_check_branch
    %83 = sbr.rel (0) target = $region17
  $region16: #{transformer_forward.21} parent=0 // pred_region
    _
  $region17: #{transformer_forward.21} parent=0 // pred_fallthru
    _
  // Predicated region
  $region18: #{transformer_forward.21} parent=0 // pred_check
    _
  $region19: #{transformer_forward.21} parent=0 // pred_check_branch
    %85 = sbr.rel (0) target = $region21
  $region20: #{transformer_forward.21} parent=0 // pred_region
    _
  $region21: #{transformer_forward.21} parent=0 // pred_fallthru
    _

// kernel: transformer_forward.29
$region0: #{transformer_forward.29}
  #allocation0 [shape = 'u32[]', space=smem, size = 0x4, offset = 0x4, fixed_abs, tag = 'smem constant byte address 0x4 - core index']
  #allocation1 [shape = 'u32[72,128]{1,0:T(1,128)}', space=vmem, size = 0x9000, scoped, tag = 'internal scratch']
  %s0 = inlined_call_operand.vmem [shape: f32[16,32], index: 0, kind: input, shape index: {}]
  %s1 = inlined_call_operand.vmem [shape: f32[16,32], index: 1, kind: input, shape index: {}]
  %s2 = inlined_call_operand.vmem [shape: f32[1,32], index: 2, kind: input, shape index: {}]
  %s3 = inlined_call_operand.vmem [shape: f32[1,32], index: 3, kind: input, shape index: {}]
  %s4 = inlined_call_operand.vmem [shape: bf16[32,64], index: 4, kind: input, shape index: {}]
  %s5 = inlined_call_operand.vmem [shape: f32[1,64], index: 5, kind: input, shape index: {}]
  %s6 = inlined_call_operand.vmem [shape: bf16[32,32], index: 6, kind: input, shape index: {}]
  %s7 = inlined_call_operand.vmem [shape: f32[1,32], index: 7, kind: input, shape index: {}]
  %s8 = inlined_call_operand.vmem [shape: bf16[16,64], index: 8, kind: output, shape index: {0}]
  %s9 = inlined_call_operand.vmem [shape: bf16[16,32], index: 9, kind: output, shape index: {1}]
  %10 = xla_tuple %s8, %s9
  %s11 = sld [smem:[#allocation0]]
  $region50: #{transformer_forward.29} parent=0
    _
  %s13 = ssub.s32 1, %s11
  %s14 = scalar_select 0, %s13, %s11
  // Predicated region
  $region2: #{transformer_forward.29} parent=0 // pred_check
    _
  $region3: #{transformer_forward.29} parent=0 // pred_check_branch
    %16 = sbr.rel (0) target = $region5
  $region4: #{transformer_forward.29} parent=0 // pred_region
    _
  $region5: #{transformer_forward.29} parent=0 // pred_fallthru
    _
  // Predicated region
  $region6: #{transformer_forward.29} parent=0 // pred_check
    _
  $region7: #{transformer_forward.29} parent=0 // pred_check_branch
    %18 = sbr.rel (0) target = $region9
  $region8: #{transformer_forward.29} parent=0 // pred_region
    _
  $region9: #{transformer_forward.29} parent=0 // pred_fallthru
    _
  // Predicated region
  $region10: #{transformer_forward.29} parent=0 // pred_check
    _
  $region11: #{transformer_forward.29} parent=0 // pred_check_branch
    %20 = sbr.rel (0) target = $region13
  $region12: #{transformer_forward.29} parent=0 // pred_region
    _
  $region13: #{transformer_forward.29} parent=0 // pred_fallthru
    _
  // Predicated region
  $region14: #{transformer_forward.29} parent=0 // pred_check
    _
  $region15: #{transformer_forward.29} parent=0 // pred_check_branch
    %22 = sbr.rel (0) target = $region17
  $region16: #{transformer_forward.29} parent=0 // pred_region
    _
  $region17: #{transformer_forward.29} parent=0 // pred_fallthru
    _
  // Predicated region
  $region18: #{transformer_forward.29} parent=0 // pred_check
    _
  $region19: #{transformer_forward.29} parent=0 // pred_check_branch
    %24 = sbr.rel (0) target = $region21
  $region20: #{transformer_forward.29} parent=0 // pred_region
    _
  $region21: #{transformer_forward.29} parent=0 // pred_fallthru
    _
  // Predicated region
  $region22: #{transformer_forward.29} parent=0 // pred_check
    _
  $region23: #{transformer_forward.29} parent=0 // pred_check_branch
    %26 = sbr.rel (0) target = $region25
  $region24: #{transformer_forward.29} parent=0 // pred_region
    _
  $region25: #{transformer_forward.29} parent=0 // pred_fallthru
    _
  // Predicated region
  $region26: #{transformer_forward.29} parent=0 // pred_check
    _
  $region27: #{transformer_forward.29} parent=0 // pred_check_branch
    %28 = sbr.rel (0) target = $region29
  $region28: #{transformer_forward.29} parent=0 // pred_region
    _
  $region29: #{transformer_forward.29} parent=0 // pred_fallthru
    _
  // Predicated region
  $region30: #{transformer_forward.29} parent=0 // pred_check
    _
  $region31: #{transformer_forward.29} parent=0 // pred_check_branch
    %30 = sbr.rel (0) target = $region33
  $region32: #{transformer_forward.29} parent=0 // pred_region
    _
  $region33: #{transformer_forward.29} parent=0 // pred_fallthru
    _
  %v32 = vld [vmem:[%s0] sm:$0xff]
  %v33 = vld [vmem:[%s0 + $0x8] sm:$0xff]
  %v34 = vld [vmem:[%s2] sm:$0x1]
  %v35 = vld [vmem:[%s3] sm:$0x1]
  %vm36 = vcmask 261120
  %v37 = vsel %vm36, %v32, 0.0
  %38 = vadd.xlane.f32.xlu0 %v37
  %v39 = vpop.xlane.xlu0 %38
  %v40 = vsel %vm36, %v33, 0.0
  %41 = vadd.xlane.f32.xlu0 %v40
  %v42 = vpop.xlane.xlu0 %41
  %v43 = vrcp.pop 32.0
  %v44 = vmul.f32 32.0, %v43
  %v45 = vsub.f32 1.0, %v44
  %v46 = vmul.f32 %v43, %v45
  %v47 = vadd.f32 %v43, %v46
  %vm48 = vweird.f32 %v43
  %v49 = vsel %vm48, %v43, %v47
  %v50 = vmul.f32 %v39, %v49
  %v51 = vmul.f32 %v42, %v49
  %v52 = vsub.f32 %v32, %v50
  %v53 = vsub.f32 %v33, %v51
  %v54 = vmul.f32 %v52, %v52
  %v55 = vmul.f32 %v53, %v53
  %v56 = vsel %vm36, %v54, 0.0
  %57 = vadd.xlane.f32.xlu0 %v56
  %v58 = vpop.xlane.xlu0 %57
  %v59 = vsel %vm36, %v55, 0.0
  %60 = vadd.xlane.f32.xlu0 %v59
  %v61 = vpop.xlane.xlu0 %60
  %v62 = vmul.f32 %v58, %v49
  %v63 = vmul.f32 %v61, %v49
  %v64 = vadd.f32 %v62, 1e-05
  %v65 = vadd.f32 %v63, 1e-05
  %v66 = vrsqrt.pop %v64
  %v67 = vmul.f32 %v66, %v64
  %v68 = vmul.f32 %v67, %v66
  %v69 = vmul.f32 0.5, %v68
  %v70 = vsub.f32 1.5, %v69
  %v71 = vmul.f32 %v66, %v70
  %vm72 = vweird.f32 %v64
  %vm73 = vweird.f32 %v66
  %vm74 = vmor %vm72, %vm73
  %v75 = vsel %vm74, %v66, %v71
  %v76 = vrsqrt.pop %v65
  %v77 = vmul.f32 %v76, %v65
  %v78 = vmul.f32 %v77, %v76
  %v79 = vmul.f32 0.5, %v78
  %v80 = vsub.f32 1.5, %v79
  %v81 = vmul.f32 %v76, %v80
  %vm82 = vweird.f32 %v65
  %vm83 = vweird.f32 %v76
  %vm84 = vmor %vm82, %vm83
  %v85 = vsel %vm84, %v76, %v81
  %v86 = vmul.f32 %v52, %v75
  %v87 = vmul.f32 %v53, %v85
  %v89 = vperm.slane %v34, 0
  %v91 = vmul.f32 %v86, %v89
  %v92 = vmul.f32 %v87, %v89
  %v94 = vperm.slane %v35, 0
  %v96 = vadd.f32 %v91, %v94
  %v97 = vadd.f32 %v92, %v94
  %v98 = vld [vmem:[%s1] sm:$0xff]
  %v99 = vld [vmem:[%s1 + $0x8] sm:$0xff]
  %v100 = vadd.f32 %v96, %v98
  %v101 = vadd.f32 %v97, %v99
  %v102 = vpack.c.bf16 %v101, %v100
  %v103 = vld [vmem:[%s4] sm:$0xf]
  %v104 = vld [vmem:[%s4 + $0x4] sm:$0xf]
  %v105 = vld [vmem:[%s4 + $0x8] sm:$0xf]
  %v106 = vld [vmem:[%s4 + $0xc] sm:$0xf]
  %v107 = vld [vmem:[%s5] sm:$0x1]
  %v109 = vperm.slane %v107, 0
  %v115 = vunpack.c.l.b16 %v103
  %v116 = vunpack.c.l.b16 %v104
  %v117 = vunpack.c.l.b16 %v105
  %v118 = vunpack.c.l.b16 %v106
  %v119 = vpack.c.b16 %v116, %v115
  %v120 = vpack.c.b16 %v118, %v117
  %v124 = vsel %vm36, %v102, 0
  %126 = vmatpush.bf16.msra.mxu0 0
  %127 = vmatpush.bf16.msra.mxu0 0
  %128 = vmatpush.bf16.msra.mxu0 0
  %129 = vmatpush.bf16.msra.mxu0 0
  %130 = vmatpush.bf16.msra.mxu0 0
  %131 = vmatpush.bf16.msra.mxu0 0
  %132 = vmatpush.bf16.msra.mxu0 %v120
  %133 = vmatpush.bf16.msra.mxu0 %v119
  %134 = vmatmul.bf16.gmra.mxu0 %v124
  %v135 = vpop.f32.mrf.mxu0
  %v136 = vadd.f32 %v109, %v135
  %v137 = vpop.f32.mrf.mxu0
  %v138 = vadd.f32 %v109, %v137
  %139 = vdwg.mxu0
  %v140 = vpack.c.bf16 %v97, %v96
  %v141 = vld [vmem:[%s6] sm:$0xf]
  %v142 = vld [vmem:[%s6 + $0x4] sm:$0xf]
  %v143 = vld [vmem:[%s6 + $0x8] sm:$0xf]
  %v144 = vld [vmem:[%s6 + $0xc] sm:$0xf]
  %v145 = vld [vmem:[%s7] sm:$0x1]
  %v147 = vperm.slane %v145, 0
  %v153 = vunpack.c.l.b16 %v141
  %v154 = vunpack.c.l.b16 %v142
  %v155 = vunpack.c.l.b16 %v143
  %v156 = vunpack.c.l.b16 %v144
  %v157 = vpack.c.b16 %v154, %v153
  %v158 = vpack.c.b16 %v156, %v155
  %v162 = vsel %vm36, %v140, 0
  %164 = vmatpush.bf16.msra.mxu0 0
  %165 = vmatpush.bf16.msra.mxu0 0
  %166 = vmatpush.bf16.msra.mxu0 0
  %167 = vmatpush.bf16.msra.mxu0 0
  %168 = vmatpush.bf16.msra.mxu0 0
  %169 = vmatpush.bf16.msra.mxu0 0
  %170 = vmatpush.bf16.msra.mxu0 %v158
  %171 = vmatpush.bf16.msra.mxu0 %v157
  %172 = vmatmul.bf16.gmra.mxu0 %v162
  %v173 = vpop.f32.mrf.mxu0
  %v174 = vadd.f32 %v147, %v173
  %v175 = vpop.f32.mrf.mxu0
  %v176 = vadd.f32 %v147, %v175
  %177 = vdwg.mxu0
  %v178 = vpack.c.bf16 %v136, %v136
  %v179 = vpack.c.bf16 %v138, %v138
  %vm180 = vcmask 519168
  %181 = vst.msk [vmem:[%s8] sm:$0xf] %vm180, %v178
  %182 = vst.msk [vmem:[%s8 + $0x4] sm:$0xf] %vm180, %v179
  %v183 = vpack.c.bf16 %v174, %v174
  %v184 = vpack.c.bf16 %v176, %v176
  %vm185 = vcmask 257024
  %186 = vst.msk [vmem:[%s9] sm:$0xf] %vm185, %v183
  %187 = vst.msk [vmem:[%s9 + $0x4] sm:$0xf] %vm185, %v184
  // Predicated region
  $region34: #{transformer_forward.29} parent=0 // pred_check
    _
  $region35: #{transformer_forward.29} parent=0 // pred_check_branch
    %189 = sbr.rel (0) target = $region37
  $region36: #{transformer_forward.29} parent=0 // pred_region
    _
  $region37: #{transformer_forward.29} parent=0 // pred_fallthru
    _
  // Predicated region
  $region38: #{transformer_forward.29} parent=0 // pred_check
    _
  $region39: #{transformer_forward.29} parent=0 // pred_check_branch
    %191 = sbr.rel (0) target = $region41
  $region40: #{transformer_forward.29} parent=0 // pred_region
    _
  $region41: #{transformer_forward.29} parent=0 // pred_fallthru
    _
  // Predicated region
  $region42: #{transformer_forward.29} parent=0 // pred_check
    _
  $region43: #{transformer_forward.29} parent=0 // pred_check_branch
    %193 = sbr.rel (0) target = $region45
  $region44: #{transformer_forward.29} parent=0 // pred_region
    _
  $region45: #{transformer_forward.29} parent=0 // pred_fallthru
    _
  // Predicated region
  $region46: #{transformer_forward.29} parent=0 // pred_check
    _
  $region47: #{transformer_forward.29} parent=0 // pred_check_branch
    %195 = sbr.rel (0) target = $region49
  $region48: #{transformer_forward.29} parent=0 // pred_region
    _
  $region49: #{transformer_forward.29} parent=0 // pred_fallthru
    _

// kernel: transformer_forward.30
$region0: #{transformer_forward.30}
  #allocation0 [shape = 'u32[]', space=smem, size = 0x4, offset = 0x4, fixed_abs, tag = 'smem constant byte address 0x4 - core index']
  #allocation1 [shape = 'u32[72,128]{1,0:T(1,128)}', space=vmem, size = 0x9000, scoped, tag = 'internal scratch']
  %s0 = inlined_call_operand.vmem [shape: bf16[2,8,64], index: 0, kind: input, shape index: {}]
  %s1 = inlined_call_operand.vmem [shape: bf16[2,8,32], index: 1, kind: input, shape index: {}]
  %s2 = inlined_call_operand.vmem [shape: f32[2,1,8], index: 2, kind: input, shape index: {}]
  %s3 = inlined_call_operand.vmem [shape: f32[2,8,32], index: 3, kind: input, shape index: {}]
  %s4 = inlined_call_operand.vmem [shape: bf16[4,8,32], index: 4, kind: input, shape index: {}]
  %s5 = inlined_call_operand.vmem [shape: f32[1,32], index: 5, kind: input, shape index: {}]
  %s6 = inlined_call_operand.vmem [shape: f32[2,8,32], index: 6, kind: output, shape index: {}]
  %s7 = sld [smem:[#allocation0]]
  $region57: #{transformer_forward.30} parent=0
    _
  %s9 = ssub.s32 1, %s7
  %s10 = scalar_select 0, %s9, %s7
  loop: start=0, step=1, limit=4
  $region2: #{transformer_forward.30} parent=0 // loop_pre_header
    _
  $region3: #{transformer_forward.30} parent=0 // loop_header
    %s12 = sphi 0, %s16
    %p13 = scmp.ge.s32.totalorder %s12, 4
    %s22 = sphi 0, %s24
    %s25 = sphi 0, %s22
    %s26 = sphi 0, %s25
    %s42 = sphi 0, %s26
    %s48 = sphi 0, %s50
    %s51 = sphi 0, %s48
    %s52 = sphi 0, %s51
    %s68 = sphi 0, %s52
    %s74 = sphi 0, %s76
    %s77 = sphi 0, %s74
    %s78 = sphi 0, %s77
    %s94 = sphi 0, %s78
    %s100 = sphi 0, %s102
    %s103 = sphi 0, %s100
    %s104 = sphi 0, %s103
    %s120 = sphi 0, %s104
    %s124 = sphi 0, %s124
    %s126 = sphi 0, %s124
    %s127 = sphi 0, %s126
    %s141 = sphi 0, %s127
    %s145 = sphi 0, %s145
    %s147 = sphi 0, %s145
    %s148 = sphi 0, %s147
    %s162 = sphi 0, %s148
    %s168 = sphi 0, %s170
    %s171 = sphi 0, %s168
    %s172 = sphi 0, %s171
    %s188 = sphi 0, %s172
  $region4: #{transformer_forward.30} parent=0 // loop_header_branch
    %15 = sbr.rel (%p13) target = $region8
  $region5: #{transformer_forward.30} parent=0 // loop_body
    %s17 = ssub.s32 %s12, 1
    %s18 = ssub.s32 %s12, 2
    %s19 = sadd.s32 %s12, 1
    %s20 = ssub.s32 %s12, %s19
    %p21 = scmp.eq.s32.totalorder %s20, 0
    %s23 = sadd.s32 %s22, 1
    %s24 = scalar_select %p21, %s22, %s23
    %p27 = pneg %p21
    %p28 = scmp.eq.s32.totalorder %s12, 1
    %p29 = por %p27, %p28
    %p30 = scmp.ne.s32.totalorder %s22, %s25
    %p31 = scmp.eq.s32.totalorder %s12, 0
    %p32 = por %p30, %p31
    %p33 = scmp.ne.s32.totalorder %s22, %s25
    %p34 = scmp.eq.s32.totalorder %s17, 1
    %p35 = por %p33, %p34
    %p36 = scmp.ne.s32.totalorder %s25, %s26
    %p37 = scmp.eq.s32.totalorder %s17, 0
    %p38 = por %p36, %p37
    %p39 = scmp.ne.s32.totalorder %s25, %s26
    %p40 = scmp.eq.s32.totalorder %s18, 1
    %p41 = por %p39, %p40
    %p43 = scmp.ne.s32.totalorder %s26, %s42
    %p44 = scmp.eq.s32.totalorder %s18, 0
    %p45 = por %p43, %p44
    %s46 = ssub.s32 %s12, %s19
    %p47 = scmp.eq.s32.totalorder %s46, 0
    %s49 = sadd.s32 %s48, 1
    %s50 = scalar_select %p47, %s48, %s49
    %p53 = pneg %p47
    %p54 = scmp.eq.s32.totalorder %s12, 1
    %p55 = por %p53, %p54
    %p56 = scmp.ne.s32.totalorder %s48, %s51
    %p57 = scmp.eq.s32.totalorder %s12, 0
    %p58 = por %p56, %p57
    %p59 = scmp.ne.s32.totalorder %s48, %s51
    %p60 = scmp.eq.s32.totalorder %s17, 1
    %p61 = por %p59, %p60
    %p62 = scmp.ne.s32.totalorder %s51, %s52
    %p63 = scmp.eq.s32.totalorder %s17, 0
    %p64 = por %p62, %p63
    %p65 = scmp.ne.s32.totalorder %s51, %s52
    %p66 = scmp.eq.s32.totalorder %s18, 1
    %p67 = por %p65, %p66
    %p69 = scmp.ne.s32.totalorder %s52, %s68
    %p70 = scmp.eq.s32.totalorder %s18, 0
    %p71 = por %p69, %p70
    %s72 = ssub.s32 %s12, %s19
    %p73 = scmp.eq.s32.totalorder %s72, 0
    %s75 = sadd.s32 %s74, 1
    %s76 = scalar_select %p73, %s74, %s75
    %p79 = pneg %p73
    %p80 = scmp.eq.s32.totalorder %s12, 1
    %p81 = por %p79, %p80
    %p82 = scmp.ne.s32.totalorder %s74, %s77
    %p83 = scmp.eq.s32.totalorder %s12, 0
    %p84 = por %p82, %p83
    %p85 = scmp.ne.s32.totalorder %s74, %s77
    %p86 = scmp.eq.s32.totalorder %s17, 1
    %p87 = por %p85, %p86
    %p88 = scmp.ne.s32.totalorder %s77, %s78
    %p89 = scmp.eq.s32.totalorder %s17, 0
    %p90 = por %p88, %p89
    %p91 = scmp.ne.s32.totalorder %s77, %s78
    %p92 = scmp.eq.s32.totalorder %s18, 1
    %p93 = por %p91, %p92
    %p95 = scmp.ne.s32.totalorder %s78, %s94
    %p96 = scmp.eq.s32.totalorder %s18, 0
    %p97 = por %p95, %p96
    %s98 = ssub.s32 %s12, %s19
    %p99 = scmp.eq.s32.totalorder %s98, 0
    %s101 = sadd.s32 %s100, 1
    %s102 = scalar_select %p99, %s100, %s101
    %p105 = pneg %p99
    %p106 = scmp.eq.s32.totalorder %s12, 1
    %p107 = por %p105, %p106
    %p108 = scmp.ne.s32.totalorder %s100, %s103
    %p109 = scmp.eq.s32.totalorder %s12, 0
    %p110 = por %p108, %p109
    %p111 = scmp.ne.s32.totalorder %s100, %s103
    %p112 = scmp.eq.s32.totalorder %s17, 1
    %p113 = por %p111, %p112
    %p114 = scmp.ne.s32.totalorder %s103, %s104
    %p115 = scmp.eq.s32.totalorder %s17, 0
    %p116 = por %p114, %p115
    %p117 = scmp.ne.s32.totalorder %s103, %s104
    %p118 = scmp.eq.s32.totalorder %s18, 1
    %p119 = por %p117, %p118
    %p121 = scmp.ne.s32.totalorder %s104, %s120
    %p122 = scmp.eq.s32.totalorder %s18, 0
    %p123 = por %p121, %p122
    %s125 = sadd.s32 %s124, 1
    %p128 = scmp.eq.s32.totalorder %s12, 1
    %p129 = scmp.ne.s32.totalorder %s124, %s126
    %p130 = scmp.eq.s32.totalorder %s12, 0
    %p131 = por %p129, %p130
    %p132 = scmp.ne.s32.totalorder %s124, %s126
    %p133 = scmp.eq.s32.totalorder %s17, 1
    %p134 = por %p132, %p133
    %p135 = scmp.ne.s32.totalorder %s126, %s127
    %p136 = scmp.eq.s32.totalorder %s17, 0
    %p137 = por %p135, %p136
    %p138 = scmp.ne.s32.totalorder %s126, %s127
    %p139 = scmp.eq.s32.totalorder %s18, 1
    %p140 = por %p138, %p139
    %p142 = scmp.ne.s32.totalorder %s127, %s141
    %p143 = scmp.eq.s32.totalorder %s18, 0
    %p144 = por %p142, %p143
    %s146 = sadd.s32 %s145, 1
    %p149 = scmp.eq.s32.totalorder %s12, 1
    %p150 = scmp.ne.s32.totalorder %s145, %s147
    %p151 = scmp.eq.s32.totalorder %s12, 0
    %p152 = por %p150, %p151
    %p153 = scmp.ne.s32.totalorder %s145, %s147
    %p154 = scmp.eq.s32.totalorder %s17, 1
    %p155 = por %p153, %p154
    %p156 = scmp.ne.s32.totalorder %s147, %s148
    %p157 = scmp.eq.s32.totalorder %s17, 0
    %p158 = por %p156, %p157
    %p159 = scmp.ne.s32.totalorder %s147, %s148
    %p160 = scmp.eq.s32.totalorder %s18, 1
    %p161 = por %p159, %p160
    %p163 = scmp.ne.s32.totalorder %s148, %s162
    %p164 = scmp.eq.s32.totalorder %s18, 0
    %p165 = por %p163, %p164
    %s166 = ssub.s32 %s12, %s19
    %p167 = scmp.eq.s32.totalorder %s166, 0
    %s169 = sadd.s32 %s168, 1
    %s170 = scalar_select %p167, %s168, %s169
    %p173 = pneg %p167
    %p174 = scmp.eq.s32.totalorder %s12, 1
    %p175 = por %p173, %p174
    %p176 = scmp.ne.s32.totalorder %s168, %s171
    %p177 = scmp.eq.s32.totalorder %s12, 0
    %p178 = por %p176, %p177
    %p179 = scmp.ne.s32.totalorder %s168, %s171
    %p180 = scmp.eq.s32.totalorder %s17, 1
    %p181 = por %p179, %p180
    %p182 = scmp.ne.s32.totalorder %s171, %s172
    %p183 = scmp.eq.s32.totalorder %s17, 0
    %p184 = por %p182, %p183
    %p185 = scmp.ne.s32.totalorder %s171, %s172
    %p186 = scmp.eq.s32.totalorder %s18, 1
    %p187 = por %p185, %p186
    %p189 = scmp.ne.s32.totalorder %s172, %s188
    %p190 = scmp.eq.s32.totalorder %s18, 0
    %p191 = por %p189, %p190
    %p192 = scmp.le.s32.totalorder 1, %s12
    %p193 = scmp.lt.s32.totalorder %s12, 3
    %p194 = pnand %p192, %p193
    %p195 = pneg %p194
    // Predicated region
    $region9: #{transformer_forward.30} parent=5 // pred_check
      _
    $region10: #{transformer_forward.30} parent=5 // pred_check_branch
      %197 = sbr.rel (%p194) target = $region12
    $region11: #{transformer_forward.30} parent=5 // pred_region
      %s198 = ssub.s32 %s12, 1
      // Predicated region
      $region13: #{transformer_forward.30} parent=11 // pred_check
        %p199 = pneg %p137
      $region14: #{transformer_forward.30} parent=11 // pred_check_branch
        %201 = sbr.rel (%p199) target = $region16
      $region15: #{transformer_forward.30} parent=11 // pred_region
        _
      $region16: #{transformer_forward.30} parent=11 // pred_fallthru
        _
      // Predicated region
      $region17: #{transformer_forward.30} parent=11 // pred_check
        %p202 = pneg %p158
      $region18: #{transformer_forward.30} parent=11 // pred_check_branch
        %204 = sbr.rel (%p202) target = $region20
      $region19: #{transformer_forward.30} parent=11 // pred_region
        _
      $region20: #{transformer_forward.30} parent=11 // pred_fallthru
        _
    $region12: #{transformer_forward.30} parent=5 // pred_fallthru
      _
    %p205 = scmp.lt.s32.totalorder %s12, 2
    // Predicated region
    $region21: #{transformer_forward.30} parent=5 // pred_check
      %p206 = pneg %p205
    $region22: #{transformer_forward.30} parent=5 // pred_check_branch
      %208 = sbr.rel (%p206) target = $region24
    $region23: #{transformer_forward.30} parent=5 // pred_region
      // Predicated region
      $region25: #{transformer_forward.30} parent=23 // pred_check
        %p209 = pneg %p32
      $region26: #{transformer_forward.30} parent=23 // pred_check_branch
        %211 = sbr.rel (%p209) target = $region28
      $region27: #{transformer_forward.30} parent=23 // pred_region
        %p212 = scmp.lt.s32.totalorder %s12, 1
        %s213 = scalar_select %p212, %s12, 1
        %s214 = smul.addr %s213, 4
        %s215 = scalar_lea.vmem %s0, %s214
      $region28: #{transformer_forward.30} parent=23 // pred_fallthru
        _
      // Predicated region
      $region29: #{transformer_forward.30} parent=23 // pred_check
        %p216 = pneg %p58
      $region30: #{transformer_forward.30} parent=23 // pred_check_branch
        %218 = sbr.rel (%p216) target = $region32
      $region31: #{transformer_forward.30} parent=23 // pred_region
        %p219 = scmp.lt.s32.totalorder %s12, 1
        %s220 = scalar_select %p219, %s12, 1
        %s221 = smul.addr %s220, 4
        %s222 = scalar_lea.vmem %s1, %s221
      $region32: #{transformer_forward.30} parent=23 // pred_fallthru
        _
      // Predicated region
      $region33: #{transformer_forward.30} parent=23 // pred_check
        %p223 = pneg %p84
      $region34: #{transformer_forward.30} parent=23 // pred_check_branch
        %225 = sbr.rel (%p223) target = $region36
      $region35: #{transformer_forward.30} parent=23 // pred_region
        %p226 = scmp.lt.s32.totalorder %s12, 1
        %s227 = scalar_select %p226, %s12, 1
        %s228 = scalar_lea.vmem %s2, %s227
      $region36: #{transformer_forward.30} parent=23 // pred_fallthru
        _
      // Predicated region
      $region37: #{transformer_forward.30} parent=23 // pred_check
        %p229 = pneg %p110
      $region38: #{transformer_forward.30} parent=23 // pred_check_branch
        %231 = sbr.rel (%p229) target = $region40
      $region39: #{transformer_forward.30} parent=23 // pred_region
        %p232 = scmp.lt.s32.totalorder %s12, 1
        %s233 = scalar_select %p232, %s12, 1
        %s234 = smul.addr %s233, 8
        %s235 = scalar_lea.vmem %s3, %s234
      $region40: #{transformer_forward.30} parent=23 // pred_fallthru
        _
    $region24: #{transformer_forward.30} parent=5 // pred_fallthru
      _
    %p236 = scmp.le.s32.totalorder 1, %s12
    %p237 = scmp.lt.s32.totalorder %s12, 3
    %p238 = pnand %p236, %p237
    %p239 = pneg %p238
    // Predicated region
    $region41: #{transformer_forward.30} parent=5 // pred_check
      _
    $region42: #{transformer_forward.30} parent=5 // pred_check_branch
      %241 = sbr.rel (%p238) target = $region44
    $region43: #{transformer_forward.30} parent=5 // pred_region
      %s242 = ssub.s32 %s12, 1
      %p243 = scmp.lt.s32.totalorder %s17, 1
      %s244 = scalar_select %p243, %s17, 1
      %s245 = smul.addr %s244, 4
      %s246 = scalar_lea.vmem %s0, %s245
      %p247 = pneg %p38
      %p248 = pneg %p35
      %p249 = scmp.lt.s32.totalorder %s17, 1
      %s250 = scalar_select %p249, %s17, 1
      %s251 = smul.addr %s250, 4
      %s252 = scalar_lea.vmem %s1, %s251
      %p253 = pneg %p64
      %p254 = pneg %p61
      %p255 = scmp.lt.s32.totalorder %s17, 1
      %s256 = scalar_select %p255, %s17, 1
      %s257 = scalar_lea.vmem %s2, %s256
      %p258 = pneg %p90
      %p259 = pneg %p87
      %p260 = scmp.lt.s32.totalorder %s17, 1
      %s261 = scalar_select %p260, %s17, 1
      %s262 = smul.addr %s261, 8
      %s263 = scalar_lea.vmem %s3, %s262
      %p264 = pneg %p116
      %p265 = pneg %p113
      %p266 = pneg %p137
      %p267 = pneg %p134
      %p268 = pneg %p158
      %p269 = pneg %p155
      %p270 = pneg %p184
      %p271 = pneg %p181
      %p272 = scmp.lt.s32.totalorder %s17, 1
      %s273 = scalar_select %p272, %s17, 1
      %s274 = smul.addr %s273, 8
      %s275 = scalar_lea.vmem %s6, %s274
      %p276 = scmp.lt.s32.totalorder %s17, 1
      %s277 = scalar_select %p276, %s17, 1
      %s278 = smul.addr %s277, 4
      %s279 = scalar_lea.vmem %s0, %s278
      %p280 = scmp.lt.s32.totalorder %s17, 1
      %s281 = scalar_select %p280, %s17, 1
      %s282 = smul.addr %s281, 4
      %s283 = scalar_lea.vmem %s1, %s282
      %p284 = scmp.lt.s32.totalorder %s17, 1
      %s285 = scalar_select %p284, %s17, 1
      %s286 = scalar_lea.vmem %s2, %s285
      %p287 = scmp.lt.s32.totalorder %s17, 1
      %s288 = scalar_select %p287, %s17, 1
      %s289 = smul.addr %s288, 8
      %s290 = scalar_lea.vmem %s3, %s289
      %p291 = scmp.lt.s32.totalorder %s17, 1
      %s292 = scalar_select %p291, %s17, 1
      %s293 = smul.addr %s292, 8
      %s294 = scalar_lea.vmem %s6, %s293
      %v296 = vld [vmem:[%s286] sm:$0x1]
      %v297 = vld [vmem:[%s290] sm:$0xff]
      %v298 = vld [vmem:[%s5] sm:$0x1]
      %v299 = vlaneseq
      %v300 = vshrl.u32 %v299, 7
      %v301 = vlaneseq
      %v302 = vand.u32 %v301, 127
      %vm303 = vcmp.le.s32.totalorder %v302, %v300
      %v304 = vld [vmem:[%s279] sm:$0xf]
      %v305 = vld [vmem:[%s283] sm:$0xf]
      %v307 = vperm.slane %v296, 0
      %v310 = vunpack.c.l.b16 %v304
      %v311 = vpack.c.b16 %v310, %v310
      %312 = vrot.lane.b32.xlu0 %v311, 96
      %v313 = vpop.permute.xlu0 %312
      %vm314 = vcmask 64512
      %v316 = vsel %vm314, %v304, 0
      %v319 = vsel %vm314, %v313, 0
      %321 = vmatpush.bf16.xpose.msra.mxu0 0
      %322 = vmatpush.bf16.xpose.msra.mxu0 0
      %323 = vmatpush.bf16.xpose.msra.mxu0 0
      %324 = vmatpush.bf16.xpose.msra.mxu0 0
      %325 = vmatpush.bf16.xpose.msra.mxu0 0
      %326 = vmatpush.bf16.xpose.msra.mxu0 0
      %327 = vmatpush.bf16.xpose.msra.mxu0 0
      %328 = vmatpush.bf16.xpose.msra.mxu0 %v319
      %329 = vmatmul.bf16.gmra.mxu0 %v316
      %v330 = vpop.f32.mrf.mxu0
      %v331 = vadd.f32 %v307, %v330
      %v332 = vpop.f32.mrf.mxu0
      %333 = vdwg.mxu0
      %v334 = vsel %vm303, %v331, -1e+09
      %v335 = vsel %vm314, %v334, -inf
      %336 = vmax.xlane.f32.xlu0 %v335
      %v337 = vpop.xlane.xlu0 %336
      %v338 = vsub.f32 %v334, %v337
      %v339 = vmul.f32 %v338, 1.442695
      %v340 = vpow.pop %v339
      %v341 = vsel %vm314, %v340, 0.0
      %342 = vadd.xlane.f32.xlu0 %v341
      %v343 = vpop.xlane.xlu0 %342
      %v344 = vrcp.pop %v343
      %v345 = vmul.f32 %v340, %v344
      %v346 = vpack.c.bf16 %v345, %v345
      %v348 = vsel %vm314, %v346, 0
      %vm350 = vcmask 1043456
      %v352 = vsel %vm350, %v305, 0
      %354 = vmatpush.bf16.msra.mxu0 0
      %355 = vmatpush.bf16.msra.mxu0 0
      %356 = vmatpush.bf16.msra.mxu0 0
      %357 = vmatpush.bf16.msra.mxu0 0
      %358 = vmatpush.bf16.msra.mxu0 0
      %359 = vmatpush.bf16.msra.mxu0 0
      %360 = vmatpush.bf16.msra.mxu0 0
      %361 = vmatpush.bf16.msra.mxu0 %v352
      %362 = vmatmul.bf16.gmra.mxu0 %v348
      %v363 = vpop.f32.mrf.mxu0
      %v364 = vadd.f32 0.0, %v363
      %v365 = vpop.f32.mrf.mxu0
      %366 = vdwg.mxu0
      %v367 = vpack.c.bf16 %v364, %v364
      %v368 = vld [vmem:[%s4] sm:$0xf]
      %369 = vrot.lane.b32.xlu0 %v311, 120
      %v370 = vpop.permute.xlu0 %369
      %371 = vrot.lane.b32.xlu0 %v311, 88
      %v372 = vpop.permute.xlu0 %371
      %v374 = vsel %vm314, %v370, 0
      %v377 = vsel %vm314, %v372, 0
      %379 = vmatpush.bf16.xpose.msra.mxu0 0
      %380 = vmatpush.bf16.xpose.msra.mxu0 0
      %381 = vmatpush.bf16.xpose.msra.mxu0 0
      %382 = vmatpush.bf16.xpose.msra.mxu0 0
      %383 = vmatpush.bf16.xpose.msra.mxu0 0
      %384 = vmatpush.bf16.xpose.msra.mxu0 0
      %385 = vmatpush.bf16.xpose.msra.mxu0 0
      %386 = vmatpush.bf16.xpose.msra.mxu0 %v377
      %387 = vmatmul.bf16.gmra.mxu0 %v374
      %v388 = vpop.f32.mrf.mxu0
      %v389 = vadd.f32 %v307, %v388
      %v390 = vpop.f32.mrf.mxu0
      %391 = vdwg.mxu0
      %v392 = vsel %vm303, %v389, -1e+09
      %v393 = vsel %vm314, %v392, -inf
      %394 = vmax.xlane.f32.xlu0 %v393
      %v395 = vpop.xlane.xlu0 %394
      %v396 = vsub.f32 %v392, %v395
      %v397 = vmul.f32 %v396, 1.442695
      %v398 = vpow.pop %v397
      %v399 = vsel %vm314, %v398, 0.0
      %400 = vadd.xlane.f32.xlu0 %v399
      %v401 = vpop.xlane.xlu0 %400
      %v402 = vrcp.pop %v401
      %v403 = vmul.f32 %v398, %v402
      %v404 = vpack.c.bf16 %v403, %v403
      %v406 = vunpack.c.l.b16 %v305
      %v407 = vpack.c.b16 %v406, %v406
      %408 = vrot.lane.b32.xlu0 %v407, 120
      %v409 = vpop.permute.xlu0 %408
      %v411 = vsel %vm314, %v404, 0
      %v414 = vsel %vm350, %v409, 0
      %416 = vmatpush.bf16.msra.mxu0 0
      %417 = vmatpush.bf16.msra.mxu0 0
      %418 = vmatpush.bf16.msra.mxu0 0
      %419 = vmatpush.bf16.msra.mxu0 0
      %420 = vmatpush.bf16.msra.mxu0 0
      %421 = vmatpush.bf16.msra.mxu0 0
      %422 = vmatpush.bf16.msra.mxu0 0
      %423 = vmatpush.bf16.msra.mxu0 %v414
      %424 = vmatmul.bf16.gmra.mxu0 %v411
      %v425 = vpop.f32.mrf.mxu0
      %v426 = vadd.f32 0.0, %v425
      %v427 = vpop.f32.mrf.mxu0
      %428 = vdwg.mxu0
      %v429 = vpack.c.bf16 %v426, %v426
      %s430 = scalar_lea.vmem %s4, 4
      %v431 = vld [vmem:[%s430] sm:$0xf]
      %v433 = vsel %vm314, %v429, 0
      %v436 = vsel %vm350, %v431, 0
      %438 = vmatpush.bf16.msra.mxu0 0
      %439 = vmatpush.bf16.msra.mxu0 0
      %440 = vmatpush.bf16.msra.mxu0 0
      %441 = vmatpush.bf16.msra.mxu0 0
      %442 = vmatpush.bf16.msra.mxu0 0
      %443 = vmatpush.bf16.msra.mxu0 0
      %444 = vmatpush.bf16.msra.mxu0 0
      %445 = vmatpush.bf16.msra.mxu0 %v436
      %446 = vmatmul.bf16.gmra.mxu0 %v433
      %v447 = vpop.f32.mrf.mxu0
      %v448 = vadd.f32 0.0, %v447
      %v449 = vpop.f32.mrf.mxu0
      %450 = vdwg.mxu0
      %v452 = vsel %vm314, %v367, 0
      %v455 = vsel %vm350, %v368, 0
      %457 = vmatpush.bf16.msra.mxu0 0
      %458 = vmatpush.bf16.msra.mxu0 0
      %459 = vmatpush.bf16.msra.mxu0 0
      %460 = vmatpush.bf16.msra.mxu0 0
      %461 = vmatpush.bf16.msra.mxu0 0
      %462 = vmatpush.bf16.msra.mxu0 0
      %463 = vmatpush.bf16.msra.mxu0 0
      %464 = vmatpush.bf16.msra.mxu0 %v455
      %465 = vmatmul.bf16.gmra.mxu0 %v452
      %v466 = vpop.f32.mrf.mxu0
      %v467 = vadd.f32 %v448, %v466
      %v468 = vpop.f32.mrf.mxu0
      %469 = vdwg.mxu0
      %470 = vrot.lane.b32.xlu0 %v311, 112
      %v471 = vpop.permute.xlu0 %470
      %472 = vrot.lane.b32.xlu0 %v311, 80
      %v473 = vpop.permute.xlu0 %472
      %v475 = vsel %vm314, %v471, 0
      %v478 = vsel %vm314, %v473, 0
      %480 = vmatpush.bf16.xpose.msra.mxu0 0
      %481 = vmatpush.bf16.xpose.msra.mxu0 0
      %482 = vmatpush.bf16.xpose.msra.mxu0 0
      %483 = vmatpush.bf16.xpose.msra.mxu0 0
      %484 = vmatpush.bf16.xpose.msra.mxu0 0
      %485 = vmatpush.bf16.xpose.msra.mxu0 0
      %486 = vmatpush.bf16.xpose.msra.mxu0 0
      %487 = vmatpush.bf16.xpose.msra.mxu0 %v478
      %488 = vmatmul.bf16.gmra.mxu0 %v475
      %v489 = vpop.f32.mrf.mxu0
      %v490 = vadd.f32 %v307, %v489
      %v491 = vpop.f32.mrf.mxu0
      %492 = vdwg.mxu0
      %v493 = vsel %vm303, %v490, -1e+09
      %v494 = vsel %vm314, %v493, -inf
      %495 = vmax.xlane.f32.xlu0 %v494
      %v496 = vpop.xlane.xlu0 %495
      %v497 = vsub.f32 %v493, %v496
      %v498 = vmul.f32 %v497, 1.442695
      %v499 = vpow.pop %v498
      %v500 = vsel %vm314, %v499, 0.0
      %501 = vadd.xlane.f32.xlu0 %v500
      %v502 = vpop.xlane.xlu0 %501
      %v503 = vrcp.pop %v502
      %v504 = vmul.f32 %v499, %v503
      %v505 = vpack.c.bf16 %v504, %v504
      %506 = vrot.lane.b32.xlu0 %v407, 112
      %v507 = vpop.permute.xlu0 %506
      %v509 = vsel %vm314, %v505, 0
      %v512 = vsel %vm350, %v507, 0
      %514 = vmatpush.bf16.msra.mxu0 0
      %515 = vmatpush.bf16.msra.mxu0 0
      %516 = vmatpush.bf16.msra.mxu0 0
      %517 = vmatpush.bf16.msra.mxu0 0
      %518 = vmatpush.bf16.msra.mxu0 0
      %519 = vmatpush.bf16.msra.mxu0 0
      %520 = vmatpush.bf16.msra.mxu0 0
      %521 = vmatpush.bf16.msra.mxu0 %v512
      %522 = vmatmul.bf16.gmra.mxu0 %v509
      %v523 = vpop.f32.mrf.mxu0
      %v524 = vadd.f32 0.0, %v523
      %v525 = vpop.f32.mrf.mxu0
      %526 = vdwg.mxu0
      %v527 = vpack.c.bf16 %v524, %v524
      %s528 = scalar_lea.vmem %s4, 8
      %v529 = vld [vmem:[%s528] sm:$0xf]
      %v531 = vsel %vm314, %v527, 0
      %v534 = vsel %vm350, %v529, 0
      %536 = vmatpush.bf16.msra.mxu0 0
      %537 = vmatpush.bf16.msra.mxu0 0
      %538 = vmatpush.bf16.msra.mxu0 0
      %539 = vmatpush.bf16.msra.mxu0 0
      %540 = vmatpush.bf16.msra.mxu0 0
      %541 = vmatpush.bf16.msra.mxu0 0
      %542 = vmatpush.bf16.msra.mxu0 0
      %543 = vmatpush.bf16.msra.mxu0 %v534
      %544 = vmatmul.bf16.gmra.mxu0 %v531
      %v545 = vpop.f32.mrf.mxu0
      %v546 = vadd.f32 0.0, %v545
      %v547 = vpop.f32.mrf.mxu0
      %548 = vdwg.mxu0
      %v549 = vadd.f32 %v467, %v546
      %550 = vrot.lane.b32.xlu0 %v311, 104
      %v551 = vpop.permute.xlu0 %550
      %552 = vrot.lane.b32.xlu0 %v311, 72
      %v553 = vpop.permute.xlu0 %552
      %v555 = vsel %vm314, %v551, 0
      %v558 = vsel %vm314, %v553, 0
      %560 = vmatpush.bf16.xpose.msra.mxu0 0
      %561 = vmatpush.bf16.xpose.msra.mxu0 0
      %562 = vmatpush.bf16.xpose.msra.mxu0 0
      %563 = vmatpush.bf16.xpose.msra.mxu0 0
      %564 = vmatpush.bf16.xpose.msra.mxu0 0
      %565 = vmatpush.bf16.xpose.msra.mxu0 0
      %566 = vmatpush.bf16.xpose.msra.mxu0 0
      %567 = vmatpush.bf16.xpose.msra.mxu0 %v558
      %568 = vmatmul.bf16.gmra.mxu0 %v555
      %v569 = vpop.f32.mrf.mxu0
      %v570 = vadd.f32 %v307, %v569
      %v571 = vpop.f32.mrf.mxu0
      %572 = vdwg.mxu0
      %v573 = vsel %vm303, %v570, -1e+09
      %v574 = vsel %vm314, %v573, -inf
      %575 = vmax.xlane.f32.xlu0 %v574
      %v576 = vpop.xlane.xlu0 %575
      %v577 = vsub.f32 %v573, %v576
      %v578 = vmul.f32 %v577, 1.442695
      %v579 = vpow.pop %v578
      %v580 = vsel %vm314, %v579, 0.0
      %581 = vadd.xlane.f32.xlu0 %v580
      %v582 = vpop.xlane.xlu0 %581
      %v583 = vrcp.pop %v582
      %v584 = vmul.f32 %v579, %v583
      %v585 = vpack.c.bf16 %v584, %v584
      %586 = vrot.lane.b32.xlu0 %v407, 104
      %v587 = vpop.permute.xlu0 %586
      %v589 = vsel %vm314, %v585, 0
      %v592 = vsel %vm350, %v587, 0
      %594 = vmatpush.bf16.msra.mxu0 0
      %595 = vmatpush.bf16.msra.mxu0 0
      %596 = vmatpush.bf16.msra.mxu0 0
      %597 = vmatpush.bf16.msra.mxu0 0
      %598 = vmatpush.bf16.msra.mxu0 0
      %599 = vmatpush.bf16.msra.mxu0 0
      %600 = vmatpush.bf16.msra.mxu0 0
      %601 = vmatpush.bf16.msra.mxu0 %v592
      %602 = vmatmul.bf16.gmra.mxu0 %v589
      %v603 = vpop.f32.mrf.mxu0
      %v604 = vadd.f32 0.0, %v603
      %v605 = vpop.f32.mrf.mxu0
      %606 = vdwg.mxu0
      %v607 = vpack.c.bf16 %v604, %v604
      %s608 = scalar_lea.vmem %s4, 12
      %v609 = vld [vmem:[%s608] sm:$0xf]
      %v611 = vsel %vm314, %v607, 0
      %v614 = vsel %vm350, %v609, 0
      %616 = vmatpush.bf16.msra.mxu0 0
      %617 = vmatpush.bf16.msra.mxu0 0
      %618 = vmatpush.bf16.msra.mxu0 0
      %619 = vmatpush.bf16.msra.mxu0 0
      %620 = vmatpush.bf16.msra.mxu0 0
      %621 = vmatpush.bf16.msra.mxu0 0
      %622 = vmatpush.bf16.msra.mxu0 0
      %623 = vmatpush.bf16.msra.mxu0 %v614
      %624 = vmatmul.bf16.gmra.mxu0 %v611
      %v625 = vpop.f32.mrf.mxu0
      %v626 = vadd.f32 0.0, %v625
      %v627 = vpop.f32.mrf.mxu0
      %628 = vdwg.mxu0
      %v629 = vadd.f32 %v549, %v626
      %v630 = vadd.f32 %v297, %v629
      %v632 = vperm.slane %v298, 0
      %v634 = vadd.f32 %v630, %v632
      %vm635 = vcmask 261120
      %636 = vst.msk [vmem:[%s294] sm:$0xff] %vm635, %v634
      %p637 = scmp.lt.s32.totalorder %s17, 1
      %s638 = scalar_select %p637, %s17, 1
      %s639 = smul.addr %s638, 8
      %s640 = scalar_lea.vmem %s6, %s639
      // Predicated region
      $region45: #{transformer_forward.30} parent=43 // pred_check
        %p641 = pneg %p181
      $region46: #{transformer_forward.30} parent=43 // pred_check_branch
        %643 = sbr.rel (%p641) target = $region48
      $region47: #{transformer_forward.30} parent=43 // pred_region
        _
      $region48: #{transformer_forward.30} parent=43 // pred_fallthru
        _
    $region44: #{transformer_forward.30} parent=5 // pred_fallthru
      _
    %p644 = scmp.le.s32.totalorder 2, %s12
    // Predicated region
    $region49: #{transformer_forward.30} parent=5 // pred_check
      %p645 = pneg %p644
    $region50: #{transformer_forward.30} parent=5 // pred_check_branch
      %647 = sbr.rel (%p645) target = $region52
    $region51: #{transformer_forward.30} parent=5 // pred_region
      %s648 = ssub.s32 %s12, 2
      // Predicated region
      $region53: #{transformer_forward.30} parent=51 // pred_check
        %p649 = pneg %p187
      $region54: #{transformer_forward.30} parent=51 // pred_check_branch
        %651 = sbr.rel (%p649) target = $region56
      $region55: #{transformer_forward.30} parent=51 // pred_region
        %p652 = scmp.lt.s32.totalorder %s18, 1
        %s653 = scalar_select %p652, %s18, 1
        %s654 = smul.addr %s653, 8
        %s655 = scalar_lea.vmem %s6, %s654
      $region56: #{transformer_forward.30} parent=51 // pred_fallthru
        _
    $region52: #{transformer_forward.30} parent=5 // pred_fallthru
      _
  $region6: #{transformer_forward.30} parent=0 // loop_footer
    %s16 = sadd.s32 1, %s12
  $region7: #{transformer_forward.30} parent=0 // loop_footer_branch
    %11 = sbr.rel target = $region3
  $region8: #{transformer_forward.30} parent=0 // loop_exit
    _

// kernel: transformer_forward.22
$region0: #{transformer_forward.22}
  #allocation0 [shape = 'u32[]', space=smem, size = 0x4, offset = 0x4, fixed_abs, tag = 'smem constant byte address 0x4 - core index']
  #allocation1 [shape = 'u32[72,128]{1,0:T(1,128)}', space=vmem, size = 0x9000, scoped, tag = 'internal scratch']
  %s0 = inlined_call_operand.vmem [shape: f32[32,32], index: 0, kind: input, shape index: {}]
  %s1 = inlined_call_operand.vmem [shape: f32[32,32], index: 1, kind: input, shape index: {}]
  %s2 = inlined_call_operand.vmem [shape: f32[1,32], index: 2, kind: input, shape index: {}]
  %s3 = inlined_call_operand.vmem [shape: f32[1,32], index: 3, kind: input, shape index: {}]
  %s4 = inlined_call_operand.vmem [shape: bf16[32,64], index: 4, kind: input, shape index: {}]
  %s5 = inlined_call_operand.vmem [shape: f32[1,64], index: 5, kind: input, shape index: {}]
  %s6 = inlined_call_operand.vmem [shape: bf16[32,32], index: 6, kind: input, shape index: {}]
  %s7 = inlined_call_operand.vmem [shape: f32[1,32], index: 7, kind: input, shape index: {}]
  %s8 = inlined_call_operand.vmem [shape: bf16[32,64], index: 8, kind: output, shape index: {0}]
  %s9 = inlined_call_operand.vmem [shape: bf16[32,32], index: 9, kind: output, shape index: {1}]
  %10 = xla_tuple %s8, %s9
  %s11 = sld [smem:[#allocation0]]
  $region50: #{transformer_forward.22} parent=0
    _
  %s13 = ssub.s32 1, %s11
  %s14 = scalar_select 0, %s13, %s11
  // Predicated region
  $region2: #{transformer_forward.22} parent=0 // pred_check
    _
  $region3: #{transformer_forward.22} parent=0 // pred_check_branch
    %16 = sbr.rel (0) target = $region5
  $region4: #{transformer_forward.22} parent=0 // pred_region
    _
  $region5: #{transformer_forward.22} parent=0 // pred_fallthru
    _
  // Predicated region
  $region6: #{transformer_forward.22} parent=0 // pred_check
    _
  $region7: #{transformer_forward.22} parent=0 // pred_check_branch
    %18 = sbr.rel (0) target = $region9
  $region8: #{transformer_forward.22} parent=0 // pred_region
    _
  $region9: #{transformer_forward.22} parent=0 // pred_fallthru
    _
  // Predicated region
  $region10: #{transformer_forward.22} parent=0 // pred_check
    _
  $region11: #{transformer_forward.22} parent=0 // pred_check_branch
    %20 = sbr.rel (0) target = $region13
  $region12: #{transformer_forward.22} parent=0 // pred_region
    _
  $region13: #{transformer_forward.22} parent=0 // pred_fallthru
    _
  // Predicated region
  $region14: #{transformer_forward.22} parent=0 // pred_check
    _
  $region15: #{transformer_forward.22} parent=0 // pred_check_branch
    %22 = sbr.rel (0) target = $region17
  $region16: #{transformer_forward.22} parent=0 // pred_region
    _
  $region17: #{transformer_forward.22} parent=0 // pred_fallthru
    _
  // Predicated region
  $region18: #{transformer_forward.22} parent=0 // pred_check
    _
  $region19: #{transformer_forward.22} parent=0 // pred_check_branch
    %24 = sbr.rel (0) target = $region21
  $region20: #{transformer_forward.22} parent=0 // pred_region
    _
  $region21: #{transformer_forward.22} parent=0 // pred_fallthru
    _
  // Predicated region
  $region22: #{transformer_forward.22} parent=0 // pred_check
    _
  $region23: #{transformer_forward.22} parent=0 // pred_check_branch
    %26 = sbr.rel (0) target = $region25
  $region24: #{transformer_forward.22} parent=0 // pred_region
    _
  $region25: #{transformer_forward.22} parent=0 // pred_fallthru
    _
  // Predicated region
  $region26: #{transformer_forward.22} parent=0 // pred_check
    _
  $region27: #{transformer_forward.22} parent=0 // pred_check_branch
    %28 = sbr.rel (0) target = $region29
  $region28: #{transformer_forward.22} parent=0 // pred_region
    _
  $region29: #{transformer_forward.22} parent=0 // pred_fallthru
    _
  // Predicated region
  $region30: #{transformer_forward.22} parent=0 // pred_check
    _
  $region31: #{transformer_forward.22} parent=0 // pred_check_branch
    %30 = sbr.rel (0) target = $region33
  $region32: #{transformer_forward.22} parent=0 // pred_region
    _
  $region33: #{transformer_forward.22} parent=0 // pred_fallthru
    _
  %v32 = vld [vmem:[%s0] sm:$0xff]
  %v33 = vld [vmem:[%s0 + $0x8] sm:$0xff]
  %v34 = vld [vmem:[%s0 + $0x10] sm:$0xff]
  %v35 = vld [vmem:[%s0 + $0x18] sm:$0xff]
  %v36 = vld [vmem:[%s2] sm:$0x1]
  %v37 = vld [vmem:[%s3] sm:$0x1]
  %vm38 = vcmask 261120
  %v39 = vsel %vm38, %v32, 0.0
  %40 = vadd.xlane.f32.xlu0 %v39
  %v41 = vpop.xlane.xlu0 %40
  %v42 = vsel %vm38, %v33, 0.0
  %43 = vadd.xlane.f32.xlu0 %v42
  %v44 = vpop.xlane.xlu0 %43
  %v45 = vsel %vm38, %v34, 0.0
  %46 = vadd.xlane.f32.xlu0 %v45
  %v47 = vpop.xlane.xlu0 %46
  %v48 = vsel %vm38, %v35, 0.0
  %49 = vadd.xlane.f32.xlu0 %v48
  %v50 = vpop.xlane.xlu0 %49
  %v51 = vrcp.pop 32.0
  %v52 = vmul.f32 32.0, %v51
  %v53 = vsub.f32 1.0, %v52
  %v54 = vmul.f32 %v51, %v53
  %v55 = vadd.f32 %v51, %v54
  %vm56 = vweird.f32 %v51
  %v57 = vsel %vm56, %v51, %v55
  %v58 = vmul.f32 %v41, %v57
  %v59 = vmul.f32 %v44, %v57
  %v60 = vmul.f32 %v47, %v57
  %v61 = vmul.f32 %v50, %v57
  %v62 = vsub.f32 %v32, %v58
  %v63 = vsub.f32 %v33, %v59
  %v64 = vsub.f32 %v34, %v60
  %v65 = vsub.f32 %v35, %v61
  %v66 = vmul.f32 %v62, %v62
  %v67 = vmul.f32 %v63, %v63
  %v68 = vmul.f32 %v64, %v64
  %v69 = vmul.f32 %v65, %v65
  %v70 = vsel %vm38, %v66, 0.0
  %71 = vadd.xlane.f32.xlu0 %v70
  %v72 = vpop.xlane.xlu0 %71
  %v73 = vsel %vm38, %v67, 0.0
  %74 = vadd.xlane.f32.xlu0 %v73
  %v75 = vpop.xlane.xlu0 %74
  %v76 = vsel %vm38, %v68, 0.0
  %77 = vadd.xlane.f32.xlu0 %v76
  %v78 = vpop.xlane.xlu0 %77
  %v79 = vsel %vm38, %v69, 0.0
  %80 = vadd.xlane.f32.xlu0 %v79
  %v81 = vpop.xlane.xlu0 %80
  %v82 = vmul.f32 %v72, %v57
  %v83 = vmul.f32 %v75, %v57
  %v84 = vmul.f32 %v78, %v57
  %v85 = vmul.f32 %v81, %v57
  %v86 = vadd.f32 %v82, 1e-05
  %v87 = vadd.f32 %v83, 1e-05
  %v88 = vadd.f32 %v84, 1e-05
  %v89 = vadd.f32 %v85, 1e-05
  %v90 = vrsqrt.pop %v86
  %v91 = vmul.f32 %v90, %v86
  %v92 = vmul.f32 %v91, %v90
  %v93 = vmul.f32 0.5, %v92
  %v94 = vsub.f32 1.5, %v93
  %v95 = vmul.f32 %v90, %v94
  %vm96 = vweird.f32 %v86
  %vm97 = vweird.f32 %v90
  %vm98 = vmor %vm96, %vm97
  %v99 = vsel %vm98, %v90, %v95
  %v100 = vrsqrt.pop %v87
  %v101 = vmul.f32 %v100, %v87
  %v102 = vmul.f32 %v101, %v100
  %v103 = vmul.f32 0.5, %v102
  %v104 = vsub.f32 1.5, %v103
  %v105 = vmul.f32 %v100, %v104
  %vm106 = vweird.f32 %v87
  %vm107 = vweird.f32 %v100
  %vm108 = vmor %vm106, %vm107
  %v109 = vsel %vm108, %v100, %v105
  %v110 = vrsqrt.pop %v88
  %v111 = vmul.f32 %v110, %v88
  %v112 = vmul.f32 %v111, %v110
  %v113 = vmul.f32 0.5, %v112
  %v114 = vsub.f32 1.5, %v113
  %v115 = vmul.f32 %v110, %v114
  %vm116 = vweird.f32 %v88
  %vm117 = vweird.f32 %v110
  %vm118 = vmor %vm116, %vm117
  %v119 = vsel %vm118, %v110, %v115
  %v120 = vrsqrt.pop %v89
  %v121 = vmul.f32 %v120, %v89
  %v122 = vmul.f32 %v121, %v120
  %v123 = vmul.f32 0.5, %v122
  %v124 = vsub.f32 1.5, %v123
  %v125 = vmul.f32 %v120, %v124
  %vm126 = vweird.f32 %v89
  %vm127 = vweird.f32 %v120
  %vm128 = vmor %vm126, %vm127
  %v129 = vsel %vm128, %v120, %v125
  %v130 = vmul.f32 %v62, %v99
  %v131 = vmul.f32 %v63, %v109
  %v132 = vmul.f32 %v64, %v119
  %v133 = vmul.f32 %v65, %v129
  %v135 = vperm.slane %v36, 0
  %v137 = vmul.f32 %v130, %v135
  %v138 = vmul.f32 %v131, %v135
  %v139 = vmul.f32 %v132, %v135
  %v140 = vmul.f32 %v133, %v135
  %v142 = vperm.slane %v37, 0
  %v144 = vadd.f32 %v137, %v142
  %v145 = vadd.f32 %v138, %v142
  %v146 = vadd.f32 %v139, %v142
  %v147 = vadd.f32 %v140, %v142
  %v148 = vld [vmem:[%s1] sm:$0xff]
  %v149 = vld [vmem:[%s1 + $0x8] sm:$0xff]
  %v150 = vld [vmem:[%s1 + $0x10] sm:$0xff]
  %v151 = vld [vmem:[%s1 + $0x18] sm:$0xff]
  %v152 = vadd.f32 %v144, %v148
  %v153 = vadd.f32 %v145, %v149
  %v154 = vadd.f32 %v146, %v150
  %v155 = vadd.f32 %v147, %v151
  %v156 = vpack.c.bf16 %v153, %v152
  %v157 = vpack.c.bf16 %v155, %v154
  %v158 = vld [vmem:[%s4] sm:$0xf]
  %v159 = vld [vmem:[%s4 + $0x4] sm:$0xf]
  %v160 = vld [vmem:[%s4 + $0x8] sm:$0xf]
  %v161 = vld [vmem:[%s4 + $0xc] sm:$0xf]
  %v162 = vld [vmem:[%s5] sm:$0x1]
  %v164 = vperm.slane %v162, 0
  %v170 = vunpack.c.l.b16 %v158
  %v171 = vunpack.c.l.b16 %v159
  %v172 = vunpack.c.l.b16 %v160
  %v173 = vunpack.c.l.b16 %v161
  %v174 = vpack.c.b16 %v171, %v170
  %v175 = vpack.c.b16 %v173, %v172
  %v179 = vsel %vm38, %v156, 0
  %v182 = vsel %vm38, %v157, 0
  %184 = vmatpush.bf16.msra.mxu0 0
  %185 = vmatpush.bf16.msra.mxu0 0
  %186 = vmatpush.bf16.msra.mxu0 0
  %187 = vmatpush.bf16.msra.mxu0 0
  %188 = vmatpush.bf16.msra.mxu0 0
  %189 = vmatpush.bf16.msra.mxu0 0
  %190 = vmatpush.bf16.msra.mxu0 %v175
  %191 = vmatpush.bf16.msra.mxu0 %v174
  %192 = vmatmul.bf16.gmra.mxu0 %v179
  %v193 = vpop.f32.mrf.mxu0
  %v194 = vadd.f32 %v164, %v193
  %v195 = vpop.f32.mrf.mxu0
  %v196 = vadd.f32 %v164, %v195
  %197 = vmatmul.bf16.gmra.mxu0 %v182
  %v198 = vpop.f32.mrf.mxu0
  %v199 = vadd.f32 %v164, %v198
  %v200 = vpop.f32.mrf.mxu0
  %v201 = vadd.f32 %v164, %v200
  %202 = vdwg.mxu0
  %v203 = vpack.c.bf16 %v145, %v144
  %v204 = vpack.c.bf16 %v147, %v146
  %v205 = vld [vmem:[%s6] sm:$0xf]
  %v206 = vld [vmem:[%s6 + $0x4] sm:$0xf]
  %v207 = vld [vmem:[%s6 + $0x8] sm:$0xf]
  %v208 = vld [vmem:[%s6 + $0xc] sm:$0xf]
  %v209 = vld [vmem:[%s7] sm:$0x1]
  %v211 = vperm.slane %v209, 0
  %v217 = vunpack.c.l.b16 %v205
  %v218 = vunpack.c.l.b16 %v206
  %v219 = vunpack.c.l.b16 %v207
  %v220 = vunpack.c.l.b16 %v208
  %v221 = vpack.c.b16 %v218, %v217
  %v222 = vpack.c.b16 %v220, %v219
  %v226 = vsel %vm38, %v203, 0
  %v229 = vsel %vm38, %v204, 0
  %231 = vmatpush.bf16.msra.mxu0 0
  %232 = vmatpush.bf16.msra.mxu0 0
  %233 = vmatpush.bf16.msra.mxu0 0
  %234 = vmatpush.bf16.msra.mxu0 0
  %235 = vmatpush.bf16.msra.mxu0 0
  %236 = vmatpush.bf16.msra.mxu0 0
  %237 = vmatpush.bf16.msra.mxu0 %v222
  %238 = vmatpush.bf16.msra.mxu0 %v221
  %239 = vmatmul.bf16.gmra.mxu0 %v226
  %v240 = vpop.f32.mrf.mxu0
  %v241 = vadd.f32 %v211, %v240
  %v242 = vpop.f32.mrf.mxu0
  %v243 = vadd.f32 %v211, %v242
  %244 = vmatmul.bf16.gmra.mxu0 %v229
  %v245 = vpop.f32.mrf.mxu0
  %v246 = vadd.f32 %v211, %v245
  %v247 = vpop.f32.mrf.mxu0
  %v248 = vadd.f32 %v211, %v247
  %249 = vdwg.mxu0
  %v250 = vpack.c.bf16 %v194, %v194
  %v251 = vpack.c.bf16 %v196, %v196
  %v252 = vpack.c.bf16 %v199, %v199
  %v253 = vpack.c.bf16 %v201, %v201
  %vm254 = vcmask 519168
  %255 = vst.msk [vmem:[%s8] sm:$0xf] %vm254, %v250
  %256 = vst.msk [vmem:[%s8 + $0x4] sm:$0xf] %vm254, %v251
  %257 = vst.msk [vmem:[%s8 + $0x8] sm:$0xf] %vm254, %v252
  %258 = vst.msk [vmem:[%s8 + $0xc] sm:$0xf] %vm254, %v253
  %v259 = vpack.c.bf16 %v241, %v241
  %v260 = vpack.c.bf16 %v243, %v243
  %v261 = vpack.c.bf16 %v246, %v246
  %v262 = vpack.c.bf16 %v248, %v248
  %vm263 = vcmask 257024
  %264 = vst.msk [vmem:[%s9] sm:$0xf] %vm263, %v259
  %265 = vst.msk [vmem:[%s9 + $0x4] sm:$0xf] %vm263, %v260
  %266 = vst.msk [vmem:[%s9 + $0x8] sm:$0xf] %vm263, %v261
  %267 = vst.msk [vmem:[%s9 + $0xc] sm:$0xf] %vm263, %v262
  // Predicated region
  $region34: #{transformer_forward.22} parent=0 // pred_check
    _
  $region35: #{transformer_forward.22} parent=0 // pred_check_branch
    %269 = sbr.rel (0) target = $region37
  $region36: #{transformer_forward.22} parent=0 // pred_region
    _
  $region37: #{transformer_forward.22} parent=0 // pred_fallthru
    _
  // Predicated region
  $region38: #{transformer_forward.22} parent=0 // pred_check
    _
  $region39: #{transformer_forward.22} parent=0 // pred_check_branch
    %271 = sbr.rel (0) target = $region41
  $region40: #{transformer_forward.22} parent=0 // pred_region
    _
  $region41: #{transformer_forward.22} parent=0 // pred_fallthru
    _
  // Predicated region
  $region42: #{transformer_forward.22} parent=0 // pred_check
    _
  $region43: #{transformer_forward.22} parent=0 // pred_check_branch
    %273 = sbr.rel (0) target = $region45
  $region44: #{transformer_forward.22} parent=0 // pred_region
    _
  $region45: #{transformer_forward.22} parent=0 // pred_fallthru
    _
  // Predicated region
  $region46: #{transformer_forward.22} parent=0 // pred_check
    _
  $region47: #{transformer_forward.22} parent=0 // pred_check_branch
    %275 = sbr.rel (0) target = $region49
  $region48: #{transformer_forward.22} parent=0 // pred_region
    _
  $region49: #{transformer_forward.22} parent=0 // pred_fallthru
    _

// kernel: transformer_forward.24
$region0: #{transformer_forward.24}
  #allocation0 [shape = 'u32[]', space=smem, size = 0x4, offset = 0x4, fixed_abs, tag = 'smem constant byte address 0x4 - core index']
  #allocation1 [shape = 'u32[72,128]{1,0:T(1,128)}', space=vmem, size = 0x9000, scoped, tag = 'internal scratch']
  %s0 = inlined_call_operand.vmem [shape: f32[32,32], index: 0, kind: input, shape index: {}]
  %s1 = inlined_call_operand.vmem [shape: f32[1,32], index: 1, kind: input, shape index: {}]
  %s2 = inlined_call_operand.hbm [shape: f32[1,32], index: 2, kind: input, shape index: {}]
  %s3 = inlined_call_operand.vmem [shape: bf16[32,64], index: 3, kind: input, shape index: {}]
  %s4 = inlined_call_operand.hbm [shape: f32[1,64], index: 4, kind: input, shape index: {}]
  %s5 = inlined_call_operand.vmem [shape: bf16[64,32], index: 5, kind: input, shape index: {}]
  %s6 = inlined_call_operand.hbm [shape: f32[1,32], index: 6, kind: input, shape index: {}]
  %s7 = inlined_call_operand.vmem [shape: f32[32,32], index: 7, kind: output, shape index: {}]
  %s8 = sld [smem:[#allocation0]]
  $region50: #{transformer_forward.24} parent=0
    _
  %s10 = ssub.s32 1, %s8
  %s11 = scalar_select 0, %s10, %s8
  $region1: #{transformer_forward.24} parent=0
    #allocation2 [shape = 'u8[512]{0}', space=vmem, size = 0x400, scoped, tag = 'input window, operand 2, single buffered']
    #allocation3 [shape = 's32[1]{0}', space=sflag, size = 0x4, scoped, tag = 'scoped memory for transformer_forward.24']
    #allocation4 [shape = 'u8[512]{0}', space=vmem, size = 0x400, scoped, tag = 'input window, operand 4, single buffered']
    #allocation5 [shape = 's32[1]{0}', space=sflag, size = 0x4, scoped, tag = 'scoped memory for transformer_forward.24']
    #allocation6 [shape = 'u8[512]{0}', space=vmem, size = 0x400, scoped, tag = 'input window, operand 6, single buffered']
    %12 = vsyncpa [#allocation3], 0
    %13 = vsyncpa [#allocation5], 0
    // Predicated region
    $region2: #{transformer_forward.24} parent=1 // pred_check
      _
    $region3: #{transformer_forward.24} parent=1 // pred_check_branch
      %15 = sbr.rel (0) target = $region5
    $region4: #{transformer_forward.24} parent=1 // pred_region
      _
    $region5: #{transformer_forward.24} parent=1 // pred_fallthru
      _
    // Predicated region
    $region6: #{transformer_forward.24} parent=1 // pred_check
      _
    $region7: #{transformer_forward.24} parent=1 // pred_check_branch
      %17 = sbr.rel (0) target = $region9
    $region8: #{transformer_forward.24} parent=1 // pred_region
      _
    $region9: #{transformer_forward.24} parent=1 // pred_fallthru
      _
    // Predicated region
    $region10: #{transformer_forward.24} parent=1 // pred_check
      _
    $region11: #{transformer_forward.24} parent=1 // pred_check_branch
      %19 = sbr.rel (0) target = $region13
    $region12: #{transformer_forward.24} parent=1 // pred_region
      %21 = vsyncadd [#allocation3], 0
      %s23 = sshll.u32 %s2, 4
      %s24 = int_to_ptr.hbm [resolvable:$true] %s23
      %s25 = sshll.u32 [#allocation2], 4
      %s26 = int_to_ptr.vmem [resolvable:$true] %s25
      %28 = dma.hbm_to_vmem [thread:$0]  %s24, 16, %s26, [#allocation3]
    $region13: #{transformer_forward.24} parent=1 // pred_fallthru
      _
    // Predicated region
    $region14: #{transformer_forward.24} parent=1 // pred_check
      _
    $region15: #{transformer_forward.24} parent=1 // pred_check_branch
      %30 = sbr.rel (0) target = $region17
    $region16: #{transformer_forward.24} parent=1 // pred_region
      _
    $region17: #{transformer_forward.24} parent=1 // pred_fallthru
      _
    // Predicated region
    $region18: #{transformer_forward.24} parent=1 // pred_check
      _
    $region19: #{transformer_forward.24} parent=1 // pred_check_branch
      %32 = sbr.rel (0) target = $region21
    $region20: #{transformer_forward.24} parent=1 // pred_region
      %34 = vsyncadd [#allocation5], 0
      %s36 = sshll.u32 %s4, 4
      %s37 = int_to_ptr.hbm [resolvable:$true] %s36
      %s38 = sshll.u32 [#allocation4], 4
      %s39 = int_to_ptr.vmem [resolvable:$true] %s38
      %41 = dma.hbm_to_vmem [thread:$0]  %s37, 16, %s39, [#allocation5]
    $region21: #{transformer_forward.24} parent=1 // pred_fallthru
      _
    // Predicated region
    $region22: #{transformer_forward.24} parent=1 // pred_check
      _
    $region23: #{transformer_forward.24} parent=1 // pred_check_branch
      %43 = sbr.rel (0) target = $region25
    $region24: #{transformer_forward.24} parent=1 // pred_region
      _
    $region25: #{transformer_forward.24} parent=1 // pred_fallthru
      _
    // Predicated region
    $region26: #{transformer_forward.24} parent=1 // pred_check
      _
    $region27: #{transformer_forward.24} parent=1 // pred_check_branch
      %45 = sbr.rel (0) target = $region29
    $region28: #{transformer_forward.24} parent=1 // pred_region
      %47 = vsyncadd [#allocation5], 0
      %s49 = sshll.u32 %s6, 4
      %s50 = int_to_ptr.hbm [resolvable:$true] %s49
      %s51 = sshll.u32 [#allocation6], 4
      %s52 = int_to_ptr.vmem [resolvable:$true] %s51
      %54 = dma.hbm_to_vmem [thread:$0]  %s50, 16, %s52, [#allocation5]
    $region29: #{transformer_forward.24} parent=1 // pred_fallthru
      _
    // Predicated region
    $region30: #{transformer_forward.24} parent=1 // pred_check
      _
    $region31: #{transformer_forward.24} parent=1 // pred_check_branch
      %56 = sbr.rel (0) target = $region33
    $region32: #{transformer_forward.24} parent=1 // pred_region
      %58 = dma.done [#allocation3], 16
    $region33: #{transformer_forward.24} parent=1 // pred_fallthru
      _
    // Predicated region
    $region34: #{transformer_forward.24} parent=1 // pred_check
      _
    $region35: #{transformer_forward.24} parent=1 // pred_check_branch
      %60 = sbr.rel (0) target = $region37
    $region36: #{transformer_forward.24} parent=1 // pred_region
      %62 = dma.done [#allocation5], 16
    $region37: #{transformer_forward.24} parent=1 // pred_fallthru
      _
    // Predicated region
    $region38: #{transformer_forward.24} parent=1 // pred_check
      _
    $region39: #{transformer_forward.24} parent=1 // pred_check_branch
      %64 = sbr.rel (0) target = $region41
    $region40: #{transformer_forward.24} parent=1 // pred_region
      %66 = dma.done [#allocation5], 16
    $region41: #{transformer_forward.24} parent=1 // pred_fallthru
      _
    %v68 = vld [vmem:[%s0] sm:$0xff]
    %v69 = vld [vmem:[%s0 + $0x8] sm:$0xff]
    %v70 = vld [vmem:[%s0 + $0x10] sm:$0xff]
    %v71 = vld [vmem:[%s0 + $0x18] sm:$0xff]
    %v72 = vld [vmem:[%s1] sm:$0x1]
    %v73 = vld [vmem:[#allocation2] sm:$0x1]
    %vm74 = vcmask 261120
    %v75 = vsel %vm74, %v68, 0.0
    %76 = vadd.xlane.f32.xlu0 %v75
    %v77 = vpop.xlane.xlu0 %76
    %v78 = vsel %vm74, %v69, 0.0
    %79 = vadd.xlane.f32.xlu0 %v78
    %v80 = vpop.xlane.xlu0 %79
    %v81 = vsel %vm74, %v70, 0.0
    %82 = vadd.xlane.f32.xlu0 %v81
    %v83 = vpop.xlane.xlu0 %82
    %v84 = vsel %vm74, %v71, 0.0
    %85 = vadd.xlane.f32.xlu0 %v84
    %v86 = vpop.xlane.xlu0 %85
    %v87 = vrcp.pop 32.0
    %v88 = vmul.f32 32.0, %v87
    %v89 = vsub.f32 1.0, %v88
    %v90 = vmul.f32 %v87, %v89
    %v91 = vadd.f32 %v87, %v90
    %vm92 = vweird.f32 %v87
    %v93 = vsel %vm92, %v87, %v91
    %v94 = vmul.f32 %v77, %v93
    %v95 = vmul.f32 %v80, %v93
    %v96 = vmul.f32 %v83, %v93
    %v97 = vmul.f32 %v86, %v93
    %v98 = vsub.f32 %v68, %v94
    %v99 = vsub.f32 %v69, %v95
    %v100 = vsub.f32 %v70, %v96
    %v101 = vsub.f32 %v71, %v97
    %v102 = vmul.f32 %v98, %v98
    %v103 = vmul.f32 %v99, %v99
    %v104 = vmul.f32 %v100, %v100
    %v105 = vmul.f32 %v101, %v101
    %v106 = vsel %vm74, %v102, 0.0
    %107 = vadd.xlane.f32.xlu0 %v106
    %v108 = vpop.xlane.xlu0 %107
    %v109 = vsel %vm74, %v103, 0.0
    %110 = vadd.xlane.f32.xlu0 %v109
    %v111 = vpop.xlane.xlu0 %110
    %v112 = vsel %vm74, %v104, 0.0
    %113 = vadd.xlane.f32.xlu0 %v112
    %v114 = vpop.xlane.xlu0 %113
    %v115 = vsel %vm74, %v105, 0.0
    %116 = vadd.xlane.f32.xlu0 %v115
    %v117 = vpop.xlane.xlu0 %116
    %v118 = vmul.f32 %v108, %v93
    %v119 = vmul.f32 %v111, %v93
    %v120 = vmul.f32 %v114, %v93
    %v121 = vmul.f32 %v117, %v93
    %v122 = vadd.f32 %v118, 1e-05
    %v123 = vadd.f32 %v119, 1e-05
    %v124 = vadd.f32 %v120, 1e-05
    %v125 = vadd.f32 %v121, 1e-05
    %v126 = vrsqrt.pop %v122
    %v127 = vmul.f32 %v126, %v122
    %v128 = vmul.f32 %v127, %v126
    %v129 = vmul.f32 0.5, %v128
    %v130 = vsub.f32 1.5, %v129
    %v131 = vmul.f32 %v126, %v130
    %vm132 = vweird.f32 %v122
    %vm133 = vweird.f32 %v126
    %vm134 = vmor %vm132, %vm133
    %v135 = vsel %vm134, %v126, %v131
    %v136 = vrsqrt.pop %v123
    %v137 = vmul.f32 %v136, %v123
    %v138 = vmul.f32 %v137, %v136
    %v139 = vmul.f32 0.5, %v138
    %v140 = vsub.f32 1.5, %v139
    %v141 = vmul.f32 %v136, %v140
    %vm142 = vweird.f32 %v123
    %vm143 = vweird.f32 %v136
    %vm144 = vmor %vm142, %vm143
    %v145 = vsel %vm144, %v136, %v141
    %v146 = vrsqrt.pop %v124
    %v147 = vmul.f32 %v146, %v124
    %v148 = vmul.f32 %v147, %v146
    %v149 = vmul.f32 0.5, %v148
    %v150 = vsub.f32 1.5, %v149
    %v151 = vmul.f32 %v146, %v150
    %vm152 = vweird.f32 %v124
    %vm153 = vweird.f32 %v146
    %vm154 = vmor %vm152, %vm153
    %v155 = vsel %vm154, %v146, %v151
    %v156 = vrsqrt.pop %v125
    %v157 = vmul.f32 %v156, %v125
    %v158 = vmul.f32 %v157, %v156
    %v159 = vmul.f32 0.5, %v158
    %v160 = vsub.f32 1.5, %v159
    %v161 = vmul.f32 %v156, %v160
    %vm162 = vweird.f32 %v125
    %vm163 = vweird.f32 %v156
    %vm164 = vmor %vm162, %vm163
    %v165 = vsel %vm164, %v156, %v161
    %v166 = vmul.f32 %v98, %v135
    %v167 = vmul.f32 %v99, %v145
    %v168 = vmul.f32 %v100, %v155
    %v169 = vmul.f32 %v101, %v165
    %v171 = vperm.slane %v72, 0
    %v173 = vmul.f32 %v166, %v171
    %v174 = vmul.f32 %v167, %v171
    %v175 = vmul.f32 %v168, %v171
    %v176 = vmul.f32 %v169, %v171
    %v178 = vperm.slane %v73, 0
    %v180 = vadd.f32 %v173, %v178
    %v181 = vadd.f32 %v174, %v178
    %v182 = vadd.f32 %v175, %v178
    %v183 = vadd.f32 %v176, %v178
    %v184 = vpack.c.bf16 %v181, %v180
    %v185 = vpack.c.bf16 %v183, %v182
    %v186 = vld [vmem:[%s3] sm:$0xf]
    %v187 = vld [vmem:[%s3 + $0x4] sm:$0xf]
    %v188 = vld [vmem:[%s3 + $0x8] sm:$0xf]
    %v189 = vld [vmem:[%s3 + $0xc] sm:$0xf]
    %v190 = vld [vmem:[#allocation4] sm:$0x1]
    %v192 = vperm.slane %v190, 0
    %v198 = vunpack.c.l.b16 %v186
    %v199 = vunpack.c.l.b16 %v187
    %v200 = vunpack.c.l.b16 %v188
    %v201 = vunpack.c.l.b16 %v189
    %v202 = vpack.c.b16 %v199, %v198
    %v203 = vpack.c.b16 %v201, %v200
    %v207 = vsel %vm74, %v184, 0
    %v210 = vsel %vm74, %v185, 0
    %212 = vmatpush.bf16.msra.mxu0 0
    %213 = vmatpush.bf16.msra.mxu0 0
    %214 = vmatpush.bf16.msra.mxu0 0
    %215 = vmatpush.bf16.msra.mxu0 0
    %216 = vmatpush.bf16.msra.mxu0 0
    %217 = vmatpush.bf16.msra.mxu0 0
    %218 = vmatpush.bf16.msra.mxu0 %v203
    %219 = vmatpush.bf16.msra.mxu0 %v202
    %220 = vmatmul.bf16.gmra.mxu0 %v207
    %v221 = vpop.f32.mrf.mxu0
    %v222 = vadd.f32 %v192, %v221
    %v223 = vpop.f32.mrf.mxu0
    %v224 = vadd.f32 %v192, %v223
    %225 = vmatmul.bf16.gmra.mxu0 %v210
    %v226 = vpop.f32.mrf.mxu0
    %v227 = vadd.f32 %v192, %v226
    %v228 = vpop.f32.mrf.mxu0
    %v229 = vadd.f32 %v192, %v228
    %230 = vdwg.mxu0
    %v231 = vmax.f32 %v222, 0.0
    %v232 = vmax.f32 %v224, 0.0
    %v233 = vmax.f32 %v227, 0.0
    %v234 = vmax.f32 %v229, 0.0
    %v235 = vpack.c.bf16 %v232, %v231
    %v236 = vpack.c.bf16 %v234, %v233
    %v237 = vld [vmem:[%s5] sm:$0xf]
    %v238 = vld [vmem:[%s5 + $0x4] sm:$0xf]
    %v239 = vld [vmem:[%s5 + $0x8] sm:$0xf]
    %v240 = vld [vmem:[%s5 + $0xc] sm:$0xf]
    %v241 = vld [vmem:[%s5 + $0x10] sm:$0xf]
    %v242 = vld [vmem:[%s5 + $0x14] sm:$0xf]
    %v243 = vld [vmem:[%s5 + $0x18] sm:$0xf]
    %v244 = vld [vmem:[%s5 + $0x1c] sm:$0xf]
    %v245 = vld [vmem:[#allocation6] sm:$0x1]
    %v247 = vperm.slane %v245, 0
    %v257 = vunpack.c.l.b16 %v237
    %v258 = vunpack.c.l.b16 %v238
    %v259 = vunpack.c.l.b16 %v239
    %v260 = vunpack.c.l.b16 %v240
    %v261 = vunpack.c.l.b16 %v241
    %v262 = vunpack.c.l.b16 %v242
    %v263 = vunpack.c.l.b16 %v243
    %v264 = vunpack.c.l.b16 %v244
    %v265 = vpack.c.b16 %v258, %v257
    %v266 = vpack.c.b16 %v260, %v259
    %v267 = vpack.c.b16 %v262, %v261
    %v268 = vpack.c.b16 %v264, %v263
    %vm273 = vcmask 523264
    %v275 = vsel %vm273, %v235, 0
    %v278 = vsel %vm273, %v236, 0
    %280 = vmatpush.bf16.msra.mxu0 0
    %281 = vmatpush.bf16.msra.mxu0 0
    %282 = vmatpush.bf16.msra.mxu0 0
    %283 = vmatpush.bf16.msra.mxu0 0
    %284 = vmatpush.bf16.msra.mxu0 %v268
    %285 = vmatpush.bf16.msra.mxu0 %v267
    %286 = vmatpush.bf16.msra.mxu0 %v266
    %287 = vmatpush.bf16.msra.mxu0 %v265
    %288 = vmatmul.bf16.gmra.mxu0 %v275
    %v289 = vpop.f32.mrf.mxu0
    %v290 = vadd.f32 %v247, %v289
    %v291 = vpop.f32.mrf.mxu0
    %v292 = vadd.f32 %v247, %v291
    %293 = vmatmul.bf16.gmra.mxu0 %v278
    %v294 = vpop.f32.mrf.mxu0
    %v295 = vadd.f32 %v247, %v294
    %v296 = vpop.f32.mrf.mxu0
    %v297 = vadd.f32 %v247, %v296
    %298 = vdwg.mxu0
    %v299 = vadd.f32 %v68, %v290
    %v300 = vadd.f32 %v69, %v292
    %v301 = vadd.f32 %v70, %v295
    %v302 = vadd.f32 %v71, %v297
    %303 = vst.msk [vmem:[%s7] sm:$0xff] %vm74, %v299
    %304 = vst.msk [vmem:[%s7 + $0x8] sm:$0xff] %vm74, %v300
    %305 = vst.msk [vmem:[%s7 + $0x10] sm:$0xff] %vm74, %v301
    %306 = vst.msk [vmem:[%s7 + $0x18] sm:$0xff] %vm74, %v302
    // Predicated region
    $region42: #{transformer_forward.24} parent=1 // pred_check
      _
    $region43: #{transformer_forward.24} parent=1 // pred_check_branch
      %308 = sbr.rel (0) target = $region45
    $region44: #{transformer_forward.24} parent=1 // pred_region
      _
    $region45: #{transformer_forward.24} parent=1 // pred_fallthru
      _
    // Predicated region
    $region46: #{transformer_forward.24} parent=1 // pred_check
      _
    $region47: #{transformer_forward.24} parent=1 // pred_check_branch
      %310 = sbr.rel (0) target = $region49
    $region48: #{transformer_forward.24} parent=1 // pred_region
      _
    $region49: #{transformer_forward.24} parent=1 // pred_fallthru
      _
    %311 = vsyncpa [#allocation3], 1
    %312 = vsyncpa [#allocation5], 1

// kernel: transformer_forward.25
$region0: #{transformer_forward.25}
  #allocation0 [shape = 'u32[]', space=smem, size = 0x4, offset = 0x4, fixed_abs, tag = 'smem constant byte address 0x4 - core index']
  #allocation1 [shape = 'u32[72,128]{1,0:T(1,128)}', space=vmem, size = 0x9000, scoped, tag = 'internal scratch']
  %s0 = inlined_call_operand.vmem [shape: f32[32,32], index: 0, kind: input, shape index: {}]
  %s1 = inlined_call_operand.vmem [shape: f32[32,32], index: 1, kind: input, shape index: {}]
  %s2 = inlined_call_operand.hbm [shape: f32[1,32], index: 2, kind: input, shape index: {}]
  %s3 = inlined_call_operand.hbm [shape: f32[1,32], index: 3, kind: input, shape index: {}]
  %s4 = inlined_call_operand.vmem [shape: bf16[32,64], index: 4, kind: input, shape index: {}]
  %s5 = inlined_call_operand.hbm [shape: f32[1,64], index: 5, kind: input, shape index: {}]
  %s6 = inlined_call_operand.vmem [shape: bf16[32,32], index: 6, kind: input, shape index: {}]
  %s7 = inlined_call_operand.hbm [shape: f32[1,32], index: 7, kind: input, shape index: {}]
  %s8 = inlined_call_operand.vmem [shape: bf16[32,64], index: 8, kind: output, shape index: {0}]
  %s9 = inlined_call_operand.vmem [shape: bf16[32,32], index: 9, kind: output, shape index: {1}]
  %10 = xla_tuple %s8, %s9
  %s11 = sld [smem:[#allocation0]]
  $region66: #{transformer_forward.25} parent=0
    _
  %s13 = ssub.s32 1, %s11
  %s14 = scalar_select 0, %s13, %s11
  $region1: #{transformer_forward.25} parent=0
    #allocation2 [shape = 'u8[512]{0}', space=vmem, size = 0x400, scoped, tag = 'input window, operand 2, single buffered']
    #allocation3 [shape = 's32[1]{0}', space=sflag, size = 0x4, scoped, tag = 'scoped memory for transformer_forward.25']
    #allocation4 [shape = 'u8[512]{0}', space=vmem, size = 0x400, scoped, tag = 'input window, operand 3, single buffered']
    #allocation5 [shape = 's32[1]{0}', space=sflag, size = 0x4, scoped, tag = 'scoped memory for transformer_forward.25']
    #allocation6 [shape = 'u8[512]{0}', space=vmem, size = 0x400, scoped, tag = 'input window, operand 5, single buffered']
    #allocation7 [shape = 'u8[512]{0}', space=vmem, size = 0x400, scoped, tag = 'input window, operand 7, single buffered']
    #allocation8 [shape = 's32[1]{0}', space=sflag, size = 0x4, scoped, tag = 'scoped memory for transformer_forward.25']
    %15 = vsyncpa [#allocation3], 0
    %16 = vsyncpa [#allocation5], 0
    %17 = vsyncpa [#allocation8], 0
    // Predicated region
    $region2: #{transformer_forward.25} parent=1 // pred_check
      _
    $region3: #{transformer_forward.25} parent=1 // pred_check_branch
      %19 = sbr.rel (0) target = $region5
    $region4: #{transformer_forward.25} parent=1 // pred_region
      _
    $region5: #{transformer_forward.25} parent=1 // pred_fallthru
      _
    // Predicated region
    $region6: #{transformer_forward.25} parent=1 // pred_check
      _
    $region7: #{transformer_forward.25} parent=1 // pred_check_branch
      %21 = sbr.rel (0) target = $region9
    $region8: #{transformer_forward.25} parent=1 // pred_region
      _
    $region9: #{transformer_forward.25} parent=1 // pred_fallthru
      _
    // Predicated region
    $region10: #{transformer_forward.25} parent=1 // pred_check
      _
    $region11: #{transformer_forward.25} parent=1 // pred_check_branch
      %23 = sbr.rel (0) target = $region13
    $region12: #{transformer_forward.25} parent=1 // pred_region
      %25 = vsyncadd [#allocation3], 0
      %s27 = sshll.u32 %s2, 4
      %s28 = int_to_ptr.hbm [resolvable:$true] %s27
      %s29 = sshll.u32 [#allocation2], 4
      %s30 = int_to_ptr.vmem [resolvable:$true] %s29
      %32 = dma.hbm_to_vmem [thread:$0]  %s28, 16, %s30, [#allocation3]
    $region13: #{transformer_forward.25} parent=1 // pred_fallthru
      _
    // Predicated region
    $region14: #{transformer_forward.25} parent=1 // pred_check
      _
    $region15: #{transformer_forward.25} parent=1 // pred_check_branch
      %34 = sbr.rel (0) target = $region17
    $region16: #{transformer_forward.25} parent=1 // pred_region
      %36 = vsyncadd [#allocation5], 0
      %s38 = sshll.u32 %s3, 4
      %s39 = int_to_ptr.hbm [resolvable:$true] %s38
      %s40 = sshll.u32 [#allocation4], 4
      %s41 = int_to_ptr.vmem [resolvable:$true] %s40
      %43 = dma.hbm_to_vmem [thread:$0]  %s39, 16, %s41, [#allocation5]
    $region17: #{transformer_forward.25} parent=1 // pred_fallthru
      _
    // Predicated region
    $region18: #{transformer_forward.25} parent=1 // pred_check
      _
    $region19: #{transformer_forward.25} parent=1 // pred_check_branch
      %45 = sbr.rel (0) target = $region21
    $region20: #{transformer_forward.25} parent=1 // pred_region
      _
    $region21: #{transformer_forward.25} parent=1 // pred_fallthru
      _
    // Predicated region
    $region22: #{transformer_forward.25} parent=1 // pred_check
      _
    $region23: #{transformer_forward.25} parent=1 // pred_check_branch
      %47 = sbr.rel (0) target = $region25
    $region24: #{transformer_forward.25} parent=1 // pred_region
      %49 = vsyncadd [#allocation5], 0
      %s51 = sshll.u32 %s5, 4
      %s52 = int_to_ptr.hbm [resolvable:$true] %s51
      %s53 = sshll.u32 [#allocation6], 4
      %s54 = int_to_ptr.vmem [resolvable:$true] %s53
      %56 = dma.hbm_to_vmem [thread:$0]  %s52, 16, %s54, [#allocation5]
    $region25: #{transformer_forward.25} parent=1 // pred_fallthru
      _
    // Predicated region
    $region26: #{transformer_forward.25} parent=1 // pred_check
      _
    $region27: #{transformer_forward.25} parent=1 // pred_check_branch
      %58 = sbr.rel (0) target = $region29
    $region28: #{transformer_forward.25} parent=1 // pred_region
      _
    $region29: #{transformer_forward.25} parent=1 // pred_fallthru
      _
    // Predicated region
    $region30: #{transformer_forward.25} parent=1 // pred_check
      _
    $region31: #{transformer_forward.25} parent=1 // pred_check_branch
      %60 = sbr.rel (0) target = $region33
    $region32: #{transformer_forward.25} parent=1 // pred_region
      %62 = vsyncadd [#allocation8], 0
      %s64 = sshll.u32 %s7, 4
      %s65 = int_to_ptr.hbm [resolvable:$true] %s64
      %s66 = sshll.u32 [#allocation7], 4
      %s67 = int_to_ptr.vmem [resolvable:$true] %s66
      %69 = dma.hbm_to_vmem [thread:$0]  %s65, 16, %s67, [#allocation8]
    $region33: #{transformer_forward.25} parent=1 // pred_fallthru
      _
    // Predicated region
    $region34: #{transformer_forward.25} parent=1 // pred_check
      _
    $region35: #{transformer_forward.25} parent=1 // pred_check_branch
      %71 = sbr.rel (0) target = $region37
    $region36: #{transformer_forward.25} parent=1 // pred_region
      %73 = dma.done [#allocation3], 16
    $region37: #{transformer_forward.25} parent=1 // pred_fallthru
      _
    // Predicated region
    $region38: #{transformer_forward.25} parent=1 // pred_check
      _
    $region39: #{transformer_forward.25} parent=1 // pred_check_branch
      %75 = sbr.rel (0) target = $region41
    $region40: #{transformer_forward.25} parent=1 // pred_region
      %77 = dma.done [#allocation5], 16
    $region41: #{transformer_forward.25} parent=1 // pred_fallthru
      _
    // Predicated region
    $region42: #{transformer_forward.25} parent=1 // pred_check
      _
    $region43: #{transformer_forward.25} parent=1 // pred_check_branch
      %79 = sbr.rel (0) target = $region45
    $region44: #{transformer_forward.25} parent=1 // pred_region
      %81 = dma.done [#allocation5], 16
    $region45: #{transformer_forward.25} parent=1 // pred_fallthru
      _
    // Predicated region
    $region46: #{transformer_forward.25} parent=1 // pred_check
      _
    $region47: #{transformer_forward.25} parent=1 // pred_check_branch
      %83 = sbr.rel (0) target = $region49
    $region48: #{transformer_forward.25} parent=1 // pred_region
      %85 = dma.done [#allocation8], 16
    $region49: #{transformer_forward.25} parent=1 // pred_fallthru
      _
    %v87 = vld [vmem:[%s0] sm:$0xff]
    %v88 = vld [vmem:[%s0 + $0x8] sm:$0xff]
    %v89 = vld [vmem:[%s0 + $0x10] sm:$0xff]
    %v90 = vld [vmem:[%s0 + $0x18] sm:$0xff]
    %v91 = vld [vmem:[#allocation2] sm:$0x1]
    %v92 = vld [vmem:[#allocation4] sm:$0x1]
    %vm93 = vcmask 261120
    %v94 = vsel %vm93, %v87, 0.0
    %95 = vadd.xlane.f32.xlu0 %v94
    %v96 = vpop.xlane.xlu0 %95
    %v97 = vsel %vm93, %v88, 0.0
    %98 = vadd.xlane.f32.xlu0 %v97
    %v99 = vpop.xlane.xlu0 %98
    %v100 = vsel %vm93, %v89, 0.0
    %101 = vadd.xlane.f32.xlu0 %v100
    %v102 = vpop.xlane.xlu0 %101
    %v103 = vsel %vm93, %v90, 0.0
    %104 = vadd.xlane.f32.xlu0 %v103
    %v105 = vpop.xlane.xlu0 %104
    %v106 = vrcp.pop 32.0
    %v107 = vmul.f32 32.0, %v106
    %v108 = vsub.f32 1.0, %v107
    %v109 = vmul.f32 %v106, %v108
    %v110 = vadd.f32 %v106, %v109
    %vm111 = vweird.f32 %v106
    %v112 = vsel %vm111, %v106, %v110
    %v113 = vmul.f32 %v96, %v112
    %v114 = vmul.f32 %v99, %v112
    %v115 = vmul.f32 %v102, %v112
    %v116 = vmul.f32 %v105, %v112
    %v117 = vsub.f32 %v87, %v113
    %v118 = vsub.f32 %v88, %v114
    %v119 = vsub.f32 %v89, %v115
    %v120 = vsub.f32 %v90, %v116
    %v121 = vmul.f32 %v117, %v117
    %v122 = vmul.f32 %v118, %v118
    %v123 = vmul.f32 %v119, %v119
    %v124 = vmul.f32 %v120, %v120
    %v125 = vsel %vm93, %v121, 0.0
    %126 = vadd.xlane.f32.xlu0 %v125
    %v127 = vpop.xlane.xlu0 %126
    %v128 = vsel %vm93, %v122, 0.0
    %129 = vadd.xlane.f32.xlu0 %v128
    %v130 = vpop.xlane.xlu0 %129
    %v131 = vsel %vm93, %v123, 0.0
    %132 = vadd.xlane.f32.xlu0 %v131
    %v133 = vpop.xlane.xlu0 %132
    %v134 = vsel %vm93, %v124, 0.0
    %135 = vadd.xlane.f32.xlu0 %v134
    %v136 = vpop.xlane.xlu0 %135
    %v137 = vmul.f32 %v127, %v112
    %v138 = vmul.f32 %v130, %v112
    %v139 = vmul.f32 %v133, %v112
    %v140 = vmul.f32 %v136, %v112
    %v141 = vadd.f32 %v137, 1e-05
    %v142 = vadd.f32 %v138, 1e-05
    %v143 = vadd.f32 %v139, 1e-05
    %v144 = vadd.f32 %v140, 1e-05
    %v145 = vrsqrt.pop %v141
    %v146 = vmul.f32 %v145, %v141
    %v147 = vmul.f32 %v146, %v145
    %v148 = vmul.f32 0.5, %v147
    %v149 = vsub.f32 1.5, %v148
    %v150 = vmul.f32 %v145, %v149
    %vm151 = vweird.f32 %v141
    %vm152 = vweird.f32 %v145
    %vm153 = vmor %vm151, %vm152
    %v154 = vsel %vm153, %v145, %v150
    %v155 = vrsqrt.pop %v142
    %v156 = vmul.f32 %v155, %v142
    %v157 = vmul.f32 %v156, %v155
    %v158 = vmul.f32 0.5, %v157
    %v159 = vsub.f32 1.5, %v158
    %v160 = vmul.f32 %v155, %v159
    %vm161 = vweird.f32 %v142
    %vm162 = vweird.f32 %v155
    %vm163 = vmor %vm161, %vm162
    %v164 = vsel %vm163, %v155, %v160
    %v165 = vrsqrt.pop %v143
    %v166 = vmul.f32 %v165, %v143
    %v167 = vmul.f32 %v166, %v165
    %v168 = vmul.f32 0.5, %v167
    %v169 = vsub.f32 1.5, %v168
    %v170 = vmul.f32 %v165, %v169
    %vm171 = vweird.f32 %v143
    %vm172 = vweird.f32 %v165
    %vm173 = vmor %vm171, %vm172
    %v174 = vsel %vm173, %v165, %v170
    %v175 = vrsqrt.pop %v144
    %v176 = vmul.f32 %v175, %v144
    %v177 = vmul.f32 %v176, %v175
    %v178 = vmul.f32 0.5, %v177
    %v179 = vsub.f32 1.5, %v178
    %v180 = vmul.f32 %v175, %v179
    %vm181 = vweird.f32 %v144
    %vm182 = vweird.f32 %v175
    %vm183 = vmor %vm181, %vm182
    %v184 = vsel %vm183, %v175, %v180
    %v185 = vmul.f32 %v117, %v154
    %v186 = vmul.f32 %v118, %v164
    %v187 = vmul.f32 %v119, %v174
    %v188 = vmul.f32 %v120, %v184
    %v190 = vperm.slane %v91, 0
    %v192 = vmul.f32 %v185, %v190
    %v193 = vmul.f32 %v186, %v190
    %v194 = vmul.f32 %v187, %v190
    %v195 = vmul.f32 %v188, %v190
    %v197 = vperm.slane %v92, 0
    %v199 = vadd.f32 %v192, %v197
    %v200 = vadd.f32 %v193, %v197
    %v201 = vadd.f32 %v194, %v197
    %v202 = vadd.f32 %v195, %v197
    %v203 = vld [vmem:[%s1] sm:$0xff]
    %v204 = vld [vmem:[%s1 + $0x8] sm:$0xff]
    %v205 = vld [vmem:[%s1 + $0x10] sm:$0xff]
    %v206 = vld [vmem:[%s1 + $0x18] sm:$0xff]
    %v207 = vadd.f32 %v199, %v203
    %v208 = vadd.f32 %v200, %v204
    %v209 = vadd.f32 %v201, %v205
    %v210 = vadd.f32 %v202, %v206
    %v211 = vpack.c.bf16 %v208, %v207
    %v212 = vpack.c.bf16 %v210, %v209
    %v213 = vld [vmem:[%s4] sm:$0xf]
    %v214 = vld [vmem:[%s4 + $0x4] sm:$0xf]
    %v215 = vld [vmem:[%s4 + $0x8] sm:$0xf]
    %v216 = vld [vmem:[%s4 + $0xc] sm:$0xf]
    %v217 = vld [vmem:[#allocation6] sm:$0x1]
    %v219 = vperm.slane %v217, 0
    %v225 = vunpack.c.l.b16 %v213
    %v226 = vunpack.c.l.b16 %v214
    %v227 = vunpack.c.l.b16 %v215
    %v228 = vunpack.c.l.b16 %v216
    %v229 = vpack.c.b16 %v226, %v225
    %v230 = vpack.c.b16 %v228, %v227
    %v234 = vsel %vm93, %v211, 0
    %v237 = vsel %vm93, %v212, 0
    %239 = vmatpush.bf16.msra.mxu0 0
    %240 = vmatpush.bf16.msra.mxu0 0
    %241 = vmatpush.bf16.msra.mxu0 0
    %242 = vmatpush.bf16.msra.mxu0 0
    %243 = vmatpush.bf16.msra.mxu0 0
    %244 = vmatpush.bf16.msra.mxu0 0
    %245 = vmatpush.bf16.msra.mxu0 %v230
    %246 = vmatpush.bf16.msra.mxu0 %v229
    %247 = vmatmul.bf16.gmra.mxu0 %v234
    %v248 = vpop.f32.mrf.mxu0
    %v249 = vadd.f32 %v219, %v248
    %v250 = vpop.f32.mrf.mxu0
    %v251 = vadd.f32 %v219, %v250
    %252 = vmatmul.bf16.gmra.mxu0 %v237
    %v253 = vpop.f32.mrf.mxu0
    %v254 = vadd.f32 %v219, %v253
    %v255 = vpop.f32.mrf.mxu0
    %v256 = vadd.f32 %v219, %v255
    %257 = vdwg.mxu0
    %v258 = vpack.c.bf16 %v200, %v199
    %v259 = vpack.c.bf16 %v202, %v201
    %v260 = vld [vmem:[%s6] sm:$0xf]
    %v261 = vld [vmem:[%s6 + $0x4] sm:$0xf]
    %v262 = vld [vmem:[%s6 + $0x8] sm:$0xf]
    %v263 = vld [vmem:[%s6 + $0xc] sm:$0xf]
    %v264 = vld [vmem:[#allocation7] sm:$0x1]
    %v266 = vperm.slane %v264, 0
    %v272 = vunpack.c.l.b16 %v260
    %v273 = vunpack.c.l.b16 %v261
    %v274 = vunpack.c.l.b16 %v262
    %v275 = vunpack.c.l.b16 %v263
    %v276 = vpack.c.b16 %v273, %v272
    %v277 = vpack.c.b16 %v275, %v274
    %v281 = vsel %vm93, %v258, 0
    %v284 = vsel %vm93, %v259, 0
    %286 = vmatpush.bf16.msra.mxu0 0
    %287 = vmatpush.bf16.msra.mxu0 0
    %288 = vmatpush.bf16.msra.mxu0 0
    %289 = vmatpush.bf16.msra.mxu0 0
    %290 = vmatpush.bf16.msra.mxu0 0
    %291 = vmatpush.bf16.msra.mxu0 0
    %292 = vmatpush.bf16.msra.mxu0 %v277
    %293 = vmatpush.bf16.msra.mxu0 %v276
    %294 = vmatmul.bf16.gmra.mxu0 %v281
    %v295 = vpop.f32.mrf.mxu0
    %v296 = vadd.f32 %v266, %v295
    %v297 = vpop.f32.mrf.mxu0
    %v298 = vadd.f32 %v266, %v297
    %299 = vmatmul.bf16.gmra.mxu0 %v284
    %v300 = vpop.f32.mrf.mxu0
    %v301 = vadd.f32 %v266, %v300
    %v302 = vpop.f32.mrf.mxu0
    %v303 = vadd.f32 %v266, %v302
    %304 = vdwg.mxu0
    %v305 = vpack.c.bf16 %v249, %v249
    %v306 = vpack.c.bf16 %v251, %v251
    %v307 = vpack.c.bf16 %v254, %v254
    %v308 = vpack.c.bf16 %v256, %v256
    %vm309 = vcmask 519168
    %310 = vst.msk [vmem:[%s8] sm:$0xf] %vm309, %v305
    %311 = vst.msk [vmem:[%s8 + $0x4] sm:$0xf] %vm309, %v306
    %312 = vst.msk [vmem:[%s8 + $0x8] sm:$0xf] %vm309, %v307
    %313 = vst.msk [vmem:[%s8 + $0xc] sm:$0xf] %vm309, %v308
    %v314 = vpack.c.bf16 %v296, %v296
    %v315 = vpack.c.bf16 %v298, %v298
    %v316 = vpack.c.bf16 %v301, %v301
    %v317 = vpack.c.bf16 %v303, %v303
    %vm318 = vcmask 257024
    %319 = vst.msk [vmem:[%s9] sm:$0xf] %vm318, %v314
    %320 = vst.msk [vmem:[%s9 + $0x4] sm:$0xf] %vm318, %v315
    %321 = vst.msk [vmem:[%s9 + $0x8] sm:$0xf] %vm318, %v316
    %322 = vst.msk [vmem:[%s9 + $0xc] sm:$0xf] %vm318, %v317
    // Predicated region
    $region50: #{transformer_forward.25} parent=1 // pred_check
      _
    $region51: #{transformer_forward.25} parent=1 // pred_check_branch
      %324 = sbr.rel (0) target = $region53
    $region52: #{transformer_forward.25} parent=1 // pred_region
      _
    $region53: #{transformer_forward.25} parent=1 // pred_fallthru
      _
    // Predicated region
    $region54: #{transformer_forward.25} parent=1 // pred_check
      _
    $region55: #{transformer_forward.25} parent=1 // pred_check_branch
      %326 = sbr.rel (0) target = $region57
    $region56: #{transformer_forward.25} parent=1 // pred_region
      _
    $region57: #{transformer_forward.25} parent=1 // pred_fallthru
      _
    // Predicated region
    $region58: #{transformer_forward.25} parent=1 // pred_check
      _
    $region59: #{transformer_forward.25} parent=1 // pred_check_branch
      %328 = sbr.rel (0) target = $region61
    $region60: #{transformer_forward.25} parent=1 // pred_region
      _
    $region61: #{transformer_forward.25} parent=1 // pred_fallthru
      _
    // Predicated region
    $region62: #{transformer_forward.25} parent=1 // pred_check
      _
    $region63: #{transformer_forward.25} parent=1 // pred_check_branch
      %330 = sbr.rel (0) target = $region65
    $region64: #{transformer_forward.25} parent=1 // pred_region
      _
    $region65: #{transformer_forward.25} parent=1 // pred_fallthru
      _
    %331 = vsyncpa [#allocation3], 1
    %332 = vsyncpa [#allocation5], 1
    %333 = vsyncpa [#allocation8], 1

// kernel: transformer_forward.23
$region0: #{transformer_forward.23}
  #allocation0 [shape = 'u32[]', space=smem, size = 0x4, offset = 0x4, fixed_abs, tag = 'smem constant byte address 0x4 - core index']
  #allocation1 [shape = 'u32[72,128]{1,0:T(1,128)}', space=vmem, size = 0x9000, scoped, tag = 'internal scratch']
  %s0 = inlined_call_operand.vmem [shape: bf16[2,16,64], index: 0, kind: input, shape index: {}]
  %s1 = inlined_call_operand.vmem [shape: bf16[2,16,32], index: 1, kind: input, shape index: {}]
  %s2 = inlined_call_operand.vmem [shape: f32[2,1,16], index: 2, kind: input, shape index: {}]
  %s3 = inlined_call_operand.vmem [shape: f32[2,16,32], index: 3, kind: input, shape index: {}]
  %s4 = inlined_call_operand.vmem [shape: bf16[4,8,32], index: 4, kind: input, shape index: {}]
  %s5 = inlined_call_operand.vmem [shape: f32[1,32], index: 5, kind: input, shape index: {}]
  %s6 = inlined_call_operand.vmem [shape: f32[2,16,32], index: 6, kind: output, shape index: {}]
  %s7 = sld [smem:[#allocation0]]
  $region57: #{transformer_forward.23} parent=0
    _
  %s9 = ssub.s32 1, %s7
  %s10 = scalar_select 0, %s9, %s7
  loop: start=0, step=1, limit=4
  $region2: #{transformer_forward.23} parent=0 // loop_pre_header
    _
  $region3: #{transformer_forward.23} parent=0 // loop_header
    %s12 = sphi 0, %s16
    %p13 = scmp.ge.s32.totalorder %s12, 4
    %s22 = sphi 0, %s24
    %s25 = sphi 0, %s22
    %s26 = sphi 0, %s25
    %s42 = sphi 0, %s26
    %s48 = sphi 0, %s50
    %s51 = sphi 0, %s48
    %s52 = sphi 0, %s51
    %s68 = sphi 0, %s52
    %s74 = sphi 0, %s76
    %s77 = sphi 0, %s74
    %s78 = sphi 0, %s77
    %s94 = sphi 0, %s78
    %s100 = sphi 0, %s102
    %s103 = sphi 0, %s100
    %s104 = sphi 0, %s103
    %s120 = sphi 0, %s104
    %s124 = sphi 0, %s124
    %s126 = sphi 0, %s124
    %s127 = sphi 0, %s126
    %s141 = sphi 0, %s127
    %s145 = sphi 0, %s145
    %s147 = sphi 0, %s145
    %s148 = sphi 0, %s147
    %s162 = sphi 0, %s148
    %s168 = sphi 0, %s170
    %s171 = sphi 0, %s168
    %s172 = sphi 0, %s171
    %s188 = sphi 0, %s172
  $region4: #{transformer_forward.23} parent=0 // loop_header_branch
    %15 = sbr.rel (%p13) target = $region8
  $region5: #{transformer_forward.23} parent=0 // loop_body
    %s17 = ssub.s32 %s12, 1
    %s18 = ssub.s32 %s12, 2
    %s19 = sadd.s32 %s12, 1
    %s20 = ssub.s32 %s12, %s19
    %p21 = scmp.eq.s32.totalorder %s20, 0
    %s23 = sadd.s32 %s22, 1
    %s24 = scalar_select %p21, %s22, %s23
    %p27 = pneg %p21
    %p28 = scmp.eq.s32.totalorder %s12, 1
    %p29 = por %p27, %p28
    %p30 = scmp.ne.s32.totalorder %s22, %s25
    %p31 = scmp.eq.s32.totalorder %s12, 0
    %p32 = por %p30, %p31
    %p33 = scmp.ne.s32.totalorder %s22, %s25
    %p34 = scmp.eq.s32.totalorder %s17, 1
    %p35 = por %p33, %p34
    %p36 = scmp.ne.s32.totalorder %s25, %s26
    %p37 = scmp.eq.s32.totalorder %s17, 0
    %p38 = por %p36, %p37
    %p39 = scmp.ne.s32.totalorder %s25, %s26
    %p40 = scmp.eq.s32.totalorder %s18, 1
    %p41 = por %p39, %p40
    %p43 = scmp.ne.s32.totalorder %s26, %s42
    %p44 = scmp.eq.s32.totalorder %s18, 0
    %p45 = por %p43, %p44
    %s46 = ssub.s32 %s12, %s19
    %p47 = scmp.eq.s32.totalorder %s46, 0
    %s49 = sadd.s32 %s48, 1
    %s50 = scalar_select %p47, %s48, %s49
    %p53 = pneg %p47
    %p54 = scmp.eq.s32.totalorder %s12, 1
    %p55 = por %p53, %p54
    %p56 = scmp.ne.s32.totalorder %s48, %s51
    %p57 = scmp.eq.s32.totalorder %s12, 0
    %p58 = por %p56, %p57
    %p59 = scmp.ne.s32.totalorder %s48, %s51
    %p60 = scmp.eq.s32.totalorder %s17, 1
    %p61 = por %p59, %p60
    %p62 = scmp.ne.s32.totalorder %s51, %s52
    %p63 = scmp.eq.s32.totalorder %s17, 0
    %p64 = por %p62, %p63
    %p65 = scmp.ne.s32.totalorder %s51, %s52
    %p66 = scmp.eq.s32.totalorder %s18, 1
    %p67 = por %p65, %p66
    %p69 = scmp.ne.s32.totalorder %s52, %s68
    %p70 = scmp.eq.s32.totalorder %s18, 0
    %p71 = por %p69, %p70
    %s72 = ssub.s32 %s12, %s19
    %p73 = scmp.eq.s32.totalorder %s72, 0
    %s75 = sadd.s32 %s74, 1
    %s76 = scalar_select %p73, %s74, %s75
    %p79 = pneg %p73
    %p80 = scmp.eq.s32.totalorder %s12, 1
    %p81 = por %p79, %p80
    %p82 = scmp.ne.s32.totalorder %s74, %s77
    %p83 = scmp.eq.s32.totalorder %s12, 0
    %p84 = por %p82, %p83
    %p85 = scmp.ne.s32.totalorder %s74, %s77
    %p86 = scmp.eq.s32.totalorder %s17, 1
    %p87 = por %p85, %p86
    %p88 = scmp.ne.s32.totalorder %s77, %s78
    %p89 = scmp.eq.s32.totalorder %s17, 0
    %p90 = por %p88, %p89
    %p91 = scmp.ne.s32.totalorder %s77, %s78
    %p92 = scmp.eq.s32.totalorder %s18, 1
    %p93 = por %p91, %p92
    %p95 = scmp.ne.s32.totalorder %s78, %s94
    %p96 = scmp.eq.s32.totalorder %s18, 0
    %p97 = por %p95, %p96
    %s98 = ssub.s32 %s12, %s19
    %p99 = scmp.eq.s32.totalorder %s98, 0
    %s101 = sadd.s32 %s100, 1
    %s102 = scalar_select %p99, %s100, %s101
    %p105 = pneg %p99
    %p106 = scmp.eq.s32.totalorder %s12, 1
    %p107 = por %p105, %p106
    %p108 = scmp.ne.s32.totalorder %s100, %s103
    %p109 = scmp.eq.s32.totalorder %s12, 0
    %p110 = por %p108, %p109
    %p111 = scmp.ne.s32.totalorder %s100, %s103
    %p112 = scmp.eq.s32.totalorder %s17, 1
    %p113 = por %p111, %p112
    %p114 = scmp.ne.s32.totalorder %s103, %s104
    %p115 = scmp.eq.s32.totalorder %s17, 0
    %p116 = por %p114, %p115
    %p117 = scmp.ne.s32.totalorder %s103, %s104
    %p118 = scmp.eq.s32.totalorder %s18, 1
    %p119 = por %p117, %p118
    %p121 = scmp.ne.s32.totalorder %s104, %s120
    %p122 = scmp.eq.s32.totalorder %s18, 0
    %p123 = por %p121, %p122
    %s125 = sadd.s32 %s124, 1
    %p128 = scmp.eq.s32.totalorder %s12, 1
    %p129 = scmp.ne.s32.totalorder %s124, %s126
    %p130 = scmp.eq.s32.totalorder %s12, 0
    %p131 = por %p129, %p130
    %p132 = scmp.ne.s32.totalorder %s124, %s126
    %p133 = scmp.eq.s32.totalorder %s17, 1
    %p134 = por %p132, %p133
    %p135 = scmp.ne.s32.totalorder %s126, %s127
    %p136 = scmp.eq.s32.totalorder %s17, 0
    %p137 = por %p135, %p136
    %p138 = scmp.ne.s32.totalorder %s126, %s127
    %p139 = scmp.eq.s32.totalorder %s18, 1
    %p140 = por %p138, %p139
    %p142 = scmp.ne.s32.totalorder %s127, %s141
    %p143 = scmp.eq.s32.totalorder %s18, 0
    %p144 = por %p142, %p143
    %s146 = sadd.s32 %s145, 1
    %p149 = scmp.eq.s32.totalorder %s12, 1
    %p150 = scmp.ne.s32.totalorder %s145, %s147
    %p151 = scmp.eq.s32.totalorder %s12, 0
    %p152 = por %p150, %p151
    %p153 = scmp.ne.s32.totalorder %s145, %s147
    %p154 = scmp.eq.s32.totalorder %s17, 1
    %p155 = por %p153, %p154
    %p156 = scmp.ne.s32.totalorder %s147, %s148
    %p157 = scmp.eq.s32.totalorder %s17, 0
    %p158 = por %p156, %p157
    %p159 = scmp.ne.s32.totalorder %s147, %s148
    %p160 = scmp.eq.s32.totalorder %s18, 1
    %p161 = por %p159, %p160
    %p163 = scmp.ne.s32.totalorder %s148, %s162
    %p164 = scmp.eq.s32.totalorder %s18, 0
    %p165 = por %p163, %p164
    %s166 = ssub.s32 %s12, %s19
    %p167 = scmp.eq.s32.totalorder %s166, 0
    %s169 = sadd.s32 %s168, 1
    %s170 = scalar_select %p167, %s168, %s169
    %p173 = pneg %p167
    %p174 = scmp.eq.s32.totalorder %s12, 1
    %p175 = por %p173, %p174
    %p176 = scmp.ne.s32.totalorder %s168, %s171
    %p177 = scmp.eq.s32.totalorder %s12, 0
    %p178 = por %p176, %p177
    %p179 = scmp.ne.s32.totalorder %s168, %s171
    %p180 = scmp.eq.s32.totalorder %s17, 1
    %p181 = por %p179, %p180
    %p182 = scmp.ne.s32.totalorder %s171, %s172
    %p183 = scmp.eq.s32.totalorder %s17, 0
    %p184 = por %p182, %p183
    %p185 = scmp.ne.s32.totalorder %s171, %s172
    %p186 = scmp.eq.s32.totalorder %s18, 1
    %p187 = por %p185, %p186
    %p189 = scmp.ne.s32.totalorder %s172, %s188
    %p190 = scmp.eq.s32.totalorder %s18, 0
    %p191 = por %p189, %p190
    %p192 = scmp.le.s32.totalorder 1, %s12
    %p193 = scmp.lt.s32.totalorder %s12, 3
    %p194 = pnand %p192, %p193
    %p195 = pneg %p194
    // Predicated region
    $region9: #{transformer_forward.23} parent=5 // pred_check
      _
    $region10: #{transformer_forward.23} parent=5 // pred_check_branch
      %197 = sbr.rel (%p194) target = $region12
    $region11: #{transformer_forward.23} parent=5 // pred_region
      %s198 = ssub.s32 %s12, 1
      // Predicated region
      $region13: #{transformer_forward.23} parent=11 // pred_check
        %p199 = pneg %p137
      $region14: #{transformer_forward.23} parent=11 // pred_check_branch
        %201 = sbr.rel (%p199) target = $region16
      $region15: #{transformer_forward.23} parent=11 // pred_region
        _
      $region16: #{transformer_forward.23} parent=11 // pred_fallthru
        _
      // Predicated region
      $region17: #{transformer_forward.23} parent=11 // pred_check
        %p202 = pneg %p158
      $region18: #{transformer_forward.23} parent=11 // pred_check_branch
        %204 = sbr.rel (%p202) target = $region20
      $region19: #{transformer_forward.23} parent=11 // pred_region
        _
      $region20: #{transformer_forward.23} parent=11 // pred_fallthru
        _
    $region12: #{transformer_forward.23} parent=5 // pred_fallthru
      _
    %p205 = scmp.lt.s32.totalorder %s12, 2
    // Predicated region
    $region21: #{transformer_forward.23} parent=5 // pred_check
      %p206 = pneg %p205
    $region22: #{transformer_forward.23} parent=5 // pred_check_branch
      %208 = sbr.rel (%p206) target = $region24
    $region23: #{transformer_forward.23} parent=5 // pred_region
      // Predicated region
      $region25: #{transformer_forward.23} parent=23 // pred_check
        %p209 = pneg %p32
      $region26: #{transformer_forward.23} parent=23 // pred_check_branch
        %211 = sbr.rel (%p209) target = $region28
      $region27: #{transformer_forward.23} parent=23 // pred_region
        %p212 = scmp.lt.s32.totalorder %s12, 1
        %s213 = scalar_select %p212, %s12, 1
        %s214 = smul.addr %s213, 2
        %s215 = smul.addr %s214, 4
        %s216 = scalar_lea.vmem %s0, %s215
      $region28: #{transformer_forward.23} parent=23 // pred_fallthru
        _
      // Predicated region
      $region29: #{transformer_forward.23} parent=23 // pred_check
        %p217 = pneg %p58
      $region30: #{transformer_forward.23} parent=23 // pred_check_branch
        %219 = sbr.rel (%p217) target = $region32
      $region31: #{transformer_forward.23} parent=23 // pred_region
        %p220 = scmp.lt.s32.totalorder %s12, 1
        %s221 = scalar_select %p220, %s12, 1
        %s222 = smul.addr %s221, 2
        %s223 = smul.addr %s222, 4
        %s224 = scalar_lea.vmem %s1, %s223
      $region32: #{transformer_forward.23} parent=23 // pred_fallthru
        _
      // Predicated region
      $region33: #{transformer_forward.23} parent=23 // pred_check
        %p225 = pneg %p84
      $region34: #{transformer_forward.23} parent=23 // pred_check_branch
        %227 = sbr.rel (%p225) target = $region36
      $region35: #{transformer_forward.23} parent=23 // pred_region
        %p228 = scmp.lt.s32.totalorder %s12, 1
        %s229 = scalar_select %p228, %s12, 1
        %s230 = scalar_lea.vmem %s2, %s229
      $region36: #{transformer_forward.23} parent=23 // pred_fallthru
        _
      // Predicated region
      $region37: #{transformer_forward.23} parent=23 // pred_check
        %p231 = pneg %p110
      $region38: #{transformer_forward.23} parent=23 // pred_check_branch
        %233 = sbr.rel (%p231) target = $region40
      $region39: #{transformer_forward.23} parent=23 // pred_region
        %p234 = scmp.lt.s32.totalorder %s12, 1
        %s235 = scalar_select %p234, %s12, 1
        %s236 = smul.addr %s235, 2
        %s237 = smul.addr %s236, 8
        %s238 = scalar_lea.vmem %s3, %s237
      $region40: #{transformer_forward.23} parent=23 // pred_fallthru
        _
    $region24: #{transformer_forward.23} parent=5 // pred_fallthru
      _
    %p239 = scmp.le.s32.totalorder 1, %s12
    %p240 = scmp.lt.s32.totalorder %s12, 3
    %p241 = pnand %p239, %p240
    %p242 = pneg %p241
    // Predicated region
    $region41: #{transformer_forward.23} parent=5 // pred_check
      _
    $region42: #{transformer_forward.23} parent=5 // pred_check_branch
      %244 = sbr.rel (%p241) target = $region44
    $region43: #{transformer_forward.23} parent=5 // pred_region
      %s245 = ssub.s32 %s12, 1
      %p246 = scmp.lt.s32.totalorder %s17, 1
      %s247 = scalar_select %p246, %s17, 1
      %s248 = smul.addr %s247, 2
      %s249 = smul.addr %s248, 4
      %s250 = scalar_lea.vmem %s0, %s249
      %p251 = pneg %p38
      %p252 = pneg %p35
      %p253 = scmp.lt.s32.totalorder %s17, 1
      %s254 = scalar_select %p253, %s17, 1
      %s255 = smul.addr %s254, 2
      %s256 = smul.addr %s255, 4
      %s257 = scalar_lea.vmem %s1, %s256
      %p258 = pneg %p64
      %p259 = pneg %p61
      %p260 = scmp.lt.s32.totalorder %s17, 1
      %s261 = scalar_select %p260, %s17, 1
      %s262 = scalar_lea.vmem %s2, %s261
      %p263 = pneg %p90
      %p264 = pneg %p87
      %p265 = scmp.lt.s32.totalorder %s17, 1
      %s266 = scalar_select %p265, %s17, 1
      %s267 = smul.addr %s266, 2
      %s268 = smul.addr %s267, 8
      %s269 = scalar_lea.vmem %s3, %s268
      %p270 = pneg %p116
      %p271 = pneg %p113
      %p272 = pneg %p137
      %p273 = pneg %p134
      %p274 = pneg %p158
      %p275 = pneg %p155
      %p276 = pneg %p184
      %p277 = pneg %p181
      %p278 = scmp.lt.s32.totalorder %s17, 1
      %s279 = scalar_select %p278, %s17, 1
      %s280 = smul.addr %s279, 2
      %s281 = smul.addr %s280, 8
      %s282 = scalar_lea.vmem %s6, %s281
      %p283 = scmp.lt.s32.totalorder %s17, 1
      %s284 = scalar_select %p283, %s17, 1
      %s285 = smul.addr %s284, 2
      %s286 = smul.addr %s285, 4
      %s287 = scalar_lea.vmem %s0, %s286
      %p288 = scmp.lt.s32.totalorder %s17, 1
      %s289 = scalar_select %p288, %s17, 1
      %s290 = smul.addr %s289, 2
      %s291 = smul.addr %s290, 4
      %s292 = scalar_lea.vmem %s1, %s291
      %p293 = scmp.lt.s32.totalorder %s17, 1
      %s294 = scalar_select %p293, %s17, 1
      %s295 = scalar_lea.vmem %s2, %s294
      %p296 = scmp.lt.s32.totalorder %s17, 1
      %s297 = scalar_select %p296, %s17, 1
      %s298 = smul.addr %s297, 2
      %s299 = smul.addr %s298, 8
      %s300 = scalar_lea.vmem %s3, %s299
      %p301 = scmp.lt.s32.totalorder %s17, 1
      %s302 = scalar_select %p301, %s17, 1
      %s303 = smul.addr %s302, 2
      %s304 = smul.addr %s303, 8
      %s305 = scalar_lea.vmem %s6, %s304
      %v307 = vld [vmem:[%s295] sm:$0x1]
      %v308 = vld [vmem:[%s300] sm:$0xff]
      %v309 = vld [vmem:[%s300 + $0x8] sm:$0xff]
      %v310 = vld [vmem:[%s5] sm:$0x1]
      %v311 = vld [vmem:[%s287] sm:$0xf]
      %v312 = vld [vmem:[%s287 + $0x4] sm:$0xf]
      %v313 = vld [vmem:[%s292] sm:$0xf]
      %v314 = vld [vmem:[%s292 + $0x4] sm:$0xf]
      %v316 = vperm.slane %v307, 0
      %v320 = vunpack.c.l.b16 %v311
      %v321 = vunpack.c.l.b16 %v312
      %v322 = vpack.c.b16 %v321, %v320
      %323 = vrot.lane.b32.xlu0 %v322, 96
      %v324 = vpop.permute.xlu0 %323
      %vm325 = vcmask 64512
      %v327 = vsel %vm325, %v322, 0
      %v330 = vsel %vm325, %v324, 0
      %332 = vmatpush.bf16.xpose.msra.mxu0 0
      %333 = vmatpush.bf16.xpose.msra.mxu0 0
      %334 = vmatpush.bf16.xpose.msra.mxu0 0
      %335 = vmatpush.bf16.xpose.msra.mxu0 0
      %336 = vmatpush.bf16.xpose.msra.mxu0 0
      %337 = vmatpush.bf16.xpose.msra.mxu0 0
      %338 = vmatpush.bf16.xpose.msra.mxu0 0
      %339 = vmatpush.bf16.xpose.msra.mxu0 %v330
      %340 = vmatmul.bf16.gmra.mxu0 %v327
      %v341 = vpop.f32.mrf.mxu0
      %v342 = vadd.f32 %v316, %v341
      %v343 = vpop.f32.mrf.mxu0
      %v344 = vadd.f32 %v316, %v343
      %345 = vdwg.mxu0
      %vm346 = vcmask 130048
      %v347 = vsel %vm346, %v342, -inf
      %348 = vmax.xlane.f32.xlu0 %v347
      %v349 = vpop.xlane.xlu0 %348
      %v350 = vsel %vm346, %v344, -inf
      %351 = vmax.xlane.f32.xlu0 %v350
      %v352 = vpop.xlane.xlu0 %351
      %v353 = vsub.f32 %v342, %v349
      %v354 = vsub.f32 %v344, %v352
      %v355 = vmul.f32 %v353, 1.442695
      %v356 = vpow.pop %v355
      %v357 = vmul.f32 %v354, 1.442695
      %v358 = vpow.pop %v357
      %v359 = vsel %vm346, %v356, 0.0
      %360 = vadd.xlane.f32.xlu0 %v359
      %v361 = vpop.xlane.xlu0 %360
      %v362 = vsel %vm346, %v358, 0.0
      %363 = vadd.xlane.f32.xlu0 %v362
      %v364 = vpop.xlane.xlu0 %363
      %v365 = vrcp.pop %v361
      %v366 = vrcp.pop %v364
      %v367 = vmul.f32 %v356, %v365
      %v368 = vmul.f32 %v358, %v366
      %v369 = vpack.c.bf16 %v368, %v367
      %v372 = vunpack.c.l.b16 %v313
      %v373 = vunpack.c.l.b16 %v314
      %v374 = vpack.c.b16 %v373, %v372
      %v377 = vsel %vm346, %v369, 0
      %379 = vmatpush.bf16.msra.mxu0 0
      %380 = vmatpush.bf16.msra.mxu0 0
      %381 = vmatpush.bf16.msra.mxu0 0
      %382 = vmatpush.bf16.msra.mxu0 0
      %383 = vmatpush.bf16.msra.mxu0 0
      %384 = vmatpush.bf16.msra.mxu0 0
      %385 = vmatpush.bf16.msra.mxu0 0
      %386 = vmatpush.bf16.msra.mxu0 %v374
      %387 = vmatmul.bf16.gmra.mxu0 %v377
      %v388 = vpop.f32.mrf.mxu0
      %v389 = vadd.f32 0.0, %v388
      %v390 = vpop.f32.mrf.mxu0
      %v391 = vadd.f32 0.0, %v390
      %392 = vdwg.mxu0
      %v393 = vpack.c.bf16 %v391, %v389
      %v394 = vld [vmem:[%s4] sm:$0xf]
      %395 = vrot.lane.b32.xlu0 %v322, 120
      %v396 = vpop.permute.xlu0 %395
      %397 = vrot.lane.b32.xlu0 %v322, 88
      %v398 = vpop.permute.xlu0 %397
      %v400 = vsel %vm325, %v396, 0
      %v403 = vsel %vm325, %v398, 0
      %405 = vmatpush.bf16.xpose.msra.mxu0 0
      %406 = vmatpush.bf16.xpose.msra.mxu0 0
      %407 = vmatpush.bf16.xpose.msra.mxu0 0
      %408 = vmatpush.bf16.xpose.msra.mxu0 0
      %409 = vmatpush.bf16.xpose.msra.mxu0 0
      %410 = vmatpush.bf16.xpose.msra.mxu0 0
      %411 = vmatpush.bf16.xpose.msra.mxu0 0
      %412 = vmatpush.bf16.xpose.msra.mxu0 %v403
      %413 = vmatmul.bf16.gmra.mxu0 %v400
      %v414 = vpop.f32.mrf.mxu0
      %v415 = vadd.f32 %v316, %v414
      %v416 = vpop.f32.mrf.mxu0
      %v417 = vadd.f32 %v316, %v416
      %418 = vdwg.mxu0
      %v419 = vsel %vm346, %v415, -inf
      %420 = vmax.xlane.f32.xlu0 %v419
      %v421 = vpop.xlane.xlu0 %420
      %v422 = vsel %vm346, %v417, -inf
      %423 = vmax.xlane.f32.xlu0 %v422
      %v424 = vpop.xlane.xlu0 %423
      %v425 = vsub.f32 %v415, %v421
      %v426 = vsub.f32 %v417, %v424
      %v427 = vmul.f32 %v425, 1.442695
      %v428 = vpow.pop %v427
      %v429 = vmul.f32 %v426, 1.442695
      %v430 = vpow.pop %v429
      %v431 = vsel %vm346, %v428, 0.0
      %432 = vadd.xlane.f32.xlu0 %v431
      %v433 = vpop.xlane.xlu0 %432
      %v434 = vsel %vm346, %v430, 0.0
      %435 = vadd.xlane.f32.xlu0 %v434
      %v436 = vpop.xlane.xlu0 %435
      %v437 = vrcp.pop %v433
      %v438 = vrcp.pop %v436
      %v439 = vmul.f32 %v428, %v437
      %v440 = vmul.f32 %v430, %v438
      %v441 = vpack.c.bf16 %v440, %v439
      %442 = vrot.lane.b32.xlu0 %v374, 120
      %v443 = vpop.permute.xlu0 %442
      %v446 = vsel %vm346, %v441, 0
      %448 = vmatpush.bf16.msra.mxu0 0
      %449 = vmatpush.bf16.msra.mxu0 0
      %450 = vmatpush.bf16.msra.mxu0 0
      %451 = vmatpush.bf16.msra.mxu0 0
      %452 = vmatpush.bf16.msra.mxu0 0
      %453 = vmatpush.bf16.msra.mxu0 0
      %454 = vmatpush.bf16.msra.mxu0 0
      %455 = vmatpush.bf16.msra.mxu0 %v443
      %456 = vmatmul.bf16.gmra.mxu0 %v446
      %v457 = vpop.f32.mrf.mxu0
      %v458 = vadd.f32 0.0, %v457
      %v459 = vpop.f32.mrf.mxu0
      %v460 = vadd.f32 0.0, %v459
      %461 = vdwg.mxu0
      %v462 = vpack.c.bf16 %v460, %v458
      %s463 = scalar_lea.vmem %s4, 4
      %v464 = vld [vmem:[%s463] sm:$0xf]
      %v466 = vsel %vm325, %v462, 0
      %vm468 = vcmask 1043456
      %v470 = vsel %vm468, %v464, 0
      %472 = vmatpush.bf16.msra.mxu0 0
      %473 = vmatpush.bf16.msra.mxu0 0
      %474 = vmatpush.bf16.msra.mxu0 0
      %475 = vmatpush.bf16.msra.mxu0 0
      %476 = vmatpush.bf16.msra.mxu0 0
      %477 = vmatpush.bf16.msra.mxu0 0
      %478 = vmatpush.bf16.msra.mxu0 0
      %479 = vmatpush.bf16.msra.mxu0 %v470
      %480 = vmatmul.bf16.gmra.mxu0 %v466
      %v481 = vpop.f32.mrf.mxu0
      %v482 = vadd.f32 0.0, %v481
      %v483 = vpop.f32.mrf.mxu0
      %v484 = vadd.f32 0.0, %v483
      %485 = vdwg.mxu0
      %v487 = vsel %vm325, %v393, 0
      %v490 = vsel %vm468, %v394, 0
      %492 = vmatpush.bf16.msra.mxu0 0
      %493 = vmatpush.bf16.msra.mxu0 0
      %494 = vmatpush.bf16.msra.mxu0 0
      %495 = vmatpush.bf16.msra.mxu0 0
      %496 = vmatpush.bf16.msra.mxu0 0
      %497 = vmatpush.bf16.msra.mxu0 0
      %498 = vmatpush.bf16.msra.mxu0 0
      %499 = vmatpush.bf16.msra.mxu0 %v490
      %500 = vmatmul.bf16.gmra.mxu0 %v487
      %v501 = vpop.f32.mrf.mxu0
      %v502 = vadd.f32 %v482, %v501
      %v503 = vpop.f32.mrf.mxu0
      %v504 = vadd.f32 %v484, %v503
      %505 = vdwg.mxu0
      %506 = vrot.lane.b32.xlu0 %v322, 112
      %v507 = vpop.permute.xlu0 %506
      %508 = vrot.lane.b32.xlu0 %v322, 80
      %v509 = vpop.permute.xlu0 %508
      %v511 = vsel %vm325, %v507, 0
      %v514 = vsel %vm325, %v509, 0
      %516 = vmatpush.bf16.xpose.msra.mxu0 0
      %517 = vmatpush.bf16.xpose.msra.mxu0 0
      %518 = vmatpush.bf16.xpose.msra.mxu0 0
      %519 = vmatpush.bf16.xpose.msra.mxu0 0
      %520 = vmatpush.bf16.xpose.msra.mxu0 0
      %521 = vmatpush.bf16.xpose.msra.mxu0 0
      %522 = vmatpush.bf16.xpose.msra.mxu0 0
      %523 = vmatpush.bf16.xpose.msra.mxu0 %v514
      %524 = vmatmul.bf16.gmra.mxu0 %v511
      %v525 = vpop.f32.mrf.mxu0
      %v526 = vadd.f32 %v316, %v525
      %v527 = vpop.f32.mrf.mxu0
      %v528 = vadd.f32 %v316, %v527
      %529 = vdwg.mxu0
      %v530 = vsel %vm346, %v526, -inf
      %531 = vmax.xlane.f32.xlu0 %v530
      %v532 = vpop.xlane.xlu0 %531
      %v533 = vsel %vm346, %v528, -inf
      %534 = vmax.xlane.f32.xlu0 %v533
      %v535 = vpop.xlane.xlu0 %534
      %v536 = vsub.f32 %v526, %v532
      %v537 = vsub.f32 %v528, %v535
      %v538 = vmul.f32 %v536, 1.442695
      %v539 = vpow.pop %v538
      %v540 = vmul.f32 %v537, 1.442695
      %v541 = vpow.pop %v540
      %v542 = vsel %vm346, %v539, 0.0
      %543 = vadd.xlane.f32.xlu0 %v542
      %v544 = vpop.xlane.xlu0 %543
      %v545 = vsel %vm346, %v541, 0.0
      %546 = vadd.xlane.f32.xlu0 %v545
      %v547 = vpop.xlane.xlu0 %546
      %v548 = vrcp.pop %v544
      %v549 = vrcp.pop %v547
      %v550 = vmul.f32 %v539, %v548
      %v551 = vmul.f32 %v541, %v549
      %v552 = vpack.c.bf16 %v551, %v550
      %553 = vrot.lane.b32.xlu0 %v374, 112
      %v554 = vpop.permute.xlu0 %553
      %v557 = vsel %vm346, %v552, 0
      %559 = vmatpush.bf16.msra.mxu0 0
      %560 = vmatpush.bf16.msra.mxu0 0
      %561 = vmatpush.bf16.msra.mxu0 0
      %562 = vmatpush.bf16.msra.mxu0 0
      %563 = vmatpush.bf16.msra.mxu0 0
      %564 = vmatpush.bf16.msra.mxu0 0
      %565 = vmatpush.bf16.msra.mxu0 0
      %566 = vmatpush.bf16.msra.mxu0 %v554
      %567 = vmatmul.bf16.gmra.mxu0 %v557
      %v568 = vpop.f32.mrf.mxu0
      %v569 = vadd.f32 0.0, %v568
      %v570 = vpop.f32.mrf.mxu0
      %v571 = vadd.f32 0.0, %v570
      %572 = vdwg.mxu0
      %v573 = vpack.c.bf16 %v571, %v569
      %s574 = scalar_lea.vmem %s4, 8
      %v575 = vld [vmem:[%s574] sm:$0xf]
      %v577 = vsel %vm325, %v573, 0
      %v580 = vsel %vm468, %v575, 0
      %582 = vmatpush.bf16.msra.mxu0 0
      %583 = vmatpush.bf16.msra.mxu0 0
      %584 = vmatpush.bf16.msra.mxu0 0
      %585 = vmatpush.bf16.msra.mxu0 0
      %586 = vmatpush.bf16.msra.mxu0 0
      %587 = vmatpush.bf16.msra.mxu0 0
      %588 = vmatpush.bf16.msra.mxu0 0
      %589 = vmatpush.bf16.msra.mxu0 %v580
      %590 = vmatmul.bf16.gmra.mxu0 %v577
      %v591 = vpop.f32.mrf.mxu0
      %v592 = vadd.f32 0.0, %v591
      %v593 = vpop.f32.mrf.mxu0
      %v594 = vadd.f32 0.0, %v593
      %595 = vdwg.mxu0
      %v596 = vadd.f32 %v502, %v592
      %v597 = vadd.f32 %v504, %v594
      %598 = vrot.lane.b32.xlu0 %v322, 104
      %v599 = vpop.permute.xlu0 %598
      %600 = vrot.lane.b32.xlu0 %v322, 72
      %v601 = vpop.permute.xlu0 %600
      %v603 = vsel %vm325, %v599, 0
      %v606 = vsel %vm325, %v601, 0
      %608 = vmatpush.bf16.xpose.msra.mxu0 0
      %609 = vmatpush.bf16.xpose.msra.mxu0 0
      %610 = vmatpush.bf16.xpose.msra.mxu0 0
      %611 = vmatpush.bf16.xpose.msra.mxu0 0
      %612 = vmatpush.bf16.xpose.msra.mxu0 0
      %613 = vmatpush.bf16.xpose.msra.mxu0 0
      %614 = vmatpush.bf16.xpose.msra.mxu0 0
      %615 = vmatpush.bf16.xpose.msra.mxu0 %v606
      %616 = vmatmul.bf16.gmra.mxu0 %v603
      %v617 = vpop.f32.mrf.mxu0
      %v618 = vadd.f32 %v316, %v617
      %v619 = vpop.f32.mrf.mxu0
      %v620 = vadd.f32 %v316, %v619
      %621 = vdwg.mxu0
      %v622 = vsel %vm346, %v618, -inf
      %623 = vmax.xlane.f32.xlu0 %v622
      %v624 = vpop.xlane.xlu0 %623
      %v625 = vsel %vm346, %v620, -inf
      %626 = vmax.xlane.f32.xlu0 %v625
      %v627 = vpop.xlane.xlu0 %626
      %v628 = vsub.f32 %v618, %v624
      %v629 = vsub.f32 %v620, %v627
      %v630 = vmul.f32 %v628, 1.442695
      %v631 = vpow.pop %v630
      %v632 = vmul.f32 %v629, 1.442695
      %v633 = vpow.pop %v632
      %v634 = vsel %vm346, %v631, 0.0
      %635 = vadd.xlane.f32.xlu0 %v634
      %v636 = vpop.xlane.xlu0 %635
      %v637 = vsel %vm346, %v633, 0.0
      %638 = vadd.xlane.f32.xlu0 %v637
      %v639 = vpop.xlane.xlu0 %638
      %v640 = vrcp.pop %v636
      %v641 = vrcp.pop %v639
      %v642 = vmul.f32 %v631, %v640
      %v643 = vmul.f32 %v633, %v641
      %v644 = vpack.c.bf16 %v643, %v642
      %645 = vrot.lane.b32.xlu0 %v374, 104
      %v646 = vpop.permute.xlu0 %645
      %v649 = vsel %vm346, %v644, 0
      %651 = vmatpush.bf16.msra.mxu0 0
      %652 = vmatpush.bf16.msra.mxu0 0
      %653 = vmatpush.bf16.msra.mxu0 0
      %654 = vmatpush.bf16.msra.mxu0 0
      %655 = vmatpush.bf16.msra.mxu0 0
      %656 = vmatpush.bf16.msra.mxu0 0
      %657 = vmatpush.bf16.msra.mxu0 0
      %658 = vmatpush.bf16.msra.mxu0 %v646
      %659 = vmatmul.bf16.gmra.mxu0 %v649
      %v660 = vpop.f32.mrf.mxu0
      %v661 = vadd.f32 0.0, %v660
      %v662 = vpop.f32.mrf.mxu0
      %v663 = vadd.f32 0.0, %v662
      %664 = vdwg.mxu0
      %v665 = vpack.c.bf16 %v663, %v661
      %s666 = scalar_lea.vmem %s4, 12
      %v667 = vld [vmem:[%s666] sm:$0xf]
      %v669 = vsel %vm325, %v665, 0
      %v672 = vsel %vm468, %v667, 0
      %674 = vmatpush.bf16.msra.mxu0 0
      %675 = vmatpush.bf16.msra.mxu0 0
      %676 = vmatpush.bf16.msra.mxu0 0
      %677 = vmatpush.bf16.msra.mxu0 0
      %678 = vmatpush.bf16.msra.mxu0 0
      %679 = vmatpush.bf16.msra.mxu0 0
      %680 = vmatpush.bf16.msra.mxu0 0
      %681 = vmatpush.bf16.msra.mxu0 %v672
      %682 = vmatmul.bf16.gmra.mxu0 %v669
      %v683 = vpop.f32.mrf.mxu0
      %v684 = vadd.f32 0.0, %v683
      %v685 = vpop.f32.mrf.mxu0
      %v686 = vadd.f32 0.0, %v685
      %687 = vdwg.mxu0
      %v688 = vadd.f32 %v596, %v684
      %v689 = vadd.f32 %v597, %v686
      %v690 = vadd.f32 %v308, %v688
      %v691 = vadd.f32 %v309, %v689
      %v693 = vperm.slane %v310, 0
      %v695 = vadd.f32 %v690, %v693
      %v696 = vadd.f32 %v691, %v693
      %vm697 = vcmask 261120
      %698 = vst.msk [vmem:[%s305] sm:$0xff] %vm697, %v695
      %699 = vst.msk [vmem:[%s305 + $0x8] sm:$0xff] %vm697, %v696
      %p700 = scmp.lt.s32.totalorder %s17, 1
      %s701 = scalar_select %p700, %s17, 1
      %s702 = smul.addr %s701, 2
      %s703 = smul.addr %s702, 8
      %s704 = scalar_lea.vmem %s6, %s703
      // Predicated region
      $region45: #{transformer_forward.23} parent=43 // pred_check
        %p705 = pneg %p181
      $region46: #{transformer_forward.23} parent=43 // pred_check_branch
        %707 = sbr.rel (%p705) target = $region48
      $region47: #{transformer_forward.23} parent=43 // pred_region
        _
      $region48: #{transformer_forward.23} parent=43 // pred_fallthru
        _
    $region44: #{transformer_forward.23} parent=5 // pred_fallthru
      _
    %p708 = scmp.le.s32.totalorder 2, %s12
    // Predicated region
    $region49: #{transformer_forward.23} parent=5 // pred_check
      %p709 = pneg %p708
    $region50: #{transformer_forward.23} parent=5 // pred_check_branch
      %711 = sbr.rel (%p709) target = $region52
    $region51: #{transformer_forward.23} parent=5 // pred_region
      %s712 = ssub.s32 %s12, 2
      // Predicated region
      $region53: #{transformer_forward.23} parent=51 // pred_check
        %p713 = pneg %p187
      $region54: #{transformer_forward.23} parent=51 // pred_check_branch
        %715 = sbr.rel (%p713) target = $region56
      $region55: #{transformer_forward.23} parent=51 // pred_region
        %p716 = scmp.lt.s32.totalorder %s18, 1
        %s717 = scalar_select %p716, %s18, 1
        %s718 = smul.addr %s717, 2
        %s719 = smul.addr %s718, 8
        %s720 = scalar_lea.vmem %s6, %s719
      $region56: #{transformer_forward.23} parent=51 // pred_fallthru
        _
    $region52: #{transformer_forward.23} parent=5 // pred_fallthru
      _
  $region6: #{transformer_forward.23} parent=0 // loop_footer
    %s16 = sadd.s32 1, %s12
  $region7: #{transformer_forward.23} parent=0 // loop_footer_branch
    %11 = sbr.rel target = $region3
  $region8: #{transformer_forward.23} parent=0 // loop_exit
    _

// kernel: transformer_forward.28
$region0: #{transformer_forward.28}
  #allocation0 [shape = 'u32[]', space=smem, size = 0x4, offset = 0x4, fixed_abs, tag = 'smem constant byte address 0x4 - core index']
  #allocation1 [shape = 'u32[72,128]{1,0:T(1,128)}', space=vmem, size = 0x9000, scoped, tag = 'internal scratch']
  %s0 = inlined_call_operand.vmem [shape: f32[32,32], index: 0, kind: input, shape index: {}]
  %s1 = inlined_call_operand.hbm [shape: f32[1,32], index: 1, kind: input, shape index: {}]
  %s2 = inlined_call_operand.hbm [shape: f32[1,32], index: 2, kind: input, shape index: {}]
  %s3 = inlined_call_operand.vmem [shape: f32[32,32], index: 3, kind: output, shape index: {}]
  %s4 = sld [smem:[#allocation0]]
  $region30: #{transformer_forward.28} parent=0
    _
  %s6 = ssub.s32 1, %s4
  %s7 = scalar_select 0, %s6, %s4
  $region1: #{transformer_forward.28} parent=0
    #allocation2 [shape = 'u8[512]{0}', space=vmem, size = 0x400, scoped, tag = 'input window, operand 1, single buffered']
    #allocation3 [shape = 's32[1]{0}', space=sflag, size = 0x4, scoped, tag = 'scoped memory for transformer_forward.28']
    #allocation4 [shape = 'u8[512]{0}', space=vmem, size = 0x400, scoped, tag = 'input window, operand 2, single buffered']
    #allocation5 [shape = 's32[1]{0}', space=sflag, size = 0x4, scoped, tag = 'scoped memory for transformer_forward.28']
    %8 = vsyncpa [#allocation3], 0
    %9 = vsyncpa [#allocation5], 0
    // Predicated region
    $region2: #{transformer_forward.28} parent=1 // pred_check
      _
    $region3: #{transformer_forward.28} parent=1 // pred_check_branch
      %11 = sbr.rel (0) target = $region5
    $region4: #{transformer_forward.28} parent=1 // pred_region
      _
    $region5: #{transformer_forward.28} parent=1 // pred_fallthru
      _
    // Predicated region
    $region6: #{transformer_forward.28} parent=1 // pred_check
      _
    $region7: #{transformer_forward.28} parent=1 // pred_check_branch
      %13 = sbr.rel (0) target = $region9
    $region8: #{transformer_forward.28} parent=1 // pred_region
      %15 = vsyncadd [#allocation3], 0
      %s17 = sshll.u32 %s1, 4
      %s18 = int_to_ptr.hbm [resolvable:$true] %s17
      %s19 = sshll.u32 [#allocation2], 4
      %s20 = int_to_ptr.vmem [resolvable:$true] %s19
      %22 = dma.hbm_to_vmem [thread:$0]  %s18, 16, %s20, [#allocation3]
    $region9: #{transformer_forward.28} parent=1 // pred_fallthru
      _
    // Predicated region
    $region10: #{transformer_forward.28} parent=1 // pred_check
      _
    $region11: #{transformer_forward.28} parent=1 // pred_check_branch
      %24 = sbr.rel (0) target = $region13
    $region12: #{transformer_forward.28} parent=1 // pred_region
      %26 = vsyncadd [#allocation5], 0
      %s28 = sshll.u32 %s2, 4
      %s29 = int_to_ptr.hbm [resolvable:$true] %s28
      %s30 = sshll.u32 [#allocation4], 4
      %s31 = int_to_ptr.vmem [resolvable:$true] %s30
      %33 = dma.hbm_to_vmem [thread:$0]  %s29, 16, %s31, [#allocation5]
    $region13: #{transformer_forward.28} parent=1 // pred_fallthru
      _
    // Predicated region
    $region14: #{transformer_forward.28} parent=1 // pred_check
      _
    $region15: #{transformer_forward.28} parent=1 // pred_check_branch
      %35 = sbr.rel (0) target = $region17
    $region16: #{transformer_forward.28} parent=1 // pred_region
      %37 = dma.done [#allocation3], 16
    $region17: #{transformer_forward.28} parent=1 // pred_fallthru
      _
    // Predicated region
    $region18: #{transformer_forward.28} parent=1 // pred_check
      _
    $region19: #{transformer_forward.28} parent=1 // pred_check_branch
      %39 = sbr.rel (0) target = $region21
    $region20: #{transformer_forward.28} parent=1 // pred_region
      %41 = dma.done [#allocation5], 16
    $region21: #{transformer_forward.28} parent=1 // pred_fallthru
      _
    %v42 = vld [vmem:[%s0] sm:$0xff]
    %v43 = vld [vmem:[%s0 + $0x8] sm:$0xff]
    %v44 = vld [vmem:[%s0 + $0x10] sm:$0xff]
    %v45 = vld [vmem:[%s0 + $0x18] sm:$0xff]
    %v46 = vld [vmem:[#allocation2] sm:$0x1]
    %v47 = vld [vmem:[#allocation4] sm:$0x1]
    %vm48 = vcmask 261120
    %v49 = vsel %vm48, %v42, 0.0
    %50 = vadd.xlane.f32.xlu0 %v49
    %v51 = vpop.xlane.xlu0 %50
    %v52 = vsel %vm48, %v43, 0.0
    %53 = vadd.xlane.f32.xlu0 %v52
    %v54 = vpop.xlane.xlu0 %53
    %v55 = vsel %vm48, %v44, 0.0
    %56 = vadd.xlane.f32.xlu0 %v55
    %v57 = vpop.xlane.xlu0 %56
    %v58 = vsel %vm48, %v45, 0.0
    %59 = vadd.xlane.f32.xlu0 %v58
    %v60 = vpop.xlane.xlu0 %59
    %v61 = vrcp.pop 32.0
    %v62 = vmul.f32 32.0, %v61
    %v63 = vsub.f32 1.0, %v62
    %v64 = vmul.f32 %v61, %v63
    %v65 = vadd.f32 %v61, %v64
    %vm66 = vweird.f32 %v61
    %v67 = vsel %vm66, %v61, %v65
    %v68 = vmul.f32 %v51, %v67
    %v69 = vmul.f32 %v54, %v67
    %v70 = vmul.f32 %v57, %v67
    %v71 = vmul.f32 %v60, %v67
    %v72 = vsub.f32 %v42, %v68
    %v73 = vsub.f32 %v43, %v69
    %v74 = vsub.f32 %v44, %v70
    %v75 = vsub.f32 %v45, %v71
    %v76 = vmul.f32 %v72, %v72
    %v77 = vmul.f32 %v73, %v73
    %v78 = vmul.f32 %v74, %v74
    %v79 = vmul.f32 %v75, %v75
    %v80 = vsel %vm48, %v76, 0.0
    %81 = vadd.xlane.f32.xlu0 %v80
    %v82 = vpop.xlane.xlu0 %81
    %v83 = vsel %vm48, %v77, 0.0
    %84 = vadd.xlane.f32.xlu0 %v83
    %v85 = vpop.xlane.xlu0 %84
    %v86 = vsel %vm48, %v78, 0.0
    %87 = vadd.xlane.f32.xlu0 %v86
    %v88 = vpop.xlane.xlu0 %87
    %v89 = vsel %vm48, %v79, 0.0
    %90 = vadd.xlane.f32.xlu0 %v89
    %v91 = vpop.xlane.xlu0 %90
    %v92 = vmul.f32 %v82, %v67
    %v93 = vmul.f32 %v85, %v67
    %v94 = vmul.f32 %v88, %v67
    %v95 = vmul.f32 %v91, %v67
    %v96 = vadd.f32 %v92, 1e-05
    %v97 = vadd.f32 %v93, 1e-05
    %v98 = vadd.f32 %v94, 1e-05
    %v99 = vadd.f32 %v95, 1e-05
    %v100 = vrsqrt.pop %v96
    %v101 = vmul.f32 %v100, %v96
    %v102 = vmul.f32 %v101, %v100
    %v103 = vmul.f32 0.5, %v102
    %v104 = vsub.f32 1.5, %v103
    %v105 = vmul.f32 %v100, %v104
    %vm106 = vweird.f32 %v96
    %vm107 = vweird.f32 %v100
    %vm108 = vmor %vm106, %vm107
    %v109 = vsel %vm108, %v100, %v105
    %v110 = vrsqrt.pop %v97
    %v111 = vmul.f32 %v110, %v97
    %v112 = vmul.f32 %v111, %v110
    %v113 = vmul.f32 0.5, %v112
    %v114 = vsub.f32 1.5, %v113
    %v115 = vmul.f32 %v110, %v114
    %vm116 = vweird.f32 %v97
    %vm117 = vweird.f32 %v110
    %vm118 = vmor %vm116, %vm117
    %v119 = vsel %vm118, %v110, %v115
    %v120 = vrsqrt.pop %v98
    %v121 = vmul.f32 %v120, %v98
    %v122 = vmul.f32 %v121, %v120
    %v123 = vmul.f32 0.5, %v122
    %v124 = vsub.f32 1.5, %v123
    %v125 = vmul.f32 %v120, %v124
    %vm126 = vweird.f32 %v98
    %vm127 = vweird.f32 %v120
    %vm128 = vmor %vm126, %vm127
    %v129 = vsel %vm128, %v120, %v125
    %v130 = vrsqrt.pop %v99
    %v131 = vmul.f32 %v130, %v99
    %v132 = vmul.f32 %v131, %v130
    %v133 = vmul.f32 0.5, %v132
    %v134 = vsub.f32 1.5, %v133
    %v135 = vmul.f32 %v130, %v134
    %vm136 = vweird.f32 %v99
    %vm137 = vweird.f32 %v130
    %vm138 = vmor %vm136, %vm137
    %v139 = vsel %vm138, %v130, %v135
    %v140 = vmul.f32 %v72, %v109
    %v141 = vmul.f32 %v73, %v119
    %v142 = vmul.f32 %v74, %v129
    %v143 = vmul.f32 %v75, %v139
    %v145 = vperm.slane %v46, 0
    %v147 = vmul.f32 %v140, %v145
    %v148 = vmul.f32 %v141, %v145
    %v149 = vmul.f32 %v142, %v145
    %v150 = vmul.f32 %v143, %v145
    %v152 = vperm.slane %v47, 0
    %v154 = vadd.f32 %v147, %v152
    %v155 = vadd.f32 %v148, %v152
    %v156 = vadd.f32 %v149, %v152
    %v157 = vadd.f32 %v150, %v152
    %158 = vst.msk [vmem:[%s3] sm:$0xff] %vm48, %v154
    %159 = vst.msk [vmem:[%s3 + $0x8] sm:$0xff] %vm48, %v155
    %160 = vst.msk [vmem:[%s3 + $0x10] sm:$0xff] %vm48, %v156
    %161 = vst.msk [vmem:[%s3 + $0x18] sm:$0xff] %vm48, %v157
    // Predicated region
    $region22: #{transformer_forward.28} parent=1 // pred_check
      _
    $region23: #{transformer_forward.28} parent=1 // pred_check_branch
      %163 = sbr.rel (0) target = $region25
    $region24: #{transformer_forward.28} parent=1 // pred_region
      _
    $region25: #{transformer_forward.28} parent=1 // pred_fallthru
      _
    // Predicated region
    $region26: #{transformer_forward.28} parent=1 // pred_check
      _
    $region27: #{transformer_forward.28} parent=1 // pred_check_branch
      %165 = sbr.rel (0) target = $region29
    $region28: #{transformer_forward.28} parent=1 // pred_region
      _
    $region29: #{transformer_forward.28} parent=1 // pred_fallthru
      _
    %166 = vsyncpa [#allocation3], 1
    %167 = vsyncpa [#allocation5], 1

// kernel: transformer_forward.27
$region0: #{transformer_forward.27}
  #allocation0 [shape = 'u32[]', space=smem, size = 0x4, offset = 0x4, fixed_abs, tag = 'smem constant byte address 0x4 - core index']
  #allocation1 [shape = 'u32[72,128]{1,0:T(1,128)}', space=vmem, size = 0x9000, scoped, tag = 'internal scratch']
  %s0 = inlined_call_operand.vmem [shape: f32[32,32], index: 0, kind: input, shape index: {}]
  %s1 = inlined_call_operand.vmem [shape: f32[1,32], index: 1, kind: input, shape index: {}]
  %s2 = inlined_call_operand.vmem [shape: f32[1,32], index: 2, kind: input, shape index: {}]
  %s3 = inlined_call_operand.vmem [shape: bf16[32,64], index: 3, kind: input, shape index: {}]
  %s4 = inlined_call_operand.vmem [shape: f32[1,64], index: 4, kind: input, shape index: {}]
  %s5 = inlined_call_operand.vmem [shape: bf16[64,32], index: 5, kind: input, shape index: {}]
  %s6 = inlined_call_operand.vmem [shape: f32[1,32], index: 6, kind: input, shape index: {}]
  %s7 = inlined_call_operand.vmem [shape: f32[32,32], index: 7, kind: output, shape index: {}]
  %s8 = sld [smem:[#allocation0]]
  $region38: #{transformer_forward.27} parent=0
    _
  %s10 = ssub.s32 1, %s8
  %s11 = scalar_select 0, %s10, %s8
  // Predicated region
  $region2: #{transformer_forward.27} parent=0 // pred_check
    _
  $region3: #{transformer_forward.27} parent=0 // pred_check_branch
    %13 = sbr.rel (0) target = $region5
  $region4: #{transformer_forward.27} parent=0 // pred_region
    _
  $region5: #{transformer_forward.27} parent=0 // pred_fallthru
    _
  // Predicated region
  $region6: #{transformer_forward.27} parent=0 // pred_check
    _
  $region7: #{transformer_forward.27} parent=0 // pred_check_branch
    %15 = sbr.rel (0) target = $region9
  $region8: #{transformer_forward.27} parent=0 // pred_region
    _
  $region9: #{transformer_forward.27} parent=0 // pred_fallthru
    _
  // Predicated region
  $region10: #{transformer_forward.27} parent=0 // pred_check
    _
  $region11: #{transformer_forward.27} parent=0 // pred_check_branch
    %17 = sbr.rel (0) target = $region13
  $region12: #{transformer_forward.27} parent=0 // pred_region
    _
  $region13: #{transformer_forward.27} parent=0 // pred_fallthru
    _
  // Predicated region
  $region14: #{transformer_forward.27} parent=0 // pred_check
    _
  $region15: #{transformer_forward.27} parent=0 // pred_check_branch
    %19 = sbr.rel (0) target = $region17
  $region16: #{transformer_forward.27} parent=0 // pred_region
    _
  $region17: #{transformer_forward.27} parent=0 // pred_fallthru
    _
  // Predicated region
  $region18: #{transformer_forward.27} parent=0 // pred_check
    _
  $region19: #{transformer_forward.27} parent=0 // pred_check_branch
    %21 = sbr.rel (0) target = $region21
  $region20: #{transformer_forward.27} parent=0 // pred_region
    _
  $region21: #{transformer_forward.27} parent=0 // pred_fallthru
    _
  // Predicated region
  $region22: #{transformer_forward.27} parent=0 // pred_check
    _
  $region23: #{transformer_forward.27} parent=0 // pred_check_branch
    %23 = sbr.rel (0) target = $region25
  $region24: #{transformer_forward.27} parent=0 // pred_region
    _
  $region25: #{transformer_forward.27} parent=0 // pred_fallthru
    _
  // Predicated region
  $region26: #{transformer_forward.27} parent=0 // pred_check
    _
  $region27: #{transformer_forward.27} parent=0 // pred_check_branch
    %25 = sbr.rel (0) target = $region29
  $region28: #{transformer_forward.27} parent=0 // pred_region
    _
  $region29: #{transformer_forward.27} parent=0 // pred_fallthru
    _
  %v27 = vld [vmem:[%s0] sm:$0xff]
  %v28 = vld [vmem:[%s0 + $0x8] sm:$0xff]
  %v29 = vld [vmem:[%s0 + $0x10] sm:$0xff]
  %v30 = vld [vmem:[%s0 + $0x18] sm:$0xff]
  %v31 = vld [vmem:[%s1] sm:$0x1]
  %v32 = vld [vmem:[%s2] sm:$0x1]
  %vm33 = vcmask 261120
  %v34 = vsel %vm33, %v27, 0.0
  %35 = vadd.xlane.f32.xlu0 %v34
  %v36 = vpop.xlane.xlu0 %35
  %v37 = vsel %vm33, %v28, 0.0
  %38 = vadd.xlane.f32.xlu0 %v37
  %v39 = vpop.xlane.xlu0 %38
  %v40 = vsel %vm33, %v29, 0.0
  %41 = vadd.xlane.f32.xlu0 %v40
  %v42 = vpop.xlane.xlu0 %41
  %v43 = vsel %vm33, %v30, 0.0
  %44 = vadd.xlane.f32.xlu0 %v43
  %v45 = vpop.xlane.xlu0 %44
  %v46 = vrcp.pop 32.0
  %v47 = vmul.f32 32.0, %v46
  %v48 = vsub.f32 1.0, %v47
  %v49 = vmul.f32 %v46, %v48
  %v50 = vadd.f32 %v46, %v49
  %vm51 = vweird.f32 %v46
  %v52 = vsel %vm51, %v46, %v50
  %v53 = vmul.f32 %v36, %v52
  %v54 = vmul.f32 %v39, %v52
  %v55 = vmul.f32 %v42, %v52
  %v56 = vmul.f32 %v45, %v52
  %v57 = vsub.f32 %v27, %v53
  %v58 = vsub.f32 %v28, %v54
  %v59 = vsub.f32 %v29, %v55
  %v60 = vsub.f32 %v30, %v56
  %v61 = vmul.f32 %v57, %v57
  %v62 = vmul.f32 %v58, %v58
  %v63 = vmul.f32 %v59, %v59
  %v64 = vmul.f32 %v60, %v60
  %v65 = vsel %vm33, %v61, 0.0
  %66 = vadd.xlane.f32.xlu0 %v65
  %v67 = vpop.xlane.xlu0 %66
  %v68 = vsel %vm33, %v62, 0.0
  %69 = vadd.xlane.f32.xlu0 %v68
  %v70 = vpop.xlane.xlu0 %69
  %v71 = vsel %vm33, %v63, 0.0
  %72 = vadd.xlane.f32.xlu0 %v71
  %v73 = vpop.xlane.xlu0 %72
  %v74 = vsel %vm33, %v64, 0.0
  %75 = vadd.xlane.f32.xlu0 %v74
  %v76 = vpop.xlane.xlu0 %75
  %v77 = vmul.f32 %v67, %v52
  %v78 = vmul.f32 %v70, %v52
  %v79 = vmul.f32 %v73, %v52
  %v80 = vmul.f32 %v76, %v52
  %v81 = vadd.f32 %v77, 1e-05
  %v82 = vadd.f32 %v78, 1e-05
  %v83 = vadd.f32 %v79, 1e-05
  %v84 = vadd.f32 %v80, 1e-05
  %v85 = vrsqrt.pop %v81
  %v86 = vmul.f32 %v85, %v81
  %v87 = vmul.f32 %v86, %v85
  %v88 = vmul.f32 0.5, %v87
  %v89 = vsub.f32 1.5, %v88
  %v90 = vmul.f32 %v85, %v89
  %vm91 = vweird.f32 %v81
  %vm92 = vweird.f32 %v85
  %vm93 = vmor %vm91, %vm92
  %v94 = vsel %vm93, %v85, %v90
  %v95 = vrsqrt.pop %v82
  %v96 = vmul.f32 %v95, %v82
  %v97 = vmul.f32 %v96, %v95
  %v98 = vmul.f32 0.5, %v97
  %v99 = vsub.f32 1.5, %v98
  %v100 = vmul.f32 %v95, %v99
  %vm101 = vweird.f32 %v82
  %vm102 = vweird.f32 %v95
  %vm103 = vmor %vm101, %vm102
  %v104 = vsel %vm103, %v95, %v100
  %v105 = vrsqrt.pop %v83
  %v106 = vmul.f32 %v105, %v83
  %v107 = vmul.f32 %v106, %v105
  %v108 = vmul.f32 0.5, %v107
  %v109 = vsub.f32 1.5, %v108
  %v110 = vmul.f32 %v105, %v109
  %vm111 = vweird.f32 %v83
  %vm112 = vweird.f32 %v105
  %vm113 = vmor %vm111, %vm112
  %v114 = vsel %vm113, %v105, %v110
  %v115 = vrsqrt.pop %v84
  %v116 = vmul.f32 %v115, %v84
  %v117 = vmul.f32 %v116, %v115
  %v118 = vmul.f32 0.5, %v117
  %v119 = vsub.f32 1.5, %v118
  %v120 = vmul.f32 %v115, %v119
  %vm121 = vweird.f32 %v84
  %vm122 = vweird.f32 %v115
  %vm123 = vmor %vm121, %vm122
  %v124 = vsel %vm123, %v115, %v120
  %v125 = vmul.f32 %v57, %v94
  %v126 = vmul.f32 %v58, %v104
  %v127 = vmul.f32 %v59, %v114
  %v128 = vmul.f32 %v60, %v124
  %v130 = vperm.slane %v31, 0
  %v132 = vmul.f32 %v125, %v130
  %v133 = vmul.f32 %v126, %v130
  %v134 = vmul.f32 %v127, %v130
  %v135 = vmul.f32 %v128, %v130
  %v137 = vperm.slane %v32, 0
  %v139 = vadd.f32 %v132, %v137
  %v140 = vadd.f32 %v133, %v137
  %v141 = vadd.f32 %v134, %v137
  %v142 = vadd.f32 %v135, %v137
  %v143 = vpack.c.bf16 %v140, %v139
  %v144 = vpack.c.bf16 %v142, %v141
  %v145 = vld [vmem:[%s3] sm:$0xf]
  %v146 = vld [vmem:[%s3 + $0x4] sm:$0xf]
  %v147 = vld [vmem:[%s3 + $0x8] sm:$0xf]
  %v148 = vld [vmem:[%s3 + $0xc] sm:$0xf]
  %v149 = vld [vmem:[%s4] sm:$0x1]
  %v151 = vperm.slane %v149, 0
  %v157 = vunpack.c.l.b16 %v145
  %v158 = vunpack.c.l.b16 %v146
  %v159 = vunpack.c.l.b16 %v147
  %v160 = vunpack.c.l.b16 %v148
  %v161 = vpack.c.b16 %v158, %v157
  %v162 = vpack.c.b16 %v160, %v159
  %v166 = vsel %vm33, %v143, 0
  %v169 = vsel %vm33, %v144, 0
  %171 = vmatpush.bf16.msra.mxu0 0
  %172 = vmatpush.bf16.msra.mxu0 0
  %173 = vmatpush.bf16.msra.mxu0 0
  %174 = vmatpush.bf16.msra.mxu0 0
  %175 = vmatpush.bf16.msra.mxu0 0
  %176 = vmatpush.bf16.msra.mxu0 0
  %177 = vmatpush.bf16.msra.mxu0 %v162
  %178 = vmatpush.bf16.msra.mxu0 %v161
  %179 = vmatmul.bf16.gmra.mxu0 %v166
  %v180 = vpop.f32.mrf.mxu0
  %v181 = vadd.f32 %v151, %v180
  %v182 = vpop.f32.mrf.mxu0
  %v183 = vadd.f32 %v151, %v182
  %184 = vmatmul.bf16.gmra.mxu0 %v169
  %v185 = vpop.f32.mrf.mxu0
  %v186 = vadd.f32 %v151, %v185
  %v187 = vpop.f32.mrf.mxu0
  %v188 = vadd.f32 %v151, %v187
  %189 = vdwg.mxu0
  %v190 = vmax.f32 %v181, 0.0
  %v191 = vmax.f32 %v183, 0.0
  %v192 = vmax.f32 %v186, 0.0
  %v193 = vmax.f32 %v188, 0.0
  %v194 = vpack.c.bf16 %v191, %v190
  %v195 = vpack.c.bf16 %v193, %v192
  %v196 = vld [vmem:[%s5] sm:$0xf]
  %v197 = vld [vmem:[%s5 + $0x4] sm:$0xf]
  %v198 = vld [vmem:[%s5 + $0x8] sm:$0xf]
  %v199 = vld [vmem:[%s5 + $0xc] sm:$0xf]
  %v200 = vld [vmem:[%s5 + $0x10] sm:$0xf]
  %v201 = vld [vmem:[%s5 + $0x14] sm:$0xf]
  %v202 = vld [vmem:[%s5 + $0x18] sm:$0xf]
  %v203 = vld [vmem:[%s5 + $0x1c] sm:$0xf]
  %v204 = vld [vmem:[%s6] sm:$0x1]
  %v206 = vperm.slane %v204, 0
  %v216 = vunpack.c.l.b16 %v196
  %v217 = vunpack.c.l.b16 %v197
  %v218 = vunpack.c.l.b16 %v198
  %v219 = vunpack.c.l.b16 %v199
  %v220 = vunpack.c.l.b16 %v200
  %v221 = vunpack.c.l.b16 %v201
  %v222 = vunpack.c.l.b16 %v202
  %v223 = vunpack.c.l.b16 %v203
  %v224 = vpack.c.b16 %v217, %v216
  %v225 = vpack.c.b16 %v219, %v218
  %v226 = vpack.c.b16 %v221, %v220
  %v227 = vpack.c.b16 %v223, %v222
  %vm232 = vcmask 523264
  %v234 = vsel %vm232, %v194, 0
  %v237 = vsel %vm232, %v195, 0
  %239 = vmatpush.bf16.msra.mxu0 0
  %240 = vmatpush.bf16.msra.mxu0 0
  %241 = vmatpush.bf16.msra.mxu0 0
  %242 = vmatpush.bf16.msra.mxu0 0
  %243 = vmatpush.bf16.msra.mxu0 %v227
  %244 = vmatpush.bf16.msra.mxu0 %v226
  %245 = vmatpush.bf16.msra.mxu0 %v225
  %246 = vmatpush.bf16.msra.mxu0 %v224
  %247 = vmatmul.bf16.gmra.mxu0 %v234
  %v248 = vpop.f32.mrf.mxu0
  %v249 = vadd.f32 %v206, %v248
  %v250 = vpop.f32.mrf.mxu0
  %v251 = vadd.f32 %v206, %v250
  %252 = vmatmul.bf16.gmra.mxu0 %v237
  %v253 = vpop.f32.mrf.mxu0
  %v254 = vadd.f32 %v206, %v253
  %v255 = vpop.f32.mrf.mxu0
  %v256 = vadd.f32 %v206, %v255
  %257 = vdwg.mxu0
  %v258 = vadd.f32 %v27, %v249
  %v259 = vadd.f32 %v28, %v251
  %v260 = vadd.f32 %v29, %v254
  %v261 = vadd.f32 %v30, %v256
  %262 = vst.msk [vmem:[%s7] sm:$0xff] %vm33, %v258
  %263 = vst.msk [vmem:[%s7 + $0x8] sm:$0xff] %vm33, %v259
  %264 = vst.msk [vmem:[%s7 + $0x10] sm:$0xff] %vm33, %v260
  %265 = vst.msk [vmem:[%s7 + $0x18] sm:$0xff] %vm33, %v261
  // Predicated region
  $region30: #{transformer_forward.27} parent=0 // pred_check
    _
  $region31: #{transformer_forward.27} parent=0 // pred_check_branch
    %267 = sbr.rel (0) target = $region33
  $region32: #{transformer_forward.27} parent=0 // pred_region
    _
  $region33: #{transformer_forward.27} parent=0 // pred_fallthru
    _
  // Predicated region
  $region34: #{transformer_forward.27} parent=0 // pred_check
    _
  $region35: #{transformer_forward.27} parent=0 // pred_check_branch
    %269 = sbr.rel (0) target = $region37
  $region36: #{transformer_forward.27} parent=0 // pred_region
    _
  $region37: #{transformer_forward.27} parent=0 // pred_fallthru
    _

// kernel: transformer_forward.32
$region0: #{transformer_forward.32}
  #allocation0 [shape = 'u32[]', space=smem, size = 0x4, offset = 0x4, fixed_abs, tag = 'smem constant byte address 0x4 - core index']
  #allocation1 [shape = 'u32[72,128]{1,0:T(1,128)}', space=vmem, size = 0x9000, scoped, tag = 'internal scratch']
  %s0 = inlined_call_operand.vmem [shape: f32[32,32], index: 0, kind: input, shape index: {}]
  %s1 = inlined_call_operand.vmem [shape: f32[32,32], index: 1, kind: input, shape index: {}]
  %s2 = inlined_call_operand.vmem [shape: bf16[32,32], index: 2, kind: input, shape index: {}]
  %s3 = inlined_call_operand.vmem [shape: f32[1,32], index: 3, kind: input, shape index: {}]
  %s4 = inlined_call_operand.vmem [shape: bf16[32,32], index: 4, kind: input, shape index: {}]
  %s5 = inlined_call_operand.hbm [shape: f32[1,32], index: 5, kind: input, shape index: {}]
  %s6 = inlined_call_operand.vmem [shape: bf16[32,32], index: 6, kind: output, shape index: {0}]
  %s7 = inlined_call_operand.vmem [shape: bf16[32,32], index: 7, kind: output, shape index: {1}]
  %8 = xla_tuple %s6, %s7
  %s9 = sld [smem:[#allocation0]]
  $region46: #{transformer_forward.32} parent=0
    _
  %s11 = ssub.s32 1, %s9
  %s12 = scalar_select 0, %s11, %s9
  $region1: #{transformer_forward.32} parent=0
    #allocation2 [shape = 'u8[512]{0}', space=vmem, size = 0x400, scoped, tag = 'input window, operand 5, single buffered']
    #allocation3 [shape = 's32[1]{0}', space=sflag, size = 0x4, scoped, tag = 'scoped memory for transformer_forward.32']
    %13 = vsyncpa [#allocation3], 0
    // Predicated region
    $region2: #{transformer_forward.32} parent=1 // pred_check
      _
    $region3: #{transformer_forward.32} parent=1 // pred_check_branch
      %15 = sbr.rel (0) target = $region5
    $region4: #{transformer_forward.32} parent=1 // pred_region
      _
    $region5: #{transformer_forward.32} parent=1 // pred_fallthru
      _
    // Predicated region
    $region6: #{transformer_forward.32} parent=1 // pred_check
      _
    $region7: #{transformer_forward.32} parent=1 // pred_check_branch
      %17 = sbr.rel (0) target = $region9
    $region8: #{transformer_forward.32} parent=1 // pred_region
      _
    $region9: #{transformer_forward.32} parent=1 // pred_fallthru
      _
    // Predicated region
    $region10: #{transformer_forward.32} parent=1 // pred_check
      _
    $region11: #{transformer_forward.32} parent=1 // pred_check_branch
      %19 = sbr.rel (0) target = $region13
    $region12: #{transformer_forward.32} parent=1 // pred_region
      _
    $region13: #{transformer_forward.32} parent=1 // pred_fallthru
      _
    // Predicated region
    $region14: #{transformer_forward.32} parent=1 // pred_check
      _
    $region15: #{transformer_forward.32} parent=1 // pred_check_branch
      %21 = sbr.rel (0) target = $region17
    $region16: #{transformer_forward.32} parent=1 // pred_region
      _
    $region17: #{transformer_forward.32} parent=1 // pred_fallthru
      _
    // Predicated region
    $region18: #{transformer_forward.32} parent=1 // pred_check
      _
    $region19: #{transformer_forward.32} parent=1 // pred_check_branch
      %23 = sbr.rel (0) target = $region21
    $region20: #{transformer_forward.32} parent=1 // pred_region
      _
    $region21: #{transformer_forward.32} parent=1 // pred_fallthru
      _
    // Predicated region
    $region22: #{transformer_forward.32} parent=1 // pred_check
      _
    $region23: #{transformer_forward.32} parent=1 // pred_check_branch
      %25 = sbr.rel (0) target = $region25
    $region24: #{transformer_forward.32} parent=1 // pred_region
      %27 = vsyncadd [#allocation3], 0
      %s29 = sshll.u32 %s5, 4
      %s30 = int_to_ptr.hbm [resolvable:$true] %s29
      %s31 = sshll.u32 [#allocation2], 4
      %s32 = int_to_ptr.vmem [resolvable:$true] %s31
      %34 = dma.hbm_to_vmem [thread:$0]  %s30, 16, %s32, [#allocation3]
    $region25: #{transformer_forward.32} parent=1 // pred_fallthru
      _
    // Predicated region
    $region26: #{transformer_forward.32} parent=1 // pred_check
      _
    $region27: #{transformer_forward.32} parent=1 // pred_check_branch
      %36 = sbr.rel (0) target = $region29
    $region28: #{transformer_forward.32} parent=1 // pred_region
      %38 = dma.done [#allocation3], 16
    $region29: #{transformer_forward.32} parent=1 // pred_fallthru
      _
    %v40 = vld [vmem:[%s0] sm:$0xff]
    %v41 = vld [vmem:[%s0 + $0x8] sm:$0xff]
    %v42 = vld [vmem:[%s0 + $0x10] sm:$0xff]
    %v43 = vld [vmem:[%s0 + $0x18] sm:$0xff]
    %v44 = vld [vmem:[%s1] sm:$0xff]
    %v45 = vld [vmem:[%s1 + $0x8] sm:$0xff]
    %v46 = vld [vmem:[%s1 + $0x10] sm:$0xff]
    %v47 = vld [vmem:[%s1 + $0x18] sm:$0xff]
    %v48 = vadd.f32 %v40, %v44
    %v49 = vadd.f32 %v41, %v45
    %v50 = vadd.f32 %v42, %v46
    %v51 = vadd.f32 %v43, %v47
    %v52 = vpack.c.bf16 %v49, %v48
    %v53 = vpack.c.bf16 %v51, %v50
    %v54 = vld [vmem:[%s2] sm:$0xf]
    %v55 = vld [vmem:[%s2 + $0x4] sm:$0xf]
    %v56 = vld [vmem:[%s2 + $0x8] sm:$0xf]
    %v57 = vld [vmem:[%s2 + $0xc] sm:$0xf]
    %v58 = vld [vmem:[%s3] sm:$0x1]
    %v60 = vperm.slane %v58, 0
    %v66 = vunpack.c.l.b16 %v54
    %v67 = vunpack.c.l.b16 %v55
    %v68 = vunpack.c.l.b16 %v56
    %v69 = vunpack.c.l.b16 %v57
    %v70 = vpack.c.b16 %v67, %v66
    %v71 = vpack.c.b16 %v69, %v68
    %vm74 = vcmask 261120
    %v76 = vsel %vm74, %v52, 0
    %v79 = vsel %vm74, %v53, 0
    %81 = vmatpush.bf16.msra.mxu0 0
    %82 = vmatpush.bf16.msra.mxu0 0
    %83 = vmatpush.bf16.msra.mxu0 0
    %84 = vmatpush.bf16.msra.mxu0 0
    %85 = vmatpush.bf16.msra.mxu0 0
    %86 = vmatpush.bf16.msra.mxu0 0
    %87 = vmatpush.bf16.msra.mxu0 %v71
    %88 = vmatpush.bf16.msra.mxu0 %v70
    %89 = vmatmul.bf16.gmra.mxu0 %v76
    %v90 = vpop.f32.mrf.mxu0
    %v91 = vadd.f32 %v60, %v90
    %v92 = vpop.f32.mrf.mxu0
    %v93 = vadd.f32 %v60, %v92
    %94 = vmatmul.bf16.gmra.mxu0 %v79
    %v95 = vpop.f32.mrf.mxu0
    %v96 = vadd.f32 %v60, %v95
    %v97 = vpop.f32.mrf.mxu0
    %v98 = vadd.f32 %v60, %v97
    %99 = vdwg.mxu0
    %v100 = vpack.c.bf16 %v41, %v40
    %v101 = vpack.c.bf16 %v43, %v42
    %v102 = vld [vmem:[%s4] sm:$0xf]
    %v103 = vld [vmem:[%s4 + $0x4] sm:$0xf]
    %v104 = vld [vmem:[%s4 + $0x8] sm:$0xf]
    %v105 = vld [vmem:[%s4 + $0xc] sm:$0xf]
    %v106 = vld [vmem:[#allocation2] sm:$0x1]
    %v108 = vperm.slane %v106, 0
    %v114 = vunpack.c.l.b16 %v102
    %v115 = vunpack.c.l.b16 %v103
    %v116 = vunpack.c.l.b16 %v104
    %v117 = vunpack.c.l.b16 %v105
    %v118 = vpack.c.b16 %v115, %v114
    %v119 = vpack.c.b16 %v117, %v116
    %v123 = vsel %vm74, %v100, 0
    %v126 = vsel %vm74, %v101, 0
    %128 = vmatpush.bf16.msra.mxu0 0
    %129 = vmatpush.bf16.msra.mxu0 0
    %130 = vmatpush.bf16.msra.mxu0 0
    %131 = vmatpush.bf16.msra.mxu0 0
    %132 = vmatpush.bf16.msra.mxu0 0
    %133 = vmatpush.bf16.msra.mxu0 0
    %134 = vmatpush.bf16.msra.mxu0 %v119
    %135 = vmatpush.bf16.msra.mxu0 %v118
    %136 = vmatmul.bf16.gmra.mxu0 %v123
    %v137 = vpop.f32.mrf.mxu0
    %v138 = vadd.f32 %v108, %v137
    %v139 = vpop.f32.mrf.mxu0
    %v140 = vadd.f32 %v108, %v139
    %141 = vmatmul.bf16.gmra.mxu0 %v126
    %v142 = vpop.f32.mrf.mxu0
    %v143 = vadd.f32 %v108, %v142
    %v144 = vpop.f32.mrf.mxu0
    %v145 = vadd.f32 %v108, %v144
    %146 = vdwg.mxu0
    %v147 = vpack.c.bf16 %v91, %v91
    %v148 = vpack.c.bf16 %v93, %v93
    %v149 = vpack.c.bf16 %v96, %v96
    %v150 = vpack.c.bf16 %v98, %v98
    %vm151 = vcmask 257024
    %152 = vst.msk [vmem:[%s6] sm:$0xf] %vm151, %v147
    %153 = vst.msk [vmem:[%s6 + $0x4] sm:$0xf] %vm151, %v148
    %154 = vst.msk [vmem:[%s6 + $0x8] sm:$0xf] %vm151, %v149
    %155 = vst.msk [vmem:[%s6 + $0xc] sm:$0xf] %vm151, %v150
    %v156 = vpack.c.bf16 %v138, %v138
    %v157 = vpack.c.bf16 %v140, %v140
    %v158 = vpack.c.bf16 %v143, %v143
    %v159 = vpack.c.bf16 %v145, %v145
    %160 = vst.msk [vmem:[%s7] sm:$0xf] %vm151, %v156
    %161 = vst.msk [vmem:[%s7 + $0x4] sm:$0xf] %vm151, %v157
    %162 = vst.msk [vmem:[%s7 + $0x8] sm:$0xf] %vm151, %v158
    %163 = vst.msk [vmem:[%s7 + $0xc] sm:$0xf] %vm151, %v159
    // Predicated region
    $region30: #{transformer_forward.32} parent=1 // pred_check
      _
    $region31: #{transformer_forward.32} parent=1 // pred_check_branch
      %165 = sbr.rel (0) target = $region33
    $region32: #{transformer_forward.32} parent=1 // pred_region
      _
    $region33: #{transformer_forward.32} parent=1 // pred_fallthru
      _
    // Predicated region
    $region34: #{transformer_forward.32} parent=1 // pred_check
      _
    $region35: #{transformer_forward.32} parent=1 // pred_check_branch
      %167 = sbr.rel (0) target = $region37
    $region36: #{transformer_forward.32} parent=1 // pred_region
      _
    $region37: #{transformer_forward.32} parent=1 // pred_fallthru
      _
    // Predicated region
    $region38: #{transformer_forward.32} parent=1 // pred_check
      _
    $region39: #{transformer_forward.32} parent=1 // pred_check_branch
      %169 = sbr.rel (0) target = $region41
    $region40: #{transformer_forward.32} parent=1 // pred_region
      _
    $region41: #{transformer_forward.32} parent=1 // pred_fallthru
      _
    // Predicated region
    $region42: #{transformer_forward.32} parent=1 // pred_check
      _
    $region43: #{transformer_forward.32} parent=1 // pred_check_branch
      %171 = sbr.rel (0) target = $region45
    $region44: #{transformer_forward.32} parent=1 // pred_region
      _
    $region45: #{transformer_forward.32} parent=1 // pred_fallthru
      _
    %172 = vsyncpa [#allocation3], 1

// kernel: transformer_forward.33
$region0: #{transformer_forward.33}
  #allocation0 [shape = 'u32[]', space=smem, size = 0x4, offset = 0x4, fixed_abs, tag = 'smem constant byte address 0x4 - core index']
  #allocation1 [shape = 'u32[72,128]{1,0:T(1,128)}', space=vmem, size = 0x9000, scoped, tag = 'internal scratch']
  %s0 = inlined_call_operand.vmem [shape: bf16[2,8,32], index: 0, kind: input, shape index: {}]
  %s1 = inlined_call_operand.vmem [shape: bf16[2,16,32], index: 1, kind: input, shape index: {}]
  %s2 = inlined_call_operand.vmem [shape: bf16[2,16,32], index: 2, kind: input, shape index: {}]
  %s3 = inlined_call_operand.vmem [shape: f32[2,1,16], index: 3, kind: input, shape index: {}]
  %s4 = inlined_call_operand.vmem [shape: f32[2,8,32], index: 4, kind: input, shape index: {}]
  %s5 = inlined_call_operand.vmem [shape: bf16[4,8,32], index: 5, kind: input, shape index: {}]
  %s6 = inlined_call_operand.vmem [shape: f32[1,32], index: 6, kind: input, shape index: {}]
  %s7 = inlined_call_operand.vmem [shape: f32[2,8,32], index: 7, kind: output, shape index: {}]
  %s8 = sld [smem:[#allocation0]]
  $region61: #{transformer_forward.33} parent=0
    _
  %s10 = ssub.s32 1, %s8
  %s11 = scalar_select 0, %s10, %s8
  loop: start=0, step=1, limit=4
  $region2: #{transformer_forward.33} parent=0 // loop_pre_header
    _
  $region3: #{transformer_forward.33} parent=0 // loop_header
    %s13 = sphi 0, %s17
    %p14 = scmp.ge.s32.totalorder %s13, 4
    %s23 = sphi 0, %s25
    %s26 = sphi 0, %s23
    %s27 = sphi 0, %s26
    %s43 = sphi 0, %s27
    %s49 = sphi 0, %s51
    %s52 = sphi 0, %s49
    %s53 = sphi 0, %s52
    %s69 = sphi 0, %s53
    %s75 = sphi 0, %s77
    %s78 = sphi 0, %s75
    %s79 = sphi 0, %s78
    %s95 = sphi 0, %s79
    %s101 = sphi 0, %s103
    %s104 = sphi 0, %s101
    %s105 = sphi 0, %s104
    %s121 = sphi 0, %s105
    %s127 = sphi 0, %s129
    %s130 = sphi 0, %s127
    %s131 = sphi 0, %s130
    %s147 = sphi 0, %s131
    %s151 = sphi 0, %s151
    %s153 = sphi 0, %s151
    %s154 = sphi 0, %s153
    %s168 = sphi 0, %s154
    %s172 = sphi 0, %s172
    %s174 = sphi 0, %s172
    %s175 = sphi 0, %s174
    %s189 = sphi 0, %s175
    %s195 = sphi 0, %s197
    %s198 = sphi 0, %s195
    %s199 = sphi 0, %s198
    %s215 = sphi 0, %s199
  $region4: #{transformer_forward.33} parent=0 // loop_header_branch
    %16 = sbr.rel (%p14) target = $region8
  $region5: #{transformer_forward.33} parent=0 // loop_body
    %s18 = ssub.s32 %s13, 1
    %s19 = ssub.s32 %s13, 2
    %s20 = sadd.s32 %s13, 1
    %s21 = ssub.s32 %s13, %s20
    %p22 = scmp.eq.s32.totalorder %s21, 0
    %s24 = sadd.s32 %s23, 1
    %s25 = scalar_select %p22, %s23, %s24
    %p28 = pneg %p22
    %p29 = scmp.eq.s32.totalorder %s13, 1
    %p30 = por %p28, %p29
    %p31 = scmp.ne.s32.totalorder %s23, %s26
    %p32 = scmp.eq.s32.totalorder %s13, 0
    %p33 = por %p31, %p32
    %p34 = scmp.ne.s32.totalorder %s23, %s26
    %p35 = scmp.eq.s32.totalorder %s18, 1
    %p36 = por %p34, %p35
    %p37 = scmp.ne.s32.totalorder %s26, %s27
    %p38 = scmp.eq.s32.totalorder %s18, 0
    %p39 = por %p37, %p38
    %p40 = scmp.ne.s32.totalorder %s26, %s27
    %p41 = scmp.eq.s32.totalorder %s19, 1
    %p42 = por %p40, %p41
    %p44 = scmp.ne.s32.totalorder %s27, %s43
    %p45 = scmp.eq.s32.totalorder %s19, 0
    %p46 = por %p44, %p45
    %s47 = ssub.s32 %s13, %s20
    %p48 = scmp.eq.s32.totalorder %s47, 0
    %s50 = sadd.s32 %s49, 1
    %s51 = scalar_select %p48, %s49, %s50
    %p54 = pneg %p48
    %p55 = scmp.eq.s32.totalorder %s13, 1
    %p56 = por %p54, %p55
    %p57 = scmp.ne.s32.totalorder %s49, %s52
    %p58 = scmp.eq.s32.totalorder %s13, 0
    %p59 = por %p57, %p58
    %p60 = scmp.ne.s32.totalorder %s49, %s52
    %p61 = scmp.eq.s32.totalorder %s18, 1
    %p62 = por %p60, %p61
    %p63 = scmp.ne.s32.totalorder %s52, %s53
    %p64 = scmp.eq.s32.totalorder %s18, 0
    %p65 = por %p63, %p64
    %p66 = scmp.ne.s32.totalorder %s52, %s53
    %p67 = scmp.eq.s32.totalorder %s19, 1
    %p68 = por %p66, %p67
    %p70 = scmp.ne.s32.totalorder %s53, %s69
    %p71 = scmp.eq.s32.totalorder %s19, 0
    %p72 = por %p70, %p71
    %s73 = ssub.s32 %s13, %s20
    %p74 = scmp.eq.s32.totalorder %s73, 0
    %s76 = sadd.s32 %s75, 1
    %s77 = scalar_select %p74, %s75, %s76
    %p80 = pneg %p74
    %p81 = scmp.eq.s32.totalorder %s13, 1
    %p82 = por %p80, %p81
    %p83 = scmp.ne.s32.totalorder %s75, %s78
    %p84 = scmp.eq.s32.totalorder %s13, 0
    %p85 = por %p83, %p84
    %p86 = scmp.ne.s32.totalorder %s75, %s78
    %p87 = scmp.eq.s32.totalorder %s18, 1
    %p88 = por %p86, %p87
    %p89 = scmp.ne.s32.totalorder %s78, %s79
    %p90 = scmp.eq.s32.totalorder %s18, 0
    %p91 = por %p89, %p90
    %p92 = scmp.ne.s32.totalorder %s78, %s79
    %p93 = scmp.eq.s32.totalorder %s19, 1
    %p94 = por %p92, %p93
    %p96 = scmp.ne.s32.totalorder %s79, %s95
    %p97 = scmp.eq.s32.totalorder %s19, 0
    %p98 = por %p96, %p97
    %s99 = ssub.s32 %s13, %s20
    %p100 = scmp.eq.s32.totalorder %s99, 0
    %s102 = sadd.s32 %s101, 1
    %s103 = scalar_select %p100, %s101, %s102
    %p106 = pneg %p100
    %p107 = scmp.eq.s32.totalorder %s13, 1
    %p108 = por %p106, %p107
    %p109 = scmp.ne.s32.totalorder %s101, %s104
    %p110 = scmp.eq.s32.totalorder %s13, 0
    %p111 = por %p109, %p110
    %p112 = scmp.ne.s32.totalorder %s101, %s104
    %p113 = scmp.eq.s32.totalorder %s18, 1
    %p114 = por %p112, %p113
    %p115 = scmp.ne.s32.totalorder %s104, %s105
    %p116 = scmp.eq.s32.totalorder %s18, 0
    %p117 = por %p115, %p116
    %p118 = scmp.ne.s32.totalorder %s104, %s105
    %p119 = scmp.eq.s32.totalorder %s19, 1
    %p120 = por %p118, %p119
    %p122 = scmp.ne.s32.totalorder %s105, %s121
    %p123 = scmp.eq.s32.totalorder %s19, 0
    %p124 = por %p122, %p123
    %s125 = ssub.s32 %s13, %s20
    %p126 = scmp.eq.s32.totalorder %s125, 0
    %s128 = sadd.s32 %s127, 1
    %s129 = scalar_select %p126, %s127, %s128
    %p132 = pneg %p126
    %p133 = scmp.eq.s32.totalorder %s13, 1
    %p134 = por %p132, %p133
    %p135 = scmp.ne.s32.totalorder %s127, %s130
    %p136 = scmp.eq.s32.totalorder %s13, 0
    %p137 = por %p135, %p136
    %p138 = scmp.ne.s32.totalorder %s127, %s130
    %p139 = scmp.eq.s32.totalorder %s18, 1
    %p140 = por %p138, %p139
    %p141 = scmp.ne.s32.totalorder %s130, %s131
    %p142 = scmp.eq.s32.totalorder %s18, 0
    %p143 = por %p141, %p142
    %p144 = scmp.ne.s32.totalorder %s130, %s131
    %p145 = scmp.eq.s32.totalorder %s19, 1
    %p146 = por %p144, %p145
    %p148 = scmp.ne.s32.totalorder %s131, %s147
    %p149 = scmp.eq.s32.totalorder %s19, 0
    %p150 = por %p148, %p149
    %s152 = sadd.s32 %s151, 1
    %p155 = scmp.eq.s32.totalorder %s13, 1
    %p156 = scmp.ne.s32.totalorder %s151, %s153
    %p157 = scmp.eq.s32.totalorder %s13, 0
    %p158 = por %p156, %p157
    %p159 = scmp.ne.s32.totalorder %s151, %s153
    %p160 = scmp.eq.s32.totalorder %s18, 1
    %p161 = por %p159, %p160
    %p162 = scmp.ne.s32.totalorder %s153, %s154
    %p163 = scmp.eq.s32.totalorder %s18, 0
    %p164 = por %p162, %p163
    %p165 = scmp.ne.s32.totalorder %s153, %s154
    %p166 = scmp.eq.s32.totalorder %s19, 1
    %p167 = por %p165, %p166
    %p169 = scmp.ne.s32.totalorder %s154, %s168
    %p170 = scmp.eq.s32.totalorder %s19, 0
    %p171 = por %p169, %p170
    %s173 = sadd.s32 %s172, 1
    %p176 = scmp.eq.s32.totalorder %s13, 1
    %p177 = scmp.ne.s32.totalorder %s172, %s174
    %p178 = scmp.eq.s32.totalorder %s13, 0
    %p179 = por %p177, %p178
    %p180 = scmp.ne.s32.totalorder %s172, %s174
    %p181 = scmp.eq.s32.totalorder %s18, 1
    %p182 = por %p180, %p181
    %p183 = scmp.ne.s32.totalorder %s174, %s175
    %p184 = scmp.eq.s32.totalorder %s18, 0
    %p185 = por %p183, %p184
    %p186 = scmp.ne.s32.totalorder %s174, %s175
    %p187 = scmp.eq.s32.totalorder %s19, 1
    %p188 = por %p186, %p187
    %p190 = scmp.ne.s32.totalorder %s175, %s189
    %p191 = scmp.eq.s32.totalorder %s19, 0
    %p192 = por %p190, %p191
    %s193 = ssub.s32 %s13, %s20
    %p194 = scmp.eq.s32.totalorder %s193, 0
    %s196 = sadd.s32 %s195, 1
    %s197 = scalar_select %p194, %s195, %s196
    %p200 = pneg %p194
    %p201 = scmp.eq.s32.totalorder %s13, 1
    %p202 = por %p200, %p201
    %p203 = scmp.ne.s32.totalorder %s195, %s198
    %p204 = scmp.eq.s32.totalorder %s13, 0
    %p205 = por %p203, %p204
    %p206 = scmp.ne.s32.totalorder %s195, %s198
    %p207 = scmp.eq.s32.totalorder %s18, 1
    %p208 = por %p206, %p207
    %p209 = scmp.ne.s32.totalorder %s198, %s199
    %p210 = scmp.eq.s32.totalorder %s18, 0
    %p211 = por %p209, %p210
    %p212 = scmp.ne.s32.totalorder %s198, %s199
    %p213 = scmp.eq.s32.totalorder %s19, 1
    %p214 = por %p212, %p213
    %p216 = scmp.ne.s32.totalorder %s199, %s215
    %p217 = scmp.eq.s32.totalorder %s19, 0
    %p218 = por %p216, %p217
    %p219 = scmp.le.s32.totalorder 1, %s13
    %p220 = scmp.lt.s32.totalorder %s13, 3
    %p221 = pnand %p219, %p220
    %p222 = pneg %p221
    // Predicated region
    $region9: #{transformer_forward.33} parent=5 // pred_check
      _
    $region10: #{transformer_forward.33} parent=5 // pred_check_branch
      %224 = sbr.rel (%p221) target = $region12
    $region11: #{transformer_forward.33} parent=5 // pred_region
      %s225 = ssub.s32 %s13, 1
      // Predicated region
      $region13: #{transformer_forward.33} parent=11 // pred_check
        %p226 = pneg %p164
      $region14: #{transformer_forward.33} parent=11 // pred_check_branch
        %228 = sbr.rel (%p226) target = $region16
      $region15: #{transformer_forward.33} parent=11 // pred_region
        _
      $region16: #{transformer_forward.33} parent=11 // pred_fallthru
        _
      // Predicated region
      $region17: #{transformer_forward.33} parent=11 // pred_check
        %p229 = pneg %p185
      $region18: #{transformer_forward.33} parent=11 // pred_check_branch
        %231 = sbr.rel (%p229) target = $region20
      $region19: #{transformer_forward.33} parent=11 // pred_region
        _
      $region20: #{transformer_forward.33} parent=11 // pred_fallthru
        _
    $region12: #{transformer_forward.33} parent=5 // pred_fallthru
      _
    %p232 = scmp.lt.s32.totalorder %s13, 2
    // Predicated region
    $region21: #{transformer_forward.33} parent=5 // pred_check
      %p233 = pneg %p232
    $region22: #{transformer_forward.33} parent=5 // pred_check_branch
      %235 = sbr.rel (%p233) target = $region24
    $region23: #{transformer_forward.33} parent=5 // pred_region
      // Predicated region
      $region25: #{transformer_forward.33} parent=23 // pred_check
        %p236 = pneg %p33
      $region26: #{transformer_forward.33} parent=23 // pred_check_branch
        %238 = sbr.rel (%p236) target = $region28
      $region27: #{transformer_forward.33} parent=23 // pred_region
        %p239 = scmp.lt.s32.totalorder %s13, 1
        %s240 = scalar_select %p239, %s13, 1
        %s241 = smul.addr %s240, 4
        %s242 = scalar_lea.vmem %s0, %s241
      $region28: #{transformer_forward.33} parent=23 // pred_fallthru
        _
      // Predicated region
      $region29: #{transformer_forward.33} parent=23 // pred_check
        %p243 = pneg %p59
      $region30: #{transformer_forward.33} parent=23 // pred_check_branch
        %245 = sbr.rel (%p243) target = $region32
      $region31: #{transformer_forward.33} parent=23 // pred_region
        %p246 = scmp.lt.s32.totalorder %s13, 1
        %s247 = scalar_select %p246, %s13, 1
        %s248 = smul.addr %s247, 2
        %s249 = smul.addr %s248, 4
        %s250 = scalar_lea.vmem %s1, %s249
      $region32: #{transformer_forward.33} parent=23 // pred_fallthru
        _
      // Predicated region
      $region33: #{transformer_forward.33} parent=23 // pred_check
        %p251 = pneg %p85
      $region34: #{transformer_forward.33} parent=23 // pred_check_branch
        %253 = sbr.rel (%p251) target = $region36
      $region35: #{transformer_forward.33} parent=23 // pred_region
        %p254 = scmp.lt.s32.totalorder %s13, 1
        %s255 = scalar_select %p254, %s13, 1
        %s256 = smul.addr %s255, 2
        %s257 = smul.addr %s256, 4
        %s258 = scalar_lea.vmem %s2, %s257
      $region36: #{transformer_forward.33} parent=23 // pred_fallthru
        _
      // Predicated region
      $region37: #{transformer_forward.33} parent=23 // pred_check
        %p259 = pneg %p111
      $region38: #{transformer_forward.33} parent=23 // pred_check_branch
        %261 = sbr.rel (%p259) target = $region40
      $region39: #{transformer_forward.33} parent=23 // pred_region
        %p262 = scmp.lt.s32.totalorder %s13, 1
        %s263 = scalar_select %p262, %s13, 1
        %s264 = scalar_lea.vmem %s3, %s263
      $region40: #{transformer_forward.33} parent=23 // pred_fallthru
        _
      // Predicated region
      $region41: #{transformer_forward.33} parent=23 // pred_check
        %p265 = pneg %p137
      $region42: #{transformer_forward.33} parent=23 // pred_check_branch
        %267 = sbr.rel (%p265) target = $region44
      $region43: #{transformer_forward.33} parent=23 // pred_region
        %p268 = scmp.lt.s32.totalorder %s13, 1
        %s269 = scalar_select %p268, %s13, 1
        %s270 = smul.addr %s269, 8
        %s271 = scalar_lea.vmem %s4, %s270
      $region44: #{transformer_forward.33} parent=23 // pred_fallthru
        _
    $region24: #{transformer_forward.33} parent=5 // pred_fallthru
      _
    %p272 = scmp.le.s32.totalorder 1, %s13
    %p273 = scmp.lt.s32.totalorder %s13, 3
    %p274 = pnand %p272, %p273
    %p275 = pneg %p274
    // Predicated region
    $region45: #{transformer_forward.33} parent=5 // pred_check
      _
    $region46: #{transformer_forward.33} parent=5 // pred_check_branch
      %277 = sbr.rel (%p274) target = $region48
    $region47: #{transformer_forward.33} parent=5 // pred_region
      %s278 = ssub.s32 %s13, 1
      %p279 = scmp.lt.s32.totalorder %s18, 1
      %s280 = scalar_select %p279, %s18, 1
      %s281 = smul.addr %s280, 4
      %s282 = scalar_lea.vmem %s0, %s281
      %p283 = pneg %p39
      %p284 = pneg %p36
      %p285 = scmp.lt.s32.totalorder %s18, 1
      %s286 = scalar_select %p285, %s18, 1
      %s287 = smul.addr %s286, 2
      %s288 = smul.addr %s287, 4
      %s289 = scalar_lea.vmem %s1, %s288
      %p290 = pneg %p65
      %p291 = pneg %p62
      %p292 = scmp.lt.s32.totalorder %s18, 1
      %s293 = scalar_select %p292, %s18, 1
      %s294 = smul.addr %s293, 2
      %s295 = smul.addr %s294, 4
      %s296 = scalar_lea.vmem %s2, %s295
      %p297 = pneg %p91
      %p298 = pneg %p88
      %p299 = scmp.lt.s32.totalorder %s18, 1
      %s300 = scalar_select %p299, %s18, 1
      %s301 = scalar_lea.vmem %s3, %s300
      %p302 = pneg %p117
      %p303 = pneg %p114
      %p304 = scmp.lt.s32.totalorder %s18, 1
      %s305 = scalar_select %p304, %s18, 1
      %s306 = smul.addr %s305, 8
      %s307 = scalar_lea.vmem %s4, %s306
      %p308 = pneg %p143
      %p309 = pneg %p140
      %p310 = pneg %p164
      %p311 = pneg %p161
      %p312 = pneg %p185
      %p313 = pneg %p182
      %p314 = pneg %p211
      %p315 = pneg %p208
      %p316 = scmp.lt.s32.totalorder %s18, 1
      %s317 = scalar_select %p316, %s18, 1
      %s318 = smul.addr %s317, 8
      %s319 = scalar_lea.vmem %s7, %s318
      %p320 = scmp.lt.s32.totalorder %s18, 1
      %s321 = scalar_select %p320, %s18, 1
      %s322 = smul.addr %s321, 4
      %s323 = scalar_lea.vmem %s0, %s322
      %p324 = scmp.lt.s32.totalorder %s18, 1
      %s325 = scalar_select %p324, %s18, 1
      %s326 = smul.addr %s325, 2
      %s327 = smul.addr %s326, 4
      %s328 = scalar_lea.vmem %s1, %s327
      %p329 = scmp.lt.s32.totalorder %s18, 1
      %s330 = scalar_select %p329, %s18, 1
      %s331 = smul.addr %s330, 2
      %s332 = smul.addr %s331, 4
      %s333 = scalar_lea.vmem %s2, %s332
      %p334 = scmp.lt.s32.totalorder %s18, 1
      %s335 = scalar_select %p334, %s18, 1
      %s336 = scalar_lea.vmem %s3, %s335
      %p337 = scmp.lt.s32.totalorder %s18, 1
      %s338 = scalar_select %p337, %s18, 1
      %s339 = smul.addr %s338, 8
      %s340 = scalar_lea.vmem %s4, %s339
      %p341 = scmp.lt.s32.totalorder %s18, 1
      %s342 = scalar_select %p341, %s18, 1
      %s343 = smul.addr %s342, 8
      %s344 = scalar_lea.vmem %s7, %s343
      %v346 = vld [vmem:[%s336] sm:$0x1]
      %v347 = vld [vmem:[%s340] sm:$0xff]
      %v348 = vld [vmem:[%s6] sm:$0x1]
      %v349 = vld [vmem:[%s323] sm:$0xf]
      %v350 = vld [vmem:[%s328] sm:$0xf]
      %v351 = vld [vmem:[%s328 + $0x4] sm:$0xf]
      %v352 = vld [vmem:[%s333] sm:$0xf]
      %v353 = vld [vmem:[%s333 + $0x4] sm:$0xf]
      %v355 = vperm.slane %v346, 0
      %v359 = vunpack.c.l.b16 %v350
      %v360 = vunpack.c.l.b16 %v351
      %v361 = vpack.c.b16 %v360, %v359
      %vm362 = vcmask 64512
      %v364 = vsel %vm362, %v349, 0
      %v367 = vsel %vm362, %v361, 0
      %369 = vmatpush.bf16.xpose.msra.mxu0 0
      %370 = vmatpush.bf16.xpose.msra.mxu0 0
      %371 = vmatpush.bf16.xpose.msra.mxu0 0
      %372 = vmatpush.bf16.xpose.msra.mxu0 0
      %373 = vmatpush.bf16.xpose.msra.mxu0 0
      %374 = vmatpush.bf16.xpose.msra.mxu0 0
      %375 = vmatpush.bf16.xpose.msra.mxu0 0
      %376 = vmatpush.bf16.xpose.msra.mxu0 %v367
      %377 = vmatmul.bf16.gmra.mxu0 %v364
      %v378 = vpop.f32.mrf.mxu0
      %v379 = vadd.f32 %v355, %v378
      %v380 = vpop.f32.mrf.mxu0
      %381 = vdwg.mxu0
      %vm382 = vcmask 130048
      %v383 = vsel %vm382, %v379, -inf
      %384 = vmax.xlane.f32.xlu0 %v383
      %v385 = vpop.xlane.xlu0 %384
      %v386 = vsub.f32 %v379, %v385
      %v387 = vmul.f32 %v386, 1.442695
      %v388 = vpow.pop %v387
      %v389 = vsel %vm382, %v388, 0.0
      %390 = vadd.xlane.f32.xlu0 %v389
      %v391 = vpop.xlane.xlu0 %390
      %v392 = vrcp.pop %v391
      %v393 = vmul.f32 %v388, %v392
      %v394 = vpack.c.bf16 %v393, %v393
      %v397 = vunpack.c.l.b16 %v352
      %v398 = vunpack.c.l.b16 %v353
      %v399 = vpack.c.b16 %v398, %v397
      %v402 = vsel %vm382, %v394, 0
      %404 = vmatpush.bf16.msra.mxu0 0
      %405 = vmatpush.bf16.msra.mxu0 0
      %406 = vmatpush.bf16.msra.mxu0 0
      %407 = vmatpush.bf16.msra.mxu0 0
      %408 = vmatpush.bf16.msra.mxu0 0
      %409 = vmatpush.bf16.msra.mxu0 0
      %410 = vmatpush.bf16.msra.mxu0 0
      %411 = vmatpush.bf16.msra.mxu0 %v399
      %412 = vmatmul.bf16.gmra.mxu0 %v402
      %v413 = vpop.f32.mrf.mxu0
      %v414 = vadd.f32 0.0, %v413
      %v415 = vpop.f32.mrf.mxu0
      %416 = vdwg.mxu0
      %v417 = vpack.c.bf16 %v414, %v414
      %v418 = vld [vmem:[%s5] sm:$0xf]
      %v420 = vunpack.c.l.b16 %v349
      %v421 = vpack.c.b16 %v420, %v420
      %422 = vrot.lane.b32.xlu0 %v421, 120
      %v423 = vpop.permute.xlu0 %422
      %424 = vrot.lane.b32.xlu0 %v361, 120
      %v425 = vpop.permute.xlu0 %424
      %v427 = vsel %vm362, %v423, 0
      %v430 = vsel %vm362, %v425, 0
      %432 = vmatpush.bf16.xpose.msra.mxu0 0
      %433 = vmatpush.bf16.xpose.msra.mxu0 0
      %434 = vmatpush.bf16.xpose.msra.mxu0 0
      %435 = vmatpush.bf16.xpose.msra.mxu0 0
      %436 = vmatpush.bf16.xpose.msra.mxu0 0
      %437 = vmatpush.bf16.xpose.msra.mxu0 0
      %438 = vmatpush.bf16.xpose.msra.mxu0 0
      %439 = vmatpush.bf16.xpose.msra.mxu0 %v430
      %440 = vmatmul.bf16.gmra.mxu0 %v427
      %v441 = vpop.f32.mrf.mxu0
      %v442 = vadd.f32 %v355, %v441
      %v443 = vpop.f32.mrf.mxu0
      %444 = vdwg.mxu0
      %v445 = vsel %vm382, %v442, -inf
      %446 = vmax.xlane.f32.xlu0 %v445
      %v447 = vpop.xlane.xlu0 %446
      %v448 = vsub.f32 %v442, %v447
      %v449 = vmul.f32 %v448, 1.442695
      %v450 = vpow.pop %v449
      %v451 = vsel %vm382, %v450, 0.0
      %452 = vadd.xlane.f32.xlu0 %v451
      %v453 = vpop.xlane.xlu0 %452
      %v454 = vrcp.pop %v453
      %v455 = vmul.f32 %v450, %v454
      %v456 = vpack.c.bf16 %v455, %v455
      %457 = vrot.lane.b32.xlu0 %v399, 120
      %v458 = vpop.permute.xlu0 %457
      %v461 = vsel %vm382, %v456, 0
      %463 = vmatpush.bf16.msra.mxu0 0
      %464 = vmatpush.bf16.msra.mxu0 0
      %465 = vmatpush.bf16.msra.mxu0 0
      %466 = vmatpush.bf16.msra.mxu0 0
      %467 = vmatpush.bf16.msra.mxu0 0
      %468 = vmatpush.bf16.msra.mxu0 0
      %469 = vmatpush.bf16.msra.mxu0 0
      %470 = vmatpush.bf16.msra.mxu0 %v458
      %471 = vmatmul.bf16.gmra.mxu0 %v461
      %v472 = vpop.f32.mrf.mxu0
      %v473 = vadd.f32 0.0, %v472
      %v474 = vpop.f32.mrf.mxu0
      %475 = vdwg.mxu0
      %v476 = vpack.c.bf16 %v473, %v473
      %s477 = scalar_lea.vmem %s5, 4
      %v478 = vld [vmem:[%s477] sm:$0xf]
      %v480 = vsel %vm362, %v476, 0
      %vm482 = vcmask 1043456
      %v484 = vsel %vm482, %v478, 0
      %486 = vmatpush.bf16.msra.mxu0 0
      %487 = vmatpush.bf16.msra.mxu0 0
      %488 = vmatpush.bf16.msra.mxu0 0
      %489 = vmatpush.bf16.msra.mxu0 0
      %490 = vmatpush.bf16.msra.mxu0 0
      %491 = vmatpush.bf16.msra.mxu0 0
      %492 = vmatpush.bf16.msra.mxu0 0
      %493 = vmatpush.bf16.msra.mxu0 %v484
      %494 = vmatmul.bf16.gmra.mxu0 %v480
      %v495 = vpop.f32.mrf.mxu0
      %v496 = vadd.f32 0.0, %v495
      %v497 = vpop.f32.mrf.mxu0
      %498 = vdwg.mxu0
      %v500 = vsel %vm362, %v417, 0
      %v503 = vsel %vm482, %v418, 0
      %505 = vmatpush.bf16.msra.mxu0 0
      %506 = vmatpush.bf16.msra.mxu0 0
      %507 = vmatpush.bf16.msra.mxu0 0
      %508 = vmatpush.bf16.msra.mxu0 0
      %509 = vmatpush.bf16.msra.mxu0 0
      %510 = vmatpush.bf16.msra.mxu0 0
      %511 = vmatpush.bf16.msra.mxu0 0
      %512 = vmatpush.bf16.msra.mxu0 %v503
      %513 = vmatmul.bf16.gmra.mxu0 %v500
      %v514 = vpop.f32.mrf.mxu0
      %v515 = vadd.f32 %v496, %v514
      %v516 = vpop.f32.mrf.mxu0
      %517 = vdwg.mxu0
      %518 = vrot.lane.b32.xlu0 %v421, 112
      %v519 = vpop.permute.xlu0 %518
      %520 = vrot.lane.b32.xlu0 %v361, 112
      %v521 = vpop.permute.xlu0 %520
      %v523 = vsel %vm362, %v519, 0
      %v526 = vsel %vm362, %v521, 0
      %528 = vmatpush.bf16.xpose.msra.mxu0 0
      %529 = vmatpush.bf16.xpose.msra.mxu0 0
      %530 = vmatpush.bf16.xpose.msra.mxu0 0
      %531 = vmatpush.bf16.xpose.msra.mxu0 0
      %532 = vmatpush.bf16.xpose.msra.mxu0 0
      %533 = vmatpush.bf16.xpose.msra.mxu0 0
      %534 = vmatpush.bf16.xpose.msra.mxu0 0
      %535 = vmatpush.bf16.xpose.msra.mxu0 %v526
      %536 = vmatmul.bf16.gmra.mxu0 %v523
      %v537 = vpop.f32.mrf.mxu0
      %v538 = vadd.f32 %v355, %v537
      %v539 = vpop.f32.mrf.mxu0
      %540 = vdwg.mxu0
      %v541 = vsel %vm382, %v538, -inf
      %542 = vmax.xlane.f32.xlu0 %v541
      %v543 = vpop.xlane.xlu0 %542
      %v544 = vsub.f32 %v538, %v543
      %v545 = vmul.f32 %v544, 1.442695
      %v546 = vpow.pop %v545
      %v547 = vsel %vm382, %v546, 0.0
      %548 = vadd.xlane.f32.xlu0 %v547
      %v549 = vpop.xlane.xlu0 %548
      %v550 = vrcp.pop %v549
      %v551 = vmul.f32 %v546, %v550
      %v552 = vpack.c.bf16 %v551, %v551
      %553 = vrot.lane.b32.xlu0 %v399, 112
      %v554 = vpop.permute.xlu0 %553
      %v557 = vsel %vm382, %v552, 0
      %559 = vmatpush.bf16.msra.mxu0 0
      %560 = vmatpush.bf16.msra.mxu0 0
      %561 = vmatpush.bf16.msra.mxu0 0
      %562 = vmatpush.bf16.msra.mxu0 0
      %563 = vmatpush.bf16.msra.mxu0 0
      %564 = vmatpush.bf16.msra.mxu0 0
      %565 = vmatpush.bf16.msra.mxu0 0
      %566 = vmatpush.bf16.msra.mxu0 %v554
      %567 = vmatmul.bf16.gmra.mxu0 %v557
      %v568 = vpop.f32.mrf.mxu0
      %v569 = vadd.f32 0.0, %v568
      %v570 = vpop.f32.mrf.mxu0
      %571 = vdwg.mxu0
      %v572 = vpack.c.bf16 %v569, %v569
      %s573 = scalar_lea.vmem %s5, 8
      %v574 = vld [vmem:[%s573] sm:$0xf]
      %v576 = vsel %vm362, %v572, 0
      %v579 = vsel %vm482, %v574, 0
      %581 = vmatpush.bf16.msra.mxu0 0
      %582 = vmatpush.bf16.msra.mxu0 0
      %583 = vmatpush.bf16.msra.mxu0 0
      %584 = vmatpush.bf16.msra.mxu0 0
      %585 = vmatpush.bf16.msra.mxu0 0
      %586 = vmatpush.bf16.msra.mxu0 0
      %587 = vmatpush.bf16.msra.mxu0 0
      %588 = vmatpush.bf16.msra.mxu0 %v579
      %589 = vmatmul.bf16.gmra.mxu0 %v576
      %v590 = vpop.f32.mrf.mxu0
      %v591 = vadd.f32 0.0, %v590
      %v592 = vpop.f32.mrf.mxu0
      %593 = vdwg.mxu0
      %v594 = vadd.f32 %v515, %v591
      %595 = vrot.lane.b32.xlu0 %v421, 104
      %v596 = vpop.permute.xlu0 %595
      %597 = vrot.lane.b32.xlu0 %v361, 104
      %v598 = vpop.permute.xlu0 %597
      %v600 = vsel %vm362, %v596, 0
      %v603 = vsel %vm362, %v598, 0
      %605 = vmatpush.bf16.xpose.msra.mxu0 0
      %606 = vmatpush.bf16.xpose.msra.mxu0 0
      %607 = vmatpush.bf16.xpose.msra.mxu0 0
      %608 = vmatpush.bf16.xpose.msra.mxu0 0
      %609 = vmatpush.bf16.xpose.msra.mxu0 0
      %610 = vmatpush.bf16.xpose.msra.mxu0 0
      %611 = vmatpush.bf16.xpose.msra.mxu0 0
      %612 = vmatpush.bf16.xpose.msra.mxu0 %v603
      %613 = vmatmul.bf16.gmra.mxu0 %v600
      %v614 = vpop.f32.mrf.mxu0
      %v615 = vadd.f32 %v355, %v614
      %v616 = vpop.f32.mrf.mxu0
      %617 = vdwg.mxu0
      %v618 = vsel %vm382, %v615, -inf
      %619 = vmax.xlane.f32.xlu0 %v618
      %v620 = vpop.xlane.xlu0 %619
      %v621 = vsub.f32 %v615, %v620
      %v622 = vmul.f32 %v621, 1.442695
      %v623 = vpow.pop %v622
      %v624 = vsel %vm382, %v623, 0.0
      %625 = vadd.xlane.f32.xlu0 %v624
      %v626 = vpop.xlane.xlu0 %625
      %v627 = vrcp.pop %v626
      %v628 = vmul.f32 %v623, %v627
      %v629 = vpack.c.bf16 %v628, %v628
      %630 = vrot.lane.b32.xlu0 %v399, 104
      %v631 = vpop.permute.xlu0 %630
      %v634 = vsel %vm382, %v629, 0
      %636 = vmatpush.bf16.msra.mxu0 0
      %637 = vmatpush.bf16.msra.mxu0 0
      %638 = vmatpush.bf16.msra.mxu0 0
      %639 = vmatpush.bf16.msra.mxu0 0
      %640 = vmatpush.bf16.msra.mxu0 0
      %641 = vmatpush.bf16.msra.mxu0 0
      %642 = vmatpush.bf16.msra.mxu0 0
      %643 = vmatpush.bf16.msra.mxu0 %v631
      %644 = vmatmul.bf16.gmra.mxu0 %v634
      %v645 = vpop.f32.mrf.mxu0
      %v646 = vadd.f32 0.0, %v645
      %v647 = vpop.f32.mrf.mxu0
      %648 = vdwg.mxu0
      %v649 = vpack.c.bf16 %v646, %v646
      %s650 = scalar_lea.vmem %s5, 12
      %v651 = vld [vmem:[%s650] sm:$0xf]
      %v653 = vsel %vm362, %v649, 0
      %v656 = vsel %vm482, %v651, 0
      %658 = vmatpush.bf16.msra.mxu0 0
      %659 = vmatpush.bf16.msra.mxu0 0
      %660 = vmatpush.bf16.msra.mxu0 0
      %661 = vmatpush.bf16.msra.mxu0 0
      %662 = vmatpush.bf16.msra.mxu0 0
      %663 = vmatpush.bf16.msra.mxu0 0
      %664 = vmatpush.bf16.msra.mxu0 0
      %665 = vmatpush.bf16.msra.mxu0 %v656
      %666 = vmatmul.bf16.gmra.mxu0 %v653
      %v667 = vpop.f32.mrf.mxu0
      %v668 = vadd.f32 0.0, %v667
      %v669 = vpop.f32.mrf.mxu0
      %670 = vdwg.mxu0
      %v671 = vadd.f32 %v594, %v668
      %v672 = vadd.f32 %v347, %v671
      %v674 = vperm.slane %v348, 0
      %v676 = vadd.f32 %v672, %v674
      %vm677 = vcmask 261120
      %678 = vst.msk [vmem:[%s344] sm:$0xff] %vm677, %v676
      %p679 = scmp.lt.s32.totalorder %s18, 1
      %s680 = scalar_select %p679, %s18, 1
      %s681 = smul.addr %s680, 8
      %s682 = scalar_lea.vmem %s7, %s681
      // Predicated region
      $region49: #{transformer_forward.33} parent=47 // pred_check
        %p683 = pneg %p208
      $region50: #{transformer_forward.33} parent=47 // pred_check_branch
        %685 = sbr.rel (%p683) target = $region52
      $region51: #{transformer_forward.33} parent=47 // pred_region
        _
      $region52: #{transformer_forward.33} parent=47 // pred_fallthru
        _
    $region48: #{transformer_forward.33} parent=5 // pred_fallthru
      _
    %p686 = scmp.le.s32.totalorder 2, %s13
    // Predicated region
    $region53: #{transformer_forward.33} parent=5 // pred_check
      %p687 = pneg %p686
    $region54: #{transformer_forward.33} parent=5 // pred_check_branch
      %689 = sbr.rel (%p687) target = $region56
    $region55: #{transformer_forward.33} parent=5 // pred_region
      %s690 = ssub.s32 %s13, 2
      // Predicated region
      $region57: #{transformer_forward.33} parent=55 // pred_check
        %p691 = pneg %p214
      $region58: #{transformer_forward.33} parent=55 // pred_check_branch
        %693 = sbr.rel (%p691) target = $region60
      $region59: #{transformer_forward.33} parent=55 // pred_region
        %p694 = scmp.lt.s32.totalorder %s19, 1
        %s695 = scalar_select %p694, %s19, 1
        %s696 = smul.addr %s695, 8
        %s697 = scalar_lea.vmem %s7, %s696
      $region60: #{transformer_forward.33} parent=55 // pred_fallthru
        _
    $region56: #{transformer_forward.33} parent=5 // pred_fallthru
      _
  $region6: #{transformer_forward.33} parent=0 // loop_footer
    %s17 = sadd.s32 1, %s13
  $region7: #{transformer_forward.33} parent=0 // loop_footer_branch
    %12 = sbr.rel target = $region3
  $region8: #{transformer_forward.33} parent=0 // loop_exit
    _

// kernel: transformer_forward.37
$region0: #{transformer_forward.37}
  #allocation0 [shape = 'u32[]', space=smem, size = 0x4, offset = 0x4, fixed_abs, tag = 'smem constant byte address 0x4 - core index']
  #allocation1 [shape = 'u32[72,128]{1,0:T(1,128)}', space=vmem, size = 0x9000, scoped, tag = 'internal scratch']
  %s0 = inlined_call_operand.vmem [shape: f32[16,32], index: 0, kind: input, shape index: {}]
  %s1 = inlined_call_operand.vmem [shape: f32[16,32], index: 1, kind: input, shape index: {}]
  %s2 = inlined_call_operand.hbm [shape: f32[1,32], index: 2, kind: input, shape index: {}]
  %s3 = inlined_call_operand.hbm [shape: f32[1,32], index: 3, kind: input, shape index: {}]
  %s4 = inlined_call_operand.vmem [shape: bf16[32,32], index: 4, kind: input, shape index: {}]
  %s5 = inlined_call_operand.hbm [shape: f32[1,32], index: 5, kind: input, shape index: {}]
  %s6 = inlined_call_operand.vmem [shape: bf16[16,32], index: 6, kind: output, shape index: {}]
  %s7 = sld [smem:[#allocation0]]
  $region46: #{transformer_forward.37} parent=0
    _
  %s9 = ssub.s32 1, %s7
  %s10 = scalar_select 0, %s9, %s7
  $region1: #{transformer_forward.37} parent=0
    #allocation2 [shape = 'u8[512]{0}', space=vmem, size = 0x400, scoped, tag = 'input window, operand 2, single buffered']
    #allocation3 [shape = 's32[1]{0}', space=sflag, size = 0x4, scoped, tag = 'scoped memory for transformer_forward.37']
    #allocation4 [shape = 'u8[512]{0}', space=vmem, size = 0x400, scoped, tag = 'input window, operand 3, single buffered']
    #allocation5 [shape = 's32[1]{0}', space=sflag, size = 0x4, scoped, tag = 'scoped memory for transformer_forward.37']
    #allocation6 [shape = 'u8[512]{0}', space=vmem, size = 0x400, scoped, tag = 'input window, operand 5, single buffered']
    %11 = vsyncpa [#allocation3], 0
    %12 = vsyncpa [#allocation5], 0
    // Predicated region
    $region2: #{transformer_forward.37} parent=1 // pred_check
      _
    $region3: #{transformer_forward.37} parent=1 // pred_check_branch
      %14 = sbr.rel (0) target = $region5
    $region4: #{transformer_forward.37} parent=1 // pred_region
      _
    $region5: #{transformer_forward.37} parent=1 // pred_fallthru
      _
    // Predicated region
    $region6: #{transformer_forward.37} parent=1 // pred_check
      _
    $region7: #{transformer_forward.37} parent=1 // pred_check_branch
      %16 = sbr.rel (0) target = $region9
    $region8: #{transformer_forward.37} parent=1 // pred_region
      _
    $region9: #{transformer_forward.37} parent=1 // pred_fallthru
      _
    // Predicated region
    $region10: #{transformer_forward.37} parent=1 // pred_check
      _
    $region11: #{transformer_forward.37} parent=1 // pred_check_branch
      %18 = sbr.rel (0) target = $region13
    $region12: #{transformer_forward.37} parent=1 // pred_region
      %20 = vsyncadd [#allocation3], 0
      %s22 = sshll.u32 %s2, 4
      %s23 = int_to_ptr.hbm [resolvable:$true] %s22
      %s24 = sshll.u32 [#allocation2], 4
      %s25 = int_to_ptr.vmem [resolvable:$true] %s24
      %27 = dma.hbm_to_vmem [thread:$0]  %s23, 16, %s25, [#allocation3]
    $region13: #{transformer_forward.37} parent=1 // pred_fallthru
      _
    // Predicated region
    $region14: #{transformer_forward.37} parent=1 // pred_check
      _
    $region15: #{transformer_forward.37} parent=1 // pred_check_branch
      %29 = sbr.rel (0) target = $region17
    $region16: #{transformer_forward.37} parent=1 // pred_region
      %31 = vsyncadd [#allocation5], 0
      %s33 = sshll.u32 %s3, 4
      %s34 = int_to_ptr.hbm [resolvable:$true] %s33
      %s35 = sshll.u32 [#allocation4], 4
      %s36 = int_to_ptr.vmem [resolvable:$true] %s35
      %38 = dma.hbm_to_vmem [thread:$0]  %s34, 16, %s36, [#allocation5]
    $region17: #{transformer_forward.37} parent=1 // pred_fallthru
      _
    // Predicated region
    $region18: #{transformer_forward.37} parent=1 // pred_check
      _
    $region19: #{transformer_forward.37} parent=1 // pred_check_branch
      %40 = sbr.rel (0) target = $region21
    $region20: #{transformer_forward.37} parent=1 // pred_region
      _
    $region21: #{transformer_forward.37} parent=1 // pred_fallthru
      _
    // Predicated region
    $region22: #{transformer_forward.37} parent=1 // pred_check
      _
    $region23: #{transformer_forward.37} parent=1 // pred_check_branch
      %42 = sbr.rel (0) target = $region25
    $region24: #{transformer_forward.37} parent=1 // pred_region
      %44 = vsyncadd [#allocation5], 0
      %s46 = sshll.u32 %s5, 4
      %s47 = int_to_ptr.hbm [resolvable:$true] %s46
      %s48 = sshll.u32 [#allocation6], 4
      %s49 = int_to_ptr.vmem [resolvable:$true] %s48
      %51 = dma.hbm_to_vmem [thread:$0]  %s47, 16, %s49, [#allocation5]
    $region25: #{transformer_forward.37} parent=1 // pred_fallthru
      _
    // Predicated region
    $region26: #{transformer_forward.37} parent=1 // pred_check
      _
    $region27: #{transformer_forward.37} parent=1 // pred_check_branch
      %53 = sbr.rel (0) target = $region29
    $region28: #{transformer_forward.37} parent=1 // pred_region
      %55 = dma.done [#allocation3], 16
    $region29: #{transformer_forward.37} parent=1 // pred_fallthru
      _
    // Predicated region
    $region30: #{transformer_forward.37} parent=1 // pred_check
      _
    $region31: #{transformer_forward.37} parent=1 // pred_check_branch
      %57 = sbr.rel (0) target = $region33
    $region32: #{transformer_forward.37} parent=1 // pred_region
      %59 = dma.done [#allocation5], 16
    $region33: #{transformer_forward.37} parent=1 // pred_fallthru
      _
    // Predicated region
    $region34: #{transformer_forward.37} parent=1 // pred_check
      _
    $region35: #{transformer_forward.37} parent=1 // pred_check_branch
      %61 = sbr.rel (0) target = $region37
    $region36: #{transformer_forward.37} parent=1 // pred_region
      %63 = dma.done [#allocation5], 16
    $region37: #{transformer_forward.37} parent=1 // pred_fallthru
      _
    %v65 = vld [vmem:[%s0] sm:$0xff]
    %v66 = vld [vmem:[%s0 + $0x8] sm:$0xff]
    %v67 = vld [vmem:[#allocation2] sm:$0x1]
    %v68 = vld [vmem:[#allocation4] sm:$0x1]
    %vm69 = vcmask 261120
    %v70 = vsel %vm69, %v65, 0.0
    %71 = vadd.xlane.f32.xlu0 %v70
    %v72 = vpop.xlane.xlu0 %71
    %v73 = vsel %vm69, %v66, 0.0
    %74 = vadd.xlane.f32.xlu0 %v73
    %v75 = vpop.xlane.xlu0 %74
    %v76 = vrcp.pop 32.0
    %v77 = vmul.f32 32.0, %v76
    %v78 = vsub.f32 1.0, %v77
    %v79 = vmul.f32 %v76, %v78
    %v80 = vadd.f32 %v76, %v79
    %vm81 = vweird.f32 %v76
    %v82 = vsel %vm81, %v76, %v80
    %v83 = vmul.f32 %v72, %v82
    %v84 = vmul.f32 %v75, %v82
    %v85 = vsub.f32 %v65, %v83
    %v86 = vsub.f32 %v66, %v84
    %v87 = vmul.f32 %v85, %v85
    %v88 = vmul.f32 %v86, %v86
    %v89 = vsel %vm69, %v87, 0.0
    %90 = vadd.xlane.f32.xlu0 %v89
    %v91 = vpop.xlane.xlu0 %90
    %v92 = vsel %vm69, %v88, 0.0
    %93 = vadd.xlane.f32.xlu0 %v92
    %v94 = vpop.xlane.xlu0 %93
    %v95 = vmul.f32 %v91, %v82
    %v96 = vmul.f32 %v94, %v82
    %v97 = vadd.f32 %v95, 1e-05
    %v98 = vadd.f32 %v96, 1e-05
    %v99 = vrsqrt.pop %v97
    %v100 = vmul.f32 %v99, %v97
    %v101 = vmul.f32 %v100, %v99
    %v102 = vmul.f32 0.5, %v101
    %v103 = vsub.f32 1.5, %v102
    %v104 = vmul.f32 %v99, %v103
    %vm105 = vweird.f32 %v97
    %vm106 = vweird.f32 %v99
    %vm107 = vmor %vm105, %vm106
    %v108 = vsel %vm107, %v99, %v104
    %v109 = vrsqrt.pop %v98
    %v110 = vmul.f32 %v109, %v98
    %v111 = vmul.f32 %v110, %v109
    %v112 = vmul.f32 0.5, %v111
    %v113 = vsub.f32 1.5, %v112
    %v114 = vmul.f32 %v109, %v113
    %vm115 = vweird.f32 %v98
    %vm116 = vweird.f32 %v109
    %vm117 = vmor %vm115, %vm116
    %v118 = vsel %vm117, %v109, %v114
    %v119 = vmul.f32 %v85, %v108
    %v120 = vmul.f32 %v86, %v118
    %v122 = vperm.slane %v67, 0
    %v124 = vmul.f32 %v119, %v122
    %v125 = vmul.f32 %v120, %v122
    %v127 = vperm.slane %v68, 0
    %v129 = vadd.f32 %v124, %v127
    %v130 = vadd.f32 %v125, %v127
    %v131 = vld [vmem:[%s1] sm:$0xff]
    %v132 = vld [vmem:[%s1 + $0x8] sm:$0xff]
    %v133 = vadd.f32 %v129, %v131
    %v134 = vadd.f32 %v130, %v132
    %v135 = vpack.c.bf16 %v134, %v133
    %v136 = vld [vmem:[%s4] sm:$0xf]
    %v137 = vld [vmem:[%s4 + $0x4] sm:$0xf]
    %v138 = vld [vmem:[%s4 + $0x8] sm:$0xf]
    %v139 = vld [vmem:[%s4 + $0xc] sm:$0xf]
    %v140 = vld [vmem:[#allocation6] sm:$0x1]
    %v142 = vperm.slane %v140, 0
    %v148 = vunpack.c.l.b16 %v136
    %v149 = vunpack.c.l.b16 %v137
    %v150 = vunpack.c.l.b16 %v138
    %v151 = vunpack.c.l.b16 %v139
    %v152 = vpack.c.b16 %v149, %v148
    %v153 = vpack.c.b16 %v151, %v150
    %v157 = vsel %vm69, %v135, 0
    %159 = vmatpush.bf16.msra.mxu0 0
    %160 = vmatpush.bf16.msra.mxu0 0
    %161 = vmatpush.bf16.msra.mxu0 0
    %162 = vmatpush.bf16.msra.mxu0 0
    %163 = vmatpush.bf16.msra.mxu0 0
    %164 = vmatpush.bf16.msra.mxu0 0
    %165 = vmatpush.bf16.msra.mxu0 %v153
    %166 = vmatpush.bf16.msra.mxu0 %v152
    %167 = vmatmul.bf16.gmra.mxu0 %v157
    %v168 = vpop.f32.mrf.mxu0
    %v169 = vadd.f32 %v142, %v168
    %v170 = vpop.f32.mrf.mxu0
    %v171 = vadd.f32 %v142, %v170
    %172 = vdwg.mxu0
    %v173 = vpack.c.bf16 %v169, %v169
    %v174 = vpack.c.bf16 %v171, %v171
    %vm175 = vcmask 257024
    %176 = vst.msk [vmem:[%s6] sm:$0xf] %vm175, %v173
    %177 = vst.msk [vmem:[%s6 + $0x4] sm:$0xf] %vm175, %v174
    // Predicated region
    $region38: #{transformer_forward.37} parent=1 // pred_check
      _
    $region39: #{transformer_forward.37} parent=1 // pred_check_branch
      %179 = sbr.rel (0) target = $region41
    $region40: #{transformer_forward.37} parent=1 // pred_region
      _
    $region41: #{transformer_forward.37} parent=1 // pred_fallthru
      _
    // Predicated region
    $region42: #{transformer_forward.37} parent=1 // pred_check
      _
    $region43: #{transformer_forward.37} parent=1 // pred_check_branch
      %181 = sbr.rel (0) target = $region45
    $region44: #{transformer_forward.37} parent=1 // pred_region
      _
    $region45: #{transformer_forward.37} parent=1 // pred_fallthru
      _
    %182 = vsyncpa [#allocation3], 1
    %183 = vsyncpa [#allocation5], 1

// kernel: transformer_forward.34
$region0: #{transformer_forward.34}
  #allocation0 [shape = 'u32[]', space=smem, size = 0x4, offset = 0x4, fixed_abs, tag = 'smem constant byte address 0x4 - core index']
  #allocation1 [shape = 'u32[72,128]{1,0:T(1,128)}', space=vmem, size = 0x9000, scoped, tag = 'internal scratch']
  %s0 = inlined_call_operand.vmem [shape: f32[16,32], index: 0, kind: input, shape index: {}]
  %s1 = inlined_call_operand.vmem [shape: f32[1,32], index: 1, kind: input, shape index: {}]
  %s2 = inlined_call_operand.vmem [shape: f32[1,32], index: 2, kind: input, shape index: {}]
  %s3 = inlined_call_operand.vmem [shape: bf16[32,64], index: 3, kind: input, shape index: {}]
  %s4 = inlined_call_operand.hbm [shape: f32[1,64], index: 4, kind: input, shape index: {}]
  %s5 = inlined_call_operand.vmem [shape: bf16[64,32], index: 5, kind: input, shape index: {}]
  %s6 = inlined_call_operand.hbm [shape: f32[1,32], index: 6, kind: input, shape index: {}]
  %s7 = inlined_call_operand.vmem [shape: f32[16,32], index: 7, kind: output, shape index: {}]
  %s8 = sld [smem:[#allocation0]]
  $region46: #{transformer_forward.34} parent=0
    _
  %s10 = ssub.s32 1, %s8
  %s11 = scalar_select 0, %s10, %s8
  $region1: #{transformer_forward.34} parent=0
    #allocation2 [shape = 'u8[512]{0}', space=vmem, size = 0x400, scoped, tag = 'input window, operand 4, single buffered']
    #allocation3 [shape = 's32[1]{0}', space=sflag, size = 0x4, scoped, tag = 'scoped memory for transformer_forward.34']
    #allocation4 [shape = 'u8[512]{0}', space=vmem, size = 0x400, scoped, tag = 'input window, operand 6, single buffered']
    #allocation5 [shape = 's32[1]{0}', space=sflag, size = 0x4, scoped, tag = 'scoped memory for transformer_forward.34']
    %12 = vsyncpa [#allocation3], 0
    %13 = vsyncpa [#allocation5], 0
    // Predicated region
    $region2: #{transformer_forward.34} parent=1 // pred_check
      _
    $region3: #{transformer_forward.34} parent=1 // pred_check_branch
      %15 = sbr.rel (0) target = $region5
    $region4: #{transformer_forward.34} parent=1 // pred_region
      _
    $region5: #{transformer_forward.34} parent=1 // pred_fallthru
      _
    // Predicated region
    $region6: #{transformer_forward.34} parent=1 // pred_check
      _
    $region7: #{transformer_forward.34} parent=1 // pred_check_branch
      %17 = sbr.rel (0) target = $region9
    $region8: #{transformer_forward.34} parent=1 // pred_region
      _
    $region9: #{transformer_forward.34} parent=1 // pred_fallthru
      _
    // Predicated region
    $region10: #{transformer_forward.34} parent=1 // pred_check
      _
    $region11: #{transformer_forward.34} parent=1 // pred_check_branch
      %19 = sbr.rel (0) target = $region13
    $region12: #{transformer_forward.34} parent=1 // pred_region
      _
    $region13: #{transformer_forward.34} parent=1 // pred_fallthru
      _
    // Predicated region
    $region14: #{transformer_forward.34} parent=1 // pred_check
      _
    $region15: #{transformer_forward.34} parent=1 // pred_check_branch
      %21 = sbr.rel (0) target = $region17
    $region16: #{transformer_forward.34} parent=1 // pred_region
      _
    $region17: #{transformer_forward.34} parent=1 // pred_fallthru
      _
    // Predicated region
    $region18: #{transformer_forward.34} parent=1 // pred_check
      _
    $region19: #{transformer_forward.34} parent=1 // pred_check_branch
      %23 = sbr.rel (0) target = $region21
    $region20: #{transformer_forward.34} parent=1 // pred_region
      %25 = vsyncadd [#allocation3], 0
      %s27 = sshll.u32 %s4, 4
      %s28 = int_to_ptr.hbm [resolvable:$true] %s27
      %s29 = sshll.u32 [#allocation2], 4
      %s30 = int_to_ptr.vmem [resolvable:$true] %s29
      %32 = dma.hbm_to_vmem [thread:$0]  %s28, 16, %s30, [#allocation3]
    $region21: #{transformer_forward.34} parent=1 // pred_fallthru
      _
    // Predicated region
    $region22: #{transformer_forward.34} parent=1 // pred_check
      _
    $region23: #{transformer_forward.34} parent=1 // pred_check_branch
      %34 = sbr.rel (0) target = $region25
    $region24: #{transformer_forward.34} parent=1 // pred_region
      _
    $region25: #{transformer_forward.34} parent=1 // pred_fallthru
      _
    // Predicated region
    $region26: #{transformer_forward.34} parent=1 // pred_check
      _
    $region27: #{transformer_forward.34} parent=1 // pred_check_branch
      %36 = sbr.rel (0) target = $region29
    $region28: #{transformer_forward.34} parent=1 // pred_region
      %38 = vsyncadd [#allocation5], 0
      %s40 = sshll.u32 %s6, 4
      %s41 = int_to_ptr.hbm [resolvable:$true] %s40
      %s42 = sshll.u32 [#allocation4], 4
      %s43 = int_to_ptr.vmem [resolvable:$true] %s42
      %45 = dma.hbm_to_vmem [thread:$0]  %s41, 16, %s43, [#allocation5]
    $region29: #{transformer_forward.34} parent=1 // pred_fallthru
      _
    // Predicated region
    $region30: #{transformer_forward.34} parent=1 // pred_check
      _
    $region31: #{transformer_forward.34} parent=1 // pred_check_branch
      %47 = sbr.rel (0) target = $region33
    $region32: #{transformer_forward.34} parent=1 // pred_region
      %49 = dma.done [#allocation3], 16
    $region33: #{transformer_forward.34} parent=1 // pred_fallthru
      _
    // Predicated region
    $region34: #{transformer_forward.34} parent=1 // pred_check
      _
    $region35: #{transformer_forward.34} parent=1 // pred_check_branch
      %51 = sbr.rel (0) target = $region37
    $region36: #{transformer_forward.34} parent=1 // pred_region
      %53 = dma.done [#allocation5], 16
    $region37: #{transformer_forward.34} parent=1 // pred_fallthru
      _
    %v55 = vld [vmem:[%s0] sm:$0xff]
    %v56 = vld [vmem:[%s0 + $0x8] sm:$0xff]
    %v57 = vld [vmem:[%s1] sm:$0x1]
    %v58 = vld [vmem:[%s2] sm:$0x1]
    %vm59 = vcmask 261120
    %v60 = vsel %vm59, %v55, 0.0
    %61 = vadd.xlane.f32.xlu0 %v60
    %v62 = vpop.xlane.xlu0 %61
    %v63 = vsel %vm59, %v56, 0.0
    %64 = vadd.xlane.f32.xlu0 %v63
    %v65 = vpop.xlane.xlu0 %64
    %v66 = vrcp.pop 32.0
    %v67 = vmul.f32 32.0, %v66
    %v68 = vsub.f32 1.0, %v67
    %v69 = vmul.f32 %v66, %v68
    %v70 = vadd.f32 %v66, %v69
    %vm71 = vweird.f32 %v66
    %v72 = vsel %vm71, %v66, %v70
    %v73 = vmul.f32 %v62, %v72
    %v74 = vmul.f32 %v65, %v72
    %v75 = vsub.f32 %v55, %v73
    %v76 = vsub.f32 %v56, %v74
    %v77 = vmul.f32 %v75, %v75
    %v78 = vmul.f32 %v76, %v76
    %v79 = vsel %vm59, %v77, 0.0
    %80 = vadd.xlane.f32.xlu0 %v79
    %v81 = vpop.xlane.xlu0 %80
    %v82 = vsel %vm59, %v78, 0.0
    %83 = vadd.xlane.f32.xlu0 %v82
    %v84 = vpop.xlane.xlu0 %83
    %v85 = vmul.f32 %v81, %v72
    %v86 = vmul.f32 %v84, %v72
    %v87 = vadd.f32 %v85, 1e-05
    %v88 = vadd.f32 %v86, 1e-05
    %v89 = vrsqrt.pop %v87
    %v90 = vmul.f32 %v89, %v87
    %v91 = vmul.f32 %v90, %v89
    %v92 = vmul.f32 0.5, %v91
    %v93 = vsub.f32 1.5, %v92
    %v94 = vmul.f32 %v89, %v93
    %vm95 = vweird.f32 %v87
    %vm96 = vweird.f32 %v89
    %vm97 = vmor %vm95, %vm96
    %v98 = vsel %vm97, %v89, %v94
    %v99 = vrsqrt.pop %v88
    %v100 = vmul.f32 %v99, %v88
    %v101 = vmul.f32 %v100, %v99
    %v102 = vmul.f32 0.5, %v101
    %v103 = vsub.f32 1.5, %v102
    %v104 = vmul.f32 %v99, %v103
    %vm105 = vweird.f32 %v88
    %vm106 = vweird.f32 %v99
    %vm107 = vmor %vm105, %vm106
    %v108 = vsel %vm107, %v99, %v104
    %v109 = vmul.f32 %v75, %v98
    %v110 = vmul.f32 %v76, %v108
    %v112 = vperm.slane %v57, 0
    %v114 = vmul.f32 %v109, %v112
    %v115 = vmul.f32 %v110, %v112
    %v117 = vperm.slane %v58, 0
    %v119 = vadd.f32 %v114, %v117
    %v120 = vadd.f32 %v115, %v117
    %v121 = vpack.c.bf16 %v120, %v119
    %v122 = vld [vmem:[%s3] sm:$0xf]
    %v123 = vld [vmem:[%s3 + $0x4] sm:$0xf]
    %v124 = vld [vmem:[%s3 + $0x8] sm:$0xf]
    %v125 = vld [vmem:[%s3 + $0xc] sm:$0xf]
    %v126 = vld [vmem:[#allocation2] sm:$0x1]
    %v128 = vperm.slane %v126, 0
    %v134 = vunpack.c.l.b16 %v122
    %v135 = vunpack.c.l.b16 %v123
    %v136 = vunpack.c.l.b16 %v124
    %v137 = vunpack.c.l.b16 %v125
    %v138 = vpack.c.b16 %v135, %v134
    %v139 = vpack.c.b16 %v137, %v136
    %v143 = vsel %vm59, %v121, 0
    %145 = vmatpush.bf16.msra.mxu0 0
    %146 = vmatpush.bf16.msra.mxu0 0
    %147 = vmatpush.bf16.msra.mxu0 0
    %148 = vmatpush.bf16.msra.mxu0 0
    %149 = vmatpush.bf16.msra.mxu0 0
    %150 = vmatpush.bf16.msra.mxu0 0
    %151 = vmatpush.bf16.msra.mxu0 %v139
    %152 = vmatpush.bf16.msra.mxu0 %v138
    %153 = vmatmul.bf16.gmra.mxu0 %v143
    %v154 = vpop.f32.mrf.mxu0
    %v155 = vadd.f32 %v128, %v154
    %v156 = vpop.f32.mrf.mxu0
    %v157 = vadd.f32 %v128, %v156
    %158 = vdwg.mxu0
    %v159 = vmax.f32 %v155, 0.0
    %v160 = vmax.f32 %v157, 0.0
    %v161 = vpack.c.bf16 %v160, %v159
    %v162 = vld [vmem:[%s5] sm:$0xf]
    %v163 = vld [vmem:[%s5 + $0x4] sm:$0xf]
    %v164 = vld [vmem:[%s5 + $0x8] sm:$0xf]
    %v165 = vld [vmem:[%s5 + $0xc] sm:$0xf]
    %v166 = vld [vmem:[%s5 + $0x10] sm:$0xf]
    %v167 = vld [vmem:[%s5 + $0x14] sm:$0xf]
    %v168 = vld [vmem:[%s5 + $0x18] sm:$0xf]
    %v169 = vld [vmem:[%s5 + $0x1c] sm:$0xf]
    %v170 = vld [vmem:[#allocation4] sm:$0x1]
    %v172 = vperm.slane %v170, 0
    %v182 = vunpack.c.l.b16 %v162
    %v183 = vunpack.c.l.b16 %v163
    %v184 = vunpack.c.l.b16 %v164
    %v185 = vunpack.c.l.b16 %v165
    %v186 = vunpack.c.l.b16 %v166
    %v187 = vunpack.c.l.b16 %v167
    %v188 = vunpack.c.l.b16 %v168
    %v189 = vunpack.c.l.b16 %v169
    %v190 = vpack.c.b16 %v183, %v182
    %v191 = vpack.c.b16 %v185, %v184
    %v192 = vpack.c.b16 %v187, %v186
    %v193 = vpack.c.b16 %v189, %v188
    %vm198 = vcmask 523264
    %v200 = vsel %vm198, %v161, 0
    %202 = vmatpush.bf16.msra.mxu0 0
    %203 = vmatpush.bf16.msra.mxu0 0
    %204 = vmatpush.bf16.msra.mxu0 0
    %205 = vmatpush.bf16.msra.mxu0 0
    %206 = vmatpush.bf16.msra.mxu0 %v193
    %207 = vmatpush.bf16.msra.mxu0 %v192
    %208 = vmatpush.bf16.msra.mxu0 %v191
    %209 = vmatpush.bf16.msra.mxu0 %v190
    %210 = vmatmul.bf16.gmra.mxu0 %v200
    %v211 = vpop.f32.mrf.mxu0
    %v212 = vadd.f32 %v172, %v211
    %v213 = vpop.f32.mrf.mxu0
    %v214 = vadd.f32 %v172, %v213
    %215 = vdwg.mxu0
    %v216 = vadd.f32 %v55, %v212
    %v217 = vadd.f32 %v56, %v214
    %218 = vst.msk [vmem:[%s7] sm:$0xff] %vm59, %v216
    %219 = vst.msk [vmem:[%s7 + $0x8] sm:$0xff] %vm59, %v217
    // Predicated region
    $region38: #{transformer_forward.34} parent=1 // pred_check
      _
    $region39: #{transformer_forward.34} parent=1 // pred_check_branch
      %221 = sbr.rel (0) target = $region41
    $region40: #{transformer_forward.34} parent=1 // pred_region
      _
    $region41: #{transformer_forward.34} parent=1 // pred_fallthru
      _
    // Predicated region
    $region42: #{transformer_forward.34} parent=1 // pred_check
      _
    $region43: #{transformer_forward.34} parent=1 // pred_check_branch
      %223 = sbr.rel (0) target = $region45
    $region44: #{transformer_forward.34} parent=1 // pred_region
      _
    $region45: #{transformer_forward.34} parent=1 // pred_fallthru
      _
    %224 = vsyncpa [#allocation3], 1
    %225 = vsyncpa [#allocation5], 1

// kernel: transformer_forward.35
$region0: #{transformer_forward.35}
  #allocation0 [shape = 'u32[]', space=smem, size = 0x4, offset = 0x4, fixed_abs, tag = 'smem constant byte address 0x4 - core index']
  #allocation1 [shape = 'u32[72,128]{1,0:T(1,128)}', space=vmem, size = 0x9000, scoped, tag = 'internal scratch']
  %s0 = inlined_call_operand.vmem [shape: f32[16,32], index: 0, kind: input, shape index: {}]
  %s1 = inlined_call_operand.vmem [shape: f32[16,32], index: 1, kind: input, shape index: {}]
  %s2 = inlined_call_operand.hbm [shape: f32[1,32], index: 2, kind: input, shape index: {}]
  %s3 = inlined_call_operand.hbm [shape: f32[1,32], index: 3, kind: input, shape index: {}]
  %s4 = inlined_call_operand.vmem [shape: bf16[32,64], index: 4, kind: input, shape index: {}]
  %s5 = inlined_call_operand.hbm [shape: f32[1,64], index: 5, kind: input, shape index: {}]
  %s6 = inlined_call_operand.vmem [shape: bf16[32,32], index: 6, kind: input, shape index: {}]
  %s7 = inlined_call_operand.hbm [shape: f32[1,32], index: 7, kind: input, shape index: {}]
  %s8 = inlined_call_operand.vmem [shape: bf16[16,64], index: 8, kind: output, shape index: {0}]
  %s9 = inlined_call_operand.vmem [shape: bf16[16,32], index: 9, kind: output, shape index: {1}]
  %10 = xla_tuple %s8, %s9
  %s11 = sld [smem:[#allocation0]]
  $region66: #{transformer_forward.35} parent=0
    _
  %s13 = ssub.s32 1, %s11
  %s14 = scalar_select 0, %s13, %s11
  $region1: #{transformer_forward.35} parent=0
    #allocation2 [shape = 'u8[512]{0}', space=vmem, size = 0x400, scoped, tag = 'input window, operand 2, single buffered']
    #allocation3 [shape = 's32[1]{0}', space=sflag, size = 0x4, scoped, tag = 'scoped memory for transformer_forward.35']
    #allocation4 [shape = 'u8[512]{0}', space=vmem, size = 0x400, scoped, tag = 'input window, operand 3, single buffered']
    #allocation5 [shape = 's32[1]{0}', space=sflag, size = 0x4, scoped, tag = 'scoped memory for transformer_forward.35']
    #allocation6 [shape = 'u8[512]{0}', space=vmem, size = 0x400, scoped, tag = 'input window, operand 5, single buffered']
    #allocation7 [shape = 'u8[512]{0}', space=vmem, size = 0x400, scoped, tag = 'input window, operand 7, single buffered']
    #allocation8 [shape = 's32[1]{0}', space=sflag, size = 0x4, scoped, tag = 'scoped memory for transformer_forward.35']
    %15 = vsyncpa [#allocation3], 0
    %16 = vsyncpa [#allocation5], 0
    %17 = vsyncpa [#allocation8], 0
    // Predicated region
    $region2: #{transformer_forward.35} parent=1 // pred_check
      _
    $region3: #{transformer_forward.35} parent=1 // pred_check_branch
      %19 = sbr.rel (0) target = $region5
    $region4: #{transformer_forward.35} parent=1 // pred_region
      _
    $region5: #{transformer_forward.35} parent=1 // pred_fallthru
      _
    // Predicated region
    $region6: #{transformer_forward.35} parent=1 // pred_check
      _
    $region7: #{transformer_forward.35} parent=1 // pred_check_branch
      %21 = sbr.rel (0) target = $region9
    $region8: #{transformer_forward.35} parent=1 // pred_region
      _
    $region9: #{transformer_forward.35} parent=1 // pred_fallthru
      _
    // Predicated region
    $region10: #{transformer_forward.35} parent=1 // pred_check
      _
    $region11: #{transformer_forward.35} parent=1 // pred_check_branch
      %23 = sbr.rel (0) target = $region13
    $region12: #{transformer_forward.35} parent=1 // pred_region
      %25 = vsyncadd [#allocation3], 0
      %s27 = sshll.u32 %s2, 4
      %s28 = int_to_ptr.hbm [resolvable:$true] %s27
      %s29 = sshll.u32 [#allocation2], 4
      %s30 = int_to_ptr.vmem [resolvable:$true] %s29
      %32 = dma.hbm_to_vmem [thread:$0]  %s28, 16, %s30, [#allocation3]
    $region13: #{transformer_forward.35} parent=1 // pred_fallthru
      _
    // Predicated region
    $region14: #{transformer_forward.35} parent=1 // pred_check
      _
    $region15: #{transformer_forward.35} parent=1 // pred_check_branch
      %34 = sbr.rel (0) target = $region17
    $region16: #{transformer_forward.35} parent=1 // pred_region
      %36 = vsyncadd [#allocation5], 0
      %s38 = sshll.u32 %s3, 4
      %s39 = int_to_ptr.hbm [resolvable:$true] %s38
      %s40 = sshll.u32 [#allocation4], 4
      %s41 = int_to_ptr.vmem [resolvable:$true] %s40
      %43 = dma.hbm_to_vmem [thread:$0]  %s39, 16, %s41, [#allocation5]
    $region17: #{transformer_forward.35} parent=1 // pred_fallthru
      _
    // Predicated region
    $region18: #{transformer_forward.35} parent=1 // pred_check
      _
    $region19: #{transformer_forward.35} parent=1 // pred_check_branch
      %45 = sbr.rel (0) target = $region21
    $region20: #{transformer_forward.35} parent=1 // pred_region
      _
    $region21: #{transformer_forward.35} parent=1 // pred_fallthru
      _
    // Predicated region
    $region22: #{transformer_forward.35} parent=1 // pred_check
      _
    $region23: #{transformer_forward.35} parent=1 // pred_check_branch
      %47 = sbr.rel (0) target = $region25
    $region24: #{transformer_forward.35} parent=1 // pred_region
      %49 = vsyncadd [#allocation5], 0
      %s51 = sshll.u32 %s5, 4
      %s52 = int_to_ptr.hbm [resolvable:$true] %s51
      %s53 = sshll.u32 [#allocation6], 4
      %s54 = int_to_ptr.vmem [resolvable:$true] %s53
      %56 = dma.hbm_to_vmem [thread:$0]  %s52, 16, %s54, [#allocation5]
    $region25: #{transformer_forward.35} parent=1 // pred_fallthru
      _
    // Predicated region
    $region26: #{transformer_forward.35} parent=1 // pred_check
      _
    $region27: #{transformer_forward.35} parent=1 // pred_check_branch
      %58 = sbr.rel (0) target = $region29
    $region28: #{transformer_forward.35} parent=1 // pred_region
      _
    $region29: #{transformer_forward.35} parent=1 // pred_fallthru
      _
    // Predicated region
    $region30: #{transformer_forward.35} parent=1 // pred_check
      _
    $region31: #{transformer_forward.35} parent=1 // pred_check_branch
      %60 = sbr.rel (0) target = $region33
    $region32: #{transformer_forward.35} parent=1 // pred_region
      %62 = vsyncadd [#allocation8], 0
      %s64 = sshll.u32 %s7, 4
      %s65 = int_to_ptr.hbm [resolvable:$true] %s64
      %s66 = sshll.u32 [#allocation7], 4
      %s67 = int_to_ptr.vmem [resolvable:$true] %s66
      %69 = dma.hbm_to_vmem [thread:$0]  %s65, 16, %s67, [#allocation8]
    $region33: #{transformer_forward.35} parent=1 // pred_fallthru
      _
    // Predicated region
    $region34: #{transformer_forward.35} parent=1 // pred_check
      _
    $region35: #{transformer_forward.35} parent=1 // pred_check_branch
      %71 = sbr.rel (0) target = $region37
    $region36: #{transformer_forward.35} parent=1 // pred_region
      %73 = dma.done [#allocation3], 16
    $region37: #{transformer_forward.35} parent=1 // pred_fallthru
      _
    // Predicated region
    $region38: #{transformer_forward.35} parent=1 // pred_check
      _
    $region39: #{transformer_forward.35} parent=1 // pred_check_branch
      %75 = sbr.rel (0) target = $region41
    $region40: #{transformer_forward.35} parent=1 // pred_region
      %77 = dma.done [#allocation5], 16
    $region41: #{transformer_forward.35} parent=1 // pred_fallthru
      _
    // Predicated region
    $region42: #{transformer_forward.35} parent=1 // pred_check
      _
    $region43: #{transformer_forward.35} parent=1 // pred_check_branch
      %79 = sbr.rel (0) target = $region45
    $region44: #{transformer_forward.35} parent=1 // pred_region
      %81 = dma.done [#allocation5], 16
    $region45: #{transformer_forward.35} parent=1 // pred_fallthru
      _
    // Predicated region
    $region46: #{transformer_forward.35} parent=1 // pred_check
      _
    $region47: #{transformer_forward.35} parent=1 // pred_check_branch
      %83 = sbr.rel (0) target = $region49
    $region48: #{transformer_forward.35} parent=1 // pred_region
      %85 = dma.done [#allocation8], 16
    $region49: #{transformer_forward.35} parent=1 // pred_fallthru
      _
    %v87 = vld [vmem:[%s0] sm:$0xff]
    %v88 = vld [vmem:[%s0 + $0x8] sm:$0xff]
    %v89 = vld [vmem:[#allocation2] sm:$0x1]
    %v90 = vld [vmem:[#allocation4] sm:$0x1]
    %vm91 = vcmask 261120
    %v92 = vsel %vm91, %v87, 0.0
    %93 = vadd.xlane.f32.xlu0 %v92
    %v94 = vpop.xlane.xlu0 %93
    %v95 = vsel %vm91, %v88, 0.0
    %96 = vadd.xlane.f32.xlu0 %v95
    %v97 = vpop.xlane.xlu0 %96
    %v98 = vrcp.pop 32.0
    %v99 = vmul.f32 32.0, %v98
    %v100 = vsub.f32 1.0, %v99
    %v101 = vmul.f32 %v98, %v100
    %v102 = vadd.f32 %v98, %v101
    %vm103 = vweird.f32 %v98
    %v104 = vsel %vm103, %v98, %v102
    %v105 = vmul.f32 %v94, %v104
    %v106 = vmul.f32 %v97, %v104
    %v107 = vsub.f32 %v87, %v105
    %v108 = vsub.f32 %v88, %v106
    %v109 = vmul.f32 %v107, %v107
    %v110 = vmul.f32 %v108, %v108
    %v111 = vsel %vm91, %v109, 0.0
    %112 = vadd.xlane.f32.xlu0 %v111
    %v113 = vpop.xlane.xlu0 %112
    %v114 = vsel %vm91, %v110, 0.0
    %115 = vadd.xlane.f32.xlu0 %v114
    %v116 = vpop.xlane.xlu0 %115
    %v117 = vmul.f32 %v113, %v104
    %v118 = vmul.f32 %v116, %v104
    %v119 = vadd.f32 %v117, 1e-05
    %v120 = vadd.f32 %v118, 1e-05
    %v121 = vrsqrt.pop %v119
    %v122 = vmul.f32 %v121, %v119
    %v123 = vmul.f32 %v122, %v121
    %v124 = vmul.f32 0.5, %v123
    %v125 = vsub.f32 1.5, %v124
    %v126 = vmul.f32 %v121, %v125
    %vm127 = vweird.f32 %v119
    %vm128 = vweird.f32 %v121
    %vm129 = vmor %vm127, %vm128
    %v130 = vsel %vm129, %v121, %v126
    %v131 = vrsqrt.pop %v120
    %v132 = vmul.f32 %v131, %v120
    %v133 = vmul.f32 %v132, %v131
    %v134 = vmul.f32 0.5, %v133
    %v135 = vsub.f32 1.5, %v134
    %v136 = vmul.f32 %v131, %v135
    %vm137 = vweird.f32 %v120
    %vm138 = vweird.f32 %v131
    %vm139 = vmor %vm137, %vm138
    %v140 = vsel %vm139, %v131, %v136
    %v141 = vmul.f32 %v107, %v130
    %v142 = vmul.f32 %v108, %v140
    %v144 = vperm.slane %v89, 0
    %v146 = vmul.f32 %v141, %v144
    %v147 = vmul.f32 %v142, %v144
    %v149 = vperm.slane %v90, 0
    %v151 = vadd.f32 %v146, %v149
    %v152 = vadd.f32 %v147, %v149
    %v153 = vld [vmem:[%s1] sm:$0xff]
    %v154 = vld [vmem:[%s1 + $0x8] sm:$0xff]
    %v155 = vadd.f32 %v151, %v153
    %v156 = vadd.f32 %v152, %v154
    %v157 = vpack.c.bf16 %v156, %v155
    %v158 = vld [vmem:[%s4] sm:$0xf]
    %v159 = vld [vmem:[%s4 + $0x4] sm:$0xf]
    %v160 = vld [vmem:[%s4 + $0x8] sm:$0xf]
    %v161 = vld [vmem:[%s4 + $0xc] sm:$0xf]
    %v162 = vld [vmem:[#allocation6] sm:$0x1]
    %v164 = vperm.slane %v162, 0
    %v170 = vunpack.c.l.b16 %v158
    %v171 = vunpack.c.l.b16 %v159
    %v172 = vunpack.c.l.b16 %v160
    %v173 = vunpack.c.l.b16 %v161
    %v174 = vpack.c.b16 %v171, %v170
    %v175 = vpack.c.b16 %v173, %v172
    %v179 = vsel %vm91, %v157, 0
    %181 = vmatpush.bf16.msra.mxu0 0
    %182 = vmatpush.bf16.msra.mxu0 0
    %183 = vmatpush.bf16.msra.mxu0 0
    %184 = vmatpush.bf16.msra.mxu0 0
    %185 = vmatpush.bf16.msra.mxu0 0
    %186 = vmatpush.bf16.msra.mxu0 0
    %187 = vmatpush.bf16.msra.mxu0 %v175
    %188 = vmatpush.bf16.msra.mxu0 %v174
    %189 = vmatmul.bf16.gmra.mxu0 %v179
    %v190 = vpop.f32.mrf.mxu0
    %v191 = vadd.f32 %v164, %v190
    %v192 = vpop.f32.mrf.mxu0
    %v193 = vadd.f32 %v164, %v192
    %194 = vdwg.mxu0
    %v195 = vpack.c.bf16 %v152, %v151
    %v196 = vld [vmem:[%s6] sm:$0xf]
    %v197 = vld [vmem:[%s6 + $0x4] sm:$0xf]
    %v198 = vld [vmem:[%s6 + $0x8] sm:$0xf]
    %v199 = vld [vmem:[%s6 + $0xc] sm:$0xf]
    %v200 = vld [vmem:[#allocation7] sm:$0x1]
    %v202 = vperm.slane %v200, 0
    %v208 = vunpack.c.l.b16 %v196
    %v209 = vunpack.c.l.b16 %v197
    %v210 = vunpack.c.l.b16 %v198
    %v211 = vunpack.c.l.b16 %v199
    %v212 = vpack.c.b16 %v209, %v208
    %v213 = vpack.c.b16 %v211, %v210
    %v217 = vsel %vm91, %v195, 0
    %219 = vmatpush.bf16.msra.mxu0 0
    %220 = vmatpush.bf16.msra.mxu0 0
    %221 = vmatpush.bf16.msra.mxu0 0
    %222 = vmatpush.bf16.msra.mxu0 0
    %223 = vmatpush.bf16.msra.mxu0 0
    %224 = vmatpush.bf16.msra.mxu0 0
    %225 = vmatpush.bf16.msra.mxu0 %v213
    %226 = vmatpush.bf16.msra.mxu0 %v212
    %227 = vmatmul.bf16.gmra.mxu0 %v217
    %v228 = vpop.f32.mrf.mxu0
    %v229 = vadd.f32 %v202, %v228
    %v230 = vpop.f32.mrf.mxu0
    %v231 = vadd.f32 %v202, %v230
    %232 = vdwg.mxu0
    %v233 = vpack.c.bf16 %v191, %v191
    %v234 = vpack.c.bf16 %v193, %v193
    %vm235 = vcmask 519168
    %236 = vst.msk [vmem:[%s8] sm:$0xf] %vm235, %v233
    %237 = vst.msk [vmem:[%s8 + $0x4] sm:$0xf] %vm235, %v234
    %v238 = vpack.c.bf16 %v229, %v229
    %v239 = vpack.c.bf16 %v231, %v231
    %vm240 = vcmask 257024
    %241 = vst.msk [vmem:[%s9] sm:$0xf] %vm240, %v238
    %242 = vst.msk [vmem:[%s9 + $0x4] sm:$0xf] %vm240, %v239
    // Predicated region
    $region50: #{transformer_forward.35} parent=1 // pred_check
      _
    $region51: #{transformer_forward.35} parent=1 // pred_check_branch
      %244 = sbr.rel (0) target = $region53
    $region52: #{transformer_forward.35} parent=1 // pred_region
      _
    $region53: #{transformer_forward.35} parent=1 // pred_fallthru
      _
    // Predicated region
    $region54: #{transformer_forward.35} parent=1 // pred_check
      _
    $region55: #{transformer_forward.35} parent=1 // pred_check_branch
      %246 = sbr.rel (0) target = $region57
    $region56: #{transformer_forward.35} parent=1 // pred_region
      _
    $region57: #{transformer_forward.35} parent=1 // pred_fallthru
      _
    // Predicated region
    $region58: #{transformer_forward.35} parent=1 // pred_check
      _
    $region59: #{transformer_forward.35} parent=1 // pred_check_branch
      %248 = sbr.rel (0) target = $region61
    $region60: #{transformer_forward.35} parent=1 // pred_region
      _
    $region61: #{transformer_forward.35} parent=1 // pred_fallthru
      _
    // Predicated region
    $region62: #{transformer_forward.35} parent=1 // pred_check
      _
    $region63: #{transformer_forward.35} parent=1 // pred_check_branch
      %250 = sbr.rel (0) target = $region65
    $region64: #{transformer_forward.35} parent=1 // pred_region
      _
    $region65: #{transformer_forward.35} parent=1 // pred_fallthru
      _
    %251 = vsyncpa [#allocation3], 1
    %252 = vsyncpa [#allocation5], 1
    %253 = vsyncpa [#allocation8], 1

// kernel: transformer_forward.38
$region0: #{transformer_forward.38}
  #allocation0 [shape = 'u32[]', space=smem, size = 0x4, offset = 0x4, fixed_abs, tag = 'smem constant byte address 0x4 - core index']
  #allocation1 [shape = 'u32[72,128]{1,0:T(1,128)}', space=vmem, size = 0x9000, scoped, tag = 'internal scratch']
  %s0 = inlined_call_operand.vmem [shape: f32[32,32], index: 0, kind: input, shape index: {}]
  %s1 = inlined_call_operand.vmem [shape: f32[32,32], index: 1, kind: input, shape index: {}]
  %s2 = inlined_call_operand.vmem [shape: bf16[32,32], index: 2, kind: input, shape index: {}]
  %s3 = inlined_call_operand.hbm [shape: f32[1,32], index: 3, kind: input, shape index: {}]
  %s4 = inlined_call_operand.vmem [shape: bf16[32,32], index: 4, kind: input, shape index: {}]
  %s5 = inlined_call_operand.hbm [shape: f32[1,32], index: 5, kind: input, shape index: {}]
  %s6 = inlined_call_operand.vmem [shape: bf16[32,32], index: 6, kind: output, shape index: {0}]
  %s7 = inlined_call_operand.vmem [shape: bf16[32,32], index: 7, kind: output, shape index: {1}]
  %8 = xla_tuple %s6, %s7
  %s9 = sld [smem:[#allocation0]]
  $region50: #{transformer_forward.38} parent=0
    _
  %s11 = ssub.s32 1, %s9
  %s12 = scalar_select 0, %s11, %s9
  $region1: #{transformer_forward.38} parent=0
    #allocation2 [shape = 'u8[512]{0}', space=vmem, size = 0x400, scoped, tag = 'input window, operand 3, single buffered']
    #allocation3 [shape = 's32[1]{0}', space=sflag, size = 0x4, scoped, tag = 'scoped memory for transformer_forward.38']
    #allocation4 [shape = 'u8[512]{0}', space=vmem, size = 0x400, scoped, tag = 'input window, operand 5, single buffered']
    #allocation5 [shape = 's32[1]{0}', space=sflag, size = 0x4, scoped, tag = 'scoped memory for transformer_forward.38']
    %13 = vsyncpa [#allocation3], 0
    %14 = vsyncpa [#allocation5], 0
    // Predicated region
    $region2: #{transformer_forward.38} parent=1 // pred_check
      _
    $region3: #{transformer_forward.38} parent=1 // pred_check_branch
      %16 = sbr.rel (0) target = $region5
    $region4: #{transformer_forward.38} parent=1 // pred_region
      _
    $region5: #{transformer_forward.38} parent=1 // pred_fallthru
      _
    // Predicated region
    $region6: #{transformer_forward.38} parent=1 // pred_check
      _
    $region7: #{transformer_forward.38} parent=1 // pred_check_branch
      %18 = sbr.rel (0) target = $region9
    $region8: #{transformer_forward.38} parent=1 // pred_region
      _
    $region9: #{transformer_forward.38} parent=1 // pred_fallthru
      _
    // Predicated region
    $region10: #{transformer_forward.38} parent=1 // pred_check
      _
    $region11: #{transformer_forward.38} parent=1 // pred_check_branch
      %20 = sbr.rel (0) target = $region13
    $region12: #{transformer_forward.38} parent=1 // pred_region
      _
    $region13: #{transformer_forward.38} parent=1 // pred_fallthru
      _
    // Predicated region
    $region14: #{transformer_forward.38} parent=1 // pred_check
      _
    $region15: #{transformer_forward.38} parent=1 // pred_check_branch
      %22 = sbr.rel (0) target = $region17
    $region16: #{transformer_forward.38} parent=1 // pred_region
      %24 = vsyncadd [#allocation3], 0
      %s26 = sshll.u32 %s3, 4
      %s27 = int_to_ptr.hbm [resolvable:$true] %s26
      %s28 = sshll.u32 [#allocation2], 4
      %s29 = int_to_ptr.vmem [resolvable:$true] %s28
      %31 = dma.hbm_to_vmem [thread:$0]  %s27, 16, %s29, [#allocation3]
    $region17: #{transformer_forward.38} parent=1 // pred_fallthru
      _
    // Predicated region
    $region18: #{transformer_forward.38} parent=1 // pred_check
      _
    $region19: #{transformer_forward.38} parent=1 // pred_check_branch
      %33 = sbr.rel (0) target = $region21
    $region20: #{transformer_forward.38} parent=1 // pred_region
      _
    $region21: #{transformer_forward.38} parent=1 // pred_fallthru
      _
    // Predicated region
    $region22: #{transformer_forward.38} parent=1 // pred_check
      _
    $region23: #{transformer_forward.38} parent=1 // pred_check_branch
      %35 = sbr.rel (0) target = $region25
    $region24: #{transformer_forward.38} parent=1 // pred_region
      %37 = vsyncadd [#allocation5], 0
      %s39 = sshll.u32 %s5, 4
      %s40 = int_to_ptr.hbm [resolvable:$true] %s39
      %s41 = sshll.u32 [#allocation4], 4
      %s42 = int_to_ptr.vmem [resolvable:$true] %s41
      %44 = dma.hbm_to_vmem [thread:$0]  %s40, 16, %s42, [#allocation5]
    $region25: #{transformer_forward.38} parent=1 // pred_fallthru
      _
    // Predicated region
    $region26: #{transformer_forward.38} parent=1 // pred_check
      _
    $region27: #{transformer_forward.38} parent=1 // pred_check_branch
      %46 = sbr.rel (0) target = $region29
    $region28: #{transformer_forward.38} parent=1 // pred_region
      %48 = dma.done [#allocation3], 16
    $region29: #{transformer_forward.38} parent=1 // pred_fallthru
      _
    // Predicated region
    $region30: #{transformer_forward.38} parent=1 // pred_check
      _
    $region31: #{transformer_forward.38} parent=1 // pred_check_branch
      %50 = sbr.rel (0) target = $region33
    $region32: #{transformer_forward.38} parent=1 // pred_region
      %52 = dma.done [#allocation5], 16
    $region33: #{transformer_forward.38} parent=1 // pred_fallthru
      _
    %v54 = vld [vmem:[%s0] sm:$0xff]
    %v55 = vld [vmem:[%s0 + $0x8] sm:$0xff]
    %v56 = vld [vmem:[%s0 + $0x10] sm:$0xff]
    %v57 = vld [vmem:[%s0 + $0x18] sm:$0xff]
    %v58 = vld [vmem:[%s1] sm:$0xff]
    %v59 = vld [vmem:[%s1 + $0x8] sm:$0xff]
    %v60 = vld [vmem:[%s1 + $0x10] sm:$0xff]
    %v61 = vld [vmem:[%s1 + $0x18] sm:$0xff]
    %v62 = vadd.f32 %v54, %v58
    %v63 = vadd.f32 %v55, %v59
    %v64 = vadd.f32 %v56, %v60
    %v65 = vadd.f32 %v57, %v61
    %v66 = vpack.c.bf16 %v63, %v62
    %v67 = vpack.c.bf16 %v65, %v64
    %v68 = vld [vmem:[%s2] sm:$0xf]
    %v69 = vld [vmem:[%s2 + $0x4] sm:$0xf]
    %v70 = vld [vmem:[%s2 + $0x8] sm:$0xf]
    %v71 = vld [vmem:[%s2 + $0xc] sm:$0xf]
    %v72 = vld [vmem:[#allocation2] sm:$0x1]
    %v74 = vperm.slane %v72, 0
    %v80 = vunpack.c.l.b16 %v68
    %v81 = vunpack.c.l.b16 %v69
    %v82 = vunpack.c.l.b16 %v70
    %v83 = vunpack.c.l.b16 %v71
    %v84 = vpack.c.b16 %v81, %v80
    %v85 = vpack.c.b16 %v83, %v82
    %vm88 = vcmask 261120
    %v90 = vsel %vm88, %v66, 0
    %v93 = vsel %vm88, %v67, 0
    %95 = vmatpush.bf16.msra.mxu0 0
    %96 = vmatpush.bf16.msra.mxu0 0
    %97 = vmatpush.bf16.msra.mxu0 0
    %98 = vmatpush.bf16.msra.mxu0 0
    %99 = vmatpush.bf16.msra.mxu0 0
    %100 = vmatpush.bf16.msra.mxu0 0
    %101 = vmatpush.bf16.msra.mxu0 %v85
    %102 = vmatpush.bf16.msra.mxu0 %v84
    %103 = vmatmul.bf16.gmra.mxu0 %v90
    %v104 = vpop.f32.mrf.mxu0
    %v105 = vadd.f32 %v74, %v104
    %v106 = vpop.f32.mrf.mxu0
    %v107 = vadd.f32 %v74, %v106
    %108 = vmatmul.bf16.gmra.mxu0 %v93
    %v109 = vpop.f32.mrf.mxu0
    %v110 = vadd.f32 %v74, %v109
    %v111 = vpop.f32.mrf.mxu0
    %v112 = vadd.f32 %v74, %v111
    %113 = vdwg.mxu0
    %v114 = vpack.c.bf16 %v55, %v54
    %v115 = vpack.c.bf16 %v57, %v56
    %v116 = vld [vmem:[%s4] sm:$0xf]
    %v117 = vld [vmem:[%s4 + $0x4] sm:$0xf]
    %v118 = vld [vmem:[%s4 + $0x8] sm:$0xf]
    %v119 = vld [vmem:[%s4 + $0xc] sm:$0xf]
    %v120 = vld [vmem:[#allocation4] sm:$0x1]
    %v122 = vperm.slane %v120, 0
    %v128 = vunpack.c.l.b16 %v116
    %v129 = vunpack.c.l.b16 %v117
    %v130 = vunpack.c.l.b16 %v118
    %v131 = vunpack.c.l.b16 %v119
    %v132 = vpack.c.b16 %v129, %v128
    %v133 = vpack.c.b16 %v131, %v130
    %v137 = vsel %vm88, %v114, 0
    %v140 = vsel %vm88, %v115, 0
    %142 = vmatpush.bf16.msra.mxu0 0
    %143 = vmatpush.bf16.msra.mxu0 0
    %144 = vmatpush.bf16.msra.mxu0 0
    %145 = vmatpush.bf16.msra.mxu0 0
    %146 = vmatpush.bf16.msra.mxu0 0
    %147 = vmatpush.bf16.msra.mxu0 0
    %148 = vmatpush.bf16.msra.mxu0 %v133
    %149 = vmatpush.bf16.msra.mxu0 %v132
    %150 = vmatmul.bf16.gmra.mxu0 %v137
    %v151 = vpop.f32.mrf.mxu0
    %v152 = vadd.f32 %v122, %v151
    %v153 = vpop.f32.mrf.mxu0
    %v154 = vadd.f32 %v122, %v153
    %155 = vmatmul.bf16.gmra.mxu0 %v140
    %v156 = vpop.f32.mrf.mxu0
    %v157 = vadd.f32 %v122, %v156
    %v158 = vpop.f32.mrf.mxu0
    %v159 = vadd.f32 %v122, %v158
    %160 = vdwg.mxu0
    %v161 = vpack.c.bf16 %v105, %v105
    %v162 = vpack.c.bf16 %v107, %v107
    %v163 = vpack.c.bf16 %v110, %v110
    %v164 = vpack.c.bf16 %v112, %v112
    %vm165 = vcmask 257024
    %166 = vst.msk [vmem:[%s6] sm:$0xf] %vm165, %v161
    %167 = vst.msk [vmem:[%s6 + $0x4] sm:$0xf] %vm165, %v162
    %168 = vst.msk [vmem:[%s6 + $0x8] sm:$0xf] %vm165, %v163
    %169 = vst.msk [vmem:[%s6 + $0xc] sm:$0xf] %vm165, %v164
    %v170 = vpack.c.bf16 %v152, %v152
    %v171 = vpack.c.bf16 %v154, %v154
    %v172 = vpack.c.bf16 %v157, %v157
    %v173 = vpack.c.bf16 %v159, %v159
    %174 = vst.msk [vmem:[%s7] sm:$0xf] %vm165, %v170
    %175 = vst.msk [vmem:[%s7 + $0x4] sm:$0xf] %vm165, %v171
    %176 = vst.msk [vmem:[%s7 + $0x8] sm:$0xf] %vm165, %v172
    %177 = vst.msk [vmem:[%s7 + $0xc] sm:$0xf] %vm165, %v173
    // Predicated region
    $region34: #{transformer_forward.38} parent=1 // pred_check
      _
    $region35: #{transformer_forward.38} parent=1 // pred_check_branch
      %179 = sbr.rel (0) target = $region37
    $region36: #{transformer_forward.38} parent=1 // pred_region
      _
    $region37: #{transformer_forward.38} parent=1 // pred_fallthru
      _
    // Predicated region
    $region38: #{transformer_forward.38} parent=1 // pred_check
      _
    $region39: #{transformer_forward.38} parent=1 // pred_check_branch
      %181 = sbr.rel (0) target = $region41
    $region40: #{transformer_forward.38} parent=1 // pred_region
      _
    $region41: #{transformer_forward.38} parent=1 // pred_fallthru
      _
    // Predicated region
    $region42: #{transformer_forward.38} parent=1 // pred_check
      _
    $region43: #{transformer_forward.38} parent=1 // pred_check_branch
      %183 = sbr.rel (0) target = $region45
    $region44: #{transformer_forward.38} parent=1 // pred_region
      _
    $region45: #{transformer_forward.38} parent=1 // pred_fallthru
      _
    // Predicated region
    $region46: #{transformer_forward.38} parent=1 // pred_check
      _
    $region47: #{transformer_forward.38} parent=1 // pred_check_branch
      %185 = sbr.rel (0) target = $region49
    $region48: #{transformer_forward.38} parent=1 // pred_region
      _
    $region49: #{transformer_forward.38} parent=1 // pred_fallthru
      _
    %186 = vsyncpa [#allocation3], 1
    %187 = vsyncpa [#allocation5], 1

// kernel: transformer_forward.41
$region0: #{transformer_forward.41}
  #allocation0 [shape = 'u32[]', space=smem, size = 0x4, offset = 0x4, fixed_abs, tag = 'smem constant byte address 0x4 - core index']
  #allocation1 [shape = 'u32[72,128]{1,0:T(1,128)}', space=vmem, size = 0x9000, scoped, tag = 'internal scratch']
  %s0 = inlined_call_operand.vmem [shape: f32[16,32], index: 0, kind: input, shape index: {}]
  %s1 = inlined_call_operand.vmem [shape: f32[1,32], index: 1, kind: input, shape index: {}]
  %s2 = inlined_call_operand.vmem [shape: f32[1,32], index: 2, kind: input, shape index: {}]
  %s3 = inlined_call_operand.vmem [shape: f32[16,32], index: 3, kind: output, shape index: {}]
  %s4 = sld [smem:[#allocation0]]
  $region22: #{transformer_forward.41} parent=0
    _
  %s6 = ssub.s32 1, %s4
  %s7 = scalar_select 0, %s6, %s4
  // Predicated region
  $region2: #{transformer_forward.41} parent=0 // pred_check
    _
  $region3: #{transformer_forward.41} parent=0 // pred_check_branch
    %9 = sbr.rel (0) target = $region5
  $region4: #{transformer_forward.41} parent=0 // pred_region
    _
  $region5: #{transformer_forward.41} parent=0 // pred_fallthru
    _
  // Predicated region
  $region6: #{transformer_forward.41} parent=0 // pred_check
    _
  $region7: #{transformer_forward.41} parent=0 // pred_check_branch
    %11 = sbr.rel (0) target = $region9
  $region8: #{transformer_forward.41} parent=0 // pred_region
    _
  $region9: #{transformer_forward.41} parent=0 // pred_fallthru
    _
  // Predicated region
  $region10: #{transformer_forward.41} parent=0 // pred_check
    _
  $region11: #{transformer_forward.41} parent=0 // pred_check_branch
    %13 = sbr.rel (0) target = $region13
  $region12: #{transformer_forward.41} parent=0 // pred_region
    _
  $region13: #{transformer_forward.41} parent=0 // pred_fallthru
    _
  %v14 = vld [vmem:[%s0] sm:$0xff]
  %v15 = vld [vmem:[%s0 + $0x8] sm:$0xff]
  %v16 = vld [vmem:[%s1] sm:$0x1]
  %v17 = vld [vmem:[%s2] sm:$0x1]
  %vm18 = vcmask 261120
  %v19 = vsel %vm18, %v14, 0.0
  %20 = vadd.xlane.f32.xlu0 %v19
  %v21 = vpop.xlane.xlu0 %20
  %v22 = vsel %vm18, %v15, 0.0
  %23 = vadd.xlane.f32.xlu0 %v22
  %v24 = vpop.xlane.xlu0 %23
  %v25 = vrcp.pop 32.0
  %v26 = vmul.f32 32.0, %v25
  %v27 = vsub.f32 1.0, %v26
  %v28 = vmul.f32 %v25, %v27
  %v29 = vadd.f32 %v25, %v28
  %vm30 = vweird.f32 %v25
  %v31 = vsel %vm30, %v25, %v29
  %v32 = vmul.f32 %v21, %v31
  %v33 = vmul.f32 %v24, %v31
  %v34 = vsub.f32 %v14, %v32
  %v35 = vsub.f32 %v15, %v33
  %v36 = vmul.f32 %v34, %v34
  %v37 = vmul.f32 %v35, %v35
  %v38 = vsel %vm18, %v36, 0.0
  %39 = vadd.xlane.f32.xlu0 %v38
  %v40 = vpop.xlane.xlu0 %39
  %v41 = vsel %vm18, %v37, 0.0
  %42 = vadd.xlane.f32.xlu0 %v41
  %v43 = vpop.xlane.xlu0 %42
  %v44 = vmul.f32 %v40, %v31
  %v45 = vmul.f32 %v43, %v31
  %v46 = vadd.f32 %v44, 1e-05
  %v47 = vadd.f32 %v45, 1e-05
  %v48 = vrsqrt.pop %v46
  %v49 = vmul.f32 %v48, %v46
  %v50 = vmul.f32 %v49, %v48
  %v51 = vmul.f32 0.5, %v50
  %v52 = vsub.f32 1.5, %v51
  %v53 = vmul.f32 %v48, %v52
  %vm54 = vweird.f32 %v46
  %vm55 = vweird.f32 %v48
  %vm56 = vmor %vm54, %vm55
  %v57 = vsel %vm56, %v48, %v53
  %v58 = vrsqrt.pop %v47
  %v59 = vmul.f32 %v58, %v47
  %v60 = vmul.f32 %v59, %v58
  %v61 = vmul.f32 0.5, %v60
  %v62 = vsub.f32 1.5, %v61
  %v63 = vmul.f32 %v58, %v62
  %vm64 = vweird.f32 %v47
  %vm65 = vweird.f32 %v58
  %vm66 = vmor %vm64, %vm65
  %v67 = vsel %vm66, %v58, %v63
  %v68 = vmul.f32 %v34, %v57
  %v69 = vmul.f32 %v35, %v67
  %v71 = vperm.slane %v16, 0
  %v73 = vmul.f32 %v68, %v71
  %v74 = vmul.f32 %v69, %v71
  %v76 = vperm.slane %v17, 0
  %v78 = vadd.f32 %v73, %v76
  %v79 = vadd.f32 %v74, %v76
  %80 = vst.msk [vmem:[%s3] sm:$0xff] %vm18, %v78
  %81 = vst.msk [vmem:[%s3 + $0x8] sm:$0xff] %vm18, %v79
  // Predicated region
  $region14: #{transformer_forward.41} parent=0 // pred_check
    _
  $region15: #{transformer_forward.41} parent=0 // pred_check_branch
    %83 = sbr.rel (0) target = $region17
  $region16: #{transformer_forward.41} parent=0 // pred_region
    _
  $region17: #{transformer_forward.41} parent=0 // pred_fallthru
    _
  // Predicated region
  $region18: #{transformer_forward.41} parent=0 // pred_check
    _
  $region19: #{transformer_forward.41} parent=0 // pred_check_branch
    %85 = sbr.rel (0) target = $region21
  $region20: #{transformer_forward.41} parent=0 // pred_region
    _
  $region21: #{transformer_forward.41} parent=0 // pred_fallthru
    _

// kernel: transformer_forward.40
$region0: #{transformer_forward.40}
  #allocation0 [shape = 'u32[]', space=smem, size = 0x4, offset = 0x4, fixed_abs, tag = 'smem constant byte address 0x4 - core index']
  #allocation1 [shape = 'u32[72,128]{1,0:T(1,128)}', space=vmem, size = 0x9000, scoped, tag = 'internal scratch']
  %s0 = inlined_call_operand.vmem [shape: f32[16,32], index: 0, kind: input, shape index: {}]
  %s1 = inlined_call_operand.vmem [shape: f32[1,32], index: 1, kind: input, shape index: {}]
  %s2 = inlined_call_operand.vmem [shape: f32[1,32], index: 2, kind: input, shape index: {}]
  %s3 = inlined_call_operand.vmem [shape: bf16[32,64], index: 3, kind: input, shape index: {}]
  %s4 = inlined_call_operand.vmem [shape: f32[1,64], index: 4, kind: input, shape index: {}]
  %s5 = inlined_call_operand.vmem [shape: bf16[64,32], index: 5, kind: input, shape index: {}]
  %s6 = inlined_call_operand.vmem [shape: f32[1,32], index: 6, kind: input, shape index: {}]
  %s7 = inlined_call_operand.vmem [shape: f32[16,32], index: 7, kind: output, shape index: {}]
  %s8 = sld [smem:[#allocation0]]
  $region38: #{transformer_forward.40} parent=0
    _
  %s10 = ssub.s32 1, %s8
  %s11 = scalar_select 0, %s10, %s8
  // Predicated region
  $region2: #{transformer_forward.40} parent=0 // pred_check
    _
  $region3: #{transformer_forward.40} parent=0 // pred_check_branch
    %13 = sbr.rel (0) target = $region5
  $region4: #{transformer_forward.40} parent=0 // pred_region
    _
  $region5: #{transformer_forward.40} parent=0 // pred_fallthru
    _
  // Predicated region
  $region6: #{transformer_forward.40} parent=0 // pred_check
    _
  $region7: #{transformer_forward.40} parent=0 // pred_check_branch
    %15 = sbr.rel (0) target = $region9
  $region8: #{transformer_forward.40} parent=0 // pred_region
    _
  $region9: #{transformer_forward.40} parent=0 // pred_fallthru
    _
  // Predicated region
  $region10: #{transformer_forward.40} parent=0 // pred_check
    _
  $region11: #{transformer_forward.40} parent=0 // pred_check_branch
    %17 = sbr.rel (0) target = $region13
  $region12: #{transformer_forward.40} parent=0 // pred_region
    _
  $region13: #{transformer_forward.40} parent=0 // pred_fallthru
    _
  // Predicated region
  $region14: #{transformer_forward.40} parent=0 // pred_check
    _
  $region15: #{transformer_forward.40} parent=0 // pred_check_branch
    %19 = sbr.rel (0) target = $region17
  $region16: #{transformer_forward.40} parent=0 // pred_region
    _
  $region17: #{transformer_forward.40} parent=0 // pred_fallthru
    _
  // Predicated region
  $region18: #{transformer_forward.40} parent=0 // pred_check
    _
  $region19: #{transformer_forward.40} parent=0 // pred_check_branch
    %21 = sbr.rel (0) target = $region21
  $region20: #{transformer_forward.40} parent=0 // pred_region
    _
  $region21: #{transformer_forward.40} parent=0 // pred_fallthru
    _
  // Predicated region
  $region22: #{transformer_forward.40} parent=0 // pred_check
    _
  $region23: #{transformer_forward.40} parent=0 // pred_check_branch
    %23 = sbr.rel (0) target = $region25
  $region24: #{transformer_forward.40} parent=0 // pred_region
    _
  $region25: #{transformer_forward.40} parent=0 // pred_fallthru
    _
  // Predicated region
  $region26: #{transformer_forward.40} parent=0 // pred_check
    _
  $region27: #{transformer_forward.40} parent=0 // pred_check_branch
    %25 = sbr.rel (0) target = $region29
  $region28: #{transformer_forward.40} parent=0 // pred_region
    _
  $region29: #{transformer_forward.40} parent=0 // pred_fallthru
    _
  %v27 = vld [vmem:[%s0] sm:$0xff]
  %v28 = vld [vmem:[%s0 + $0x8] sm:$0xff]
  %v29 = vld [vmem:[%s1] sm:$0x1]
  %v30 = vld [vmem:[%s2] sm:$0x1]
  %vm31 = vcmask 261120
  %v32 = vsel %vm31, %v27, 0.0
  %33 = vadd.xlane.f32.xlu0 %v32
  %v34 = vpop.xlane.xlu0 %33
  %v35 = vsel %vm31, %v28, 0.0
  %36 = vadd.xlane.f32.xlu0 %v35
  %v37 = vpop.xlane.xlu0 %36
  %v38 = vrcp.pop 32.0
  %v39 = vmul.f32 32.0, %v38
  %v40 = vsub.f32 1.0, %v39
  %v41 = vmul.f32 %v38, %v40
  %v42 = vadd.f32 %v38, %v41
  %vm43 = vweird.f32 %v38
  %v44 = vsel %vm43, %v38, %v42
  %v45 = vmul.f32 %v34, %v44
  %v46 = vmul.f32 %v37, %v44
  %v47 = vsub.f32 %v27, %v45
  %v48 = vsub.f32 %v28, %v46
  %v49 = vmul.f32 %v47, %v47
  %v50 = vmul.f32 %v48, %v48
  %v51 = vsel %vm31, %v49, 0.0
  %52 = vadd.xlane.f32.xlu0 %v51
  %v53 = vpop.xlane.xlu0 %52
  %v54 = vsel %vm31, %v50, 0.0
  %55 = vadd.xlane.f32.xlu0 %v54
  %v56 = vpop.xlane.xlu0 %55
  %v57 = vmul.f32 %v53, %v44
  %v58 = vmul.f32 %v56, %v44
  %v59 = vadd.f32 %v57, 1e-05
  %v60 = vadd.f32 %v58, 1e-05
  %v61 = vrsqrt.pop %v59
  %v62 = vmul.f32 %v61, %v59
  %v63 = vmul.f32 %v62, %v61
  %v64 = vmul.f32 0.5, %v63
  %v65 = vsub.f32 1.5, %v64
  %v66 = vmul.f32 %v61, %v65
  %vm67 = vweird.f32 %v59
  %vm68 = vweird.f32 %v61
  %vm69 = vmor %vm67, %vm68
  %v70 = vsel %vm69, %v61, %v66
  %v71 = vrsqrt.pop %v60
  %v72 = vmul.f32 %v71, %v60
  %v73 = vmul.f32 %v72, %v71
  %v74 = vmul.f32 0.5, %v73
  %v75 = vsub.f32 1.5, %v74
  %v76 = vmul.f32 %v71, %v75
  %vm77 = vweird.f32 %v60
  %vm78 = vweird.f32 %v71
  %vm79 = vmor %vm77, %vm78
  %v80 = vsel %vm79, %v71, %v76
  %v81 = vmul.f32 %v47, %v70
  %v82 = vmul.f32 %v48, %v80
  %v84 = vperm.slane %v29, 0
  %v86 = vmul.f32 %v81, %v84
  %v87 = vmul.f32 %v82, %v84
  %v89 = vperm.slane %v30, 0
  %v91 = vadd.f32 %v86, %v89
  %v92 = vadd.f32 %v87, %v89
  %v93 = vpack.c.bf16 %v92, %v91
  %v94 = vld [vmem:[%s3] sm:$0xf]
  %v95 = vld [vmem:[%s3 + $0x4] sm:$0xf]
  %v96 = vld [vmem:[%s3 + $0x8] sm:$0xf]
  %v97 = vld [vmem:[%s3 + $0xc] sm:$0xf]
  %v98 = vld [vmem:[%s4] sm:$0x1]
  %v100 = vperm.slane %v98, 0
  %v106 = vunpack.c.l.b16 %v94
  %v107 = vunpack.c.l.b16 %v95
  %v108 = vunpack.c.l.b16 %v96
  %v109 = vunpack.c.l.b16 %v97
  %v110 = vpack.c.b16 %v107, %v106
  %v111 = vpack.c.b16 %v109, %v108
  %v115 = vsel %vm31, %v93, 0
  %117 = vmatpush.bf16.msra.mxu0 0
  %118 = vmatpush.bf16.msra.mxu0 0
  %119 = vmatpush.bf16.msra.mxu0 0
  %120 = vmatpush.bf16.msra.mxu0 0
  %121 = vmatpush.bf16.msra.mxu0 0
  %122 = vmatpush.bf16.msra.mxu0 0
  %123 = vmatpush.bf16.msra.mxu0 %v111
  %124 = vmatpush.bf16.msra.mxu0 %v110
  %125 = vmatmul.bf16.gmra.mxu0 %v115
  %v126 = vpop.f32.mrf.mxu0
  %v127 = vadd.f32 %v100, %v126
  %v128 = vpop.f32.mrf.mxu0
  %v129 = vadd.f32 %v100, %v128
  %130 = vdwg.mxu0
  %v131 = vmax.f32 %v127, 0.0
  %v132 = vmax.f32 %v129, 0.0
  %v133 = vpack.c.bf16 %v132, %v131
  %v134 = vld [vmem:[%s5] sm:$0xf]
  %v135 = vld [vmem:[%s5 + $0x4] sm:$0xf]
  %v136 = vld [vmem:[%s5 + $0x8] sm:$0xf]
  %v137 = vld [vmem:[%s5 + $0xc] sm:$0xf]
  %v138 = vld [vmem:[%s5 + $0x10] sm:$0xf]
  %v139 = vld [vmem:[%s5 + $0x14] sm:$0xf]
  %v140 = vld [vmem:[%s5 + $0x18] sm:$0xf]
  %v141 = vld [vmem:[%s5 + $0x1c] sm:$0xf]
  %v142 = vld [vmem:[%s6] sm:$0x1]
  %v144 = vperm.slane %v142, 0
  %v154 = vunpack.c.l.b16 %v134
  %v155 = vunpack.c.l.b16 %v135
  %v156 = vunpack.c.l.b16 %v136
  %v157 = vunpack.c.l.b16 %v137
  %v158 = vunpack.c.l.b16 %v138
  %v159 = vunpack.c.l.b16 %v139
  %v160 = vunpack.c.l.b16 %v140
  %v161 = vunpack.c.l.b16 %v141
  %v162 = vpack.c.b16 %v155, %v154
  %v163 = vpack.c.b16 %v157, %v156
  %v164 = vpack.c.b16 %v159, %v158
  %v165 = vpack.c.b16 %v161, %v160
  %vm170 = vcmask 523264
  %v172 = vsel %vm170, %v133, 0
  %174 = vmatpush.bf16.msra.mxu0 0
  %175 = vmatpush.bf16.msra.mxu0 0
  %176 = vmatpush.bf16.msra.mxu0 0
  %177 = vmatpush.bf16.msra.mxu0 0
  %178 = vmatpush.bf16.msra.mxu0 %v165
  %179 = vmatpush.bf16.msra.mxu0 %v164
  %180 = vmatpush.bf16.msra.mxu0 %v163
  %181 = vmatpush.bf16.msra.mxu0 %v162
  %182 = vmatmul.bf16.gmra.mxu0 %v172
  %v183 = vpop.f32.mrf.mxu0
  %v184 = vadd.f32 %v144, %v183
  %v185 = vpop.f32.mrf.mxu0
  %v186 = vadd.f32 %v144, %v185
  %187 = vdwg.mxu0
  %v188 = vadd.f32 %v27, %v184
  %v189 = vadd.f32 %v28, %v186
  %190 = vst.msk [vmem:[%s7] sm:$0xff] %vm31, %v188
  %191 = vst.msk [vmem:[%s7 + $0x8] sm:$0xff] %vm31, %v189
  // Predicated region
  $region30: #{transformer_forward.40} parent=0 // pred_check
    _
  $region31: #{transformer_forward.40} parent=0 // pred_check_branch
    %193 = sbr.rel (0) target = $region33
  $region32: #{transformer_forward.40} parent=0 // pred_region
    _
  $region33: #{transformer_forward.40} parent=0 // pred_fallthru
    _
  // Predicated region
  $region34: #{transformer_forward.40} parent=0 // pred_check
    _
  $region35: #{transformer_forward.40} parent=0 // pred_check_branch
    %195 = sbr.rel (0) target = $region37
  $region36: #{transformer_forward.40} parent=0 // pred_region
    _
  $region37: #{transformer_forward.40} parent=0 // pred_fallthru
    _

// kernel: transformer_forward.39
$region0: #{transformer_forward.39}
  #allocation0 [shape = 'u32[]', space=smem, size = 0x4, offset = 0x4, fixed_abs, tag = 'smem constant byte address 0x4 - core index']
  #allocation1 [shape = 'u32[72,128]{1,0:T(1,128)}', space=vmem, size = 0x9000, scoped, tag = 'internal scratch']
  %s0 = inlined_call_operand.vmem [shape: bf16[2,8,32], index: 0, kind: input, shape index: {}]
  %s1 = inlined_call_operand.vmem [shape: bf16[2,16,32], index: 1, kind: input, shape index: {}]
  %s2 = inlined_call_operand.vmem [shape: bf16[2,16,32], index: 2, kind: input, shape index: {}]
  %s3 = inlined_call_operand.vmem [shape: f32[2,1,16], index: 3, kind: input, shape index: {}]
  %s4 = inlined_call_operand.vmem [shape: f32[2,8,32], index: 4, kind: input, shape index: {}]
  %s5 = inlined_call_operand.vmem [shape: bf16[4,8,32], index: 5, kind: input, shape index: {}]
  %s6 = inlined_call_operand.hbm [shape: f32[1,32], index: 6, kind: input, shape index: {}]
  %s7 = inlined_call_operand.vmem [shape: f32[2,8,32], index: 7, kind: output, shape index: {}]
  %s8 = sld [smem:[#allocation0]]
  $region65: #{transformer_forward.39} parent=0
    _
  %s10 = ssub.s32 1, %s8
  %s11 = scalar_select 0, %s10, %s8
  $region1: #{transformer_forward.39} parent=0
    #allocation2 [shape = 'u8[512]{0}', space=vmem, size = 0x400, scoped, tag = 'input window, operand 6, single buffered']
    #allocation3 [shape = 's32[2]{0}', space=sflag, size = 0x8, scoped, tag = 'scoped memory for transformer_forward.39']
    %12 = vsyncpa [#allocation3], 0
    loop: start=0, step=1, limit=4
    $region2: #{transformer_forward.39} parent=1 // loop_pre_header
      _
    $region3: #{transformer_forward.39} parent=1 // loop_header
      %s14 = sphi 0, %s18
      %p15 = scmp.ge.s32.totalorder %s14, 4
      %s24 = sphi 0, %s26
      %s27 = sphi 0, %s24
      %s28 = sphi 0, %s27
      %s44 = sphi 0, %s28
      %s50 = sphi 0, %s52
      %s53 = sphi 0, %s50
      %s54 = sphi 0, %s53
      %s70 = sphi 0, %s54
      %s76 = sphi 0, %s78
      %s79 = sphi 0, %s76
      %s80 = sphi 0, %s79
      %s96 = sphi 0, %s80
      %s102 = sphi 0, %s104
      %s105 = sphi 0, %s102
      %s106 = sphi 0, %s105
      %s122 = sphi 0, %s106
      %s128 = sphi 0, %s130
      %s131 = sphi 0, %s128
      %s132 = sphi 0, %s131
      %s148 = sphi 0, %s132
      %s152 = sphi 0, %s152
      %s154 = sphi 0, %s152
      %s155 = sphi 0, %s154
      %s169 = sphi 0, %s155
      %s173 = sphi 0, %s173
      %s175 = sphi 0, %s173
      %s176 = sphi 0, %s175
      %s190 = sphi 0, %s176
      %s196 = sphi 0, %s198
      %s199 = sphi 0, %s196
      %s200 = sphi 0, %s199
      %s216 = sphi 0, %s200
    $region4: #{transformer_forward.39} parent=1 // loop_header_branch
      %17 = sbr.rel (%p15) target = $region8
    $region5: #{transformer_forward.39} parent=1 // loop_body
      %s19 = ssub.s32 %s14, 1
      %s20 = ssub.s32 %s14, 2
      %s21 = sadd.s32 %s14, 1
      %s22 = ssub.s32 %s14, %s21
      %p23 = scmp.eq.s32.totalorder %s22, 0
      %s25 = sadd.s32 %s24, 1
      %s26 = scalar_select %p23, %s24, %s25
      %p29 = pneg %p23
      %p30 = scmp.eq.s32.totalorder %s14, 1
      %p31 = por %p29, %p30
      %p32 = scmp.ne.s32.totalorder %s24, %s27
      %p33 = scmp.eq.s32.totalorder %s14, 0
      %p34 = por %p32, %p33
      %p35 = scmp.ne.s32.totalorder %s24, %s27
      %p36 = scmp.eq.s32.totalorder %s19, 1
      %p37 = por %p35, %p36
      %p38 = scmp.ne.s32.totalorder %s27, %s28
      %p39 = scmp.eq.s32.totalorder %s19, 0
      %p40 = por %p38, %p39
      %p41 = scmp.ne.s32.totalorder %s27, %s28
      %p42 = scmp.eq.s32.totalorder %s20, 1
      %p43 = por %p41, %p42
      %p45 = scmp.ne.s32.totalorder %s28, %s44
      %p46 = scmp.eq.s32.totalorder %s20, 0
      %p47 = por %p45, %p46
      %s48 = ssub.s32 %s14, %s21
      %p49 = scmp.eq.s32.totalorder %s48, 0
      %s51 = sadd.s32 %s50, 1
      %s52 = scalar_select %p49, %s50, %s51
      %p55 = pneg %p49
      %p56 = scmp.eq.s32.totalorder %s14, 1
      %p57 = por %p55, %p56
      %p58 = scmp.ne.s32.totalorder %s50, %s53
      %p59 = scmp.eq.s32.totalorder %s14, 0
      %p60 = por %p58, %p59
      %p61 = scmp.ne.s32.totalorder %s50, %s53
      %p62 = scmp.eq.s32.totalorder %s19, 1
      %p63 = por %p61, %p62
      %p64 = scmp.ne.s32.totalorder %s53, %s54
      %p65 = scmp.eq.s32.totalorder %s19, 0
      %p66 = por %p64, %p65
      %p67 = scmp.ne.s32.totalorder %s53, %s54
      %p68 = scmp.eq.s32.totalorder %s20, 1
      %p69 = por %p67, %p68
      %p71 = scmp.ne.s32.totalorder %s54, %s70
      %p72 = scmp.eq.s32.totalorder %s20, 0
      %p73 = por %p71, %p72
      %s74 = ssub.s32 %s14, %s21
      %p75 = scmp.eq.s32.totalorder %s74, 0
      %s77 = sadd.s32 %s76, 1
      %s78 = scalar_select %p75, %s76, %s77
      %p81 = pneg %p75
      %p82 = scmp.eq.s32.totalorder %s14, 1
      %p83 = por %p81, %p82
      %p84 = scmp.ne.s32.totalorder %s76, %s79
      %p85 = scmp.eq.s32.totalorder %s14, 0
      %p86 = por %p84, %p85
      %p87 = scmp.ne.s32.totalorder %s76, %s79
      %p88 = scmp.eq.s32.totalorder %s19, 1
      %p89 = por %p87, %p88
      %p90 = scmp.ne.s32.totalorder %s79, %s80
      %p91 = scmp.eq.s32.totalorder %s19, 0
      %p92 = por %p90, %p91
      %p93 = scmp.ne.s32.totalorder %s79, %s80
      %p94 = scmp.eq.s32.totalorder %s20, 1
      %p95 = por %p93, %p94
      %p97 = scmp.ne.s32.totalorder %s80, %s96
      %p98 = scmp.eq.s32.totalorder %s20, 0
      %p99 = por %p97, %p98
      %s100 = ssub.s32 %s14, %s21
      %p101 = scmp.eq.s32.totalorder %s100, 0
      %s103 = sadd.s32 %s102, 1
      %s104 = scalar_select %p101, %s102, %s103
      %p107 = pneg %p101
      %p108 = scmp.eq.s32.totalorder %s14, 1
      %p109 = por %p107, %p108
      %p110 = scmp.ne.s32.totalorder %s102, %s105
      %p111 = scmp.eq.s32.totalorder %s14, 0
      %p112 = por %p110, %p111
      %p113 = scmp.ne.s32.totalorder %s102, %s105
      %p114 = scmp.eq.s32.totalorder %s19, 1
      %p115 = por %p113, %p114
      %p116 = scmp.ne.s32.totalorder %s105, %s106
      %p117 = scmp.eq.s32.totalorder %s19, 0
      %p118 = por %p116, %p117
      %p119 = scmp.ne.s32.totalorder %s105, %s106
      %p120 = scmp.eq.s32.totalorder %s20, 1
      %p121 = por %p119, %p120
      %p123 = scmp.ne.s32.totalorder %s106, %s122
      %p124 = scmp.eq.s32.totalorder %s20, 0
      %p125 = por %p123, %p124
      %s126 = ssub.s32 %s14, %s21
      %p127 = scmp.eq.s32.totalorder %s126, 0
      %s129 = sadd.s32 %s128, 1
      %s130 = scalar_select %p127, %s128, %s129
      %p133 = pneg %p127
      %p134 = scmp.eq.s32.totalorder %s14, 1
      %p135 = por %p133, %p134
      %p136 = scmp.ne.s32.totalorder %s128, %s131
      %p137 = scmp.eq.s32.totalorder %s14, 0
      %p138 = por %p136, %p137
      %p139 = scmp.ne.s32.totalorder %s128, %s131
      %p140 = scmp.eq.s32.totalorder %s19, 1
      %p141 = por %p139, %p140
      %p142 = scmp.ne.s32.totalorder %s131, %s132
      %p143 = scmp.eq.s32.totalorder %s19, 0
      %p144 = por %p142, %p143
      %p145 = scmp.ne.s32.totalorder %s131, %s132
      %p146 = scmp.eq.s32.totalorder %s20, 1
      %p147 = por %p145, %p146
      %p149 = scmp.ne.s32.totalorder %s132, %s148
      %p150 = scmp.eq.s32.totalorder %s20, 0
      %p151 = por %p149, %p150
      %s153 = sadd.s32 %s152, 1
      %p156 = scmp.eq.s32.totalorder %s14, 1
      %p157 = scmp.ne.s32.totalorder %s152, %s154
      %p158 = scmp.eq.s32.totalorder %s14, 0
      %p159 = por %p157, %p158
      %p160 = scmp.ne.s32.totalorder %s152, %s154
      %p161 = scmp.eq.s32.totalorder %s19, 1
      %p162 = por %p160, %p161
      %p163 = scmp.ne.s32.totalorder %s154, %s155
      %p164 = scmp.eq.s32.totalorder %s19, 0
      %p165 = por %p163, %p164
      %p166 = scmp.ne.s32.totalorder %s154, %s155
      %p167 = scmp.eq.s32.totalorder %s20, 1
      %p168 = por %p166, %p167
      %p170 = scmp.ne.s32.totalorder %s155, %s169
      %p171 = scmp.eq.s32.totalorder %s20, 0
      %p172 = por %p170, %p171
      %s174 = sadd.s32 %s173, 1
      %p177 = scmp.eq.s32.totalorder %s14, 1
      %p178 = scmp.ne.s32.totalorder %s173, %s175
      %p179 = scmp.eq.s32.totalorder %s14, 0
      %p180 = por %p178, %p179
      %p181 = scmp.ne.s32.totalorder %s173, %s175
      %p182 = scmp.eq.s32.totalorder %s19, 1
      %p183 = por %p181, %p182
      %p184 = scmp.ne.s32.totalorder %s175, %s176
      %p185 = scmp.eq.s32.totalorder %s19, 0
      %p186 = por %p184, %p185
      %p187 = scmp.ne.s32.totalorder %s175, %s176
      %p188 = scmp.eq.s32.totalorder %s20, 1
      %p189 = por %p187, %p188
      %p191 = scmp.ne.s32.totalorder %s176, %s190
      %p192 = scmp.eq.s32.totalorder %s20, 0
      %p193 = por %p191, %p192
      %s194 = ssub.s32 %s14, %s21
      %p195 = scmp.eq.s32.totalorder %s194, 0
      %s197 = sadd.s32 %s196, 1
      %s198 = scalar_select %p195, %s196, %s197
      %p201 = pneg %p195
      %p202 = scmp.eq.s32.totalorder %s14, 1
      %p203 = por %p201, %p202
      %p204 = scmp.ne.s32.totalorder %s196, %s199
      %p205 = scmp.eq.s32.totalorder %s14, 0
      %p206 = por %p204, %p205
      %p207 = scmp.ne.s32.totalorder %s196, %s199
      %p208 = scmp.eq.s32.totalorder %s19, 1
      %p209 = por %p207, %p208
      %p210 = scmp.ne.s32.totalorder %s199, %s200
      %p211 = scmp.eq.s32.totalorder %s19, 0
      %p212 = por %p210, %p211
      %p213 = scmp.ne.s32.totalorder %s199, %s200
      %p214 = scmp.eq.s32.totalorder %s20, 1
      %p215 = por %p213, %p214
      %p217 = scmp.ne.s32.totalorder %s200, %s216
      %p218 = scmp.eq.s32.totalorder %s20, 0
      %p219 = por %p217, %p218
      %p220 = scmp.le.s32.totalorder 1, %s14
      %p221 = scmp.lt.s32.totalorder %s14, 3
      %p222 = pnand %p220, %p221
      %p223 = pneg %p222
      // Predicated region
      $region9: #{transformer_forward.39} parent=5 // pred_check
        _
      $region10: #{transformer_forward.39} parent=5 // pred_check_branch
        %225 = sbr.rel (%p222) target = $region12
      $region11: #{transformer_forward.39} parent=5 // pred_region
        %s226 = ssub.s32 %s14, 1
        // Predicated region
        $region13: #{transformer_forward.39} parent=11 // pred_check
          %p227 = pneg %p165
        $region14: #{transformer_forward.39} parent=11 // pred_check_branch
          %229 = sbr.rel (%p227) target = $region16
        $region15: #{transformer_forward.39} parent=11 // pred_region
          _
        $region16: #{transformer_forward.39} parent=11 // pred_fallthru
          _
        // Predicated region
        $region17: #{transformer_forward.39} parent=11 // pred_check
          %p230 = pneg %p186
        $region18: #{transformer_forward.39} parent=11 // pred_check_branch
          %232 = sbr.rel (%p230) target = $region20
        $region19: #{transformer_forward.39} parent=11 // pred_region
          %234 = vsyncadd [#allocation3], 0
          %s236 = sshll.u32 %s6, 4
          %s237 = int_to_ptr.hbm [resolvable:$true] %s236
          %s238 = sshll.u32 [#allocation2], 4
          %s239 = int_to_ptr.vmem [resolvable:$true] %s238
          %241 = dma.hbm_to_vmem [thread:$0]  %s237, 16, %s239, [#allocation3]
        $region20: #{transformer_forward.39} parent=11 // pred_fallthru
          _
      $region12: #{transformer_forward.39} parent=5 // pred_fallthru
        _
      %p242 = scmp.lt.s32.totalorder %s14, 2
      // Predicated region
      $region21: #{transformer_forward.39} parent=5 // pred_check
        %p243 = pneg %p242
      $region22: #{transformer_forward.39} parent=5 // pred_check_branch
        %245 = sbr.rel (%p243) target = $region24
      $region23: #{transformer_forward.39} parent=5 // pred_region
        // Predicated region
        $region25: #{transformer_forward.39} parent=23 // pred_check
          %p246 = pneg %p34
        $region26: #{transformer_forward.39} parent=23 // pred_check_branch
          %248 = sbr.rel (%p246) target = $region28
        $region27: #{transformer_forward.39} parent=23 // pred_region
          %p249 = scmp.lt.s32.totalorder %s14, 1
          %s250 = scalar_select %p249, %s14, 1
          %s251 = smul.addr %s250, 4
          %s252 = scalar_lea.vmem %s0, %s251
        $region28: #{transformer_forward.39} parent=23 // pred_fallthru
          _
        // Predicated region
        $region29: #{transformer_forward.39} parent=23 // pred_check
          %p253 = pneg %p60
        $region30: #{transformer_forward.39} parent=23 // pred_check_branch
          %255 = sbr.rel (%p253) target = $region32
        $region31: #{transformer_forward.39} parent=23 // pred_region
          %p256 = scmp.lt.s32.totalorder %s14, 1
          %s257 = scalar_select %p256, %s14, 1
          %s258 = smul.addr %s257, 2
          %s259 = smul.addr %s258, 4
          %s260 = scalar_lea.vmem %s1, %s259
        $region32: #{transformer_forward.39} parent=23 // pred_fallthru
          _
        // Predicated region
        $region33: #{transformer_forward.39} parent=23 // pred_check
          %p261 = pneg %p86
        $region34: #{transformer_forward.39} parent=23 // pred_check_branch
          %263 = sbr.rel (%p261) target = $region36
        $region35: #{transformer_forward.39} parent=23 // pred_region
          %p264 = scmp.lt.s32.totalorder %s14, 1
          %s265 = scalar_select %p264, %s14, 1
          %s266 = smul.addr %s265, 2
          %s267 = smul.addr %s266, 4
          %s268 = scalar_lea.vmem %s2, %s267
        $region36: #{transformer_forward.39} parent=23 // pred_fallthru
          _
        // Predicated region
        $region37: #{transformer_forward.39} parent=23 // pred_check
          %p269 = pneg %p112
        $region38: #{transformer_forward.39} parent=23 // pred_check_branch
          %271 = sbr.rel (%p269) target = $region40
        $region39: #{transformer_forward.39} parent=23 // pred_region
          %p272 = scmp.lt.s32.totalorder %s14, 1
          %s273 = scalar_select %p272, %s14, 1
          %s274 = scalar_lea.vmem %s3, %s273
        $region40: #{transformer_forward.39} parent=23 // pred_fallthru
          _
        // Predicated region
        $region41: #{transformer_forward.39} parent=23 // pred_check
          %p275 = pneg %p138
        $region42: #{transformer_forward.39} parent=23 // pred_check_branch
          %277 = sbr.rel (%p275) target = $region44
        $region43: #{transformer_forward.39} parent=23 // pred_region
          %p278 = scmp.lt.s32.totalorder %s14, 1
          %s279 = scalar_select %p278, %s14, 1
          %s280 = smul.addr %s279, 8
          %s281 = scalar_lea.vmem %s4, %s280
        $region44: #{transformer_forward.39} parent=23 // pred_fallthru
          _
      $region24: #{transformer_forward.39} parent=5 // pred_fallthru
        _
      %p282 = scmp.le.s32.totalorder 1, %s14
      %p283 = scmp.lt.s32.totalorder %s14, 3
      %p284 = pnand %p282, %p283
      %p285 = pneg %p284
      // Predicated region
      $region45: #{transformer_forward.39} parent=5 // pred_check
        _
      $region46: #{transformer_forward.39} parent=5 // pred_check_branch
        %287 = sbr.rel (%p284) target = $region48
      $region47: #{transformer_forward.39} parent=5 // pred_region
        %s288 = ssub.s32 %s14, 1
        // Predicated region
        $region49: #{transformer_forward.39} parent=47 // pred_check
          %p289 = pneg %p186
        $region50: #{transformer_forward.39} parent=47 // pred_check_branch
          %291 = sbr.rel (%p289) target = $region52
        $region51: #{transformer_forward.39} parent=47 // pred_region
          %293 = dma.done [#allocation3], 16
        $region52: #{transformer_forward.39} parent=47 // pred_fallthru
          _
        %p294 = scmp.lt.s32.totalorder %s19, 1
        %s295 = scalar_select %p294, %s19, 1
        %s296 = smul.addr %s295, 4
        %s297 = scalar_lea.vmem %s0, %s296
        %p298 = pneg %p40
        %p299 = pneg %p37
        %p300 = scmp.lt.s32.totalorder %s19, 1
        %s301 = scalar_select %p300, %s19, 1
        %s302 = smul.addr %s301, 2
        %s303 = smul.addr %s302, 4
        %s304 = scalar_lea.vmem %s1, %s303
        %p305 = pneg %p66
        %p306 = pneg %p63
        %p307 = scmp.lt.s32.totalorder %s19, 1
        %s308 = scalar_select %p307, %s19, 1
        %s309 = smul.addr %s308, 2
        %s310 = smul.addr %s309, 4
        %s311 = scalar_lea.vmem %s2, %s310
        %p312 = pneg %p92
        %p313 = pneg %p89
        %p314 = scmp.lt.s32.totalorder %s19, 1
        %s315 = scalar_select %p314, %s19, 1
        %s316 = scalar_lea.vmem %s3, %s315
        %p317 = pneg %p118
        %p318 = pneg %p115
        %p319 = scmp.lt.s32.totalorder %s19, 1
        %s320 = scalar_select %p319, %s19, 1
        %s321 = smul.addr %s320, 8
        %s322 = scalar_lea.vmem %s4, %s321
        %p323 = pneg %p144
        %p324 = pneg %p141
        %p325 = pneg %p165
        %p326 = pneg %p162
        %p327 = pneg %p186
        %p328 = pneg %p183
        %p329 = pneg %p212
        %p330 = pneg %p209
        %p331 = scmp.lt.s32.totalorder %s19, 1
        %s332 = scalar_select %p331, %s19, 1
        %s333 = smul.addr %s332, 8
        %s334 = scalar_lea.vmem %s7, %s333
        %p335 = scmp.lt.s32.totalorder %s19, 1
        %s336 = scalar_select %p335, %s19, 1
        %s337 = smul.addr %s336, 4
        %s338 = scalar_lea.vmem %s0, %s337
        %p339 = scmp.lt.s32.totalorder %s19, 1
        %s340 = scalar_select %p339, %s19, 1
        %s341 = smul.addr %s340, 2
        %s342 = smul.addr %s341, 4
        %s343 = scalar_lea.vmem %s1, %s342
        %p344 = scmp.lt.s32.totalorder %s19, 1
        %s345 = scalar_select %p344, %s19, 1
        %s346 = smul.addr %s345, 2
        %s347 = smul.addr %s346, 4
        %s348 = scalar_lea.vmem %s2, %s347
        %p349 = scmp.lt.s32.totalorder %s19, 1
        %s350 = scalar_select %p349, %s19, 1
        %s351 = scalar_lea.vmem %s3, %s350
        %p352 = scmp.lt.s32.totalorder %s19, 1
        %s353 = scalar_select %p352, %s19, 1
        %s354 = smul.addr %s353, 8
        %s355 = scalar_lea.vmem %s4, %s354
        %p356 = scmp.lt.s32.totalorder %s19, 1
        %s357 = scalar_select %p356, %s19, 1
        %s358 = smul.addr %s357, 8
        %s359 = scalar_lea.vmem %s7, %s358
        %v361 = vld [vmem:[%s351] sm:$0x1]
        %v362 = vld [vmem:[%s355] sm:$0xff]
        %v363 = vld [vmem:[#allocation2] sm:$0x1]
        %v364 = vld [vmem:[%s338] sm:$0xf]
        %v365 = vld [vmem:[%s343] sm:$0xf]
        %v366 = vld [vmem:[%s343 + $0x4] sm:$0xf]
        %v367 = vld [vmem:[%s348] sm:$0xf]
        %v368 = vld [vmem:[%s348 + $0x4] sm:$0xf]
        %v370 = vperm.slane %v361, 0
        %v374 = vunpack.c.l.b16 %v365
        %v375 = vunpack.c.l.b16 %v366
        %v376 = vpack.c.b16 %v375, %v374
        %vm377 = vcmask 64512
        %v379 = vsel %vm377, %v364, 0
        %v382 = vsel %vm377, %v376, 0
        %384 = vmatpush.bf16.xpose.msra.mxu0 0
        %385 = vmatpush.bf16.xpose.msra.mxu0 0
        %386 = vmatpush.bf16.xpose.msra.mxu0 0
        %387 = vmatpush.bf16.xpose.msra.mxu0 0
        %388 = vmatpush.bf16.xpose.msra.mxu0 0
        %389 = vmatpush.bf16.xpose.msra.mxu0 0
        %390 = vmatpush.bf16.xpose.msra.mxu0 0
        %391 = vmatpush.bf16.xpose.msra.mxu0 %v382
        %392 = vmatmul.bf16.gmra.mxu0 %v379
        %v393 = vpop.f32.mrf.mxu0
        %v394 = vadd.f32 %v370, %v393
        %v395 = vpop.f32.mrf.mxu0
        %396 = vdwg.mxu0
        %vm397 = vcmask 130048
        %v398 = vsel %vm397, %v394, -inf
        %399 = vmax.xlane.f32.xlu0 %v398
        %v400 = vpop.xlane.xlu0 %399
        %v401 = vsub.f32 %v394, %v400
        %v402 = vmul.f32 %v401, 1.442695
        %v403 = vpow.pop %v402
        %v404 = vsel %vm397, %v403, 0.0
        %405 = vadd.xlane.f32.xlu0 %v404
        %v406 = vpop.xlane.xlu0 %405
        %v407 = vrcp.pop %v406
        %v408 = vmul.f32 %v403, %v407
        %v409 = vpack.c.bf16 %v408, %v408
        %v412 = vunpack.c.l.b16 %v367
        %v413 = vunpack.c.l.b16 %v368
        %v414 = vpack.c.b16 %v413, %v412
        %v417 = vsel %vm397, %v409, 0
        %419 = vmatpush.bf16.msra.mxu0 0
        %420 = vmatpush.bf16.msra.mxu0 0
        %421 = vmatpush.bf16.msra.mxu0 0
        %422 = vmatpush.bf16.msra.mxu0 0
        %423 = vmatpush.bf16.msra.mxu0 0
        %424 = vmatpush.bf16.msra.mxu0 0
        %425 = vmatpush.bf16.msra.mxu0 0
        %426 = vmatpush.bf16.msra.mxu0 %v414
        %427 = vmatmul.bf16.gmra.mxu0 %v417
        %v428 = vpop.f32.mrf.mxu0
        %v429 = vadd.f32 0.0, %v428
        %v430 = vpop.f32.mrf.mxu0
        %431 = vdwg.mxu0
        %v432 = vpack.c.bf16 %v429, %v429
        %v433 = vld [vmem:[%s5] sm:$0xf]
        %v435 = vunpack.c.l.b16 %v364
        %v436 = vpack.c.b16 %v435, %v435
        %437 = vrot.lane.b32.xlu0 %v436, 120
        %v438 = vpop.permute.xlu0 %437
        %439 = vrot.lane.b32.xlu0 %v376, 120
        %v440 = vpop.permute.xlu0 %439
        %v442 = vsel %vm377, %v438, 0
        %v445 = vsel %vm377, %v440, 0
        %447 = vmatpush.bf16.xpose.msra.mxu0 0
        %448 = vmatpush.bf16.xpose.msra.mxu0 0
        %449 = vmatpush.bf16.xpose.msra.mxu0 0
        %450 = vmatpush.bf16.xpose.msra.mxu0 0
        %451 = vmatpush.bf16.xpose.msra.mxu0 0
        %452 = vmatpush.bf16.xpose.msra.mxu0 0
        %453 = vmatpush.bf16.xpose.msra.mxu0 0
        %454 = vmatpush.bf16.xpose.msra.mxu0 %v445
        %455 = vmatmul.bf16.gmra.mxu0 %v442
        %v456 = vpop.f32.mrf.mxu0
        %v457 = vadd.f32 %v370, %v456
        %v458 = vpop.f32.mrf.mxu0
        %459 = vdwg.mxu0
        %v460 = vsel %vm397, %v457, -inf
        %461 = vmax.xlane.f32.xlu0 %v460
        %v462 = vpop.xlane.xlu0 %461
        %v463 = vsub.f32 %v457, %v462
        %v464 = vmul.f32 %v463, 1.442695
        %v465 = vpow.pop %v464
        %v466 = vsel %vm397, %v465, 0.0
        %467 = vadd.xlane.f32.xlu0 %v466
        %v468 = vpop.xlane.xlu0 %467
        %v469 = vrcp.pop %v468
        %v470 = vmul.f32 %v465, %v469
        %v471 = vpack.c.bf16 %v470, %v470
        %472 = vrot.lane.b32.xlu0 %v414, 120
        %v473 = vpop.permute.xlu0 %472
        %v476 = vsel %vm397, %v471, 0
        %478 = vmatpush.bf16.msra.mxu0 0
        %479 = vmatpush.bf16.msra.mxu0 0
        %480 = vmatpush.bf16.msra.mxu0 0
        %481 = vmatpush.bf16.msra.mxu0 0
        %482 = vmatpush.bf16.msra.mxu0 0
        %483 = vmatpush.bf16.msra.mxu0 0
        %484 = vmatpush.bf16.msra.mxu0 0
        %485 = vmatpush.bf16.msra.mxu0 %v473
        %486 = vmatmul.bf16.gmra.mxu0 %v476
        %v487 = vpop.f32.mrf.mxu0
        %v488 = vadd.f32 0.0, %v487
        %v489 = vpop.f32.mrf.mxu0
        %490 = vdwg.mxu0
        %v491 = vpack.c.bf16 %v488, %v488
        %s492 = scalar_lea.vmem %s5, 4
        %v493 = vld [vmem:[%s492] sm:$0xf]
        %v495 = vsel %vm377, %v491, 0
        %vm497 = vcmask 1043456
        %v499 = vsel %vm497, %v493, 0
        %501 = vmatpush.bf16.msra.mxu0 0
        %502 = vmatpush.bf16.msra.mxu0 0
        %503 = vmatpush.bf16.msra.mxu0 0
        %504 = vmatpush.bf16.msra.mxu0 0
        %505 = vmatpush.bf16.msra.mxu0 0
        %506 = vmatpush.bf16.msra.mxu0 0
        %507 = vmatpush.bf16.msra.mxu0 0
        %508 = vmatpush.bf16.msra.mxu0 %v499
        %509 = vmatmul.bf16.gmra.mxu0 %v495
        %v510 = vpop.f32.mrf.mxu0
        %v511 = vadd.f32 0.0, %v510
        %v512 = vpop.f32.mrf.mxu0
        %513 = vdwg.mxu0
        %v515 = vsel %vm377, %v432, 0
        %v518 = vsel %vm497, %v433, 0
        %520 = vmatpush.bf16.msra.mxu0 0
        %521 = vmatpush.bf16.msra.mxu0 0
        %522 = vmatpush.bf16.msra.mxu0 0
        %523 = vmatpush.bf16.msra.mxu0 0
        %524 = vmatpush.bf16.msra.mxu0 0
        %525 = vmatpush.bf16.msra.mxu0 0
        %526 = vmatpush.bf16.msra.mxu0 0
        %527 = vmatpush.bf16.msra.mxu0 %v518
        %528 = vmatmul.bf16.gmra.mxu0 %v515
        %v529 = vpop.f32.mrf.mxu0
        %v530 = vadd.f32 %v511, %v529
        %v531 = vpop.f32.mrf.mxu0
        %532 = vdwg.mxu0
        %533 = vrot.lane.b32.xlu0 %v436, 112
        %v534 = vpop.permute.xlu0 %533
        %535 = vrot.lane.b32.xlu0 %v376, 112
        %v536 = vpop.permute.xlu0 %535
        %v538 = vsel %vm377, %v534, 0
        %v541 = vsel %vm377, %v536, 0
        %543 = vmatpush.bf16.xpose.msra.mxu0 0
        %544 = vmatpush.bf16.xpose.msra.mxu0 0
        %545 = vmatpush.bf16.xpose.msra.mxu0 0
        %546 = vmatpush.bf16.xpose.msra.mxu0 0
        %547 = vmatpush.bf16.xpose.msra.mxu0 0
        %548 = vmatpush.bf16.xpose.msra.mxu0 0
        %549 = vmatpush.bf16.xpose.msra.mxu0 0
        %550 = vmatpush.bf16.xpose.msra.mxu0 %v541
        %551 = vmatmul.bf16.gmra.mxu0 %v538
        %v552 = vpop.f32.mrf.mxu0
        %v553 = vadd.f32 %v370, %v552
        %v554 = vpop.f32.mrf.mxu0
        %555 = vdwg.mxu0
        %v556 = vsel %vm397, %v553, -inf
        %557 = vmax.xlane.f32.xlu0 %v556
        %v558 = vpop.xlane.xlu0 %557
        %v559 = vsub.f32 %v553, %v558
        %v560 = vmul.f32 %v559, 1.442695
        %v561 = vpow.pop %v560
        %v562 = vsel %vm397, %v561, 0.0
        %563 = vadd.xlane.f32.xlu0 %v562
        %v564 = vpop.xlane.xlu0 %563
        %v565 = vrcp.pop %v564
        %v566 = vmul.f32 %v561, %v565
        %v567 = vpack.c.bf16 %v566, %v566
        %568 = vrot.lane.b32.xlu0 %v414, 112
        %v569 = vpop.permute.xlu0 %568
        %v572 = vsel %vm397, %v567, 0
        %574 = vmatpush.bf16.msra.mxu0 0
        %575 = vmatpush.bf16.msra.mxu0 0
        %576 = vmatpush.bf16.msra.mxu0 0
        %577 = vmatpush.bf16.msra.mxu0 0
        %578 = vmatpush.bf16.msra.mxu0 0
        %579 = vmatpush.bf16.msra.mxu0 0
        %580 = vmatpush.bf16.msra.mxu0 0
        %581 = vmatpush.bf16.msra.mxu0 %v569
        %582 = vmatmul.bf16.gmra.mxu0 %v572
        %v583 = vpop.f32.mrf.mxu0
        %v584 = vadd.f32 0.0, %v583
        %v585 = vpop.f32.mrf.mxu0
        %586 = vdwg.mxu0
        %v587 = vpack.c.bf16 %v584, %v584
        %s588 = scalar_lea.vmem %s5, 8
        %v589 = vld [vmem:[%s588] sm:$0xf]
        %v591 = vsel %vm377, %v587, 0
        %v594 = vsel %vm497, %v589, 0
        %596 = vmatpush.bf16.msra.mxu0 0
        %597 = vmatpush.bf16.msra.mxu0 0
        %598 = vmatpush.bf16.msra.mxu0 0
        %599 = vmatpush.bf16.msra.mxu0 0
        %600 = vmatpush.bf16.msra.mxu0 0
        %601 = vmatpush.bf16.msra.mxu0 0
        %602 = vmatpush.bf16.msra.mxu0 0
        %603 = vmatpush.bf16.msra.mxu0 %v594
        %604 = vmatmul.bf16.gmra.mxu0 %v591
        %v605 = vpop.f32.mrf.mxu0
        %v606 = vadd.f32 0.0, %v605
        %v607 = vpop.f32.mrf.mxu0
        %608 = vdwg.mxu0
        %v609 = vadd.f32 %v530, %v606
        %610 = vrot.lane.b32.xlu0 %v436, 104
        %v611 = vpop.permute.xlu0 %610
        %612 = vrot.lane.b32.xlu0 %v376, 104
        %v613 = vpop.permute.xlu0 %612
        %v615 = vsel %vm377, %v611, 0
        %v618 = vsel %vm377, %v613, 0
        %620 = vmatpush.bf16.xpose.msra.mxu0 0
        %621 = vmatpush.bf16.xpose.msra.mxu0 0
        %622 = vmatpush.bf16.xpose.msra.mxu0 0
        %623 = vmatpush.bf16.xpose.msra.mxu0 0
        %624 = vmatpush.bf16.xpose.msra.mxu0 0
        %625 = vmatpush.bf16.xpose.msra.mxu0 0
        %626 = vmatpush.bf16.xpose.msra.mxu0 0
        %627 = vmatpush.bf16.xpose.msra.mxu0 %v618
        %628 = vmatmul.bf16.gmra.mxu0 %v615
        %v629 = vpop.f32.mrf.mxu0
        %v630 = vadd.f32 %v370, %v629
        %v631 = vpop.f32.mrf.mxu0
        %632 = vdwg.mxu0
        %v633 = vsel %vm397, %v630, -inf
        %634 = vmax.xlane.f32.xlu0 %v633
        %v635 = vpop.xlane.xlu0 %634
        %v636 = vsub.f32 %v630, %v635
        %v637 = vmul.f32 %v636, 1.442695
        %v638 = vpow.pop %v637
        %v639 = vsel %vm397, %v638, 0.0
        %640 = vadd.xlane.f32.xlu0 %v639
        %v641 = vpop.xlane.xlu0 %640
        %v642 = vrcp.pop %v641
        %v643 = vmul.f32 %v638, %v642
        %v644 = vpack.c.bf16 %v643, %v643
        %645 = vrot.lane.b32.xlu0 %v414, 104
        %v646 = vpop.permute.xlu0 %645
        %v649 = vsel %vm397, %v644, 0
        %651 = vmatpush.bf16.msra.mxu0 0
        %652 = vmatpush.bf16.msra.mxu0 0
        %653 = vmatpush.bf16.msra.mxu0 0
        %654 = vmatpush.bf16.msra.mxu0 0
        %655 = vmatpush.bf16.msra.mxu0 0
        %656 = vmatpush.bf16.msra.mxu0 0
        %657 = vmatpush.bf16.msra.mxu0 0
        %658 = vmatpush.bf16.msra.mxu0 %v646
        %659 = vmatmul.bf16.gmra.mxu0 %v649
        %v660 = vpop.f32.mrf.mxu0
        %v661 = vadd.f32 0.0, %v660
        %v662 = vpop.f32.mrf.mxu0
        %663 = vdwg.mxu0
        %v664 = vpack.c.bf16 %v661, %v661
        %s665 = scalar_lea.vmem %s5, 12
        %v666 = vld [vmem:[%s665] sm:$0xf]
        %v668 = vsel %vm377, %v664, 0
        %v671 = vsel %vm497, %v666, 0
        %673 = vmatpush.bf16.msra.mxu0 0
        %674 = vmatpush.bf16.msra.mxu0 0
        %675 = vmatpush.bf16.msra.mxu0 0
        %676 = vmatpush.bf16.msra.mxu0 0
        %677 = vmatpush.bf16.msra.mxu0 0
        %678 = vmatpush.bf16.msra.mxu0 0
        %679 = vmatpush.bf16.msra.mxu0 0
        %680 = vmatpush.bf16.msra.mxu0 %v671
        %681 = vmatmul.bf16.gmra.mxu0 %v668
        %v682 = vpop.f32.mrf.mxu0
        %v683 = vadd.f32 0.0, %v682
        %v684 = vpop.f32.mrf.mxu0
        %685 = vdwg.mxu0
        %v686 = vadd.f32 %v609, %v683
        %v687 = vadd.f32 %v362, %v686
        %v689 = vperm.slane %v363, 0
        %v691 = vadd.f32 %v687, %v689
        %vm692 = vcmask 261120
        %693 = vst.msk [vmem:[%s359] sm:$0xff] %vm692, %v691
        %p694 = scmp.lt.s32.totalorder %s19, 1
        %s695 = scalar_select %p694, %s19, 1
        %s696 = smul.addr %s695, 8
        %s697 = scalar_lea.vmem %s7, %s696
        // Predicated region
        $region53: #{transformer_forward.39} parent=47 // pred_check
          %p698 = pneg %p209
        $region54: #{transformer_forward.39} parent=47 // pred_check_branch
          %700 = sbr.rel (%p698) target = $region56
        $region55: #{transformer_forward.39} parent=47 // pred_region
          _
        $region56: #{transformer_forward.39} parent=47 // pred_fallthru
          _
      $region48: #{transformer_forward.39} parent=5 // pred_fallthru
        _
      %p701 = scmp.le.s32.totalorder 2, %s14
      // Predicated region
      $region57: #{transformer_forward.39} parent=5 // pred_check
        %p702 = pneg %p701
      $region58: #{transformer_forward.39} parent=5 // pred_check_branch
        %704 = sbr.rel (%p702) target = $region60
      $region59: #{transformer_forward.39} parent=5 // pred_region
        %s705 = ssub.s32 %s14, 2
        // Predicated region
        $region61: #{transformer_forward.39} parent=59 // pred_check
          %p706 = pneg %p215
        $region62: #{transformer_forward.39} parent=59 // pred_check_branch
          %708 = sbr.rel (%p706) target = $region64
        $region63: #{transformer_forward.39} parent=59 // pred_region
          %p709 = scmp.lt.s32.totalorder %s20, 1
          %s710 = scalar_select %p709, %s20, 1
          %s711 = smul.addr %s710, 8
          %s712 = scalar_lea.vmem %s7, %s711
        $region64: #{transformer_forward.39} parent=59 // pred_fallthru
          _
      $region60: #{transformer_forward.39} parent=5 // pred_fallthru
        _
    $region6: #{transformer_forward.39} parent=1 // loop_footer
      %s18 = sadd.s32 1, %s14
    $region7: #{transformer_forward.39} parent=1 // loop_footer_branch
      %13 = sbr.rel target = $region3
    $region8: #{transformer_forward.39} parent=1 // loop_exit
      _
    %713 = vsyncpa [#allocation3], 1
    %s714 = scalar_lea.sflag [#allocation3], 1
    %715 = vsyncpa %s714, 1

</llo_original>
